<compile_context>
chip_gen: v7x
topology: tpu7x:2x2x1
jax: 0.10.0
libtpu: 0.0.40
codegen_flags: <defaults>
</compile_context>

<pallas_src>
import functools

import jax
import jax.numpy as jnp
from jax import lax
from jax.experimental import pallas as pl
from jax.experimental.pallas import tpu as pltpu


def e2f_kernel(
    x_ref,
    w00, b00, w01, b01,
    w10, b10, w11, b11,
    w20, b20, w21, b21,
    w30, b30,
    w31t, b31c, w4t, b4c, w5t, b5c, w6t, b6c, w7t, b7c,
    alpha_ref,
    out_ref,
):
    f32 = jnp.float32

    def relu(v):
        return jnp.maximum(v, 0.0)

    def lin(h, w_ref, b_ref):
        # h: (B, in) f32 -> cast to weight dtype (bf16 fast path) for the MXU,
        # accumulate in f32, add f32 bias (1, out).
        return jnp.dot(h.astype(w_ref.dtype), w_ref[...],
                       preferred_element_type=f32) + b_ref[...]

    def lin_nt(w_ref, h_rows, b_ref):
        # w: (out, in), h_rows: (B, in) -> (out, B)   (q @ k.T style NT matmul)
        return lax.dot_general(
            w_ref[...], h_rows, (((1,), (1,)), ((), ())),
            preferred_element_type=f32) + b_ref[...]

    def lin_nn(w_ref, h_cols, b_ref):
        # w: (out, in), h_cols: (in, B) -> (out, B)
        return jnp.dot(w_ref[...], h_cols,
                       preferred_element_type=f32) + b_ref[...]

    # ---- block 0: 3 residual layers at width 512 (shared fc00), then 512->256
    h = x_ref[...].astype(f32)
    s = h
    t = relu(lin(h, w00, b00) + s); s = s + t
    t = relu(lin(t, w00, b00) + s); s = s + t
    t = relu(lin(t, w00, b00) + s)
    h = relu(lin(t, w01, b01))

    # ---- block 1: 4 residual layers at width 256 (shared fc10), then 256->128
    s = h
    t = relu(lin(h, w10, b10) + s); s = s + t
    t = relu(lin(t, w10, b10) + s); s = s + t
    t = relu(lin(t, w10, b10) + s); s = s + t
    t = relu(lin(t, w10, b10) + s)
    h = relu(lin(t, w11, b11))

    # ---- block 2: 4 residual layers at width 128 (shared fc20), then 128->64
    s = h
    t = relu(lin(h, w20, b20) + s); s = s + t
    t = relu(lin(t, w20, b20) + s); s = s + t
    t = relu(lin(t, w20, b20) + s); s = s + t
    t = relu(lin(t, w20, b20) + s)
    h = relu(lin(t, w21, b21))

    # ---- block 3: 4 residual layers at width 64 (shared fc30) ----
    s = h
    t = relu(lin(h, w30, b30) + s); s = s + t
    t = relu(lin(t, w30, b30) + s); s = s + t
    t = relu(lin(t, w30, b30) + s); s = s + t
    t = relu(lin(t, w30, b30) + s)                      # (B, 64) f32

    # ---- head in transposed (features, batch) layout (f32) ----
    g = relu(lin_nt(w31t, t, b31c))                     # (32, B)   64 -> 32
    g = relu(lin_nn(w4t, g, b4c))                       # (8, B)
    g = relu(lin_nn(w5t, g, b5c))                       # (4, B)
    z = lin_nn(w6t, g, b6c)                             # (2, B)
    alpha = alpha_ref[0]                                # PReLU scalar from SMEM
    p = jnp.where(z >= 0.0, z, alpha * z)
    out_ref[...] = lin_nn(w7t, p, b7c)                  # (1, B) lane-dense store


_BLOCK_LAYERS = ["fc00", "fc01", "fc10", "fc11", "fc20", "fc21", "fc30"]
_HEAD_LAYERS = ["fc31", "fc4", "fc5", "fc6", "fc7"]


def init_params(key):
    """PyTorch-style init: W, b ~ U(-1/sqrt(fan_in), 1/sqrt(fan_in)).

    Weights are stored in math layout (fan_in, fan_out); biases as (fan_out,).
    """
    dims = [
        ("fc00", 512, 512), ("fc01", 512, 256),
        ("fc10", 256, 256), ("fc11", 256, 128),
        ("fc20", 128, 128), ("fc21", 128, 64),
        ("fc30", 64, 64), ("fc31", 64, 32),
        ("fc4", 32, 8), ("fc5", 8, 4), ("fc6", 4, 2), ("fc7", 2, 1),
    ]
    params = {}
    for name, fan_in, fan_out in dims:
        key, kw, kb = jax.random.split(key, 3)
        bound = 1.0 / jnp.sqrt(fan_in)
        params[name + "_w"] = jax.random.uniform(
            kw, (fan_in, fan_out), jnp.float32, -bound, bound)
        params[name + "_b"] = jax.random.uniform(
            kb, (fan_out,), jnp.float32, -bound, bound)
    params["prelu_alpha"] = jnp.full((1,), 0.25, jnp.float32)  # nn.PReLU default
    return params


@functools.partial(jax.jit, static_argnames=("block_rows", "compute_dtype"))
def e2f_forward(x, params, block_rows=256, compute_dtype=jnp.bfloat16):
    """Runs the whole E2F forward in one Pallas kernel, tiled over the batch."""
    assert block_rows % 128 == 0, "block_rows must be a multiple of 128"
    f32 = jnp.float32

    h = x.reshape(-1, 512).astype(f32)
    n = h.shape[0]
    n_pad = ((n + block_rows - 1) // block_rows) * block_rows
    if n_pad != n:
        h = jnp.pad(h, ((0, n_pad - n), (0, 0)))
    num_blocks = n_pad // block_rows

    # activations + big residual-block weights in compute_dtype for the MXU
    h = h.astype(compute_dtype)

    args = []
    for nm in _BLOCK_LAYERS:
        args.append(params[nm + "_w"].astype(compute_dtype))        # (in, out)
        args.append(params[nm + "_b"].reshape(1, -1).astype(f32))   # (1, out)
    for nm in _HEAD_LAYERS:
        args.append(params[nm + "_w"].T.astype(f32))                # (out, in)
        args.append(params[nm + "_b"].reshape(-1, 1).astype(f32))   # (out, 1)
    alpha = params["prelu_alpha"].reshape(1).astype(f32)

    def full_block(a):
        # whole-array block, same (constant) block index at every grid step
        return pl.BlockSpec(a.shape, lambda i: (0, 0))

    in_specs = [pl.BlockSpec((block_rows, 512), lambda i: (i, 0))]
    in_specs += [full_block(a) for a in args]
    in_specs += [pl.BlockSpec(memory_space=pltpu.MemorySpace.SMEM)]  # alpha

    out = pl.pallas_call(
        e2f_kernel,
        out_shape=jax.ShapeDtypeStruct((1, n_pad), f32),
        grid_spec=pltpu.PrefetchScalarGridSpec(
            num_scalar_prefetch=0,
            grid=(num_blocks,),
            in_specs=in_specs,
            # lane-dense output row: each grid step writes a (1, block_rows)
            # column chunk of the single output row.
            out_specs=pl.BlockSpec((1, block_rows), lambda i: (0, i)),
        ),
        compiler_params=pltpu.CompilerParams(
            dimension_semantics=("parallel",),
        ),
    )(h, *args, alpha)

    return out.reshape(-1)[:n].reshape(n, 1)


def e2f_reference(x, params, compute_dtype=jnp.float32):
    """Pure-JAX reference mirroring the PyTorch forward.

    `compute_dtype` mirrors the kernel's matmul-input dtype for the residual
    blocks (the head always runs in f32, like the kernel).
    """
    f32 = jnp.float32

    def lin(h, nm):  # residual-block layers (optionally bf16 matmul inputs)
        w = params[nm + "_w"].astype(compute_dtype)
        return (jnp.dot(h.astype(compute_dtype), w, preferred_element_type=f32)
                + params[nm + "_b"].astype(f32))

    def lin32(h, nm):  # head layers, f32
        return (jnp.dot(h, params[nm + "_w"].astype(f32),
                        preferred_element_type=f32)
                + params[nm + "_b"].astype(f32))

    r = jax.nn.relu
    h0 = x.reshape(-1, 512).astype(compute_dtype).astype(f32)
    h1 = r(lin(h0, "fc00") + h0)
    h2 = r(lin(h1, "fc00") + h1 + h0)
    h3 = r(lin(h2, "fc00") + h2 + h1 + h0)
    h0 = r(lin(h3, "fc01"))
    h1 = r(lin(h0, "fc10") + h0)
    h2 = r(lin(h1, "fc10") + h1 + h0)
    h3 = r(lin(h2, "fc10") + h2 + h1 + h0)
    h4 = r(lin(h3, "fc10") + h3 + h2 + h1 + h0)
    h0 = r(lin(h4, "fc11"))
    h1 = r(lin(h0, "fc20") + h0)
    h2 = r(lin(h1, "fc20") + h1 + h0)
    h3 = r(lin(h2, "fc20") + h2 + h1 + h0)
    h4 = r(lin(h3, "fc20") + h3 + h2 + h1 + h0)
    h0 = r(lin(h4, "fc21"))
    h1 = r(lin(h0, "fc30") + h0)
    h2 = r(lin(h1, "fc30") + h1 + h0)
    h3 = r(lin(h2, "fc30") + h2 + h1 + h0)
    h4 = r(lin(h3, "fc30") + h3 + h2 + h1 + h0)
    h0 = r(lin32(h4, "fc31"))
    h0 = r(lin32(h0, "fc4"))
    h0 = r(lin32(h0, "fc5"))
    z = lin32(h0, "fc6")
    a = params["prelu_alpha"][0]
    h2 = jnp.where(z >= 0.0, z, a * z)
    return lin32(h2, "fc7")


if __name__ == "__main__":
    key = jax.random.PRNGKey(0)
    key, kx = jax.random.split(key)
    params = init_params(key)

    # small batch of 16 rows of 512 features (x.view(-1, 512))
    x = jax.random.normal(kx, (16, 512), jnp.float32)

    # 1) exact-semantics path: f32 matmuls, compare tightly against f32 reference
    out_f32 = e2f_forward(x, params, compute_dtype=jnp.float32)
    jax.block_until_ready(out_f32)
    ref_f32 = e2f_reference(x, params, jnp.float32)
    assert out_f32.shape == (16, 1)
    assert jnp.allclose(out_f32, ref_f32, atol=1e-3, rtol=1e-3), (
        f"f32 max err {jnp.max(jnp.abs(out_f32 - ref_f32))}")

    # 2) default fast path: bf16 matmul inputs + f32 accumulation, compared
    #    against a reference that mirrors the same bf16 casting.
    out_bf16 = e2f_forward(x, params)
    jax.block_until_ready(out_bf16)
    ref_bf16 = e2f_reference(x, params, jnp.bfloat16)
    assert out_bf16.shape == (16, 1)
    assert jnp.allclose(out_bf16, ref_bf16, atol=5e-2, rtol=5e-2), (
        f"bf16 max err {jnp.max(jnp.abs(out_bf16 - ref_bf16))}")

    print("KERNEL_OK")
</pallas_src>

<mosaic_0001>
module attributes {stable_mosaic.version = 11 : i64} {
  func.func @e2f_kernel(%arg0: i32, %arg1: memref<256x512xf32, #tpu.memory_space<vmem>>, %arg2: memref<512x512xf32, #tpu.memory_space<vmem>>, %arg3: memref<1x512xf32, #tpu.memory_space<vmem>>, %arg4: memref<512x256xf32, #tpu.memory_space<vmem>>, %arg5: memref<1x256xf32, #tpu.memory_space<vmem>>, %arg6: memref<256x256xf32, #tpu.memory_space<vmem>>, %arg7: memref<1x256xf32, #tpu.memory_space<vmem>>, %arg8: memref<256x128xf32, #tpu.memory_space<vmem>>, %arg9: memref<1x128xf32, #tpu.memory_space<vmem>>, %arg10: memref<128x128xf32, #tpu.memory_space<vmem>>, %arg11: memref<1x128xf32, #tpu.memory_space<vmem>>, %arg12: memref<128x64xf32, #tpu.memory_space<vmem>>, %arg13: memref<1x64xf32, #tpu.memory_space<vmem>>, %arg14: memref<64x64xf32, #tpu.memory_space<vmem>>, %arg15: memref<1x64xf32, #tpu.memory_space<vmem>>, %arg16: memref<32x64xf32, #tpu.memory_space<vmem>>, %arg17: memref<32x1xf32, #tpu.memory_space<vmem>>, %arg18: memref<8x32xf32, #tpu.memory_space<vmem>>, %arg19: memref<8x1xf32, #tpu.memory_space<vmem>>, %arg20: memref<4x8xf32, #tpu.memory_space<vmem>>, %arg21: memref<4x1xf32, #tpu.memory_space<vmem>>, %arg22: memref<2x4xf32, #tpu.memory_space<vmem>>, %arg23: memref<2x1xf32, #tpu.memory_space<vmem>>, %arg24: memref<1x2xf32, #tpu.memory_space<vmem>>, %arg25: memref<1x1xf32, #tpu.memory_space<vmem>>, %arg26: memref<1xf32, #tpu.memory_space<smem>>, %arg27: memref<1x256xf32, #tpu.memory_space<vmem>>) attributes {dimension_semantics = [#tpu.dimension_semantics<parallel>], iteration_bounds = array<i64: 1>, scalar_prefetch = 0 : i64, scratch_operands = 0 : i64, tpu.core_type = #tpu.core_type<tc>, window_params = [{transform_indices = @transform_0, window_bounds = array<i64: 256, 512>}, {pipeline_mode = #tpu.pipeline_mode<synchronous>, transform_indices = @transform_1, window_bounds = array<i64: 512, 512>}, {pipeline_mode = #tpu.pipeline_mode<synchronous>, transform_indices = @transform_2, window_bounds = array<i64: 1, 512>}, {pipeline_mode = #tpu.pipeline_mode<synchronous>, transform_indices = @transform_3, window_bounds = array<i64: 512, 256>}, {pipeline_mode = #tpu.pipeline_mode<synchronous>, transform_indices = @transform_4, window_bounds = array<i64: 1, 256>}, {pipeline_mode = #tpu.pipeline_mode<synchronous>, transform_indices = @transform_5, window_bounds = array<i64: 256, 256>}, {pipeline_mode = #tpu.pipeline_mode<synchronous>, transform_indices = @transform_6, window_bounds = array<i64: 1, 256>}, {pipeline_mode = #tpu.pipeline_mode<synchronous>, transform_indices = @transform_7, window_bounds = array<i64: 256, 128>}, {pipeline_mode = #tpu.pipeline_mode<synchronous>, transform_indices = @transform_8, window_bounds = array<i64: 1, 128>}, {pipeline_mode = #tpu.pipeline_mode<synchronous>, transform_indices = @transform_9, window_bounds = array<i64: 128, 128>}, {pipeline_mode = #tpu.pipeline_mode<synchronous>, transform_indices = @transform_10, window_bounds = array<i64: 1, 128>}, {pipeline_mode = #tpu.pipeline_mode<synchronous>, transform_indices = @transform_11, window_bounds = array<i64: 128, 64>}, {pipeline_mode = #tpu.pipeline_mode<synchronous>, transform_indices = @transform_12, window_bounds = array<i64: 1, 64>}, {pipeline_mode = #tpu.pipeline_mode<synchronous>, transform_indices = @transform_13, window_bounds = array<i64: 64, 64>}, {pipeline_mode = #tpu.pipeline_mode<synchronous>, transform_indices = @transform_14, window_bounds = array<i64: 1, 64>}, {pipeline_mode = #tpu.pipeline_mode<synchronous>, transform_indices = @transform_15, window_bounds = array<i64: 32, 64>}, {pipeline_mode = #tpu.pipeline_mode<synchronous>, transform_indices = @transform_16, window_bounds = array<i64: 32, 1>}, {pipeline_mode = #tpu.pipeline_mode<synchronous>, transform_indices = @transform_17, window_bounds = array<i64: 8, 32>}, {pipeline_mode = #tpu.pipeline_mode<synchronous>, transform_indices = @transform_18, window_bounds = array<i64: 8, 1>}, {pipeline_mode = #tpu.pipeline_mode<synchronous>, transform_indices = @transform_19, window_bounds = array<i64: 4, 8>}, {pipeline_mode = #tpu.pipeline_mode<synchronous>, transform_indices = @transform_20, window_bounds = array<i64: 4, 1>}, {pipeline_mode = #tpu.pipeline_mode<synchronous>, transform_indices = @transform_21, window_bounds = array<i64: 2, 4>}, {pipeline_mode = #tpu.pipeline_mode<synchronous>, transform_indices = @transform_22, window_bounds = array<i64: 2, 1>}, {pipeline_mode = #tpu.pipeline_mode<synchronous>, transform_indices = @transform_23, window_bounds = array<i64: 1, 2>}, {pipeline_mode = #tpu.pipeline_mode<synchronous>, transform_indices = @transform_24, window_bounds = array<i64: 1, 1>}, {transform_indices = @transform_25, window_bounds = array<i64: 1>}, {transform_indices = @transform_26, window_bounds = array<i64: 1, 256>}]} {
    %c0 = arith.constant 0 : index
    %c0_0 = arith.constant 0 : index
    %0 = vector.load %arg1[%c0, %c0_0] : memref<256x512xf32, #tpu.memory_space<vmem>>, vector<256x512xf32>
    %c0_1 = arith.constant 0 : index
    %c0_2 = arith.constant 0 : index
    %1 = vector.load %arg2[%c0_1, %c0_2] : memref<512x512xf32, #tpu.memory_space<vmem>>, vector<512x512xf32>
    %cst = arith.constant dense<0.000000e+00> : vector<256x512xf32>
    %2 = tpu.matmul %0, %1, %cst {dimension_numbers = #tpu.dot_dimension_numbers<[1], [0], [0], [1], [0, 0, 1, 1], [], []>} : vector<256x512xf32>, vector<512x512xf32>, vector<256x512xf32> -> vector<256x512xf32>
    %c0_3 = arith.constant 0 : index
    %c0_4 = arith.constant 0 : index
    %3 = vector.load %arg3[%c0_3, %c0_4] : memref<1x512xf32, #tpu.memory_space<vmem>>, vector<1x512xf32>
    %4 = vector.broadcast %3 : vector<1x512xf32> to vector<256x512xf32>
    %5 = arith.addf %2, %4 : vector<256x512xf32>
    %6 = arith.addf %5, %0 : vector<256x512xf32>
    %cst_5 = arith.constant 0.000000e+00 : f32
    %7 = vector.broadcast %cst_5 : f32 to vector<256x512xf32>
    %8 = arith.maximumf %6, %7 : vector<256x512xf32>
    %9 = arith.addf %0, %8 : vector<256x512xf32>
    %c0_6 = arith.constant 0 : index
    %c0_7 = arith.constant 0 : index
    %10 = vector.load %arg2[%c0_6, %c0_7] : memref<512x512xf32, #tpu.memory_space<vmem>>, vector<512x512xf32>
    %cst_8 = arith.constant dense<0.000000e+00> : vector<256x512xf32>
    %11 = tpu.matmul %8, %10, %cst_8 {dimension_numbers = #tpu.dot_dimension_numbers<[1], [0], [0], [1], [0, 0, 1, 1], [], []>} : vector<256x512xf32>, vector<512x512xf32>, vector<256x512xf32> -> vector<256x512xf32>
    %c0_9 = arith.constant 0 : index
    %c0_10 = arith.constant 0 : index
    %12 = vector.load %arg3[%c0_9, %c0_10] : memref<1x512xf32, #tpu.memory_space<vmem>>, vector<1x512xf32>
    %13 = vector.broadcast %12 : vector<1x512xf32> to vector<256x512xf32>
    %14 = arith.addf %11, %13 : vector<256x512xf32>
    %15 = arith.addf %14, %9 : vector<256x512xf32>
    %cst_11 = arith.constant 0.000000e+00 : f32
    %16 = vector.broadcast %cst_11 : f32 to vector<256x512xf32>
    %17 = arith.maximumf %15, %16 : vector<256x512xf32>
    %18 = arith.addf %9, %17 : vector<256x512xf32>
    %c0_12 = arith.constant 0 : index
    %c0_13 = arith.constant 0 : index
    %19 = vector.load %arg2[%c0_12, %c0_13] : memref<512x512xf32, #tpu.memory_space<vmem>>, vector<512x512xf32>
    %cst_14 = arith.constant dense<0.000000e+00> : vector<256x512xf32>
    %20 = tpu.matmul %17, %19, %cst_14 {dimension_numbers = #tpu.dot_dimension_numbers<[1], [0], [0], [1], [0, 0, 1, 1], [], []>} : vector<256x512xf32>, vector<512x512xf32>, vector<256x512xf32> -> vector<256x512xf32>
    %c0_15 = arith.constant 0 : index
    %c0_16 = arith.constant 0 : index
    %21 = vector.load %arg3[%c0_15, %c0_16] : memref<1x512xf32, #tpu.memory_space<vmem>>, vector<1x512xf32>
    %22 = vector.broadcast %21 : vector<1x512xf32> to vector<256x512xf32>
    %23 = arith.addf %20, %22 : vector<256x512xf32>
    %24 = arith.addf %23, %18 : vector<256x512xf32>
    %cst_17 = arith.constant 0.000000e+00 : f32
    %25 = vector.broadcast %cst_17 : f32 to vector<256x512xf32>
    %26 = arith.maximumf %24, %25 : vector<256x512xf32>
    %c0_18 = arith.constant 0 : index
    %c0_19 = arith.constant 0 : index
    %27 = vector.load %arg4[%c0_18, %c0_19] : memref<512x256xf32, #tpu.memory_space<vmem>>, vector<512x256xf32>
    %cst_20 = arith.constant dense<0.000000e+00> : vector<256x256xf32>
    %28 = tpu.matmul %26, %27, %cst_20 {dimension_numbers = #tpu.dot_dimension_numbers<[1], [0], [0], [1], [0, 0, 1, 1], [], []>} : vector<256x512xf32>, vector<512x256xf32>, vector<256x256xf32> -> vector<256x256xf32>
    %c0_21 = arith.constant 0 : index
    %c0_22 = arith.constant 0 : index
    %29 = vector.load %arg5[%c0_21, %c0_22] : memref<1x256xf32, #tpu.memory_space<vmem>>, vector<1x256xf32>
    %30 = vector.broadcast %29 : vector<1x256xf32> to vector<256x256xf32>
    %31 = arith.addf %28, %30 : vector<256x256xf32>
    %cst_23 = arith.constant 0.000000e+00 : f32
    %32 = vector.broadcast %cst_23 : f32 to vector<256x256xf32>
    %33 = arith.maximumf %31, %32 : vector<256x256xf32>
    %c0_24 = arith.constant 0 : index
    %c0_25 = arith.constant 0 : index
    %34 = vector.load %arg6[%c0_24, %c0_25] : memref<256x256xf32, #tpu.memory_space<vmem>>, vector<256x256xf32>
    %cst_26 = arith.constant dense<0.000000e+00> : vector<256x256xf32>
    %35 = tpu.matmul %33, %34, %cst_26 {dimension_numbers = #tpu.dot_dimension_numbers<[1], [0], [0], [1], [0, 0, 1, 1], [], []>} : vector<256x256xf32>, vector<256x256xf32>, vector<256x256xf32> -> vector<256x256xf32>
    %c0_27 = arith.constant 0 : index
    %c0_28 = arith.constant 0 : index
    %36 = vector.load %arg7[%c0_27, %c0_28] : memref<1x256xf32, #tpu.memory_space<vmem>>, vector<1x256xf32>
    %37 = vector.broadcast %36 : vector<1x256xf32> to vector<256x256xf32>
    %38 = arith.addf %35, %37 : vector<256x256xf32>
    %39 = arith.addf %38, %33 : vector<256x256xf32>
    %cst_29 = arith.constant 0.000000e+00 : f32
    %40 = vector.broadcast %cst_29 : f32 to vector<256x256xf32>
    %41 = arith.maximumf %39, %40 : vector<256x256xf32>
    %42 = arith.addf %33, %41 : vector<256x256xf32>
    %c0_30 = arith.constant 0 : index
    %c0_31 = arith.constant 0 : index
    %43 = vector.load %arg6[%c0_30, %c0_31] : memref<256x256xf32, #tpu.memory_space<vmem>>, vector<256x256xf32>
    %cst_32 = arith.constant dense<0.000000e+00> : vector<256x256xf32>
    %44 = tpu.matmul %41, %43, %cst_32 {dimension_numbers = #tpu.dot_dimension_numbers<[1], [0], [0], [1], [0, 0, 1, 1], [], []>} : vector<256x256xf32>, vector<256x256xf32>, vector<256x256xf32> -> vector<256x256xf32>
    %c0_33 = arith.constant 0 : index
    %c0_34 = arith.constant 0 : index
    %45 = vector.load %arg7[%c0_33, %c0_34] : memref<1x256xf32, #tpu.memory_space<vmem>>, vector<1x256xf32>
    %46 = vector.broadcast %45 : vector<1x256xf32> to vector<256x256xf32>
    %47 = arith.addf %44, %46 : vector<256x256xf32>
    %48 = arith.addf %47, %42 : vector<256x256xf32>
    %cst_35 = arith.constant 0.000000e+00 : f32
    %49 = vector.broadcast %cst_35 : f32 to vector<256x256xf32>
    %50 = arith.maximumf %48, %49 : vector<256x256xf32>
    %51 = arith.addf %42, %50 : vector<256x256xf32>
    %c0_36 = arith.constant 0 : index
    %c0_37 = arith.constant 0 : index
    %52 = vector.load %arg6[%c0_36, %c0_37] : memref<256x256xf32, #tpu.memory_space<vmem>>, vector<256x256xf32>
    %cst_38 = arith.constant dense<0.000000e+00> : vector<256x256xf32>
    %53 = tpu.matmul %50, %52, %cst_38 {dimension_numbers = #tpu.dot_dimension_numbers<[1], [0], [0], [1], [0, 0, 1, 1], [], []>} : vector<256x256xf32>, vector<256x256xf32>, vector<256x256xf32> -> vector<256x256xf32>
    %c0_39 = arith.constant 0 : index
    %c0_40 = arith.constant 0 : index
    %54 = vector.load %arg7[%c0_39, %c0_40] : memref<1x256xf32, #tpu.memory_space<vmem>>, vector<1x256xf32>
    %55 = vector.broadcast %54 : vector<1x256xf32> to vector<256x256xf32>
    %56 = arith.addf %53, %55 : vector<256x256xf32>
    %57 = arith.addf %56, %51 : vector<256x256xf32>
    %cst_41 = arith.constant 0.000000e+00 : f32
    %58 = vector.broadcast %cst_41 : f32 to vector<256x256xf32>
    %59 = arith.maximumf %57, %58 : vector<256x256xf32>
    %60 = arith.addf %51, %59 : vector<256x256xf32>
    %c0_42 = arith.constant 0 : index
    %c0_43 = arith.constant 0 : index
    %61 = vector.load %arg6[%c0_42, %c0_43] : memref<256x256xf32, #tpu.memory_space<vmem>>, vector<256x256xf32>
    %cst_44 = arith.constant dense<0.000000e+00> : vector<256x256xf32>
    %62 = tpu.matmul %59, %61, %cst_44 {dimension_numbers = #tpu.dot_dimension_numbers<[1], [0], [0], [1], [0, 0, 1, 1], [], []>} : vector<256x256xf32>, vector<256x256xf32>, vector<256x256xf32> -> vector<256x256xf32>
    %c0_45 = arith.constant 0 : index
    %c0_46 = arith.constant 0 : index
    %63 = vector.load %arg7[%c0_45, %c0_46] : memref<1x256xf32, #tpu.memory_space<vmem>>, vector<1x256xf32>
    %64 = vector.broadcast %63 : vector<1x256xf32> to vector<256x256xf32>
    %65 = arith.addf %62, %64 : vector<256x256xf32>
    %66 = arith.addf %65, %60 : vector<256x256xf32>
    %cst_47 = arith.constant 0.000000e+00 : f32
    %67 = vector.broadcast %cst_47 : f32 to vector<256x256xf32>
    %68 = arith.maximumf %66, %67 : vector<256x256xf32>
    %c0_48 = arith.constant 0 : index
    %c0_49 = arith.constant 0 : index
    %69 = vector.load %arg8[%c0_48, %c0_49] : memref<256x128xf32, #tpu.memory_space<vmem>>, vector<256x128xf32>
    %cst_50 = arith.constant dense<0.000000e+00> : vector<256x128xf32>
    %70 = tpu.matmul %68, %69, %cst_50 {dimension_numbers = #tpu.dot_dimension_numbers<[1], [0], [0], [1], [0, 0, 1, 1], [], []>} : vector<256x256xf32>, vector<256x128xf32>, vector<256x128xf32> -> vector<256x128xf32>
    %c0_51 = arith.constant 0 : index
    %c0_52 = arith.constant 0 : index
    %71 = vector.load %arg9[%c0_51, %c0_52] : memref<1x128xf32, #tpu.memory_space<vmem>>, vector<1x128xf32>
    %72 = vector.broadcast %71 : vector<1x128xf32> to vector<256x128xf32>
    %73 = arith.addf %70, %72 : vector<256x128xf32>
    %cst_53 = arith.constant 0.000000e+00 : f32
    %74 = vector.broadcast %cst_53 : f32 to vector<256x128xf32>
    %75 = arith.maximumf %73, %74 : vector<256x128xf32>
    %c0_54 = arith.constant 0 : index
    %c0_55 = arith.constant 0 : index
    %76 = vector.load %arg10[%c0_54, %c0_55] : memref<128x128xf32, #tpu.memory_space<vmem>>, vector<128x128xf32>
    %cst_56 = arith.constant dense<0.000000e+00> : vector<256x128xf32>
    %77 = tpu.matmul %75, %76, %cst_56 {dimension_numbers = #tpu.dot_dimension_numbers<[1], [0], [0], [1], [0, 0, 1, 1], [], []>} : vector<256x128xf32>, vector<128x128xf32>, vector<256x128xf32> -> vector<256x128xf32>
    %c0_57 = arith.constant 0 : index
    %c0_58 = arith.constant 0 : index
    %78 = vector.load %arg11[%c0_57, %c0_58] : memref<1x128xf32, #tpu.memory_space<vmem>>, vector<1x128xf32>
    %79 = vector.broadcast %78 : vector<1x128xf32> to vector<256x128xf32>
    %80 = arith.addf %77, %79 : vector<256x128xf32>
    %81 = arith.addf %80, %75 : vector<256x128xf32>
    %cst_59 = arith.constant 0.000000e+00 : f32
    %82 = vector.broadcast %cst_59 : f32 to vector<256x128xf32>
    %83 = arith.maximumf %81, %82 : vector<256x128xf32>
    %84 = arith.addf %75, %83 : vector<256x128xf32>
    %c0_60 = arith.constant 0 : index
    %c0_61 = arith.constant 0 : index
    %85 = vector.load %arg10[%c0_60, %c0_61] : memref<128x128xf32, #tpu.memory_space<vmem>>, vector<128x128xf32>
    %cst_62 = arith.constant dense<0.000000e+00> : vector<256x128xf32>
    %86 = tpu.matmul %83, %85, %cst_62 {dimension_numbers = #tpu.dot_dimension_numbers<[1], [0], [0], [1], [0, 0, 1, 1], [], []>} : vector<256x128xf32>, vector<128x128xf32>, vector<256x128xf32> -> vector<256x128xf32>
    %c0_63 = arith.constant 0 : index
    %c0_64 = arith.constant 0 : index
    %87 = vector.load %arg11[%c0_63, %c0_64] : memref<1x128xf32, #tpu.memory_space<vmem>>, vector<1x128xf32>
    %88 = vector.broadcast %87 : vector<1x128xf32> to vector<256x128xf32>
    %89 = arith.addf %86, %88 : vector<256x128xf32>
    %90 = arith.addf %89, %84 : vector<256x128xf32>
    %cst_65 = arith.constant 0.000000e+00 : f32
    %91 = vector.broadcast %cst_65 : f32 to vector<256x128xf32>
    %92 = arith.maximumf %90, %91 : vector<256x128xf32>
    %93 = arith.addf %84, %92 : vector<256x128xf32>
    %c0_66 = arith.constant 0 : index
    %c0_67 = arith.constant 0 : index
    %94 = vector.load %arg10[%c0_66, %c0_67] : memref<128x128xf32, #tpu.memory_space<vmem>>, vector<128x128xf32>
    %cst_68 = arith.constant dense<0.000000e+00> : vector<256x128xf32>
    %95 = tpu.matmul %92, %94, %cst_68 {dimension_numbers = #tpu.dot_dimension_numbers<[1], [0], [0], [1], [0, 0, 1, 1], [], []>} : vector<256x128xf32>, vector<128x128xf32>, vector<256x128xf32> -> vector<256x128xf32>
    %c0_69 = arith.constant 0 : index
    %c0_70 = arith.constant 0 : index
    %96 = vector.load %arg11[%c0_69, %c0_70] : memref<1x128xf32, #tpu.memory_space<vmem>>, vector<1x128xf32>
    %97 = vector.broadcast %96 : vector<1x128xf32> to vector<256x128xf32>
    %98 = arith.addf %95, %97 : vector<256x128xf32>
    %99 = arith.addf %98, %93 : vector<256x128xf32>
    %cst_71 = arith.constant 0.000000e+00 : f32
    %100 = vector.broadcast %cst_71 : f32 to vector<256x128xf32>
    %101 = arith.maximumf %99, %100 : vector<256x128xf32>
    %102 = arith.addf %93, %101 : vector<256x128xf32>
    %c0_72 = arith.constant 0 : index
    %c0_73 = arith.constant 0 : index
    %103 = vector.load %arg10[%c0_72, %c0_73] : memref<128x128xf32, #tpu.memory_space<vmem>>, vector<128x128xf32>
    %cst_74 = arith.constant dense<0.000000e+00> : vector<256x128xf32>
    %104 = tpu.matmul %101, %103, %cst_74 {dimension_numbers = #tpu.dot_dimension_numbers<[1], [0], [0], [1], [0, 0, 1, 1], [], []>} : vector<256x128xf32>, vector<128x128xf32>, vector<256x128xf32> -> vector<256x128xf32>
    %c0_75 = arith.constant 0 : index
    %c0_76 = arith.constant 0 : index
    %105 = vector.load %arg11[%c0_75, %c0_76] : memref<1x128xf32, #tpu.memory_space<vmem>>, vector<1x128xf32>
    %106 = vector.broadcast %105 : vector<1x128xf32> to vector<256x128xf32>
    %107 = arith.addf %104, %106 : vector<256x128xf32>
    %108 = arith.addf %107, %102 : vector<256x128xf32>
    %cst_77 = arith.constant 0.000000e+00 : f32
    %109 = vector.broadcast %cst_77 : f32 to vector<256x128xf32>
    %110 = arith.maximumf %108, %109 : vector<256x128xf32>
    %c0_78 = arith.constant 0 : index
    %c0_79 = arith.constant 0 : index
    %111 = vector.load %arg12[%c0_78, %c0_79] : memref<128x64xf32, #tpu.memory_space<vmem>>, vector<128x64xf32>
    %cst_80 = arith.constant dense<0.000000e+00> : vector<256x64xf32>
    %112 = tpu.matmul %110, %111, %cst_80 {dimension_numbers = #tpu.dot_dimension_numbers<[1], [0], [0], [1], [0, 0, 1, 1], [], []>} : vector<256x128xf32>, vector<128x64xf32>, vector<256x64xf32> -> vector<256x64xf32>
    %c0_81 = arith.constant 0 : index
    %c0_82 = arith.constant 0 : index
    %113 = vector.load %arg13[%c0_81, %c0_82] : memref<1x64xf32, #tpu.memory_space<vmem>>, vector<1x64xf32>
    %114 = vector.broadcast %113 : vector<1x64xf32> to vector<256x64xf32>
    %115 = arith.addf %112, %114 : vector<256x64xf32>
    %cst_83 = arith.constant 0.000000e+00 : f32
    %116 = vector.broadcast %cst_83 : f32 to vector<256x64xf32>
    %117 = arith.maximumf %115, %116 : vector<256x64xf32>
    %c0_84 = arith.constant 0 : index
    %c0_85 = arith.constant 0 : index
    %118 = vector.load %arg14[%c0_84, %c0_85] : memref<64x64xf32, #tpu.memory_space<vmem>>, vector<64x64xf32>
    %cst_86 = arith.constant dense<0.000000e+00> : vector<256x64xf32>
    %119 = tpu.matmul %117, %118, %cst_86 {dimension_numbers = #tpu.dot_dimension_numbers<[1], [0], [0], [1], [0, 0, 1, 1], [], []>} : vector<256x64xf32>, vector<64x64xf32>, vector<256x64xf32> -> vector<256x64xf32>
    %c0_87 = arith.constant 0 : index
    %c0_88 = arith.constant 0 : index
    %120 = vector.load %arg15[%c0_87, %c0_88] : memref<1x64xf32, #tpu.memory_space<vmem>>, vector<1x64xf32>
    %121 = vector.broadcast %120 : vector<1x64xf32> to vector<256x64xf32>
    %122 = arith.addf %119, %121 : vector<256x64xf32>
    %123 = arith.addf %122, %117 : vector<256x64xf32>
    %cst_89 = arith.constant 0.000000e+00 : f32
    %124 = vector.broadcast %cst_89 : f32 to vector<256x64xf32>
    %125 = arith.maximumf %123, %124 : vector<256x64xf32>
    %126 = arith.addf %117, %125 : vector<256x64xf32>
    %c0_90 = arith.constant 0 : index
    %c0_91 = arith.constant 0 : index
    %127 = vector.load %arg14[%c0_90, %c0_91] : memref<64x64xf32, #tpu.memory_space<vmem>>, vector<64x64xf32>
    %cst_92 = arith.constant dense<0.000000e+00> : vector<256x64xf32>
    %128 = tpu.matmul %125, %127, %cst_92 {dimension_numbers = #tpu.dot_dimension_numbers<[1], [0], [0], [1], [0, 0, 1, 1], [], []>} : vector<256x64xf32>, vector<64x64xf32>, vector<256x64xf32> -> vector<256x64xf32>
    %c0_93 = arith.constant 0 : index
    %c0_94 = arith.constant 0 : index
    %129 = vector.load %arg15[%c0_93, %c0_94] : memref<1x64xf32, #tpu.memory_space<vmem>>, vector<1x64xf32>
    %130 = vector.broadcast %129 : vector<1x64xf32> to vector<256x64xf32>
    %131 = arith.addf %128, %130 : vector<256x64xf32>
    %132 = arith.addf %131, %126 : vector<256x64xf32>
    %cst_95 = arith.constant 0.000000e+00 : f32
    %133 = vector.broadcast %cst_95 : f32 to vector<256x64xf32>
    %134 = arith.maximumf %132, %133 : vector<256x64xf32>
    %135 = arith.addf %126, %134 : vector<256x64xf32>
    %c0_96 = arith.constant 0 : index
    %c0_97 = arith.constant 0 : index
    %136 = vector.load %arg14[%c0_96, %c0_97] : memref<64x64xf32, #tpu.memory_space<vmem>>, vector<64x64xf32>
    %cst_98 = arith.constant dense<0.000000e+00> : vector<256x64xf32>
    %137 = tpu.matmul %134, %136, %cst_98 {dimension_numbers = #tpu.dot_dimension_numbers<[1], [0], [0], [1], [0, 0, 1, 1], [], []>} : vector<256x64xf32>, vector<64x64xf32>, vector<256x64xf32> -> vector<256x64xf32>
    %c0_99 = arith.constant 0 : index
    %c0_100 = arith.constant 0 : index
    %138 = vector.load %arg15[%c0_99, %c0_100] : memref<1x64xf32, #tpu.memory_space<vmem>>, vector<1x64xf32>
    %139 = vector.broadcast %138 : vector<1x64xf32> to vector<256x64xf32>
    %140 = arith.addf %137, %139 : vector<256x64xf32>
    %141 = arith.addf %140, %135 : vector<256x64xf32>
    %cst_101 = arith.constant 0.000000e+00 : f32
    %142 = vector.broadcast %cst_101 : f32 to vector<256x64xf32>
    %143 = arith.maximumf %141, %142 : vector<256x64xf32>
    %144 = arith.addf %135, %143 : vector<256x64xf32>
    %c0_102 = arith.constant 0 : index
    %c0_103 = arith.constant 0 : index
    %145 = vector.load %arg14[%c0_102, %c0_103] : memref<64x64xf32, #tpu.memory_space<vmem>>, vector<64x64xf32>
    %cst_104 = arith.constant dense<0.000000e+00> : vector<256x64xf32>
    %146 = tpu.matmul %143, %145, %cst_104 {dimension_numbers = #tpu.dot_dimension_numbers<[1], [0], [0], [1], [0, 0, 1, 1], [], []>} : vector<256x64xf32>, vector<64x64xf32>, vector<256x64xf32> -> vector<256x64xf32>
    %c0_105 = arith.constant 0 : index
    %c0_106 = arith.constant 0 : index
    %147 = vector.load %arg15[%c0_105, %c0_106] : memref<1x64xf32, #tpu.memory_space<vmem>>, vector<1x64xf32>
    %148 = vector.broadcast %147 : vector<1x64xf32> to vector<256x64xf32>
    %149 = arith.addf %146, %148 : vector<256x64xf32>
    %150 = arith.addf %149, %144 : vector<256x64xf32>
    %cst_107 = arith.constant 0.000000e+00 : f32
    %151 = vector.broadcast %cst_107 : f32 to vector<256x64xf32>
    %152 = arith.maximumf %150, %151 : vector<256x64xf32>
    %c0_108 = arith.constant 0 : index
    %c0_109 = arith.constant 0 : index
    %153 = vector.load %arg16[%c0_108, %c0_109] : memref<32x64xf32, #tpu.memory_space<vmem>>, vector<32x64xf32>
    %cst_110 = arith.constant dense<0.000000e+00> : vector<32x256xf32>
    %154 = tpu.matmul %153, %152, %cst_110 {dimension_numbers = #tpu.dot_dimension_numbers<[1], [1], [0], [0], [0, 0, 1, 0], [], []>} : vector<32x64xf32>, vector<256x64xf32>, vector<32x256xf32> -> vector<32x256xf32>
    %c0_111 = arith.constant 0 : index
    %c0_112 = arith.constant 0 : index
    %155 = vector.load %arg17[%c0_111, %c0_112] : memref<32x1xf32, #tpu.memory_space<vmem>>, vector<32x1xf32>
    %156 = vector.broadcast %155 : vector<32x1xf32> to vector<32x256xf32>
    %157 = arith.addf %154, %156 : vector<32x256xf32>
    %cst_113 = arith.constant 0.000000e+00 : f32
    %158 = vector.broadcast %cst_113 : f32 to vector<32x256xf32>
    %159 = arith.maximumf %157, %158 : vector<32x256xf32>
    %c0_114 = arith.constant 0 : index
    %c0_115 = arith.constant 0 : index
    %160 = vector.load %arg18[%c0_114, %c0_115] : memref<8x32xf32, #tpu.memory_space<vmem>>, vector<8x32xf32>
    %cst_116 = arith.constant dense<0.000000e+00> : vector<8x256xf32>
    %161 = tpu.matmul %160, %159, %cst_116 {dimension_numbers = #tpu.dot_dimension_numbers<[1], [0], [0], [1], [0, 0, 1, 1], [], []>} : vector<8x32xf32>, vector<32x256xf32>, vector<8x256xf32> -> vector<8x256xf32>
    %c0_117 = arith.constant 0 : index
    %c0_118 = arith.constant 0 : index
    %162 = vector.load %arg19[%c0_117, %c0_118] : memref<8x1xf32, #tpu.memory_space<vmem>>, vector<8x1xf32>
    %163 = vector.broadcast %162 : vector<8x1xf32> to vector<8x256xf32>
    %164 = arith.addf %161, %163 : vector<8x256xf32>
    %cst_119 = arith.constant 0.000000e+00 : f32
    %165 = vector.broadcast %cst_119 : f32 to vector<8x256xf32>
    %166 = arith.maximumf %164, %165 : vector<8x256xf32>
    %c0_120 = arith.constant 0 : index
    %c0_121 = arith.constant 0 : index
    %167 = vector.load %arg20[%c0_120, %c0_121] : memref<4x8xf32, #tpu.memory_space<vmem>>, vector<4x8xf32>
    %cst_122 = arith.constant dense<0.000000e+00> : vector<4x256xf32>
    %168 = tpu.matmul %167, %166, %cst_122 {dimension_numbers = #tpu.dot_dimension_numbers<[1], [0], [0], [1], [0, 0, 1, 1], [], []>} : vector<4x8xf32>, vector<8x256xf32>, vector<4x256xf32> -> vector<4x256xf32>
    %c0_123 = arith.constant 0 : index
    %c0_124 = arith.constant 0 : index
    %169 = vector.load %arg21[%c0_123, %c0_124] : memref<4x1xf32, #tpu.memory_space<vmem>>, vector<4x1xf32>
    %170 = vector.broadcast %169 : vector<4x1xf32> to vector<4x256xf32>
    %171 = arith.addf %168, %170 : vector<4x256xf32>
    %cst_125 = arith.constant 0.000000e+00 : f32
    %172 = vector.broadcast %cst_125 : f32 to vector<4x256xf32>
    %173 = arith.maximumf %171, %172 : vector<4x256xf32>
    %c0_126 = arith.constant 0 : index
    %c0_127 = arith.constant 0 : index
    %174 = vector.load %arg22[%c0_126, %c0_127] : memref<2x4xf32, #tpu.memory_space<vmem>>, vector<2x4xf32>
    %cst_128 = arith.constant dense<0.000000e+00> : vector<2x256xf32>
    %175 = tpu.matmul %174, %173, %cst_128 {dimension_numbers = #tpu.dot_dimension_numbers<[1], [0], [0], [1], [0, 0, 1, 1], [], []>} : vector<2x4xf32>, vector<4x256xf32>, vector<2x256xf32> -> vector<2x256xf32>
    %c0_129 = arith.constant 0 : index
    %c0_130 = arith.constant 0 : index
    %176 = vector.load %arg23[%c0_129, %c0_130] : memref<2x1xf32, #tpu.memory_space<vmem>>, vector<2x1xf32>
    %177 = vector.broadcast %176 : vector<2x1xf32> to vector<2x256xf32>
    %178 = arith.addf %175, %177 : vector<2x256xf32>
    %c0_131 = arith.constant 0 : index
    %179 = memref.load %arg26[%c0_131] : memref<1xf32, #tpu.memory_space<smem>>
    %cst_132 = arith.constant 0.000000e+00 : f32
    %180 = vector.broadcast %cst_132 : f32 to vector<2x256xf32>
    %181 = arith.cmpf oge, %178, %180 : vector<2x256xf32>
    %182 = vector.broadcast %179 : f32 to vector<2x256xf32>
    %183 = arith.mulf %182, %178 : vector<2x256xf32>
    %184 = arith.select %181, %178, %183 : vector<2x256xi1>, vector<2x256xf32>
    %c0_133 = arith.constant 0 : index
    %c0_134 = arith.constant 0 : index
    %185 = vector.load %arg24[%c0_133, %c0_134] : memref<1x2xf32, #tpu.memory_space<vmem>>, vector<1x2xf32>
    %cst_135 = arith.constant dense<0.000000e+00> : vector<1x256xf32>
    %186 = tpu.matmul %185, %184, %cst_135 {dimension_numbers = #tpu.dot_dimension_numbers<[1], [0], [0], [1], [0, 0, 1, 1], [], []>} : vector<1x2xf32>, vector<2x256xf32>, vector<1x256xf32> -> vector<1x256xf32>
    %c0_136 = arith.constant 0 : index
    %c0_137 = arith.constant 0 : index
    %187 = vector.load %arg25[%c0_136, %c0_137] : memref<1x1xf32, #tpu.memory_space<vmem>>, vector<1x1xf32>
    %188 = vector.broadcast %187 : vector<1x1xf32> to vector<1x256xf32>
    %189 = arith.addf %186, %188 : vector<1x256xf32>
    %c0_138 = arith.constant 0 : index
    %c0_139 = arith.constant 0 : index
    %190 = vector.load %arg27[%c0_138, %c0_139] : memref<1x256xf32, #tpu.memory_space<vmem>>, vector<1x256xf32>
    tpu.vector_store %arg27[%c0_138, %c0_139], %189 {strides = array<i32>} : memref<1x256xf32, #tpu.memory_space<vmem>>, vector<1x256xf32>,
    return
  }
  func.func @transform_0(%arg0: i32) -> (i32, i32) {
    %c0_i32 = arith.constant 0 : i32
    %c0_i32_0 = arith.constant 0 : i32
    return %arg0, %c0_i32 : i32, i32
  }
  func.func @transform_1(%arg0: i32) -> (i32, i32) {
    %c0_i32 = arith.constant 0 : i32
    %c0_i32_0 = arith.constant 0 : i32
    %c0_i32_1 = arith.constant 0 : i32
    return %c0_i32, %c0_i32_0 : i32, i32
  }
  func.func @transform_2(%arg0: i32) -> (i32, i32) {
    %c0_i32 = arith.constant 0 : i32
    %c0_i32_0 = arith.constant 0 : i32
    %c0_i32_1 = arith.constant 0 : i32
    return %c0_i32, %c0_i32_0 : i32, i32
  }
  func.func @transform_3(%arg0: i32) -> (i32, i32) {
    %c0_i32 = arith.constant 0 : i32
    %c0_i32_0 = arith.constant 0 : i32
    %c0_i32_1 = arith.constant 0 : i32
    return %c0_i32, %c0_i32_0 : i32, i32
  }
  func.func @transform_4(%arg0: i32) -> (i32, i32) {
    %c0_i32 = arith.constant 0 : i32
    %c0_i32_0 = arith.constant 0 : i32
    %c0_i32_1 = arith.constant 0 : i32
    return %c0_i32, %c0_i32_0 : i32, i32
  }
  func.func @transform_5(%arg0: i32) -> (i32, i32) {
    %c0_i32 = arith.constant 0 : i32
    %c0_i32_0 = arith.constant 0 : i32
    %c0_i32_1 = arith.constant 0 : i32
    return %c0_i32, %c0_i32_0 : i32, i32
  }
  func.func @transform_6(%arg0: i32) -> (i32, i32) {
    %c0_i32 = arith.constant 0 : i32
    %c0_i32_0 = arith.constant 0 : i32
    %c0_i32_1 = arith.constant 0 : i32
    return %c0_i32, %c0_i32_0 : i32, i32
  }
  func.func @transform_7(%arg0: i32) -> (i32, i32) {
    %c0_i32 = arith.constant 0 : i32
    %c0_i32_0 = arith.constant 0 : i32
    %c0_i32_1 = arith.constant 0 : i32
    return %c0_i32, %c0_i32_0 : i32, i32
  }
  func.func @transform_8(%arg0: i32) -> (i32, i32) {
    %c0_i32 = arith.constant 0 : i32
    %c0_i32_0 = arith.constant 0 : i32
    %c0_i32_1 = arith.constant 0 : i32
    return %c0_i32, %c0_i32_0 : i32, i32
  }
  func.func @transform_9(%arg0: i32) -> (i32, i32) {
    %c0_i32 = arith.constant 0 : i32
    %c0_i32_0 = arith.constant 0 : i32
    %c0_i32_1 = arith.constant 0 : i32
    return %c0_i32, %c0_i32_0 : i32, i32
  }
  func.func @transform_10(%arg0: i32) -> (i32, i32) {
    %c0_i32 = arith.constant 0 : i32
    %c0_i32_0 = arith.constant 0 : i32
    %c0_i32_1 = arith.constant 0 : i32
    return %c0_i32, %c0_i32_0 : i32, i32
  }
  func.func @transform_11(%arg0: i32) -> (i32, i32) {
    %c0_i32 = arith.constant 0 : i32
    %c0_i32_0 = arith.constant 0 : i32
    %c0_i32_1 = arith.constant 0 : i32
    return %c0_i32, %c0_i32_0 : i32, i32
  }
  func.func @transform_12(%arg0: i32) -> (i32, i32) {
    %c0_i32 = arith.constant 0 : i32
    %c0_i32_0 = arith.constant 0 : i32
    %c0_i32_1 = arith.constant 0 : i32
    return %c0_i32, %c0_i32_0 : i32, i32
  }
  func.func @transform_13(%arg0: i32) -> (i32, i32) {
    %c0_i32 = arith.constant 0 : i32
    %c0_i32_0 = arith.constant 0 : i32
    %c0_i32_1 = arith.constant 0 : i32
    return %c0_i32, %c0_i32_0 : i32, i32
  }
  func.func @transform_14(%arg0: i32) -> (i32, i32) {
    %c0_i32 = arith.constant 0 : i32
    %c0_i32_0 = arith.constant 0 : i32
    %c0_i32_1 = arith.constant 0 : i32
    return %c0_i32, %c0_i32_0 : i32, i32
  }
  func.func @transform_15(%arg0: i32) -> (i32, i32) {
    %c0_i32 = arith.constant 0 : i32
    %c0_i32_0 = arith.constant 0 : i32
    %c0_i32_1 = arith.constant 0 : i32
    return %c0_i32, %c0_i32_0 : i32, i32
  }
  func.func @transform_16(%arg0: i32) -> (i32, i32) {
    %c0_i32 = arith.constant 0 : i32
    %c0_i32_0 = arith.constant 0 : i32
    %c0_i32_1 = arith.constant 0 : i32
    return %c0_i32, %c0_i32_0 : i32, i32
  }
  func.func @transform_17(%arg0: i32) -> (i32, i32) {
    %c0_i32 = arith.constant 0 : i32
    %c0_i32_0 = arith.constant 0 : i32
    %c0_i32_1 = arith.constant 0 : i32
    return %c0_i32, %c0_i32_0 : i32, i32
  }
  func.func @transform_18(%arg0: i32) -> (i32, i32) {
    %c0_i32 = arith.constant 0 : i32
    %c0_i32_0 = arith.constant 0 : i32
    %c0_i32_1 = arith.constant 0 : i32
    return %c0_i32, %c0_i32_0 : i32, i32
  }
  func.func @transform_19(%arg0: i32) -> (i32, i32) {
    %c0_i32 = arith.constant 0 : i32
    %c0_i32_0 = arith.constant 0 : i32
    %c0_i32_1 = arith.constant 0 : i32
    return %c0_i32, %c0_i32_0 : i32, i32
  }
  func.func @transform_20(%arg0: i32) -> (i32, i32) {
    %c0_i32 = arith.constant 0 : i32
    %c0_i32_0 = arith.constant 0 : i32
    %c0_i32_1 = arith.constant 0 : i32
    return %c0_i32, %c0_i32_0 : i32, i32
  }
  func.func @transform_21(%arg0: i32) -> (i32, i32) {
    %c0_i32 = arith.constant 0 : i32
    %c0_i32_0 = arith.constant 0 : i32
    %c0_i32_1 = arith.constant 0 : i32
    return %c0_i32, %c0_i32_0 : i32, i32
  }
  func.func @transform_22(%arg0: i32) -> (i32, i32) {
    %c0_i32 = arith.constant 0 : i32
    %c0_i32_0 = arith.constant 0 : i32
    %c0_i32_1 = arith.constant 0 : i32
    return %c0_i32, %c0_i32_0 : i32, i32
  }
  func.func @transform_23(%arg0: i32) -> (i32, i32) {
    %c0_i32 = arith.constant 0 : i32
    %c0_i32_0 = arith.constant 0 : i32
    %c0_i32_1 = arith.constant 0 : i32
    return %c0_i32, %c0_i32_0 : i32, i32
  }
  func.func @transform_24(%arg0: i32) -> (i32, i32) {
    %c0_i32 = arith.constant 0 : i32
    %c0_i32_0 = arith.constant 0 : i32
    %c0_i32_1 = arith.constant 0 : i32
    return %c0_i32, %c0_i32_0 : i32, i32
  }
  func.func @transform_25(%arg0: i32) -> i32 {
    %c0_i32 = arith.constant 0 : i32
    %c0_i32_0 = arith.constant 0 : i32
    return %c0_i32 : i32
  }
  func.func @transform_26(%arg0: i32) -> (i32, i32) {
    %c0_i32 = arith.constant 0 : i32
    %c0_i32_0 = arith.constant 0 : i32
    return %c0_i32, %arg0 : i32, i32
  }
}

</mosaic_0001>

<llo_original>
// kernel: e2f_forward.1
$region0: #{e2f_forward.1}
  #allocation0 [shape = 'u32[]', space=smem, size = 0x4, offset = 0x4, fixed_abs, tag = 'smem constant byte address 0x4 - core index']
  #allocation1 [shape = 'u32[144,128]{1,0:T(1,128)}', space=vmem, size = 0x12000, scoped, tag = 'internal scratch']
  #allocation2 [shape = 'f32[1,1]{1,0:T(1,128)S(1)}', space=vmem, size = 0x200, scoped, tag = 'scoped memory for e2f_forward.1']
  #allocation3 [shape = 'f32[1]{0:T(128)S(6)}', space=smem, size = 0x200, scoped, tag = 'scoped memory for e2f_forward.1']
  %s0 = inlined_call_operand.vmem [shape: f32[256,512], index: 0, kind: input, shape index: {}]
  %s1 = inlined_call_operand.hbm [shape: f32[512,512], index: 1, kind: input, shape index: {}]
  %s2 = inlined_call_operand.hbm [shape: f32[1,512], index: 2, kind: input, shape index: {}]
  %s3 = inlined_call_operand.vmem [shape: f32[512,256], index: 3, kind: input, shape index: {}]
  %s4 = inlined_call_operand.hbm [shape: f32[1,256], index: 4, kind: input, shape index: {}]
  %s5 = inlined_call_operand.hbm [shape: f32[256,256], index: 5, kind: input, shape index: {}]
  %s6 = inlined_call_operand.hbm [shape: f32[1,256], index: 6, kind: input, shape index: {}]
  %s7 = inlined_call_operand.vmem [shape: f32[256,128], index: 7, kind: input, shape index: {}]
  %s8 = inlined_call_operand.hbm [shape: f32[1,128], index: 8, kind: input, shape index: {}]
  %s9 = inlined_call_operand.vmem [shape: f32[128,128], index: 9, kind: input, shape index: {}]
  %s10 = inlined_call_operand.hbm [shape: f32[1,128], index: 10, kind: input, shape index: {}]
  %s11 = inlined_call_operand.vmem [shape: f32[128,64], index: 11, kind: input, shape index: {}]
  %s12 = inlined_call_operand.hbm [shape: f32[1,64], index: 12, kind: input, shape index: {}]
  %s13 = inlined_call_operand.hbm [shape: f32[64,64], index: 13, kind: input, shape index: {}]
  %s14 = inlined_call_operand.hbm [shape: f32[1,64], index: 14, kind: input, shape index: {}]
  %s15 = inlined_call_operand.vmem [shape: f32[32,64], index: 15, kind: input, shape index: {}]
  %s16 = inlined_call_operand.vmem [shape: f32[32,1], index: 16, kind: input, shape index: {}]
  %s17 = inlined_call_operand.vmem [shape: f32[8,32], index: 17, kind: input, shape index: {}]
  %s18 = inlined_call_operand.vmem [shape: f32[8,1], index: 18, kind: input, shape index: {}]
  %s19 = inlined_call_operand.vmem [shape: f32[4,8], index: 19, kind: input, shape index: {}]
  %s20 = inlined_call_operand.vmem [shape: f32[4,1], index: 20, kind: input, shape index: {}]
  %s21 = inlined_call_operand.vmem [shape: f32[2,4], index: 21, kind: input, shape index: {}]
  %s22 = inlined_call_operand.vmem [shape: f32[2,1], index: 22, kind: input, shape index: {}]
  %s23 = inlined_call_operand.vmem [shape: f32[1,2], index: 23, kind: input, shape index: {}]
  %s24 = inlined_call_operand.<no memory space> [shape: f32[1,1], index: 24, kind: input, shape index: {}]
  %s25 = inlined_call_operand.<no memory space> [shape: f32[1], index: 25, kind: input, shape index: {}]
  %s26 = inlined_call_operand.vmem [shape: f32[1,256], index: 26, kind: output, shape index: {}]
  %s27 = sld [smem:[#allocation0]]
  $region154: #{e2f_forward.1} parent=0
    _
  %s29 = ssub.s32 1, %s27
  %s30 = scalar_select 0, %s29, %s27
  %v31 = vstv %s24
  %32 = vst [vmem:[#allocation2] sm:$0x1] %v31
  %33 = sst [smem:[#allocation3]] %s25
  $region1: #{e2f_forward.1} parent=0
    #allocation4 [shape = 'u8[1048576]{0}', space=vmem, size = 0x100000, scoped, tag = 'input window, operand 1, single buffered']
    #allocation5 [shape = 's32[1]{0}', space=sflag, size = 0x4, scoped, tag = 'scoped memory for e2f_forward.1']
    #allocation6 [shape = 'u8[2048]{0}', space=vmem, size = 0x800, scoped, tag = 'input window, operand 2, single buffered']
    #allocation7 [shape = 's32[1]{0}', space=sflag, size = 0x4, scoped, tag = 'scoped memory for e2f_forward.1']
    #allocation8 [shape = 'u8[1024]{0}', space=vmem, size = 0x400, scoped, tag = 'input window, operand 4, single buffered']
    #allocation9 [shape = 'u8[262144]{0}', space=vmem, size = 0x40000, scoped, tag = 'input window, operand 5, single buffered']
    #allocation10 [shape = 's32[1]{0}', space=sflag, size = 0x4, scoped, tag = 'scoped memory for e2f_forward.1']
    #allocation11 [shape = 'u8[1024]{0}', space=vmem, size = 0x400, scoped, tag = 'input window, operand 6, single buffered']
    #allocation12 [shape = 'u8[512]{0}', space=vmem, size = 0x400, scoped, tag = 'input window, operand 8, single buffered']
    #allocation13 [shape = 's32[1]{0}', space=sflag, size = 0x4, scoped, tag = 'scoped memory for e2f_forward.1']
    #allocation14 [shape = 'u8[512]{0}', space=vmem, size = 0x400, scoped, tag = 'input window, operand 10, single buffered']
    #allocation15 [shape = 'u8[512]{0}', space=vmem, size = 0x400, scoped, tag = 'input window, operand 12, single buffered']
    #allocation16 [shape = 's32[1]{0}', space=sflag, size = 0x4, scoped, tag = 'scoped memory for e2f_forward.1']
    #allocation17 [shape = 'u8[32768]{0}', space=vmem, size = 0x8000, scoped, tag = 'input window, operand 13, single buffered']
    #allocation18 [shape = 'u8[512]{0}', space=vmem, size = 0x400, scoped, tag = 'input window, operand 14, single buffered']
    #allocation19 [shape = 's32[1]{0}', space=sflag, size = 0x4, scoped, tag = 'scoped memory for e2f_forward.1']
    %34 = vsyncpa [#allocation5], 0
    %35 = vsyncpa [#allocation7], 0
    %36 = vsyncpa [#allocation10], 0
    %37 = vsyncpa [#allocation13], 0
    %38 = vsyncpa [#allocation16], 0
    %39 = vsyncpa [#allocation19], 0
    // Predicated region
    $region2: #{e2f_forward.1} parent=1 // pred_check
      _
    $region3: #{e2f_forward.1} parent=1 // pred_check_branch
      %41 = sbr.rel (0) target = $region5
    $region4: #{e2f_forward.1} parent=1 // pred_region
      _
    $region5: #{e2f_forward.1} parent=1 // pred_fallthru
      _
    // Predicated region
    $region6: #{e2f_forward.1} parent=1 // pred_check
      _
    $region7: #{e2f_forward.1} parent=1 // pred_check_branch
      %43 = sbr.rel (0) target = $region9
    $region8: #{e2f_forward.1} parent=1 // pred_region
      %s45 = ssub.s32 32768, 32768
      %46 = vsyncadd [#allocation5], %s45
      %s47 = sshll.u32 [#allocation4], 4
      %s48 = int_to_ptr.vmem [resolvable:$true] %s47
      %53 = dma.hbm_to_vmem [thread:$0]  %s1, 32768, %s48, [#allocation5], 512, 512, 32
    $region9: #{e2f_forward.1} parent=1 // pred_fallthru
      _
    // Predicated region
    $region10: #{e2f_forward.1} parent=1 // pred_check
      _
    $region11: #{e2f_forward.1} parent=1 // pred_check_branch
      %55 = sbr.rel (0) target = $region13
    $region12: #{e2f_forward.1} parent=1 // pred_region
      %s57 = ssub.s32 64, 64
      %58 = vsyncadd [#allocation7], %s57
      %s60 = sshll.u32 [#allocation6], 4
      %s61 = int_to_ptr.vmem [resolvable:$true] %s60
      %63 = dma.hbm_to_vmem [thread:$0]  %s2, 64, %s61, [#allocation7]
    $region13: #{e2f_forward.1} parent=1 // pred_fallthru
      _
    // Predicated region
    $region14: #{e2f_forward.1} parent=1 // pred_check
      _
    $region15: #{e2f_forward.1} parent=1 // pred_check_branch
      %65 = sbr.rel (0) target = $region17
    $region16: #{e2f_forward.1} parent=1 // pred_region
      _
    $region17: #{e2f_forward.1} parent=1 // pred_fallthru
      _
    // Predicated region
    $region18: #{e2f_forward.1} parent=1 // pred_check
      _
    $region19: #{e2f_forward.1} parent=1 // pred_check_branch
      %67 = sbr.rel (0) target = $region21
    $region20: #{e2f_forward.1} parent=1 // pred_region
      %s69 = ssub.s32 32, 32
      %70 = vsyncadd [#allocation7], %s69
      %s72 = sshll.u32 [#allocation8], 4
      %s73 = int_to_ptr.vmem [resolvable:$true] %s72
      %75 = dma.hbm_to_vmem [thread:$0]  %s4, 32, %s73, [#allocation7]
    $region21: #{e2f_forward.1} parent=1 // pred_fallthru
      _
    // Predicated region
    $region22: #{e2f_forward.1} parent=1 // pred_check
      _
    $region23: #{e2f_forward.1} parent=1 // pred_check_branch
      %77 = sbr.rel (0) target = $region25
    $region24: #{e2f_forward.1} parent=1 // pred_region
      %s79 = ssub.s32 8192, 8192
      %80 = vsyncadd [#allocation10], %s79
      %s81 = sshll.u32 [#allocation9], 4
      %s82 = int_to_ptr.vmem [resolvable:$true] %s81
      %87 = dma.hbm_to_vmem [thread:$0]  %s5, 8192, %s82, [#allocation10], 256, 256, 16
    $region25: #{e2f_forward.1} parent=1 // pred_fallthru
      _
    // Predicated region
    $region26: #{e2f_forward.1} parent=1 // pred_check
      _
    $region27: #{e2f_forward.1} parent=1 // pred_check_branch
      %89 = sbr.rel (0) target = $region29
    $region28: #{e2f_forward.1} parent=1 // pred_region
      %s91 = ssub.s32 32, 32
      %92 = vsyncadd [#allocation10], %s91
      %s94 = sshll.u32 [#allocation11], 4
      %s95 = int_to_ptr.vmem [resolvable:$true] %s94
      %97 = dma.hbm_to_vmem [thread:$0]  %s6, 32, %s95, [#allocation10]
    $region29: #{e2f_forward.1} parent=1 // pred_fallthru
      _
    // Predicated region
    $region30: #{e2f_forward.1} parent=1 // pred_check
      _
    $region31: #{e2f_forward.1} parent=1 // pred_check_branch
      %99 = sbr.rel (0) target = $region33
    $region32: #{e2f_forward.1} parent=1 // pred_region
      _
    $region33: #{e2f_forward.1} parent=1 // pred_fallthru
      _
    // Predicated region
    $region34: #{e2f_forward.1} parent=1 // pred_check
      _
    $region35: #{e2f_forward.1} parent=1 // pred_check_branch
      %101 = sbr.rel (0) target = $region37
    $region36: #{e2f_forward.1} parent=1 // pred_region
      %s103 = ssub.s32 16, 16
      %104 = vsyncadd [#allocation13], %s103
      %s106 = sshll.u32 [#allocation12], 4
      %s107 = int_to_ptr.vmem [resolvable:$true] %s106
      %109 = dma.hbm_to_vmem [thread:$0]  %s8, 16, %s107, [#allocation13]
    $region37: #{e2f_forward.1} parent=1 // pred_fallthru
      _
    // Predicated region
    $region38: #{e2f_forward.1} parent=1 // pred_check
      _
    $region39: #{e2f_forward.1} parent=1 // pred_check_branch
      %111 = sbr.rel (0) target = $region41
    $region40: #{e2f_forward.1} parent=1 // pred_region
      _
    $region41: #{e2f_forward.1} parent=1 // pred_fallthru
      _
    // Predicated region
    $region42: #{e2f_forward.1} parent=1 // pred_check
      _
    $region43: #{e2f_forward.1} parent=1 // pred_check_branch
      %113 = sbr.rel (0) target = $region45
    $region44: #{e2f_forward.1} parent=1 // pred_region
      %s115 = ssub.s32 16, 16
      %116 = vsyncadd [#allocation13], %s115
      %s118 = sshll.u32 [#allocation14], 4
      %s119 = int_to_ptr.vmem [resolvable:$true] %s118
      %121 = dma.hbm_to_vmem [thread:$0]  %s10, 16, %s119, [#allocation13]
    $region45: #{e2f_forward.1} parent=1 // pred_fallthru
      _
    // Predicated region
    $region46: #{e2f_forward.1} parent=1 // pred_check
      _
    $region47: #{e2f_forward.1} parent=1 // pred_check_branch
      %123 = sbr.rel (0) target = $region49
    $region48: #{e2f_forward.1} parent=1 // pred_region
      _
    $region49: #{e2f_forward.1} parent=1 // pred_fallthru
      _
    // Predicated region
    $region50: #{e2f_forward.1} parent=1 // pred_check
      _
    $region51: #{e2f_forward.1} parent=1 // pred_check_branch
      %125 = sbr.rel (0) target = $region53
    $region52: #{e2f_forward.1} parent=1 // pred_region
      %s127 = ssub.s32 16, 16
      %128 = vsyncadd [#allocation16], %s127
      %s130 = sshll.u32 [#allocation15], 4
      %s131 = int_to_ptr.vmem [resolvable:$true] %s130
      %133 = dma.hbm_to_vmem [thread:$0]  %s12, 16, %s131, [#allocation16]
    $region53: #{e2f_forward.1} parent=1 // pred_fallthru
      _
    // Predicated region
    $region54: #{e2f_forward.1} parent=1 // pred_check
      _
    $region55: #{e2f_forward.1} parent=1 // pred_check_branch
      %135 = sbr.rel (0) target = $region57
    $region56: #{e2f_forward.1} parent=1 // pred_region
      %s137 = ssub.s32 1024, 1024
      %138 = vsyncadd [#allocation16], %s137
      %s139 = sshll.u32 [#allocation17], 4
      %s140 = int_to_ptr.vmem [resolvable:$true] %s139
      %145 = dma.hbm_to_vmem [thread:$0]  %s13, 1024, %s140, [#allocation16], 128, 128, 8
    $region57: #{e2f_forward.1} parent=1 // pred_fallthru
      _
    // Predicated region
    $region58: #{e2f_forward.1} parent=1 // pred_check
      _
    $region59: #{e2f_forward.1} parent=1 // pred_check_branch
      %147 = sbr.rel (0) target = $region61
    $region60: #{e2f_forward.1} parent=1 // pred_region
      %s149 = ssub.s32 16, 16
      %150 = vsyncadd [#allocation19], %s149
      %s152 = sshll.u32 [#allocation18], 4
      %s153 = int_to_ptr.vmem [resolvable:$true] %s152
      %155 = dma.hbm_to_vmem [thread:$0]  %s14, 16, %s153, [#allocation19]
    $region61: #{e2f_forward.1} parent=1 // pred_fallthru
      _
    // Predicated region
    $region62: #{e2f_forward.1} parent=1 // pred_check
      _
    $region63: #{e2f_forward.1} parent=1 // pred_check_branch
      %157 = sbr.rel (0) target = $region65
    $region64: #{e2f_forward.1} parent=1 // pred_region
      _
    $region65: #{e2f_forward.1} parent=1 // pred_fallthru
      _
    // Predicated region
    $region66: #{e2f_forward.1} parent=1 // pred_check
      _
    $region67: #{e2f_forward.1} parent=1 // pred_check_branch
      %159 = sbr.rel (0) target = $region69
    $region68: #{e2f_forward.1} parent=1 // pred_region
      _
    $region69: #{e2f_forward.1} parent=1 // pred_fallthru
      _
    // Predicated region
    $region70: #{e2f_forward.1} parent=1 // pred_check
      _
    $region71: #{e2f_forward.1} parent=1 // pred_check_branch
      %161 = sbr.rel (0) target = $region73
    $region72: #{e2f_forward.1} parent=1 // pred_region
      _
    $region73: #{e2f_forward.1} parent=1 // pred_fallthru
      _
    // Predicated region
    $region74: #{e2f_forward.1} parent=1 // pred_check
      _
    $region75: #{e2f_forward.1} parent=1 // pred_check_branch
      %163 = sbr.rel (0) target = $region77
    $region76: #{e2f_forward.1} parent=1 // pred_region
      _
    $region77: #{e2f_forward.1} parent=1 // pred_fallthru
      _
    // Predicated region
    $region78: #{e2f_forward.1} parent=1 // pred_check
      _
    $region79: #{e2f_forward.1} parent=1 // pred_check_branch
      %165 = sbr.rel (0) target = $region81
    $region80: #{e2f_forward.1} parent=1 // pred_region
      _
    $region81: #{e2f_forward.1} parent=1 // pred_fallthru
      _
    // Predicated region
    $region82: #{e2f_forward.1} parent=1 // pred_check
      _
    $region83: #{e2f_forward.1} parent=1 // pred_check_branch
      %167 = sbr.rel (0) target = $region85
    $region84: #{e2f_forward.1} parent=1 // pred_region
      _
    $region85: #{e2f_forward.1} parent=1 // pred_fallthru
      _
    // Predicated region
    $region86: #{e2f_forward.1} parent=1 // pred_check
      _
    $region87: #{e2f_forward.1} parent=1 // pred_check_branch
      %169 = sbr.rel (0) target = $region89
    $region88: #{e2f_forward.1} parent=1 // pred_region
      _
    $region89: #{e2f_forward.1} parent=1 // pred_fallthru
      _
    // Predicated region
    $region90: #{e2f_forward.1} parent=1 // pred_check
      _
    $region91: #{e2f_forward.1} parent=1 // pred_check_branch
      %171 = sbr.rel (0) target = $region93
    $region92: #{e2f_forward.1} parent=1 // pred_region
      _
    $region93: #{e2f_forward.1} parent=1 // pred_fallthru
      _
    // Predicated region
    $region94: #{e2f_forward.1} parent=1 // pred_check
      _
    $region95: #{e2f_forward.1} parent=1 // pred_check_branch
      %173 = sbr.rel (0) target = $region97
    $region96: #{e2f_forward.1} parent=1 // pred_region
      _
    $region97: #{e2f_forward.1} parent=1 // pred_fallthru
      _
    // Predicated region
    $region98: #{e2f_forward.1} parent=1 // pred_check
      _
    $region99: #{e2f_forward.1} parent=1 // pred_check_branch
      %175 = sbr.rel (0) target = $region101
    $region100: #{e2f_forward.1} parent=1 // pred_region
      _
    $region101: #{e2f_forward.1} parent=1 // pred_fallthru
      _
    // Predicated region
    $region102: #{e2f_forward.1} parent=1 // pred_check
      _
    $region103: #{e2f_forward.1} parent=1 // pred_check_branch
      %177 = sbr.rel (0) target = $region105
    $region104: #{e2f_forward.1} parent=1 // pred_region
      _
    $region105: #{e2f_forward.1} parent=1 // pred_fallthru
      _
    // Predicated region
    $region106: #{e2f_forward.1} parent=1 // pred_check
      _
    $region107: #{e2f_forward.1} parent=1 // pred_check_branch
      %179 = sbr.rel (0) target = $region109
    $region108: #{e2f_forward.1} parent=1 // pred_region
      %180 = dma.done [#allocation5], 32768
    $region109: #{e2f_forward.1} parent=1 // pred_fallthru
      _
    // Predicated region
    $region110: #{e2f_forward.1} parent=1 // pred_check
      _
    $region111: #{e2f_forward.1} parent=1 // pred_check_branch
      %182 = sbr.rel (0) target = $region113
    $region112: #{e2f_forward.1} parent=1 // pred_region
      %183 = dma.done [#allocation7], 64
    $region113: #{e2f_forward.1} parent=1 // pred_fallthru
      _
    // Predicated region
    $region114: #{e2f_forward.1} parent=1 // pred_check
      _
    $region115: #{e2f_forward.1} parent=1 // pred_check_branch
      %185 = sbr.rel (0) target = $region117
    $region116: #{e2f_forward.1} parent=1 // pred_region
      %186 = dma.done [#allocation7], 32
    $region117: #{e2f_forward.1} parent=1 // pred_fallthru
      _
    // Predicated region
    $region118: #{e2f_forward.1} parent=1 // pred_check
      _
    $region119: #{e2f_forward.1} parent=1 // pred_check_branch
      %188 = sbr.rel (0) target = $region121
    $region120: #{e2f_forward.1} parent=1 // pred_region
      %189 = dma.done [#allocation10], 8192
    $region121: #{e2f_forward.1} parent=1 // pred_fallthru
      _
    // Predicated region
    $region122: #{e2f_forward.1} parent=1 // pred_check
      _
    $region123: #{e2f_forward.1} parent=1 // pred_check_branch
      %191 = sbr.rel (0) target = $region125
    $region124: #{e2f_forward.1} parent=1 // pred_region
      %192 = dma.done [#allocation10], 32
    $region125: #{e2f_forward.1} parent=1 // pred_fallthru
      _
    // Predicated region
    $region126: #{e2f_forward.1} parent=1 // pred_check
      _
    $region127: #{e2f_forward.1} parent=1 // pred_check_branch
      %194 = sbr.rel (0) target = $region129
    $region128: #{e2f_forward.1} parent=1 // pred_region
      %195 = dma.done [#allocation13], 16
    $region129: #{e2f_forward.1} parent=1 // pred_fallthru
      _
    // Predicated region
    $region130: #{e2f_forward.1} parent=1 // pred_check
      _
    $region131: #{e2f_forward.1} parent=1 // pred_check_branch
      %197 = sbr.rel (0) target = $region133
    $region132: #{e2f_forward.1} parent=1 // pred_region
      %198 = dma.done [#allocation13], 16
    $region133: #{e2f_forward.1} parent=1 // pred_fallthru
      _
    // Predicated region
    $region134: #{e2f_forward.1} parent=1 // pred_check
      _
    $region135: #{e2f_forward.1} parent=1 // pred_check_branch
      %200 = sbr.rel (0) target = $region137
    $region136: #{e2f_forward.1} parent=1 // pred_region
      %201 = dma.done [#allocation16], 16
    $region137: #{e2f_forward.1} parent=1 // pred_fallthru
      _
    // Predicated region
    $region138: #{e2f_forward.1} parent=1 // pred_check
      _
    $region139: #{e2f_forward.1} parent=1 // pred_check_branch
      %203 = sbr.rel (0) target = $region141
    $region140: #{e2f_forward.1} parent=1 // pred_region
      %204 = dma.done [#allocation16], 1024
    $region141: #{e2f_forward.1} parent=1 // pred_fallthru
      _
    // Predicated region
    $region142: #{e2f_forward.1} parent=1 // pred_check
      _
    $region143: #{e2f_forward.1} parent=1 // pred_check_branch
      %206 = sbr.rel (0) target = $region145
    $region144: #{e2f_forward.1} parent=1 // pred_region
      %207 = dma.done [#allocation19], 16
    $region145: #{e2f_forward.1} parent=1 // pred_fallthru
      _
    %v208 = vld [vmem:[%s0] sm:$0xff]
    %v209 = vld [vmem:[%s0 + $0x8] sm:$0xff]
    %v210 = vld [vmem:[%s0 + $0x10] sm:$0xff]
    %v211 = vld [vmem:[%s0 + $0x18] sm:$0xff]
    %v212 = vld [vmem:[%s0 + $0x20] sm:$0xff]
    %v213 = vld [vmem:[%s0 + $0x28] sm:$0xff]
    %v214 = vld [vmem:[%s0 + $0x30] sm:$0xff]
    %v215 = vld [vmem:[%s0 + $0x38] sm:$0xff]
    %v216 = vld [vmem:[%s0 + $0x40] sm:$0xff]
    %v217 = vld [vmem:[%s0 + $0x48] sm:$0xff]
    %v218 = vld [vmem:[%s0 + $0x50] sm:$0xff]
    %v219 = vld [vmem:[%s0 + $0x58] sm:$0xff]
    %v220 = vld [vmem:[%s0 + $0x60] sm:$0xff]
    %v221 = vld [vmem:[%s0 + $0x68] sm:$0xff]
    %v222 = vld [vmem:[%s0 + $0x70] sm:$0xff]
    %v223 = vld [vmem:[%s0 + $0x78] sm:$0xff]
    %v224 = vld [vmem:[%s0 + $0x80] sm:$0xff]
    %v225 = vld [vmem:[%s0 + $0x88] sm:$0xff]
    %v226 = vld [vmem:[%s0 + $0x90] sm:$0xff]
    %v227 = vld [vmem:[%s0 + $0x98] sm:$0xff]
    %v228 = vld [vmem:[%s0 + $0xa0] sm:$0xff]
    %v229 = vld [vmem:[%s0 + $0xa8] sm:$0xff]
    %v230 = vld [vmem:[%s0 + $0xb0] sm:$0xff]
    %v231 = vld [vmem:[%s0 + $0xb8] sm:$0xff]
    %v232 = vld [vmem:[%s0 + $0xc0] sm:$0xff]
    %v233 = vld [vmem:[%s0 + $0xc8] sm:$0xff]
    %v234 = vld [vmem:[%s0 + $0xd0] sm:$0xff]
    %v235 = vld [vmem:[%s0 + $0xd8] sm:$0xff]
    %v236 = vld [vmem:[%s0 + $0xe0] sm:$0xff]
    %v237 = vld [vmem:[%s0 + $0xe8] sm:$0xff]
    %v238 = vld [vmem:[%s0 + $0xf0] sm:$0xff]
    %v239 = vld [vmem:[%s0 + $0xf8] sm:$0xff]
    %v240 = vld [vmem:[%s0 + $0x100] sm:$0xff]
    %v241 = vld [vmem:[%s0 + $0x108] sm:$0xff]
    %v242 = vld [vmem:[%s0 + $0x110] sm:$0xff]
    %v243 = vld [vmem:[%s0 + $0x118] sm:$0xff]
    %v244 = vld [vmem:[%s0 + $0x120] sm:$0xff]
    %v245 = vld [vmem:[%s0 + $0x128] sm:$0xff]
    %v246 = vld [vmem:[%s0 + $0x130] sm:$0xff]
    %v247 = vld [vmem:[%s0 + $0x138] sm:$0xff]
    %v248 = vld [vmem:[%s0 + $0x140] sm:$0xff]
    %v249 = vld [vmem:[%s0 + $0x148] sm:$0xff]
    %v250 = vld [vmem:[%s0 + $0x150] sm:$0xff]
    %v251 = vld [vmem:[%s0 + $0x158] sm:$0xff]
    %v252 = vld [vmem:[%s0 + $0x160] sm:$0xff]
    %v253 = vld [vmem:[%s0 + $0x168] sm:$0xff]
    %v254 = vld [vmem:[%s0 + $0x170] sm:$0xff]
    %v255 = vld [vmem:[%s0 + $0x178] sm:$0xff]
    %v256 = vld [vmem:[%s0 + $0x180] sm:$0xff]
    %v257 = vld [vmem:[%s0 + $0x188] sm:$0xff]
    %v258 = vld [vmem:[%s0 + $0x190] sm:$0xff]
    %v259 = vld [vmem:[%s0 + $0x198] sm:$0xff]
    %v260 = vld [vmem:[%s0 + $0x1a0] sm:$0xff]
    %v261 = vld [vmem:[%s0 + $0x1a8] sm:$0xff]
    %v262 = vld [vmem:[%s0 + $0x1b0] sm:$0xff]
    %v263 = vld [vmem:[%s0 + $0x1b8] sm:$0xff]
    %v264 = vld [vmem:[%s0 + $0x1c0] sm:$0xff]
    %v265 = vld [vmem:[%s0 + $0x1c8] sm:$0xff]
    %v266 = vld [vmem:[%s0 + $0x1d0] sm:$0xff]
    %v267 = vld [vmem:[%s0 + $0x1d8] sm:$0xff]
    %v268 = vld [vmem:[%s0 + $0x1e0] sm:$0xff]
    %v269 = vld [vmem:[%s0 + $0x1e8] sm:$0xff]
    %v270 = vld [vmem:[%s0 + $0x1f0] sm:$0xff]
    %v271 = vld [vmem:[%s0 + $0x1f8] sm:$0xff]
    %v272 = vld [vmem:[%s0 + $0x200] sm:$0xff]
    %v273 = vld [vmem:[%s0 + $0x208] sm:$0xff]
    %v274 = vld [vmem:[%s0 + $0x210] sm:$0xff]
    %v275 = vld [vmem:[%s0 + $0x218] sm:$0xff]
    %v276 = vld [vmem:[%s0 + $0x220] sm:$0xff]
    %v277 = vld [vmem:[%s0 + $0x228] sm:$0xff]
    %v278 = vld [vmem:[%s0 + $0x230] sm:$0xff]
    %v279 = vld [vmem:[%s0 + $0x238] sm:$0xff]
    %v280 = vld [vmem:[%s0 + $0x240] sm:$0xff]
    %v281 = vld [vmem:[%s0 + $0x248] sm:$0xff]
    %v282 = vld [vmem:[%s0 + $0x250] sm:$0xff]
    %v283 = vld [vmem:[%s0 + $0x258] sm:$0xff]
    %v284 = vld [vmem:[%s0 + $0x260] sm:$0xff]
    %v285 = vld [vmem:[%s0 + $0x268] sm:$0xff]
    %v286 = vld [vmem:[%s0 + $0x270] sm:$0xff]
    %v287 = vld [vmem:[%s0 + $0x278] sm:$0xff]
    %v288 = vld [vmem:[%s0 + $0x280] sm:$0xff]
    %v289 = vld [vmem:[%s0 + $0x288] sm:$0xff]
    %v290 = vld [vmem:[%s0 + $0x290] sm:$0xff]
    %v291 = vld [vmem:[%s0 + $0x298] sm:$0xff]
    %v292 = vld [vmem:[%s0 + $0x2a0] sm:$0xff]
    %v293 = vld [vmem:[%s0 + $0x2a8] sm:$0xff]
    %v294 = vld [vmem:[%s0 + $0x2b0] sm:$0xff]
    %v295 = vld [vmem:[%s0 + $0x2b8] sm:$0xff]
    %v296 = vld [vmem:[%s0 + $0x2c0] sm:$0xff]
    %v297 = vld [vmem:[%s0 + $0x2c8] sm:$0xff]
    %v298 = vld [vmem:[%s0 + $0x2d0] sm:$0xff]
    %v299 = vld [vmem:[%s0 + $0x2d8] sm:$0xff]
    %v300 = vld [vmem:[%s0 + $0x2e0] sm:$0xff]
    %v301 = vld [vmem:[%s0 + $0x2e8] sm:$0xff]
    %v302 = vld [vmem:[%s0 + $0x2f0] sm:$0xff]
    %v303 = vld [vmem:[%s0 + $0x2f8] sm:$0xff]
    %v304 = vld [vmem:[%s0 + $0x300] sm:$0xff]
    %v305 = vld [vmem:[%s0 + $0x308] sm:$0xff]
    %v306 = vld [vmem:[%s0 + $0x310] sm:$0xff]
    %v307 = vld [vmem:[%s0 + $0x318] sm:$0xff]
    %v308 = vld [vmem:[%s0 + $0x320] sm:$0xff]
    %v309 = vld [vmem:[%s0 + $0x328] sm:$0xff]
    %v310 = vld [vmem:[%s0 + $0x330] sm:$0xff]
    %v311 = vld [vmem:[%s0 + $0x338] sm:$0xff]
    %v312 = vld [vmem:[%s0 + $0x340] sm:$0xff]
    %v313 = vld [vmem:[%s0 + $0x348] sm:$0xff]
    %v314 = vld [vmem:[%s0 + $0x350] sm:$0xff]
    %v315 = vld [vmem:[%s0 + $0x358] sm:$0xff]
    %v316 = vld [vmem:[%s0 + $0x360] sm:$0xff]
    %v317 = vld [vmem:[%s0 + $0x368] sm:$0xff]
    %v318 = vld [vmem:[%s0 + $0x370] sm:$0xff]
    %v319 = vld [vmem:[%s0 + $0x378] sm:$0xff]
    %v320 = vld [vmem:[%s0 + $0x380] sm:$0xff]
    %v321 = vld [vmem:[%s0 + $0x388] sm:$0xff]
    %v322 = vld [vmem:[%s0 + $0x390] sm:$0xff]
    %v323 = vld [vmem:[%s0 + $0x398] sm:$0xff]
    %v324 = vld [vmem:[%s0 + $0x3a0] sm:$0xff]
    %v325 = vld [vmem:[%s0 + $0x3a8] sm:$0xff]
    %v326 = vld [vmem:[%s0 + $0x3b0] sm:$0xff]
    %v327 = vld [vmem:[%s0 + $0x3b8] sm:$0xff]
    %v328 = vld [vmem:[%s0 + $0x3c0] sm:$0xff]
    %v329 = vld [vmem:[%s0 + $0x3c8] sm:$0xff]
    %v330 = vld [vmem:[%s0 + $0x3d0] sm:$0xff]
    %v331 = vld [vmem:[%s0 + $0x3d8] sm:$0xff]
    %v332 = vld [vmem:[%s0 + $0x3e0] sm:$0xff]
    %v333 = vld [vmem:[%s0 + $0x3e8] sm:$0xff]
    %v334 = vld [vmem:[%s0 + $0x3f0] sm:$0xff]
    %v335 = vld [vmem:[%s0 + $0x3f8] sm:$0xff]
    %v336 = vld [vmem:[#allocation4] sm:$0xff]
    %v337 = vld [vmem:[#allocation4 + $0x8] sm:$0xff]
    %v338 = vld [vmem:[#allocation4 + $0x10] sm:$0xff]
    %v339 = vld [vmem:[#allocation4 + $0x18] sm:$0xff]
    %v340 = vld [vmem:[#allocation4 + $0x20] sm:$0xff]
    %v341 = vld [vmem:[#allocation4 + $0x28] sm:$0xff]
    %v342 = vld [vmem:[#allocation4 + $0x30] sm:$0xff]
    %v343 = vld [vmem:[#allocation4 + $0x38] sm:$0xff]
    %v344 = vld [vmem:[#allocation4 + $0x40] sm:$0xff]
    %v345 = vld [vmem:[#allocation4 + $0x48] sm:$0xff]
    %v346 = vld [vmem:[#allocation4 + $0x50] sm:$0xff]
    %v347 = vld [vmem:[#allocation4 + $0x58] sm:$0xff]
    %v348 = vld [vmem:[#allocation4 + $0x60] sm:$0xff]
    %v349 = vld [vmem:[#allocation4 + $0x68] sm:$0xff]
    %v350 = vld [vmem:[#allocation4 + $0x70] sm:$0xff]
    %v351 = vld [vmem:[#allocation4 + $0x78] sm:$0xff]
    %v352 = vld [vmem:[#allocation4 + $0x80] sm:$0xff]
    %v353 = vld [vmem:[#allocation4 + $0x88] sm:$0xff]
    %v354 = vld [vmem:[#allocation4 + $0x90] sm:$0xff]
    %v355 = vld [vmem:[#allocation4 + $0x98] sm:$0xff]
    %v356 = vld [vmem:[#allocation4 + $0xa0] sm:$0xff]
    %v357 = vld [vmem:[#allocation4 + $0xa8] sm:$0xff]
    %v358 = vld [vmem:[#allocation4 + $0xb0] sm:$0xff]
    %v359 = vld [vmem:[#allocation4 + $0xb8] sm:$0xff]
    %v360 = vld [vmem:[#allocation4 + $0xc0] sm:$0xff]
    %v361 = vld [vmem:[#allocation4 + $0xc8] sm:$0xff]
    %v362 = vld [vmem:[#allocation4 + $0xd0] sm:$0xff]
    %v363 = vld [vmem:[#allocation4 + $0xd8] sm:$0xff]
    %v364 = vld [vmem:[#allocation4 + $0xe0] sm:$0xff]
    %v365 = vld [vmem:[#allocation4 + $0xe8] sm:$0xff]
    %v366 = vld [vmem:[#allocation4 + $0xf0] sm:$0xff]
    %v367 = vld [vmem:[#allocation4 + $0xf8] sm:$0xff]
    %v368 = vld [vmem:[#allocation4 + $0x100] sm:$0xff]
    %v369 = vld [vmem:[#allocation4 + $0x108] sm:$0xff]
    %v370 = vld [vmem:[#allocation4 + $0x110] sm:$0xff]
    %v371 = vld [vmem:[#allocation4 + $0x118] sm:$0xff]
    %v372 = vld [vmem:[#allocation4 + $0x120] sm:$0xff]
    %v373 = vld [vmem:[#allocation4 + $0x128] sm:$0xff]
    %v374 = vld [vmem:[#allocation4 + $0x130] sm:$0xff]
    %v375 = vld [vmem:[#allocation4 + $0x138] sm:$0xff]
    %v376 = vld [vmem:[#allocation4 + $0x140] sm:$0xff]
    %v377 = vld [vmem:[#allocation4 + $0x148] sm:$0xff]
    %v378 = vld [vmem:[#allocation4 + $0x150] sm:$0xff]
    %v379 = vld [vmem:[#allocation4 + $0x158] sm:$0xff]
    %v380 = vld [vmem:[#allocation4 + $0x160] sm:$0xff]
    %v381 = vld [vmem:[#allocation4 + $0x168] sm:$0xff]
    %v382 = vld [vmem:[#allocation4 + $0x170] sm:$0xff]
    %v383 = vld [vmem:[#allocation4 + $0x178] sm:$0xff]
    %v384 = vld [vmem:[#allocation4 + $0x180] sm:$0xff]
    %v385 = vld [vmem:[#allocation4 + $0x188] sm:$0xff]
    %v386 = vld [vmem:[#allocation4 + $0x190] sm:$0xff]
    %v387 = vld [vmem:[#allocation4 + $0x198] sm:$0xff]
    %v388 = vld [vmem:[#allocation4 + $0x1a0] sm:$0xff]
    %v389 = vld [vmem:[#allocation4 + $0x1a8] sm:$0xff]
    %v390 = vld [vmem:[#allocation4 + $0x1b0] sm:$0xff]
    %v391 = vld [vmem:[#allocation4 + $0x1b8] sm:$0xff]
    %v392 = vld [vmem:[#allocation4 + $0x1c0] sm:$0xff]
    %v393 = vld [vmem:[#allocation4 + $0x1c8] sm:$0xff]
    %v394 = vld [vmem:[#allocation4 + $0x1d0] sm:$0xff]
    %v395 = vld [vmem:[#allocation4 + $0x1d8] sm:$0xff]
    %v396 = vld [vmem:[#allocation4 + $0x1e0] sm:$0xff]
    %v397 = vld [vmem:[#allocation4 + $0x1e8] sm:$0xff]
    %v398 = vld [vmem:[#allocation4 + $0x1f0] sm:$0xff]
    %v399 = vld [vmem:[#allocation4 + $0x1f8] sm:$0xff]
    %v400 = vld [vmem:[#allocation4 + $0x200] sm:$0xff]
    %v401 = vld [vmem:[#allocation4 + $0x208] sm:$0xff]
    %v402 = vld [vmem:[#allocation4 + $0x210] sm:$0xff]
    %v403 = vld [vmem:[#allocation4 + $0x218] sm:$0xff]
    %v404 = vld [vmem:[#allocation4 + $0x220] sm:$0xff]
    %v405 = vld [vmem:[#allocation4 + $0x228] sm:$0xff]
    %v406 = vld [vmem:[#allocation4 + $0x230] sm:$0xff]
    %v407 = vld [vmem:[#allocation4 + $0x238] sm:$0xff]
    %v408 = vld [vmem:[#allocation4 + $0x240] sm:$0xff]
    %v409 = vld [vmem:[#allocation4 + $0x248] sm:$0xff]
    %v410 = vld [vmem:[#allocation4 + $0x250] sm:$0xff]
    %v411 = vld [vmem:[#allocation4 + $0x258] sm:$0xff]
    %v412 = vld [vmem:[#allocation4 + $0x260] sm:$0xff]
    %v413 = vld [vmem:[#allocation4 + $0x268] sm:$0xff]
    %v414 = vld [vmem:[#allocation4 + $0x270] sm:$0xff]
    %v415 = vld [vmem:[#allocation4 + $0x278] sm:$0xff]
    %v416 = vld [vmem:[#allocation4 + $0x280] sm:$0xff]
    %v417 = vld [vmem:[#allocation4 + $0x288] sm:$0xff]
    %v418 = vld [vmem:[#allocation4 + $0x290] sm:$0xff]
    %v419 = vld [vmem:[#allocation4 + $0x298] sm:$0xff]
    %v420 = vld [vmem:[#allocation4 + $0x2a0] sm:$0xff]
    %v421 = vld [vmem:[#allocation4 + $0x2a8] sm:$0xff]
    %v422 = vld [vmem:[#allocation4 + $0x2b0] sm:$0xff]
    %v423 = vld [vmem:[#allocation4 + $0x2b8] sm:$0xff]
    %v424 = vld [vmem:[#allocation4 + $0x2c0] sm:$0xff]
    %v425 = vld [vmem:[#allocation4 + $0x2c8] sm:$0xff]
    %v426 = vld [vmem:[#allocation4 + $0x2d0] sm:$0xff]
    %v427 = vld [vmem:[#allocation4 + $0x2d8] sm:$0xff]
    %v428 = vld [vmem:[#allocation4 + $0x2e0] sm:$0xff]
    %v429 = vld [vmem:[#allocation4 + $0x2e8] sm:$0xff]
    %v430 = vld [vmem:[#allocation4 + $0x2f0] sm:$0xff]
    %v431 = vld [vmem:[#allocation4 + $0x2f8] sm:$0xff]
    %v432 = vld [vmem:[#allocation4 + $0x300] sm:$0xff]
    %v433 = vld [vmem:[#allocation4 + $0x308] sm:$0xff]
    %v434 = vld [vmem:[#allocation4 + $0x310] sm:$0xff]
    %v435 = vld [vmem:[#allocation4 + $0x318] sm:$0xff]
    %v436 = vld [vmem:[#allocation4 + $0x320] sm:$0xff]
    %v437 = vld [vmem:[#allocation4 + $0x328] sm:$0xff]
    %v438 = vld [vmem:[#allocation4 + $0x330] sm:$0xff]
    %v439 = vld [vmem:[#allocation4 + $0x338] sm:$0xff]
    %v440 = vld [vmem:[#allocation4 + $0x340] sm:$0xff]
    %v441 = vld [vmem:[#allocation4 + $0x348] sm:$0xff]
    %v442 = vld [vmem:[#allocation4 + $0x350] sm:$0xff]
    %v443 = vld [vmem:[#allocation4 + $0x358] sm:$0xff]
    %v444 = vld [vmem:[#allocation4 + $0x360] sm:$0xff]
    %v445 = vld [vmem:[#allocation4 + $0x368] sm:$0xff]
    %v446 = vld [vmem:[#allocation4 + $0x370] sm:$0xff]
    %v447 = vld [vmem:[#allocation4 + $0x378] sm:$0xff]
    %v448 = vld [vmem:[#allocation4 + $0x380] sm:$0xff]
    %v449 = vld [vmem:[#allocation4 + $0x388] sm:$0xff]
    %v450 = vld [vmem:[#allocation4 + $0x390] sm:$0xff]
    %v451 = vld [vmem:[#allocation4 + $0x398] sm:$0xff]
    %v452 = vld [vmem:[#allocation4 + $0x3a0] sm:$0xff]
    %v453 = vld [vmem:[#allocation4 + $0x3a8] sm:$0xff]
    %v454 = vld [vmem:[#allocation4 + $0x3b0] sm:$0xff]
    %v455 = vld [vmem:[#allocation4 + $0x3b8] sm:$0xff]
    %v456 = vld [vmem:[#allocation4 + $0x3c0] sm:$0xff]
    %v457 = vld [vmem:[#allocation4 + $0x3c8] sm:$0xff]
    %v458 = vld [vmem:[#allocation4 + $0x3d0] sm:$0xff]
    %v459 = vld [vmem:[#allocation4 + $0x3d8] sm:$0xff]
    %v460 = vld [vmem:[#allocation4 + $0x3e0] sm:$0xff]
    %v461 = vld [vmem:[#allocation4 + $0x3e8] sm:$0xff]
    %v462 = vld [vmem:[#allocation4 + $0x3f0] sm:$0xff]
    %v463 = vld [vmem:[#allocation4 + $0x3f8] sm:$0xff]
    %v464 = vld [vmem:[#allocation4 + $0x400] sm:$0xff]
    %v465 = vld [vmem:[#allocation4 + $0x408] sm:$0xff]
    %v466 = vld [vmem:[#allocation4 + $0x410] sm:$0xff]
    %v467 = vld [vmem:[#allocation4 + $0x418] sm:$0xff]
    %v468 = vld [vmem:[#allocation4 + $0x420] sm:$0xff]
    %v469 = vld [vmem:[#allocation4 + $0x428] sm:$0xff]
    %v470 = vld [vmem:[#allocation4 + $0x430] sm:$0xff]
    %v471 = vld [vmem:[#allocation4 + $0x438] sm:$0xff]
    %v472 = vld [vmem:[#allocation4 + $0x440] sm:$0xff]
    %v473 = vld [vmem:[#allocation4 + $0x448] sm:$0xff]
    %v474 = vld [vmem:[#allocation4 + $0x450] sm:$0xff]
    %v475 = vld [vmem:[#allocation4 + $0x458] sm:$0xff]
    %v476 = vld [vmem:[#allocation4 + $0x460] sm:$0xff]
    %v477 = vld [vmem:[#allocation4 + $0x468] sm:$0xff]
    %v478 = vld [vmem:[#allocation4 + $0x470] sm:$0xff]
    %v479 = vld [vmem:[#allocation4 + $0x478] sm:$0xff]
    %v480 = vld [vmem:[#allocation4 + $0x480] sm:$0xff]
    %v481 = vld [vmem:[#allocation4 + $0x488] sm:$0xff]
    %v482 = vld [vmem:[#allocation4 + $0x490] sm:$0xff]
    %v483 = vld [vmem:[#allocation4 + $0x498] sm:$0xff]
    %v484 = vld [vmem:[#allocation4 + $0x4a0] sm:$0xff]
    %v485 = vld [vmem:[#allocation4 + $0x4a8] sm:$0xff]
    %v486 = vld [vmem:[#allocation4 + $0x4b0] sm:$0xff]
    %v487 = vld [vmem:[#allocation4 + $0x4b8] sm:$0xff]
    %v488 = vld [vmem:[#allocation4 + $0x4c0] sm:$0xff]
    %v489 = vld [vmem:[#allocation4 + $0x4c8] sm:$0xff]
    %v490 = vld [vmem:[#allocation4 + $0x4d0] sm:$0xff]
    %v491 = vld [vmem:[#allocation4 + $0x4d8] sm:$0xff]
    %v492 = vld [vmem:[#allocation4 + $0x4e0] sm:$0xff]
    %v493 = vld [vmem:[#allocation4 + $0x4e8] sm:$0xff]
    %v494 = vld [vmem:[#allocation4 + $0x4f0] sm:$0xff]
    %v495 = vld [vmem:[#allocation4 + $0x4f8] sm:$0xff]
    %v496 = vld [vmem:[#allocation4 + $0x500] sm:$0xff]
    %v497 = vld [vmem:[#allocation4 + $0x508] sm:$0xff]
    %v498 = vld [vmem:[#allocation4 + $0x510] sm:$0xff]
    %v499 = vld [vmem:[#allocation4 + $0x518] sm:$0xff]
    %v500 = vld [vmem:[#allocation4 + $0x520] sm:$0xff]
    %v501 = vld [vmem:[#allocation4 + $0x528] sm:$0xff]
    %v502 = vld [vmem:[#allocation4 + $0x530] sm:$0xff]
    %v503 = vld [vmem:[#allocation4 + $0x538] sm:$0xff]
    %v504 = vld [vmem:[#allocation4 + $0x540] sm:$0xff]
    %v505 = vld [vmem:[#allocation4 + $0x548] sm:$0xff]
    %v506 = vld [vmem:[#allocation4 + $0x550] sm:$0xff]
    %v507 = vld [vmem:[#allocation4 + $0x558] sm:$0xff]
    %v508 = vld [vmem:[#allocation4 + $0x560] sm:$0xff]
    %v509 = vld [vmem:[#allocation4 + $0x568] sm:$0xff]
    %v510 = vld [vmem:[#allocation4 + $0x570] sm:$0xff]
    %v511 = vld [vmem:[#allocation4 + $0x578] sm:$0xff]
    %v512 = vld [vmem:[#allocation4 + $0x580] sm:$0xff]
    %v513 = vld [vmem:[#allocation4 + $0x588] sm:$0xff]
    %v514 = vld [vmem:[#allocation4 + $0x590] sm:$0xff]
    %v515 = vld [vmem:[#allocation4 + $0x598] sm:$0xff]
    %v516 = vld [vmem:[#allocation4 + $0x5a0] sm:$0xff]
    %v517 = vld [vmem:[#allocation4 + $0x5a8] sm:$0xff]
    %v518 = vld [vmem:[#allocation4 + $0x5b0] sm:$0xff]
    %v519 = vld [vmem:[#allocation4 + $0x5b8] sm:$0xff]
    %v520 = vld [vmem:[#allocation4 + $0x5c0] sm:$0xff]
    %v521 = vld [vmem:[#allocation4 + $0x5c8] sm:$0xff]
    %v522 = vld [vmem:[#allocation4 + $0x5d0] sm:$0xff]
    %v523 = vld [vmem:[#allocation4 + $0x5d8] sm:$0xff]
    %v524 = vld [vmem:[#allocation4 + $0x5e0] sm:$0xff]
    %v525 = vld [vmem:[#allocation4 + $0x5e8] sm:$0xff]
    %v526 = vld [vmem:[#allocation4 + $0x5f0] sm:$0xff]
    %v527 = vld [vmem:[#allocation4 + $0x5f8] sm:$0xff]
    %v528 = vld [vmem:[#allocation4 + $0x600] sm:$0xff]
    %v529 = vld [vmem:[#allocation4 + $0x608] sm:$0xff]
    %v530 = vld [vmem:[#allocation4 + $0x610] sm:$0xff]
    %v531 = vld [vmem:[#allocation4 + $0x618] sm:$0xff]
    %v532 = vld [vmem:[#allocation4 + $0x620] sm:$0xff]
    %v533 = vld [vmem:[#allocation4 + $0x628] sm:$0xff]
    %v534 = vld [vmem:[#allocation4 + $0x630] sm:$0xff]
    %v535 = vld [vmem:[#allocation4 + $0x638] sm:$0xff]
    %v536 = vld [vmem:[#allocation4 + $0x640] sm:$0xff]
    %v537 = vld [vmem:[#allocation4 + $0x648] sm:$0xff]
    %v538 = vld [vmem:[#allocation4 + $0x650] sm:$0xff]
    %v539 = vld [vmem:[#allocation4 + $0x658] sm:$0xff]
    %v540 = vld [vmem:[#allocation4 + $0x660] sm:$0xff]
    %v541 = vld [vmem:[#allocation4 + $0x668] sm:$0xff]
    %v542 = vld [vmem:[#allocation4 + $0x670] sm:$0xff]
    %v543 = vld [vmem:[#allocation4 + $0x678] sm:$0xff]
    %v544 = vld [vmem:[#allocation4 + $0x680] sm:$0xff]
    %v545 = vld [vmem:[#allocation4 + $0x688] sm:$0xff]
    %v546 = vld [vmem:[#allocation4 + $0x690] sm:$0xff]
    %v547 = vld [vmem:[#allocation4 + $0x698] sm:$0xff]
    %v548 = vld [vmem:[#allocation4 + $0x6a0] sm:$0xff]
    %v549 = vld [vmem:[#allocation4 + $0x6a8] sm:$0xff]
    %v550 = vld [vmem:[#allocation4 + $0x6b0] sm:$0xff]
    %v551 = vld [vmem:[#allocation4 + $0x6b8] sm:$0xff]
    %v552 = vld [vmem:[#allocation4 + $0x6c0] sm:$0xff]
    %v553 = vld [vmem:[#allocation4 + $0x6c8] sm:$0xff]
    %v554 = vld [vmem:[#allocation4 + $0x6d0] sm:$0xff]
    %v555 = vld [vmem:[#allocation4 + $0x6d8] sm:$0xff]
    %v556 = vld [vmem:[#allocation4 + $0x6e0] sm:$0xff]
    %v557 = vld [vmem:[#allocation4 + $0x6e8] sm:$0xff]
    %v558 = vld [vmem:[#allocation4 + $0x6f0] sm:$0xff]
    %v559 = vld [vmem:[#allocation4 + $0x6f8] sm:$0xff]
    %v560 = vld [vmem:[#allocation4 + $0x700] sm:$0xff]
    %v561 = vld [vmem:[#allocation4 + $0x708] sm:$0xff]
    %v562 = vld [vmem:[#allocation4 + $0x710] sm:$0xff]
    %v563 = vld [vmem:[#allocation4 + $0x718] sm:$0xff]
    %v564 = vld [vmem:[#allocation4 + $0x720] sm:$0xff]
    %v565 = vld [vmem:[#allocation4 + $0x728] sm:$0xff]
    %v566 = vld [vmem:[#allocation4 + $0x730] sm:$0xff]
    %v567 = vld [vmem:[#allocation4 + $0x738] sm:$0xff]
    %v568 = vld [vmem:[#allocation4 + $0x740] sm:$0xff]
    %v569 = vld [vmem:[#allocation4 + $0x748] sm:$0xff]
    %v570 = vld [vmem:[#allocation4 + $0x750] sm:$0xff]
    %v571 = vld [vmem:[#allocation4 + $0x758] sm:$0xff]
    %v572 = vld [vmem:[#allocation4 + $0x760] sm:$0xff]
    %v573 = vld [vmem:[#allocation4 + $0x768] sm:$0xff]
    %v574 = vld [vmem:[#allocation4 + $0x770] sm:$0xff]
    %v575 = vld [vmem:[#allocation4 + $0x778] sm:$0xff]
    %v576 = vld [vmem:[#allocation4 + $0x780] sm:$0xff]
    %v577 = vld [vmem:[#allocation4 + $0x788] sm:$0xff]
    %v578 = vld [vmem:[#allocation4 + $0x790] sm:$0xff]
    %v579 = vld [vmem:[#allocation4 + $0x798] sm:$0xff]
    %v580 = vld [vmem:[#allocation4 + $0x7a0] sm:$0xff]
    %v581 = vld [vmem:[#allocation4 + $0x7a8] sm:$0xff]
    %v582 = vld [vmem:[#allocation4 + $0x7b0] sm:$0xff]
    %v583 = vld [vmem:[#allocation4 + $0x7b8] sm:$0xff]
    %v584 = vld [vmem:[#allocation4 + $0x7c0] sm:$0xff]
    %v585 = vld [vmem:[#allocation4 + $0x7c8] sm:$0xff]
    %v586 = vld [vmem:[#allocation4 + $0x7d0] sm:$0xff]
    %v587 = vld [vmem:[#allocation4 + $0x7d8] sm:$0xff]
    %v588 = vld [vmem:[#allocation4 + $0x7e0] sm:$0xff]
    %v589 = vld [vmem:[#allocation4 + $0x7e8] sm:$0xff]
    %v590 = vld [vmem:[#allocation4 + $0x7f0] sm:$0xff]
    %v591 = vld [vmem:[#allocation4 + $0x7f8] sm:$0xff]
    %v592 = vld [vmem:[#allocation6] sm:$0xf]
    %v594 = vlaneseq
    %v595 = vshrl.u32 %v594, 7
    %v596 = vsub.s32 0, %v595
    %v597 = vrot.slane %v592, %v596
    %v598 = vlaneseq
    %v599 = vshrl.u32 %v598, 7
    %v600 = vsub.s32 1, %v599
    %v601 = vrot.slane %v592, %v600
    %v602 = vlaneseq
    %v603 = vshrl.u32 %v602, 7
    %v604 = vsub.s32 2, %v603
    %v605 = vrot.slane %v592, %v604
    %v606 = vlaneseq
    %v607 = vshrl.u32 %v606, 7
    %v608 = vsub.s32 3, %v607
    %v609 = vrot.slane %v592, %v608
    %614 = vmatprep.subr.mxu0 %v337
    %615 = vmatpush1.msra.mxu0 %v336
    %616 = vmatprep.subr.mxu0 %v341
    %617 = vmatpush1.msra.mxu0 %v340
    %618 = vmatprep.subr.mxu0 %v345
    %619 = vmatpush1.msra.mxu0 %v344
    %620 = vmatprep.subr.mxu0 %v349
    %621 = vmatpush1.msra.mxu0 %v348
    %622 = vmatprep.subr.mxu0 %v353
    %623 = vmatpush1.msra.mxu0 %v352
    %624 = vmatprep.subr.mxu0 %v357
    %625 = vmatpush1.msra.mxu0 %v356
    %626 = vmatprep.subr.mxu0 %v361
    %627 = vmatpush1.msra.mxu0 %v360
    %628 = vmatprep.subr.mxu0 %v365
    %629 = vmatpush1.msra.mxu0 %v364
    %630 = vmatprep.subr.mxu0 %v369
    %631 = vmatpush1.msra.mxu0 %v368
    %632 = vmatprep.subr.mxu0 %v373
    %633 = vmatpush1.msra.mxu0 %v372
    %634 = vmatprep.subr.mxu0 %v377
    %635 = vmatpush1.msra.mxu0 %v376
    %636 = vmatprep.subr.mxu0 %v381
    %637 = vmatpush1.msra.mxu0 %v380
    %638 = vmatprep.subr.mxu0 %v385
    %639 = vmatpush1.msra.mxu0 %v384
    %640 = vmatprep.subr.mxu0 %v389
    %641 = vmatpush1.msra.mxu0 %v388
    %642 = vmatprep.subr.mxu0 %v393
    %643 = vmatpush1.msra.mxu0 %v392
    %644 = vmatprep.subr.mxu0 %v397
    %645 = vmatpush1.msra.mxu0 %v396
    %646 = vmatprep.subr.mxu0 %v401
    %647 = vmatpush1.msra.mxu0 %v400
    %648 = vmatprep.subr.mxu0 %v405
    %649 = vmatpush1.msra.mxu0 %v404
    %650 = vmatprep.subr.mxu0 %v409
    %651 = vmatpush1.msra.mxu0 %v408
    %652 = vmatprep.subr.mxu0 %v413
    %653 = vmatpush1.msra.mxu0 %v412
    %654 = vmatprep.subr.mxu0 %v417
    %655 = vmatpush1.msra.mxu0 %v416
    %656 = vmatprep.subr.mxu0 %v421
    %657 = vmatpush1.msra.mxu0 %v420
    %658 = vmatprep.subr.mxu0 %v425
    %659 = vmatpush1.msra.mxu0 %v424
    %660 = vmatprep.subr.mxu0 %v429
    %661 = vmatpush1.msra.mxu0 %v428
    %662 = vmatprep.subr.mxu0 %v433
    %663 = vmatpush1.msra.mxu0 %v432
    %664 = vmatprep.subr.mxu0 %v437
    %665 = vmatpush1.msra.mxu0 %v436
    %666 = vmatprep.subr.mxu0 %v441
    %667 = vmatpush1.msra.mxu0 %v440
    %668 = vmatprep.subr.mxu0 %v445
    %669 = vmatpush1.msra.mxu0 %v444
    %670 = vmatprep.subr.mxu0 %v449
    %671 = vmatpush1.msra.mxu0 %v448
    %672 = vmatprep.subr.mxu0 %v453
    %673 = vmatpush1.msra.mxu0 %v452
    %674 = vmatprep.subr.mxu0 %v457
    %675 = vmatpush1.msra.mxu0 %v456
    %676 = vmatprep.subr.mxu0 %v461
    %677 = vmatpush1.msra.mxu0 %v460
    %678 = vmatprep.mubr.f32.mxu0 %v209
    %679 = vmatmul.mubr.f32.gmra.mrb[0].mxu0 %v208
    %v680 = vpop.f32.mrb[0].mxu0
    %v681 = vadd.f32 %v597, %v680
    %v682 = vpop.f32.mrb[0].mxu0
    %v683 = vadd.f32 %v601, %v682
    %684 = vmatprep.mubr.f32.mxu0 %v213
    %685 = vmatmul.mubr.f32.gmra.mrb[0].mxu0 %v212
    %v686 = vpop.f32.mrb[0].mxu0
    %v687 = vadd.f32 %v597, %v686
    %v688 = vpop.f32.mrb[0].mxu0
    %v689 = vadd.f32 %v601, %v688
    %690 = vmatprep.mubr.f32.mxu0 %v217
    %691 = vmatmul.mubr.f32.gmra.mrb[0].mxu0 %v216
    %v692 = vpop.f32.mrb[0].mxu0
    %v693 = vadd.f32 %v597, %v692
    %v694 = vpop.f32.mrb[0].mxu0
    %v695 = vadd.f32 %v601, %v694
    %696 = vmatprep.mubr.f32.mxu0 %v221
    %697 = vmatmul.mubr.f32.gmra.mrb[0].mxu0 %v220
    %v698 = vpop.f32.mrb[0].mxu0
    %v699 = vadd.f32 %v597, %v698
    %v700 = vpop.f32.mrb[0].mxu0
    %v701 = vadd.f32 %v601, %v700
    %702 = vmatprep.mubr.f32.mxu0 %v225
    %703 = vmatmul.mubr.f32.gmra.mrb[0].mxu0 %v224
    %v704 = vpop.f32.mrb[0].mxu0
    %v705 = vadd.f32 %v597, %v704
    %v706 = vpop.f32.mrb[0].mxu0
    %v707 = vadd.f32 %v601, %v706
    %708 = vmatprep.mubr.f32.mxu0 %v229
    %709 = vmatmul.mubr.f32.gmra.mrb[0].mxu0 %v228
    %v710 = vpop.f32.mrb[0].mxu0
    %v711 = vadd.f32 %v597, %v710
    %v712 = vpop.f32.mrb[0].mxu0
    %v713 = vadd.f32 %v601, %v712
    %714 = vmatprep.mubr.f32.mxu0 %v233
    %715 = vmatmul.mubr.f32.gmra.mrb[0].mxu0 %v232
    %v716 = vpop.f32.mrb[0].mxu0
    %v717 = vadd.f32 %v597, %v716
    %v718 = vpop.f32.mrb[0].mxu0
    %v719 = vadd.f32 %v601, %v718
    %720 = vmatprep.mubr.f32.mxu0 %v237
    %721 = vmatmul.mubr.f32.gmra.mrb[0].mxu0 %v236
    %v722 = vpop.f32.mrb[0].mxu0
    %v723 = vadd.f32 %v597, %v722
    %v724 = vpop.f32.mrb[0].mxu0
    %v725 = vadd.f32 %v601, %v724
    %726 = vmatprep.mubr.f32.mxu0 %v241
    %727 = vmatmul.mubr.f32.gmra.mrb[0].mxu0 %v240
    %v728 = vpop.f32.mrb[0].mxu0
    %v729 = vadd.f32 %v597, %v728
    %v730 = vpop.f32.mrb[0].mxu0
    %v731 = vadd.f32 %v601, %v730
    %732 = vmatprep.mubr.f32.mxu0 %v245
    %733 = vmatmul.mubr.f32.gmra.mrb[0].mxu0 %v244
    %v734 = vpop.f32.mrb[0].mxu0
    %v735 = vadd.f32 %v597, %v734
    %v736 = vpop.f32.mrb[0].mxu0
    %v737 = vadd.f32 %v601, %v736
    %738 = vmatprep.mubr.f32.mxu0 %v249
    %739 = vmatmul.mubr.f32.gmra.mrb[0].mxu0 %v248
    %v740 = vpop.f32.mrb[0].mxu0
    %v741 = vadd.f32 %v597, %v740
    %v742 = vpop.f32.mrb[0].mxu0
    %v743 = vadd.f32 %v601, %v742
    %744 = vmatprep.mubr.f32.mxu0 %v253
    %745 = vmatmul.mubr.f32.gmra.mrb[0].mxu0 %v252
    %v746 = vpop.f32.mrb[0].mxu0
    %v747 = vadd.f32 %v597, %v746
    %v748 = vpop.f32.mrb[0].mxu0
    %v749 = vadd.f32 %v601, %v748
    %750 = vmatprep.mubr.f32.mxu0 %v257
    %751 = vmatmul.mubr.f32.gmra.mrb[0].mxu0 %v256
    %v752 = vpop.f32.mrb[0].mxu0
    %v753 = vadd.f32 %v597, %v752
    %v754 = vpop.f32.mrb[0].mxu0
    %v755 = vadd.f32 %v601, %v754
    %756 = vmatprep.mubr.f32.mxu0 %v261
    %757 = vmatmul.mubr.f32.gmra.mrb[0].mxu0 %v260
    %v758 = vpop.f32.mrb[0].mxu0
    %v759 = vadd.f32 %v597, %v758
    %v760 = vpop.f32.mrb[0].mxu0
    %v761 = vadd.f32 %v601, %v760
    %762 = vmatprep.mubr.f32.mxu0 %v265
    %763 = vmatmul.mubr.f32.gmra.mrb[0].mxu0 %v264
    %v764 = vpop.f32.mrb[0].mxu0
    %v765 = vadd.f32 %v597, %v764
    %v766 = vpop.f32.mrb[0].mxu0
    %v767 = vadd.f32 %v601, %v766
    %768 = vmatprep.mubr.f32.mxu0 %v269
    %769 = vmatmul.mubr.f32.gmra.mrb[0].mxu0 %v268
    %v770 = vpop.f32.mrb[0].mxu0
    %v771 = vadd.f32 %v597, %v770
    %v772 = vpop.f32.mrb[0].mxu0
    %v773 = vadd.f32 %v601, %v772
    %774 = vmatprep.mubr.f32.mxu0 %v273
    %775 = vmatmul.mubr.f32.gmra.mrb[0].mxu0 %v272
    %v776 = vpop.f32.mrb[0].mxu0
    %v777 = vadd.f32 %v597, %v776
    %v778 = vpop.f32.mrb[0].mxu0
    %v779 = vadd.f32 %v601, %v778
    %780 = vmatprep.mubr.f32.mxu0 %v277
    %781 = vmatmul.mubr.f32.gmra.mrb[0].mxu0 %v276
    %v782 = vpop.f32.mrb[0].mxu0
    %v783 = vadd.f32 %v597, %v782
    %v784 = vpop.f32.mrb[0].mxu0
    %v785 = vadd.f32 %v601, %v784
    %786 = vmatprep.mubr.f32.mxu0 %v281
    %787 = vmatmul.mubr.f32.gmra.mrb[0].mxu0 %v280
    %v788 = vpop.f32.mrb[0].mxu0
    %v789 = vadd.f32 %v597, %v788
    %v790 = vpop.f32.mrb[0].mxu0
    %v791 = vadd.f32 %v601, %v790
    %792 = vmatprep.mubr.f32.mxu0 %v285
    %793 = vmatmul.mubr.f32.gmra.mrb[0].mxu0 %v284
    %v794 = vpop.f32.mrb[0].mxu0
    %v795 = vadd.f32 %v597, %v794
    %v796 = vpop.f32.mrb[0].mxu0
    %v797 = vadd.f32 %v601, %v796
    %798 = vmatprep.mubr.f32.mxu0 %v289
    %799 = vmatmul.mubr.f32.gmra.mrb[0].mxu0 %v288
    %v800 = vpop.f32.mrb[0].mxu0
    %v801 = vadd.f32 %v597, %v800
    %v802 = vpop.f32.mrb[0].mxu0
    %v803 = vadd.f32 %v601, %v802
    %804 = vmatprep.mubr.f32.mxu0 %v293
    %805 = vmatmul.mubr.f32.gmra.mrb[0].mxu0 %v292
    %v806 = vpop.f32.mrb[0].mxu0
    %v807 = vadd.f32 %v597, %v806
    %v808 = vpop.f32.mrb[0].mxu0
    %v809 = vadd.f32 %v601, %v808
    %810 = vmatprep.mubr.f32.mxu0 %v297
    %811 = vmatmul.mubr.f32.gmra.mrb[0].mxu0 %v296
    %v812 = vpop.f32.mrb[0].mxu0
    %v813 = vadd.f32 %v597, %v812
    %v814 = vpop.f32.mrb[0].mxu0
    %v815 = vadd.f32 %v601, %v814
    %816 = vmatprep.mubr.f32.mxu0 %v301
    %817 = vmatmul.mubr.f32.gmra.mrb[0].mxu0 %v300
    %v818 = vpop.f32.mrb[0].mxu0
    %v819 = vadd.f32 %v597, %v818
    %v820 = vpop.f32.mrb[0].mxu0
    %v821 = vadd.f32 %v601, %v820
    %822 = vmatprep.mubr.f32.mxu0 %v305
    %823 = vmatmul.mubr.f32.gmra.mrb[0].mxu0 %v304
    %v824 = vpop.f32.mrb[0].mxu0
    %v825 = vadd.f32 %v597, %v824
    %v826 = vpop.f32.mrb[0].mxu0
    %v827 = vadd.f32 %v601, %v826
    %828 = vmatprep.mubr.f32.mxu0 %v309
    %829 = vmatmul.mubr.f32.gmra.mrb[0].mxu0 %v308
    %v830 = vpop.f32.mrb[0].mxu0
    %v831 = vadd.f32 %v597, %v830
    %v832 = vpop.f32.mrb[0].mxu0
    %v833 = vadd.f32 %v601, %v832
    %834 = vmatprep.mubr.f32.mxu0 %v313
    %835 = vmatmul.mubr.f32.gmra.mrb[0].mxu0 %v312
    %v836 = vpop.f32.mrb[0].mxu0
    %v837 = vadd.f32 %v597, %v836
    %v838 = vpop.f32.mrb[0].mxu0
    %v839 = vadd.f32 %v601, %v838
    %840 = vmatprep.mubr.f32.mxu0 %v317
    %841 = vmatmul.mubr.f32.gmra.mrb[0].mxu0 %v316
    %v842 = vpop.f32.mrb[0].mxu0
    %v843 = vadd.f32 %v597, %v842
    %v844 = vpop.f32.mrb[0].mxu0
    %v845 = vadd.f32 %v601, %v844
    %846 = vmatprep.mubr.f32.mxu0 %v321
    %847 = vmatmul.mubr.f32.gmra.mrb[0].mxu0 %v320
    %v848 = vpop.f32.mrb[0].mxu0
    %v849 = vadd.f32 %v597, %v848
    %v850 = vpop.f32.mrb[0].mxu0
    %v851 = vadd.f32 %v601, %v850
    %852 = vmatprep.mubr.f32.mxu0 %v325
    %853 = vmatmul.mubr.f32.gmra.mrb[0].mxu0 %v324
    %v854 = vpop.f32.mrb[0].mxu0
    %v855 = vadd.f32 %v597, %v854
    %v856 = vpop.f32.mrb[0].mxu0
    %v857 = vadd.f32 %v601, %v856
    %858 = vmatprep.mubr.f32.mxu0 %v329
    %859 = vmatmul.mubr.f32.gmra.mrb[0].mxu0 %v328
    %v860 = vpop.f32.mrb[0].mxu0
    %v861 = vadd.f32 %v597, %v860
    %v862 = vpop.f32.mrb[0].mxu0
    %v863 = vadd.f32 %v601, %v862
    %864 = vmatprep.mubr.f32.mxu0 %v333
    %865 = vmatmul.mubr.f32.gmra.mrb[0].mxu0 %v332
    %v866 = vpop.f32.mrb[0].mxu0
    %v867 = vadd.f32 %v597, %v866
    %v868 = vpop.f32.mrb[0].mxu0
    %v869 = vadd.f32 %v601, %v868
    %870 = vdwg.mxu0
    %871 = vmatprep.subr.mxu0 %v465
    %872 = vmatpush1.msra.mxu0 %v464
    %873 = vmatprep.subr.mxu0 %v469
    %874 = vmatpush1.msra.mxu0 %v468
    %875 = vmatprep.subr.mxu0 %v473
    %876 = vmatpush1.msra.mxu0 %v472
    %877 = vmatprep.subr.mxu0 %v477
    %878 = vmatpush1.msra.mxu0 %v476
    %879 = vmatprep.subr.mxu0 %v481
    %880 = vmatpush1.msra.mxu0 %v480
    %881 = vmatprep.subr.mxu0 %v485
    %882 = vmatpush1.msra.mxu0 %v484
    %883 = vmatprep.subr.mxu0 %v489
    %884 = vmatpush1.msra.mxu0 %v488
    %885 = vmatprep.subr.mxu0 %v493
    %886 = vmatpush1.msra.mxu0 %v492
    %887 = vmatprep.subr.mxu0 %v497
    %888 = vmatpush1.msra.mxu0 %v496
    %889 = vmatprep.subr.mxu0 %v501
    %890 = vmatpush1.msra.mxu0 %v500
    %891 = vmatprep.subr.mxu0 %v505
    %892 = vmatpush1.msra.mxu0 %v504
    %893 = vmatprep.subr.mxu0 %v509
    %894 = vmatpush1.msra.mxu0 %v508
    %895 = vmatprep.subr.mxu0 %v513
    %896 = vmatpush1.msra.mxu0 %v512
    %897 = vmatprep.subr.mxu0 %v517
    %898 = vmatpush1.msra.mxu0 %v516
    %899 = vmatprep.subr.mxu0 %v521
    %900 = vmatpush1.msra.mxu0 %v520
    %901 = vmatprep.subr.mxu0 %v525
    %902 = vmatpush1.msra.mxu0 %v524
    %903 = vmatprep.subr.mxu0 %v529
    %904 = vmatpush1.msra.mxu0 %v528
    %905 = vmatprep.subr.mxu0 %v533
    %906 = vmatpush1.msra.mxu0 %v532
    %907 = vmatprep.subr.mxu0 %v537
    %908 = vmatpush1.msra.mxu0 %v536
    %909 = vmatprep.subr.mxu0 %v541
    %910 = vmatpush1.msra.mxu0 %v540
    %911 = vmatprep.subr.mxu0 %v545
    %912 = vmatpush1.msra.mxu0 %v544
    %913 = vmatprep.subr.mxu0 %v549
    %914 = vmatpush1.msra.mxu0 %v548
    %915 = vmatprep.subr.mxu0 %v553
    %916 = vmatpush1.msra.mxu0 %v552
    %917 = vmatprep.subr.mxu0 %v557
    %918 = vmatpush1.msra.mxu0 %v556
    %919 = vmatprep.subr.mxu0 %v561
    %920 = vmatpush1.msra.mxu0 %v560
    %921 = vmatprep.subr.mxu0 %v565
    %922 = vmatpush1.msra.mxu0 %v564
    %923 = vmatprep.subr.mxu0 %v569
    %924 = vmatpush1.msra.mxu0 %v568
    %925 = vmatprep.subr.mxu0 %v573
    %926 = vmatpush1.msra.mxu0 %v572
    %927 = vmatprep.subr.mxu0 %v577
    %928 = vmatpush1.msra.mxu0 %v576
    %929 = vmatprep.subr.mxu0 %v581
    %930 = vmatpush1.msra.mxu0 %v580
    %931 = vmatprep.subr.mxu0 %v585
    %932 = vmatpush1.msra.mxu0 %v584
    %933 = vmatprep.subr.mxu0 %v589
    %934 = vmatpush1.msra.mxu0 %v588
    %935 = vmatprep.mubr.f32.mxu0 %v211
    %936 = vmatmul.mubr.f32.gmra.mrb[0].mxu0 %v210
    %v937 = vpop.f32.mrb[0].mxu0
    %v938 = vadd.f32 %v681, %v937
    %v939 = vpop.f32.mrb[0].mxu0
    %v940 = vadd.f32 %v683, %v939
    %941 = vmatprep.mubr.f32.mxu0 %v215
    %942 = vmatmul.mubr.f32.gmra.mrb[0].mxu0 %v214
    %v943 = vpop.f32.mrb[0].mxu0
    %v944 = vadd.f32 %v687, %v943
    %v945 = vpop.f32.mrb[0].mxu0
    %v946 = vadd.f32 %v689, %v945
    %947 = vmatprep.mubr.f32.mxu0 %v219
    %948 = vmatmul.mubr.f32.gmra.mrb[0].mxu0 %v218
    %v949 = vpop.f32.mrb[0].mxu0
    %v950 = vadd.f32 %v693, %v949
    %v951 = vpop.f32.mrb[0].mxu0
    %v952 = vadd.f32 %v695, %v951
    %953 = vmatprep.mubr.f32.mxu0 %v223
    %954 = vmatmul.mubr.f32.gmra.mrb[0].mxu0 %v222
    %v955 = vpop.f32.mrb[0].mxu0
    %v956 = vadd.f32 %v699, %v955
    %v957 = vpop.f32.mrb[0].mxu0
    %v958 = vadd.f32 %v701, %v957
    %959 = vmatprep.mubr.f32.mxu0 %v227
    %960 = vmatmul.mubr.f32.gmra.mrb[0].mxu0 %v226
    %v961 = vpop.f32.mrb[0].mxu0
    %v962 = vadd.f32 %v705, %v961
    %v963 = vpop.f32.mrb[0].mxu0
    %v964 = vadd.f32 %v707, %v963
    %965 = vmatprep.mubr.f32.mxu0 %v231
    %966 = vmatmul.mubr.f32.gmra.mrb[0].mxu0 %v230
    %v967 = vpop.f32.mrb[0].mxu0
    %v968 = vadd.f32 %v711, %v967
    %v969 = vpop.f32.mrb[0].mxu0
    %v970 = vadd.f32 %v713, %v969
    %971 = vmatprep.mubr.f32.mxu0 %v235
    %972 = vmatmul.mubr.f32.gmra.mrb[0].mxu0 %v234
    %v973 = vpop.f32.mrb[0].mxu0
    %v974 = vadd.f32 %v717, %v973
    %v975 = vpop.f32.mrb[0].mxu0
    %v976 = vadd.f32 %v719, %v975
    %977 = vmatprep.mubr.f32.mxu0 %v239
    %978 = vmatmul.mubr.f32.gmra.mrb[0].mxu0 %v238
    %v979 = vpop.f32.mrb[0].mxu0
    %v980 = vadd.f32 %v723, %v979
    %v981 = vpop.f32.mrb[0].mxu0
    %v982 = vadd.f32 %v725, %v981
    %983 = vmatprep.mubr.f32.mxu0 %v243
    %984 = vmatmul.mubr.f32.gmra.mrb[0].mxu0 %v242
    %v985 = vpop.f32.mrb[0].mxu0
    %v986 = vadd.f32 %v729, %v985
    %v987 = vpop.f32.mrb[0].mxu0
    %v988 = vadd.f32 %v731, %v987
    %989 = vmatprep.mubr.f32.mxu0 %v247
    %990 = vmatmul.mubr.f32.gmra.mrb[0].mxu0 %v246
    %v991 = vpop.f32.mrb[0].mxu0
    %v992 = vadd.f32 %v735, %v991
    %v993 = vpop.f32.mrb[0].mxu0
    %v994 = vadd.f32 %v737, %v993
    %995 = vmatprep.mubr.f32.mxu0 %v251
    %996 = vmatmul.mubr.f32.gmra.mrb[0].mxu0 %v250
    %v997 = vpop.f32.mrb[0].mxu0
    %v998 = vadd.f32 %v741, %v997
    %v999 = vpop.f32.mrb[0].mxu0
    %v1000 = vadd.f32 %v743, %v999
    %1001 = vmatprep.mubr.f32.mxu0 %v255
    %1002 = vmatmul.mubr.f32.gmra.mrb[0].mxu0 %v254
    %v1003 = vpop.f32.mrb[0].mxu0
    %v1004 = vadd.f32 %v747, %v1003
    %v1005 = vpop.f32.mrb[0].mxu0
    %v1006 = vadd.f32 %v749, %v1005
    %1007 = vmatprep.mubr.f32.mxu0 %v259
    %1008 = vmatmul.mubr.f32.gmra.mrb[0].mxu0 %v258
    %v1009 = vpop.f32.mrb[0].mxu0
    %v1010 = vadd.f32 %v753, %v1009
    %v1011 = vpop.f32.mrb[0].mxu0
    %v1012 = vadd.f32 %v755, %v1011
    %1013 = vmatprep.mubr.f32.mxu0 %v263
    %1014 = vmatmul.mubr.f32.gmra.mrb[0].mxu0 %v262
    %v1015 = vpop.f32.mrb[0].mxu0
    %v1016 = vadd.f32 %v759, %v1015
    %v1017 = vpop.f32.mrb[0].mxu0
    %v1018 = vadd.f32 %v761, %v1017
    %1019 = vmatprep.mubr.f32.mxu0 %v267
    %1020 = vmatmul.mubr.f32.gmra.mrb[0].mxu0 %v266
    %v1021 = vpop.f32.mrb[0].mxu0
    %v1022 = vadd.f32 %v765, %v1021
    %v1023 = vpop.f32.mrb[0].mxu0
    %v1024 = vadd.f32 %v767, %v1023
    %1025 = vmatprep.mubr.f32.mxu0 %v271
    %1026 = vmatmul.mubr.f32.gmra.mrb[0].mxu0 %v270
    %v1027 = vpop.f32.mrb[0].mxu0
    %v1028 = vadd.f32 %v771, %v1027
    %v1029 = vpop.f32.mrb[0].mxu0
    %v1030 = vadd.f32 %v773, %v1029
    %1031 = vmatprep.mubr.f32.mxu0 %v275
    %1032 = vmatmul.mubr.f32.gmra.mrb[0].mxu0 %v274
    %v1033 = vpop.f32.mrb[0].mxu0
    %v1034 = vadd.f32 %v777, %v1033
    %v1035 = vpop.f32.mrb[0].mxu0
    %v1036 = vadd.f32 %v779, %v1035
    %1037 = vmatprep.mubr.f32.mxu0 %v279
    %1038 = vmatmul.mubr.f32.gmra.mrb[0].mxu0 %v278
    %v1039 = vpop.f32.mrb[0].mxu0
    %v1040 = vadd.f32 %v783, %v1039
    %v1041 = vpop.f32.mrb[0].mxu0
    %v1042 = vadd.f32 %v785, %v1041
    %1043 = vmatprep.mubr.f32.mxu0 %v283
    %1044 = vmatmul.mubr.f32.gmra.mrb[0].mxu0 %v282
    %v1045 = vpop.f32.mrb[0].mxu0
    %v1046 = vadd.f32 %v789, %v1045
    %v1047 = vpop.f32.mrb[0].mxu0
    %v1048 = vadd.f32 %v791, %v1047
    %1049 = vmatprep.mubr.f32.mxu0 %v287
    %1050 = vmatmul.mubr.f32.gmra.mrb[0].mxu0 %v286
    %v1051 = vpop.f32.mrb[0].mxu0
    %v1052 = vadd.f32 %v795, %v1051
    %v1053 = vpop.f32.mrb[0].mxu0
    %v1054 = vadd.f32 %v797, %v1053
    %1055 = vmatprep.mubr.f32.mxu0 %v291
    %1056 = vmatmul.mubr.f32.gmra.mrb[0].mxu0 %v290
    %v1057 = vpop.f32.mrb[0].mxu0
    %v1058 = vadd.f32 %v801, %v1057
    %v1059 = vpop.f32.mrb[0].mxu0
    %v1060 = vadd.f32 %v803, %v1059
    %1061 = vmatprep.mubr.f32.mxu0 %v295
    %1062 = vmatmul.mubr.f32.gmra.mrb[0].mxu0 %v294
    %v1063 = vpop.f32.mrb[0].mxu0
    %v1064 = vadd.f32 %v807, %v1063
    %v1065 = vpop.f32.mrb[0].mxu0
    %v1066 = vadd.f32 %v809, %v1065
    %1067 = vmatprep.mubr.f32.mxu0 %v299
    %1068 = vmatmul.mubr.f32.gmra.mrb[0].mxu0 %v298
    %v1069 = vpop.f32.mrb[0].mxu0
    %v1070 = vadd.f32 %v813, %v1069
    %v1071 = vpop.f32.mrb[0].mxu0
    %v1072 = vadd.f32 %v815, %v1071
    %1073 = vmatprep.mubr.f32.mxu0 %v303
    %1074 = vmatmul.mubr.f32.gmra.mrb[0].mxu0 %v302
    %v1075 = vpop.f32.mrb[0].mxu0
    %v1076 = vadd.f32 %v819, %v1075
    %v1077 = vpop.f32.mrb[0].mxu0
    %v1078 = vadd.f32 %v821, %v1077
    %1079 = vmatprep.mubr.f32.mxu0 %v307
    %1080 = vmatmul.mubr.f32.gmra.mrb[0].mxu0 %v306
    %v1081 = vpop.f32.mrb[0].mxu0
    %v1082 = vadd.f32 %v825, %v1081
    %v1083 = vpop.f32.mrb[0].mxu0
    %v1084 = vadd.f32 %v827, %v1083
    %1085 = vmatprep.mubr.f32.mxu0 %v311
    %1086 = vmatmul.mubr.f32.gmra.mrb[0].mxu0 %v310
    %v1087 = vpop.f32.mrb[0].mxu0
    %v1088 = vadd.f32 %v831, %v1087
    %v1089 = vpop.f32.mrb[0].mxu0
    %v1090 = vadd.f32 %v833, %v1089
    %1091 = vmatprep.mubr.f32.mxu0 %v315
    %1092 = vmatmul.mubr.f32.gmra.mrb[0].mxu0 %v314
    %v1093 = vpop.f32.mrb[0].mxu0
    %v1094 = vadd.f32 %v837, %v1093
    %v1095 = vpop.f32.mrb[0].mxu0
    %v1096 = vadd.f32 %v839, %v1095
    %1097 = vmatprep.mubr.f32.mxu0 %v319
    %1098 = vmatmul.mubr.f32.gmra.mrb[0].mxu0 %v318
    %v1099 = vpop.f32.mrb[0].mxu0
    %v1100 = vadd.f32 %v843, %v1099
    %v1101 = vpop.f32.mrb[0].mxu0
    %v1102 = vadd.f32 %v845, %v1101
    %1103 = vmatprep.mubr.f32.mxu0 %v323
    %1104 = vmatmul.mubr.f32.gmra.mrb[0].mxu0 %v322
    %v1105 = vpop.f32.mrb[0].mxu0
    %v1106 = vadd.f32 %v849, %v1105
    %v1107 = vpop.f32.mrb[0].mxu0
    %v1108 = vadd.f32 %v851, %v1107
    %1109 = vmatprep.mubr.f32.mxu0 %v327
    %1110 = vmatmul.mubr.f32.gmra.mrb[0].mxu0 %v326
    %v1111 = vpop.f32.mrb[0].mxu0
    %v1112 = vadd.f32 %v855, %v1111
    %v1113 = vpop.f32.mrb[0].mxu0
    %v1114 = vadd.f32 %v857, %v1113
    %1115 = vmatprep.mubr.f32.mxu0 %v331
    %1116 = vmatmul.mubr.f32.gmra.mrb[0].mxu0 %v330
    %v1117 = vpop.f32.mrb[0].mxu0
    %v1118 = vadd.f32 %v861, %v1117
    %v1119 = vpop.f32.mrb[0].mxu0
    %v1120 = vadd.f32 %v863, %v1119
    %1121 = vmatprep.mubr.f32.mxu0 %v335
    %1122 = vmatmul.mubr.f32.gmra.mrb[0].mxu0 %v334
    %v1123 = vpop.f32.mrb[0].mxu0
    %v1124 = vadd.f32 %v867, %v1123
    %v1125 = vpop.f32.mrb[0].mxu0
    %v1126 = vadd.f32 %v869, %v1125
    %1127 = vdwg.mxu0
    %1128 = vmatprep.subr.mxu0 %v339
    %1129 = vmatpush1.msra.mxu0 %v338
    %1130 = vmatprep.subr.mxu0 %v343
    %1131 = vmatpush1.msra.mxu0 %v342
    %1132 = vmatprep.subr.mxu0 %v347
    %1133 = vmatpush1.msra.mxu0 %v346
    %1134 = vmatprep.subr.mxu0 %v351
    %1135 = vmatpush1.msra.mxu0 %v350
    %1136 = vmatprep.subr.mxu0 %v355
    %1137 = vmatpush1.msra.mxu0 %v354
    %1138 = vmatprep.subr.mxu0 %v359
    %1139 = vmatpush1.msra.mxu0 %v358
    %1140 = vmatprep.subr.mxu0 %v363
    %1141 = vmatpush1.msra.mxu0 %v362
    %1142 = vmatprep.subr.mxu0 %v367
    %1143 = vmatpush1.msra.mxu0 %v366
    %1144 = vmatprep.subr.mxu0 %v371
    %1145 = vmatpush1.msra.mxu0 %v370
    %1146 = vmatprep.subr.mxu0 %v375
    %1147 = vmatpush1.msra.mxu0 %v374
    %1148 = vmatprep.subr.mxu0 %v379
    %1149 = vmatpush1.msra.mxu0 %v378
    %1150 = vmatprep.subr.mxu0 %v383
    %1151 = vmatpush1.msra.mxu0 %v382
    %1152 = vmatprep.subr.mxu0 %v387
    %1153 = vmatpush1.msra.mxu0 %v386
    %1154 = vmatprep.subr.mxu0 %v391
    %1155 = vmatpush1.msra.mxu0 %v390
    %1156 = vmatprep.subr.mxu0 %v395
    %1157 = vmatpush1.msra.mxu0 %v394
    %1158 = vmatprep.subr.mxu0 %v399
    %1159 = vmatpush1.msra.mxu0 %v398
    %1160 = vmatprep.subr.mxu0 %v403
    %1161 = vmatpush1.msra.mxu0 %v402
    %1162 = vmatprep.subr.mxu0 %v407
    %1163 = vmatpush1.msra.mxu0 %v406
    %1164 = vmatprep.subr.mxu0 %v411
    %1165 = vmatpush1.msra.mxu0 %v410
    %1166 = vmatprep.subr.mxu0 %v415
    %1167 = vmatpush1.msra.mxu0 %v414
    %1168 = vmatprep.subr.mxu0 %v419
    %1169 = vmatpush1.msra.mxu0 %v418
    %1170 = vmatprep.subr.mxu0 %v423
    %1171 = vmatpush1.msra.mxu0 %v422
    %1172 = vmatprep.subr.mxu0 %v427
    %1173 = vmatpush1.msra.mxu0 %v426
    %1174 = vmatprep.subr.mxu0 %v431
    %1175 = vmatpush1.msra.mxu0 %v430
    %1176 = vmatprep.subr.mxu0 %v435
    %1177 = vmatpush1.msra.mxu0 %v434
    %1178 = vmatprep.subr.mxu0 %v439
    %1179 = vmatpush1.msra.mxu0 %v438
    %1180 = vmatprep.subr.mxu0 %v443
    %1181 = vmatpush1.msra.mxu0 %v442
    %1182 = vmatprep.subr.mxu0 %v447
    %1183 = vmatpush1.msra.mxu0 %v446
    %1184 = vmatprep.subr.mxu0 %v451
    %1185 = vmatpush1.msra.mxu0 %v450
    %1186 = vmatprep.subr.mxu0 %v455
    %1187 = vmatpush1.msra.mxu0 %v454
    %1188 = vmatprep.subr.mxu0 %v459
    %1189 = vmatpush1.msra.mxu0 %v458
    %1190 = vmatprep.subr.mxu0 %v463
    %1191 = vmatpush1.msra.mxu0 %v462
    %1192 = vmatprep.mubr.f32.mxu0 %v209
    %1193 = vmatmul.mubr.f32.gmra.mrb[0].mxu0 %v208
    %v1194 = vpop.f32.mrb[0].mxu0
    %v1195 = vadd.f32 %v605, %v1194
    %v1196 = vpop.f32.mrb[0].mxu0
    %v1197 = vadd.f32 %v609, %v1196
    %1198 = vmatprep.mubr.f32.mxu0 %v213
    %1199 = vmatmul.mubr.f32.gmra.mrb[0].mxu0 %v212
    %v1200 = vpop.f32.mrb[0].mxu0
    %v1201 = vadd.f32 %v605, %v1200
    %v1202 = vpop.f32.mrb[0].mxu0
    %v1203 = vadd.f32 %v609, %v1202
    %1204 = vmatprep.mubr.f32.mxu0 %v217
    %1205 = vmatmul.mubr.f32.gmra.mrb[0].mxu0 %v216
    %v1206 = vpop.f32.mrb[0].mxu0
    %v1207 = vadd.f32 %v605, %v1206
    %v1208 = vpop.f32.mrb[0].mxu0
    %v1209 = vadd.f32 %v609, %v1208
    %1210 = vmatprep.mubr.f32.mxu0 %v221
    %1211 = vmatmul.mubr.f32.gmra.mrb[0].mxu0 %v220
    %v1212 = vpop.f32.mrb[0].mxu0
    %v1213 = vadd.f32 %v605, %v1212
    %v1214 = vpop.f32.mrb[0].mxu0
    %v1215 = vadd.f32 %v609, %v1214
    %1216 = vmatprep.mubr.f32.mxu0 %v225
    %1217 = vmatmul.mubr.f32.gmra.mrb[0].mxu0 %v224
    %v1218 = vpop.f32.mrb[0].mxu0
    %v1219 = vadd.f32 %v605, %v1218
    %v1220 = vpop.f32.mrb[0].mxu0
    %v1221 = vadd.f32 %v609, %v1220
    %1222 = vmatprep.mubr.f32.mxu0 %v229
    %1223 = vmatmul.mubr.f32.gmra.mrb[0].mxu0 %v228
    %v1224 = vpop.f32.mrb[0].mxu0
    %v1225 = vadd.f32 %v605, %v1224
    %v1226 = vpop.f32.mrb[0].mxu0
    %v1227 = vadd.f32 %v609, %v1226
    %1228 = vmatprep.mubr.f32.mxu0 %v233
    %1229 = vmatmul.mubr.f32.gmra.mrb[0].mxu0 %v232
    %v1230 = vpop.f32.mrb[0].mxu0
    %v1231 = vadd.f32 %v605, %v1230
    %v1232 = vpop.f32.mrb[0].mxu0
    %v1233 = vadd.f32 %v609, %v1232
    %1234 = vmatprep.mubr.f32.mxu0 %v237
    %1235 = vmatmul.mubr.f32.gmra.mrb[0].mxu0 %v236
    %v1236 = vpop.f32.mrb[0].mxu0
    %v1237 = vadd.f32 %v605, %v1236
    %v1238 = vpop.f32.mrb[0].mxu0
    %v1239 = vadd.f32 %v609, %v1238
    %1240 = vmatprep.mubr.f32.mxu0 %v241
    %1241 = vmatmul.mubr.f32.gmra.mrb[0].mxu0 %v240
    %v1242 = vpop.f32.mrb[0].mxu0
    %v1243 = vadd.f32 %v605, %v1242
    %v1244 = vpop.f32.mrb[0].mxu0
    %v1245 = vadd.f32 %v609, %v1244
    %1246 = vmatprep.mubr.f32.mxu0 %v245
    %1247 = vmatmul.mubr.f32.gmra.mrb[0].mxu0 %v244
    %v1248 = vpop.f32.mrb[0].mxu0
    %v1249 = vadd.f32 %v605, %v1248
    %v1250 = vpop.f32.mrb[0].mxu0
    %v1251 = vadd.f32 %v609, %v1250
    %1252 = vmatprep.mubr.f32.mxu0 %v249
    %1253 = vmatmul.mubr.f32.gmra.mrb[0].mxu0 %v248
    %v1254 = vpop.f32.mrb[0].mxu0
    %v1255 = vadd.f32 %v605, %v1254
    %v1256 = vpop.f32.mrb[0].mxu0
    %v1257 = vadd.f32 %v609, %v1256
    %1258 = vmatprep.mubr.f32.mxu0 %v253
    %1259 = vmatmul.mubr.f32.gmra.mrb[0].mxu0 %v252
    %v1260 = vpop.f32.mrb[0].mxu0
    %v1261 = vadd.f32 %v605, %v1260
    %v1262 = vpop.f32.mrb[0].mxu0
    %v1263 = vadd.f32 %v609, %v1262
    %1264 = vmatprep.mubr.f32.mxu0 %v257
    %1265 = vmatmul.mubr.f32.gmra.mrb[0].mxu0 %v256
    %v1266 = vpop.f32.mrb[0].mxu0
    %v1267 = vadd.f32 %v605, %v1266
    %v1268 = vpop.f32.mrb[0].mxu0
    %v1269 = vadd.f32 %v609, %v1268
    %1270 = vmatprep.mubr.f32.mxu0 %v261
    %1271 = vmatmul.mubr.f32.gmra.mrb[0].mxu0 %v260
    %v1272 = vpop.f32.mrb[0].mxu0
    %v1273 = vadd.f32 %v605, %v1272
    %v1274 = vpop.f32.mrb[0].mxu0
    %v1275 = vadd.f32 %v609, %v1274
    %1276 = vmatprep.mubr.f32.mxu0 %v265
    %1277 = vmatmul.mubr.f32.gmra.mrb[0].mxu0 %v264
    %v1278 = vpop.f32.mrb[0].mxu0
    %v1279 = vadd.f32 %v605, %v1278
    %v1280 = vpop.f32.mrb[0].mxu0
    %v1281 = vadd.f32 %v609, %v1280
    %1282 = vmatprep.mubr.f32.mxu0 %v269
    %1283 = vmatmul.mubr.f32.gmra.mrb[0].mxu0 %v268
    %v1284 = vpop.f32.mrb[0].mxu0
    %v1285 = vadd.f32 %v605, %v1284
    %v1286 = vpop.f32.mrb[0].mxu0
    %v1287 = vadd.f32 %v609, %v1286
    %1288 = vmatprep.mubr.f32.mxu0 %v273
    %1289 = vmatmul.mubr.f32.gmra.mrb[0].mxu0 %v272
    %v1290 = vpop.f32.mrb[0].mxu0
    %v1291 = vadd.f32 %v605, %v1290
    %v1292 = vpop.f32.mrb[0].mxu0
    %v1293 = vadd.f32 %v609, %v1292
    %1294 = vmatprep.mubr.f32.mxu0 %v277
    %1295 = vmatmul.mubr.f32.gmra.mrb[0].mxu0 %v276
    %v1296 = vpop.f32.mrb[0].mxu0
    %v1297 = vadd.f32 %v605, %v1296
    %v1298 = vpop.f32.mrb[0].mxu0
    %v1299 = vadd.f32 %v609, %v1298
    %1300 = vmatprep.mubr.f32.mxu0 %v281
    %1301 = vmatmul.mubr.f32.gmra.mrb[0].mxu0 %v280
    %v1302 = vpop.f32.mrb[0].mxu0
    %v1303 = vadd.f32 %v605, %v1302
    %v1304 = vpop.f32.mrb[0].mxu0
    %v1305 = vadd.f32 %v609, %v1304
    %1306 = vmatprep.mubr.f32.mxu0 %v285
    %1307 = vmatmul.mubr.f32.gmra.mrb[0].mxu0 %v284
    %v1308 = vpop.f32.mrb[0].mxu0
    %v1309 = vadd.f32 %v605, %v1308
    %v1310 = vpop.f32.mrb[0].mxu0
    %v1311 = vadd.f32 %v609, %v1310
    %1312 = vmatprep.mubr.f32.mxu0 %v289
    %1313 = vmatmul.mubr.f32.gmra.mrb[0].mxu0 %v288
    %v1314 = vpop.f32.mrb[0].mxu0
    %v1315 = vadd.f32 %v605, %v1314
    %v1316 = vpop.f32.mrb[0].mxu0
    %v1317 = vadd.f32 %v609, %v1316
    %1318 = vmatprep.mubr.f32.mxu0 %v293
    %1319 = vmatmul.mubr.f32.gmra.mrb[0].mxu0 %v292
    %v1320 = vpop.f32.mrb[0].mxu0
    %v1321 = vadd.f32 %v605, %v1320
    %v1322 = vpop.f32.mrb[0].mxu0
    %v1323 = vadd.f32 %v609, %v1322
    %1324 = vmatprep.mubr.f32.mxu0 %v297
    %1325 = vmatmul.mubr.f32.gmra.mrb[0].mxu0 %v296
    %v1326 = vpop.f32.mrb[0].mxu0
    %v1327 = vadd.f32 %v605, %v1326
    %v1328 = vpop.f32.mrb[0].mxu0
    %v1329 = vadd.f32 %v609, %v1328
    %1330 = vmatprep.mubr.f32.mxu0 %v301
    %1331 = vmatmul.mubr.f32.gmra.mrb[0].mxu0 %v300
    %v1332 = vpop.f32.mrb[0].mxu0
    %v1333 = vadd.f32 %v605, %v1332
    %v1334 = vpop.f32.mrb[0].mxu0
    %v1335 = vadd.f32 %v609, %v1334
    %1336 = vmatprep.mubr.f32.mxu0 %v305
    %1337 = vmatmul.mubr.f32.gmra.mrb[0].mxu0 %v304
    %v1338 = vpop.f32.mrb[0].mxu0
    %v1339 = vadd.f32 %v605, %v1338
    %v1340 = vpop.f32.mrb[0].mxu0
    %v1341 = vadd.f32 %v609, %v1340
    %1342 = vmatprep.mubr.f32.mxu0 %v309
    %1343 = vmatmul.mubr.f32.gmra.mrb[0].mxu0 %v308
    %v1344 = vpop.f32.mrb[0].mxu0
    %v1345 = vadd.f32 %v605, %v1344
    %v1346 = vpop.f32.mrb[0].mxu0
    %v1347 = vadd.f32 %v609, %v1346
    %1348 = vmatprep.mubr.f32.mxu0 %v313
    %1349 = vmatmul.mubr.f32.gmra.mrb[0].mxu0 %v312
    %v1350 = vpop.f32.mrb[0].mxu0
    %v1351 = vadd.f32 %v605, %v1350
    %v1352 = vpop.f32.mrb[0].mxu0
    %v1353 = vadd.f32 %v609, %v1352
    %1354 = vmatprep.mubr.f32.mxu0 %v317
    %1355 = vmatmul.mubr.f32.gmra.mrb[0].mxu0 %v316
    %v1356 = vpop.f32.mrb[0].mxu0
    %v1357 = vadd.f32 %v605, %v1356
    %v1358 = vpop.f32.mrb[0].mxu0
    %v1359 = vadd.f32 %v609, %v1358
    %1360 = vmatprep.mubr.f32.mxu0 %v321
    %1361 = vmatmul.mubr.f32.gmra.mrb[0].mxu0 %v320
    %v1362 = vpop.f32.mrb[0].mxu0
    %v1363 = vadd.f32 %v605, %v1362
    %v1364 = vpop.f32.mrb[0].mxu0
    %v1365 = vadd.f32 %v609, %v1364
    %1366 = vmatprep.mubr.f32.mxu0 %v325
    %1367 = vmatmul.mubr.f32.gmra.mrb[0].mxu0 %v324
    %v1368 = vpop.f32.mrb[0].mxu0
    %v1369 = vadd.f32 %v605, %v1368
    %v1370 = vpop.f32.mrb[0].mxu0
    %v1371 = vadd.f32 %v609, %v1370
    %1372 = vmatprep.mubr.f32.mxu0 %v329
    %1373 = vmatmul.mubr.f32.gmra.mrb[0].mxu0 %v328
    %v1374 = vpop.f32.mrb[0].mxu0
    %v1375 = vadd.f32 %v605, %v1374
    %v1376 = vpop.f32.mrb[0].mxu0
    %v1377 = vadd.f32 %v609, %v1376
    %1378 = vmatprep.mubr.f32.mxu0 %v333
    %1379 = vmatmul.mubr.f32.gmra.mrb[0].mxu0 %v332
    %v1380 = vpop.f32.mrb[0].mxu0
    %v1381 = vadd.f32 %v605, %v1380
    %v1382 = vpop.f32.mrb[0].mxu0
    %v1383 = vadd.f32 %v609, %v1382
    %1384 = vdwg.mxu0
    %1385 = vmatprep.subr.mxu0 %v467
    %1386 = vmatpush1.msra.mxu0 %v466
    %1387 = vmatprep.subr.mxu0 %v471
    %1388 = vmatpush1.msra.mxu0 %v470
    %1389 = vmatprep.subr.mxu0 %v475
    %1390 = vmatpush1.msra.mxu0 %v474
    %1391 = vmatprep.subr.mxu0 %v479
    %1392 = vmatpush1.msra.mxu0 %v478
    %1393 = vmatprep.subr.mxu0 %v483
    %1394 = vmatpush1.msra.mxu0 %v482
    %1395 = vmatprep.subr.mxu0 %v487
    %1396 = vmatpush1.msra.mxu0 %v486
    %1397 = vmatprep.subr.mxu0 %v491
    %1398 = vmatpush1.msra.mxu0 %v490
    %1399 = vmatprep.subr.mxu0 %v495
    %1400 = vmatpush1.msra.mxu0 %v494
    %1401 = vmatprep.subr.mxu0 %v499
    %1402 = vmatpush1.msra.mxu0 %v498
    %1403 = vmatprep.subr.mxu0 %v503
    %1404 = vmatpush1.msra.mxu0 %v502
    %1405 = vmatprep.subr.mxu0 %v507
    %1406 = vmatpush1.msra.mxu0 %v506
    %1407 = vmatprep.subr.mxu0 %v511
    %1408 = vmatpush1.msra.mxu0 %v510
    %1409 = vmatprep.subr.mxu0 %v515
    %1410 = vmatpush1.msra.mxu0 %v514
    %1411 = vmatprep.subr.mxu0 %v519
    %1412 = vmatpush1.msra.mxu0 %v518
    %1413 = vmatprep.subr.mxu0 %v523
    %1414 = vmatpush1.msra.mxu0 %v522
    %1415 = vmatprep.subr.mxu0 %v527
    %1416 = vmatpush1.msra.mxu0 %v526
    %1417 = vmatprep.subr.mxu0 %v531
    %1418 = vmatpush1.msra.mxu0 %v530
    %1419 = vmatprep.subr.mxu0 %v535
    %1420 = vmatpush1.msra.mxu0 %v534
    %1421 = vmatprep.subr.mxu0 %v539
    %1422 = vmatpush1.msra.mxu0 %v538
    %1423 = vmatprep.subr.mxu0 %v543
    %1424 = vmatpush1.msra.mxu0 %v542
    %1425 = vmatprep.subr.mxu0 %v547
    %1426 = vmatpush1.msra.mxu0 %v546
    %1427 = vmatprep.subr.mxu0 %v551
    %1428 = vmatpush1.msra.mxu0 %v550
    %1429 = vmatprep.subr.mxu0 %v555
    %1430 = vmatpush1.msra.mxu0 %v554
    %1431 = vmatprep.subr.mxu0 %v559
    %1432 = vmatpush1.msra.mxu0 %v558
    %1433 = vmatprep.subr.mxu0 %v563
    %1434 = vmatpush1.msra.mxu0 %v562
    %1435 = vmatprep.subr.mxu0 %v567
    %1436 = vmatpush1.msra.mxu0 %v566
    %1437 = vmatprep.subr.mxu0 %v571
    %1438 = vmatpush1.msra.mxu0 %v570
    %1439 = vmatprep.subr.mxu0 %v575
    %1440 = vmatpush1.msra.mxu0 %v574
    %1441 = vmatprep.subr.mxu0 %v579
    %1442 = vmatpush1.msra.mxu0 %v578
    %1443 = vmatprep.subr.mxu0 %v583
    %1444 = vmatpush1.msra.mxu0 %v582
    %1445 = vmatprep.subr.mxu0 %v587
    %1446 = vmatpush1.msra.mxu0 %v586
    %1447 = vmatprep.subr.mxu0 %v591
    %1448 = vmatpush1.msra.mxu0 %v590
    %1449 = vmatprep.mubr.f32.mxu0 %v211
    %1450 = vmatmul.mubr.f32.gmra.mrb[0].mxu0 %v210
    %v1451 = vpop.f32.mrb[0].mxu0
    %v1452 = vadd.f32 %v1195, %v1451
    %v1453 = vpop.f32.mrb[0].mxu0
    %v1454 = vadd.f32 %v1197, %v1453
    %1455 = vmatprep.mubr.f32.mxu0 %v215
    %1456 = vmatmul.mubr.f32.gmra.mrb[0].mxu0 %v214
    %v1457 = vpop.f32.mrb[0].mxu0
    %v1458 = vadd.f32 %v1201, %v1457
    %v1459 = vpop.f32.mrb[0].mxu0
    %v1460 = vadd.f32 %v1203, %v1459
    %1461 = vmatprep.mubr.f32.mxu0 %v219
    %1462 = vmatmul.mubr.f32.gmra.mrb[0].mxu0 %v218
    %v1463 = vpop.f32.mrb[0].mxu0
    %v1464 = vadd.f32 %v1207, %v1463
    %v1465 = vpop.f32.mrb[0].mxu0
    %v1466 = vadd.f32 %v1209, %v1465
    %1467 = vmatprep.mubr.f32.mxu0 %v223
    %1468 = vmatmul.mubr.f32.gmra.mrb[0].mxu0 %v222
    %v1469 = vpop.f32.mrb[0].mxu0
    %v1470 = vadd.f32 %v1213, %v1469
    %v1471 = vpop.f32.mrb[0].mxu0
    %v1472 = vadd.f32 %v1215, %v1471
    %1473 = vmatprep.mubr.f32.mxu0 %v227
    %1474 = vmatmul.mubr.f32.gmra.mrb[0].mxu0 %v226
    %v1475 = vpop.f32.mrb[0].mxu0
    %v1476 = vadd.f32 %v1219, %v1475
    %v1477 = vpop.f32.mrb[0].mxu0
    %v1478 = vadd.f32 %v1221, %v1477
    %1479 = vmatprep.mubr.f32.mxu0 %v231
    %1480 = vmatmul.mubr.f32.gmra.mrb[0].mxu0 %v230
    %v1481 = vpop.f32.mrb[0].mxu0
    %v1482 = vadd.f32 %v1225, %v1481
    %v1483 = vpop.f32.mrb[0].mxu0
    %v1484 = vadd.f32 %v1227, %v1483
    %1485 = vmatprep.mubr.f32.mxu0 %v235
    %1486 = vmatmul.mubr.f32.gmra.mrb[0].mxu0 %v234
    %v1487 = vpop.f32.mrb[0].mxu0
    %v1488 = vadd.f32 %v1231, %v1487
    %v1489 = vpop.f32.mrb[0].mxu0
    %v1490 = vadd.f32 %v1233, %v1489
    %1491 = vmatprep.mubr.f32.mxu0 %v239
    %1492 = vmatmul.mubr.f32.gmra.mrb[0].mxu0 %v238
    %v1493 = vpop.f32.mrb[0].mxu0
    %v1494 = vadd.f32 %v1237, %v1493
    %v1495 = vpop.f32.mrb[0].mxu0
    %v1496 = vadd.f32 %v1239, %v1495
    %1497 = vmatprep.mubr.f32.mxu0 %v243
    %1498 = vmatmul.mubr.f32.gmra.mrb[0].mxu0 %v242
    %v1499 = vpop.f32.mrb[0].mxu0
    %v1500 = vadd.f32 %v1243, %v1499
    %v1501 = vpop.f32.mrb[0].mxu0
    %v1502 = vadd.f32 %v1245, %v1501
    %1503 = vmatprep.mubr.f32.mxu0 %v247
    %1504 = vmatmul.mubr.f32.gmra.mrb[0].mxu0 %v246
    %v1505 = vpop.f32.mrb[0].mxu0
    %v1506 = vadd.f32 %v1249, %v1505
    %v1507 = vpop.f32.mrb[0].mxu0
    %v1508 = vadd.f32 %v1251, %v1507
    %1509 = vmatprep.mubr.f32.mxu0 %v251
    %1510 = vmatmul.mubr.f32.gmra.mrb[0].mxu0 %v250
    %v1511 = vpop.f32.mrb[0].mxu0
    %v1512 = vadd.f32 %v1255, %v1511
    %v1513 = vpop.f32.mrb[0].mxu0
    %v1514 = vadd.f32 %v1257, %v1513
    %1515 = vmatprep.mubr.f32.mxu0 %v255
    %1516 = vmatmul.mubr.f32.gmra.mrb[0].mxu0 %v254
    %v1517 = vpop.f32.mrb[0].mxu0
    %v1518 = vadd.f32 %v1261, %v1517
    %v1519 = vpop.f32.mrb[0].mxu0
    %v1520 = vadd.f32 %v1263, %v1519
    %1521 = vmatprep.mubr.f32.mxu0 %v259
    %1522 = vmatmul.mubr.f32.gmra.mrb[0].mxu0 %v258
    %v1523 = vpop.f32.mrb[0].mxu0
    %v1524 = vadd.f32 %v1267, %v1523
    %v1525 = vpop.f32.mrb[0].mxu0
    %v1526 = vadd.f32 %v1269, %v1525
    %1527 = vmatprep.mubr.f32.mxu0 %v263
    %1528 = vmatmul.mubr.f32.gmra.mrb[0].mxu0 %v262
    %v1529 = vpop.f32.mrb[0].mxu0
    %v1530 = vadd.f32 %v1273, %v1529
    %v1531 = vpop.f32.mrb[0].mxu0
    %v1532 = vadd.f32 %v1275, %v1531
    %1533 = vmatprep.mubr.f32.mxu0 %v267
    %1534 = vmatmul.mubr.f32.gmra.mrb[0].mxu0 %v266
    %v1535 = vpop.f32.mrb[0].mxu0
    %v1536 = vadd.f32 %v1279, %v1535
    %v1537 = vpop.f32.mrb[0].mxu0
    %v1538 = vadd.f32 %v1281, %v1537
    %1539 = vmatprep.mubr.f32.mxu0 %v271
    %1540 = vmatmul.mubr.f32.gmra.mrb[0].mxu0 %v270
    %v1541 = vpop.f32.mrb[0].mxu0
    %v1542 = vadd.f32 %v1285, %v1541
    %v1543 = vpop.f32.mrb[0].mxu0
    %v1544 = vadd.f32 %v1287, %v1543
    %1545 = vmatprep.mubr.f32.mxu0 %v275
    %1546 = vmatmul.mubr.f32.gmra.mrb[0].mxu0 %v274
    %v1547 = vpop.f32.mrb[0].mxu0
    %v1548 = vadd.f32 %v1291, %v1547
    %v1549 = vpop.f32.mrb[0].mxu0
    %v1550 = vadd.f32 %v1293, %v1549
    %1551 = vmatprep.mubr.f32.mxu0 %v279
    %1552 = vmatmul.mubr.f32.gmra.mrb[0].mxu0 %v278
    %v1553 = vpop.f32.mrb[0].mxu0
    %v1554 = vadd.f32 %v1297, %v1553
    %v1555 = vpop.f32.mrb[0].mxu0
    %v1556 = vadd.f32 %v1299, %v1555
    %1557 = vmatprep.mubr.f32.mxu0 %v283
    %1558 = vmatmul.mubr.f32.gmra.mrb[0].mxu0 %v282
    %v1559 = vpop.f32.mrb[0].mxu0
    %v1560 = vadd.f32 %v1303, %v1559
    %v1561 = vpop.f32.mrb[0].mxu0
    %v1562 = vadd.f32 %v1305, %v1561
    %1563 = vmatprep.mubr.f32.mxu0 %v287
    %1564 = vmatmul.mubr.f32.gmra.mrb[0].mxu0 %v286
    %v1565 = vpop.f32.mrb[0].mxu0
    %v1566 = vadd.f32 %v1309, %v1565
    %v1567 = vpop.f32.mrb[0].mxu0
    %v1568 = vadd.f32 %v1311, %v1567
    %1569 = vmatprep.mubr.f32.mxu0 %v291
    %1570 = vmatmul.mubr.f32.gmra.mrb[0].mxu0 %v290
    %v1571 = vpop.f32.mrb[0].mxu0
    %v1572 = vadd.f32 %v1315, %v1571
    %v1573 = vpop.f32.mrb[0].mxu0
    %v1574 = vadd.f32 %v1317, %v1573
    %1575 = vmatprep.mubr.f32.mxu0 %v295
    %1576 = vmatmul.mubr.f32.gmra.mrb[0].mxu0 %v294
    %v1577 = vpop.f32.mrb[0].mxu0
    %v1578 = vadd.f32 %v1321, %v1577
    %v1579 = vpop.f32.mrb[0].mxu0
    %v1580 = vadd.f32 %v1323, %v1579
    %1581 = vmatprep.mubr.f32.mxu0 %v299
    %1582 = vmatmul.mubr.f32.gmra.mrb[0].mxu0 %v298
    %v1583 = vpop.f32.mrb[0].mxu0
    %v1584 = vadd.f32 %v1327, %v1583
    %v1585 = vpop.f32.mrb[0].mxu0
    %v1586 = vadd.f32 %v1329, %v1585
    %1587 = vmatprep.mubr.f32.mxu0 %v303
    %1588 = vmatmul.mubr.f32.gmra.mrb[0].mxu0 %v302
    %v1589 = vpop.f32.mrb[0].mxu0
    %v1590 = vadd.f32 %v1333, %v1589
    %v1591 = vpop.f32.mrb[0].mxu0
    %v1592 = vadd.f32 %v1335, %v1591
    %1593 = vmatprep.mubr.f32.mxu0 %v307
    %1594 = vmatmul.mubr.f32.gmra.mrb[0].mxu0 %v306
    %v1595 = vpop.f32.mrb[0].mxu0
    %v1596 = vadd.f32 %v1339, %v1595
    %v1597 = vpop.f32.mrb[0].mxu0
    %v1598 = vadd.f32 %v1341, %v1597
    %1599 = vmatprep.mubr.f32.mxu0 %v311
    %1600 = vmatmul.mubr.f32.gmra.mrb[0].mxu0 %v310
    %v1601 = vpop.f32.mrb[0].mxu0
    %v1602 = vadd.f32 %v1345, %v1601
    %v1603 = vpop.f32.mrb[0].mxu0
    %v1604 = vadd.f32 %v1347, %v1603
    %1605 = vmatprep.mubr.f32.mxu0 %v315
    %1606 = vmatmul.mubr.f32.gmra.mrb[0].mxu0 %v314
    %v1607 = vpop.f32.mrb[0].mxu0
    %v1608 = vadd.f32 %v1351, %v1607
    %v1609 = vpop.f32.mrb[0].mxu0
    %v1610 = vadd.f32 %v1353, %v1609
    %1611 = vmatprep.mubr.f32.mxu0 %v319
    %1612 = vmatmul.mubr.f32.gmra.mrb[0].mxu0 %v318
    %v1613 = vpop.f32.mrb[0].mxu0
    %v1614 = vadd.f32 %v1357, %v1613
    %v1615 = vpop.f32.mrb[0].mxu0
    %v1616 = vadd.f32 %v1359, %v1615
    %1617 = vmatprep.mubr.f32.mxu0 %v323
    %1618 = vmatmul.mubr.f32.gmra.mrb[0].mxu0 %v322
    %v1619 = vpop.f32.mrb[0].mxu0
    %v1620 = vadd.f32 %v1363, %v1619
    %v1621 = vpop.f32.mrb[0].mxu0
    %v1622 = vadd.f32 %v1365, %v1621
    %1623 = vmatprep.mubr.f32.mxu0 %v327
    %1624 = vmatmul.mubr.f32.gmra.mrb[0].mxu0 %v326
    %v1625 = vpop.f32.mrb[0].mxu0
    %v1626 = vadd.f32 %v1369, %v1625
    %v1627 = vpop.f32.mrb[0].mxu0
    %v1628 = vadd.f32 %v1371, %v1627
    %1629 = vmatprep.mubr.f32.mxu0 %v331
    %1630 = vmatmul.mubr.f32.gmra.mrb[0].mxu0 %v330
    %v1631 = vpop.f32.mrb[0].mxu0
    %v1632 = vadd.f32 %v1375, %v1631
    %v1633 = vpop.f32.mrb[0].mxu0
    %v1634 = vadd.f32 %v1377, %v1633
    %1635 = vmatprep.mubr.f32.mxu0 %v335
    %1636 = vmatmul.mubr.f32.gmra.mrb[0].mxu0 %v334
    %v1637 = vpop.f32.mrb[0].mxu0
    %v1638 = vadd.f32 %v1381, %v1637
    %v1639 = vpop.f32.mrb[0].mxu0
    %v1640 = vadd.f32 %v1383, %v1639
    %1641 = vdwg.mxu0
    %v1642 = vadd.f32 %v938, %v208
    %v1643 = vadd.f32 %v940, %v209
    %v1644 = vadd.f32 %v1452, %v210
    %v1645 = vadd.f32 %v1454, %v211
    %v1646 = vadd.f32 %v944, %v212
    %v1647 = vadd.f32 %v946, %v213
    %v1648 = vadd.f32 %v1458, %v214
    %v1649 = vadd.f32 %v1460, %v215
    %v1650 = vadd.f32 %v950, %v216
    %v1651 = vadd.f32 %v952, %v217
    %v1652 = vadd.f32 %v1464, %v218
    %v1653 = vadd.f32 %v1466, %v219
    %v1654 = vadd.f32 %v956, %v220
    %v1655 = vadd.f32 %v958, %v221
    %v1656 = vadd.f32 %v1470, %v222
    %v1657 = vadd.f32 %v1472, %v223
    %v1658 = vadd.f32 %v962, %v224
    %v1659 = vadd.f32 %v964, %v225
    %v1660 = vadd.f32 %v1476, %v226
    %v1661 = vadd.f32 %v1478, %v227
    %v1662 = vadd.f32 %v968, %v228
    %v1663 = vadd.f32 %v970, %v229
    %v1664 = vadd.f32 %v1482, %v230
    %v1665 = vadd.f32 %v1484, %v231
    %v1666 = vadd.f32 %v974, %v232
    %v1667 = vadd.f32 %v976, %v233
    %v1668 = vadd.f32 %v1488, %v234
    %v1669 = vadd.f32 %v1490, %v235
    %v1670 = vadd.f32 %v980, %v236
    %v1671 = vadd.f32 %v982, %v237
    %v1672 = vadd.f32 %v1494, %v238
    %v1673 = vadd.f32 %v1496, %v239
    %v1674 = vadd.f32 %v986, %v240
    %v1675 = vadd.f32 %v988, %v241
    %v1676 = vadd.f32 %v1500, %v242
    %v1677 = vadd.f32 %v1502, %v243
    %v1678 = vadd.f32 %v992, %v244
    %v1679 = vadd.f32 %v994, %v245
    %v1680 = vadd.f32 %v1506, %v246
    %v1681 = vadd.f32 %v1508, %v247
    %v1682 = vadd.f32 %v998, %v248
    %v1683 = vadd.f32 %v1000, %v249
    %v1684 = vadd.f32 %v1512, %v250
    %v1685 = vadd.f32 %v1514, %v251
    %v1686 = vadd.f32 %v1004, %v252
    %v1687 = vadd.f32 %v1006, %v253
    %v1688 = vadd.f32 %v1518, %v254
    %v1689 = vadd.f32 %v1520, %v255
    %v1690 = vadd.f32 %v1010, %v256
    %v1691 = vadd.f32 %v1012, %v257
    %v1692 = vadd.f32 %v1524, %v258
    %v1693 = vadd.f32 %v1526, %v259
    %v1694 = vadd.f32 %v1016, %v260
    %v1695 = vadd.f32 %v1018, %v261
    %v1696 = vadd.f32 %v1530, %v262
    %v1697 = vadd.f32 %v1532, %v263
    %v1698 = vadd.f32 %v1022, %v264
    %v1699 = vadd.f32 %v1024, %v265
    %v1700 = vadd.f32 %v1536, %v266
    %v1701 = vadd.f32 %v1538, %v267
    %v1702 = vadd.f32 %v1028, %v268
    %v1703 = vadd.f32 %v1030, %v269
    %v1704 = vadd.f32 %v1542, %v270
    %v1705 = vadd.f32 %v1544, %v271
    %v1706 = vadd.f32 %v1034, %v272
    %v1707 = vadd.f32 %v1036, %v273
    %v1708 = vadd.f32 %v1548, %v274
    %v1709 = vadd.f32 %v1550, %v275
    %v1710 = vadd.f32 %v1040, %v276
    %v1711 = vadd.f32 %v1042, %v277
    %v1712 = vadd.f32 %v1554, %v278
    %v1713 = vadd.f32 %v1556, %v279
    %v1714 = vadd.f32 %v1046, %v280
    %v1715 = vadd.f32 %v1048, %v281
    %v1716 = vadd.f32 %v1560, %v282
    %v1717 = vadd.f32 %v1562, %v283
    %v1718 = vadd.f32 %v1052, %v284
    %v1719 = vadd.f32 %v1054, %v285
    %v1720 = vadd.f32 %v1566, %v286
    %v1721 = vadd.f32 %v1568, %v287
    %v1722 = vadd.f32 %v1058, %v288
    %v1723 = vadd.f32 %v1060, %v289
    %v1724 = vadd.f32 %v1572, %v290
    %v1725 = vadd.f32 %v1574, %v291
    %v1726 = vadd.f32 %v1064, %v292
    %v1727 = vadd.f32 %v1066, %v293
    %v1728 = vadd.f32 %v1578, %v294
    %v1729 = vadd.f32 %v1580, %v295
    %v1730 = vadd.f32 %v1070, %v296
    %v1731 = vadd.f32 %v1072, %v297
    %v1732 = vadd.f32 %v1584, %v298
    %v1733 = vadd.f32 %v1586, %v299
    %v1734 = vadd.f32 %v1076, %v300
    %v1735 = vadd.f32 %v1078, %v301
    %v1736 = vadd.f32 %v1590, %v302
    %v1737 = vadd.f32 %v1592, %v303
    %v1738 = vadd.f32 %v1082, %v304
    %v1739 = vadd.f32 %v1084, %v305
    %v1740 = vadd.f32 %v1596, %v306
    %v1741 = vadd.f32 %v1598, %v307
    %v1742 = vadd.f32 %v1088, %v308
    %v1743 = vadd.f32 %v1090, %v309
    %v1744 = vadd.f32 %v1602, %v310
    %v1745 = vadd.f32 %v1604, %v311
    %v1746 = vadd.f32 %v1094, %v312
    %v1747 = vadd.f32 %v1096, %v313
    %v1748 = vadd.f32 %v1608, %v314
    %v1749 = vadd.f32 %v1610, %v315
    %v1750 = vadd.f32 %v1100, %v316
    %v1751 = vadd.f32 %v1102, %v317
    %v1752 = vadd.f32 %v1614, %v318
    %v1753 = vadd.f32 %v1616, %v319
    %v1754 = vadd.f32 %v1106, %v320
    %v1755 = vadd.f32 %v1108, %v321
    %v1756 = vadd.f32 %v1620, %v322
    %v1757 = vadd.f32 %v1622, %v323
    %v1758 = vadd.f32 %v1112, %v324
    %v1759 = vadd.f32 %v1114, %v325
    %v1760 = vadd.f32 %v1626, %v326
    %v1761 = vadd.f32 %v1628, %v327
    %v1762 = vadd.f32 %v1118, %v328
    %v1763 = vadd.f32 %v1120, %v329
    %v1764 = vadd.f32 %v1632, %v330
    %v1765 = vadd.f32 %v1634, %v331
    %v1766 = vadd.f32 %v1124, %v332
    %v1767 = vadd.f32 %v1126, %v333
    %v1768 = vadd.f32 %v1638, %v334
    %v1769 = vadd.f32 %v1640, %v335
    %v1770 = vmax.f32 %v1642, 0.0
    %v1771 = vmax.f32 %v1643, 0.0
    %v1772 = vmax.f32 %v1644, 0.0
    %v1773 = vmax.f32 %v1645, 0.0
    %v1774 = vmax.f32 %v1646, 0.0
    %v1775 = vmax.f32 %v1647, 0.0
    %v1776 = vmax.f32 %v1648, 0.0
    %v1777 = vmax.f32 %v1649, 0.0
    %v1778 = vmax.f32 %v1650, 0.0
    %v1779 = vmax.f32 %v1651, 0.0
    %v1780 = vmax.f32 %v1652, 0.0
    %v1781 = vmax.f32 %v1653, 0.0
    %v1782 = vmax.f32 %v1654, 0.0
    %v1783 = vmax.f32 %v1655, 0.0
    %v1784 = vmax.f32 %v1656, 0.0
    %v1785 = vmax.f32 %v1657, 0.0
    %v1786 = vmax.f32 %v1658, 0.0
    %v1787 = vmax.f32 %v1659, 0.0
    %v1788 = vmax.f32 %v1660, 0.0
    %v1789 = vmax.f32 %v1661, 0.0
    %v1790 = vmax.f32 %v1662, 0.0
    %v1791 = vmax.f32 %v1663, 0.0
    %v1792 = vmax.f32 %v1664, 0.0
    %v1793 = vmax.f32 %v1665, 0.0
    %v1794 = vmax.f32 %v1666, 0.0
    %v1795 = vmax.f32 %v1667, 0.0
    %v1796 = vmax.f32 %v1668, 0.0
    %v1797 = vmax.f32 %v1669, 0.0
    %v1798 = vmax.f32 %v1670, 0.0
    %v1799 = vmax.f32 %v1671, 0.0
    %v1800 = vmax.f32 %v1672, 0.0
    %v1801 = vmax.f32 %v1673, 0.0
    %v1802 = vmax.f32 %v1674, 0.0
    %v1803 = vmax.f32 %v1675, 0.0
    %v1804 = vmax.f32 %v1676, 0.0
    %v1805 = vmax.f32 %v1677, 0.0
    %v1806 = vmax.f32 %v1678, 0.0
    %v1807 = vmax.f32 %v1679, 0.0
    %v1808 = vmax.f32 %v1680, 0.0
    %v1809 = vmax.f32 %v1681, 0.0
    %v1810 = vmax.f32 %v1682, 0.0
    %v1811 = vmax.f32 %v1683, 0.0
    %v1812 = vmax.f32 %v1684, 0.0
    %v1813 = vmax.f32 %v1685, 0.0
    %v1814 = vmax.f32 %v1686, 0.0
    %v1815 = vmax.f32 %v1687, 0.0
    %v1816 = vmax.f32 %v1688, 0.0
    %v1817 = vmax.f32 %v1689, 0.0
    %v1818 = vmax.f32 %v1690, 0.0
    %v1819 = vmax.f32 %v1691, 0.0
    %v1820 = vmax.f32 %v1692, 0.0
    %v1821 = vmax.f32 %v1693, 0.0
    %v1822 = vmax.f32 %v1694, 0.0
    %v1823 = vmax.f32 %v1695, 0.0
    %v1824 = vmax.f32 %v1696, 0.0
    %v1825 = vmax.f32 %v1697, 0.0
    %v1826 = vmax.f32 %v1698, 0.0
    %v1827 = vmax.f32 %v1699, 0.0
    %v1828 = vmax.f32 %v1700, 0.0
    %v1829 = vmax.f32 %v1701, 0.0
    %v1830 = vmax.f32 %v1702, 0.0
    %v1831 = vmax.f32 %v1703, 0.0
    %v1832 = vmax.f32 %v1704, 0.0
    %v1833 = vmax.f32 %v1705, 0.0
    %v1834 = vmax.f32 %v1706, 0.0
    %v1835 = vmax.f32 %v1707, 0.0
    %v1836 = vmax.f32 %v1708, 0.0
    %v1837 = vmax.f32 %v1709, 0.0
    %v1838 = vmax.f32 %v1710, 0.0
    %v1839 = vmax.f32 %v1711, 0.0
    %v1840 = vmax.f32 %v1712, 0.0
    %v1841 = vmax.f32 %v1713, 0.0
    %v1842 = vmax.f32 %v1714, 0.0
    %v1843 = vmax.f32 %v1715, 0.0
    %v1844 = vmax.f32 %v1716, 0.0
    %v1845 = vmax.f32 %v1717, 0.0
    %v1846 = vmax.f32 %v1718, 0.0
    %v1847 = vmax.f32 %v1719, 0.0
    %v1848 = vmax.f32 %v1720, 0.0
    %v1849 = vmax.f32 %v1721, 0.0
    %v1850 = vmax.f32 %v1722, 0.0
    %v1851 = vmax.f32 %v1723, 0.0
    %v1852 = vmax.f32 %v1724, 0.0
    %v1853 = vmax.f32 %v1725, 0.0
    %v1854 = vmax.f32 %v1726, 0.0
    %v1855 = vmax.f32 %v1727, 0.0
    %v1856 = vmax.f32 %v1728, 0.0
    %v1857 = vmax.f32 %v1729, 0.0
    %v1858 = vmax.f32 %v1730, 0.0
    %v1859 = vmax.f32 %v1731, 0.0
    %v1860 = vmax.f32 %v1732, 0.0
    %v1861 = vmax.f32 %v1733, 0.0
    %v1862 = vmax.f32 %v1734, 0.0
    %v1863 = vmax.f32 %v1735, 0.0
    %v1864 = vmax.f32 %v1736, 0.0
    %v1865 = vmax.f32 %v1737, 0.0
    %v1866 = vmax.f32 %v1738, 0.0
    %v1867 = vmax.f32 %v1739, 0.0
    %v1868 = vmax.f32 %v1740, 0.0
    %v1869 = vmax.f32 %v1741, 0.0
    %v1870 = vmax.f32 %v1742, 0.0
    %v1871 = vmax.f32 %v1743, 0.0
    %v1872 = vmax.f32 %v1744, 0.0
    %v1873 = vmax.f32 %v1745, 0.0
    %v1874 = vmax.f32 %v1746, 0.0
    %v1875 = vmax.f32 %v1747, 0.0
    %v1876 = vmax.f32 %v1748, 0.0
    %v1877 = vmax.f32 %v1749, 0.0
    %v1878 = vmax.f32 %v1750, 0.0
    %v1879 = vmax.f32 %v1751, 0.0
    %v1880 = vmax.f32 %v1752, 0.0
    %v1881 = vmax.f32 %v1753, 0.0
    %v1882 = vmax.f32 %v1754, 0.0
    %v1883 = vmax.f32 %v1755, 0.0
    %v1884 = vmax.f32 %v1756, 0.0
    %v1885 = vmax.f32 %v1757, 0.0
    %v1886 = vmax.f32 %v1758, 0.0
    %v1887 = vmax.f32 %v1759, 0.0
    %v1888 = vmax.f32 %v1760, 0.0
    %v1889 = vmax.f32 %v1761, 0.0
    %v1890 = vmax.f32 %v1762, 0.0
    %v1891 = vmax.f32 %v1763, 0.0
    %v1892 = vmax.f32 %v1764, 0.0
    %v1893 = vmax.f32 %v1765, 0.0
    %v1894 = vmax.f32 %v1766, 0.0
    %v1895 = vmax.f32 %v1767, 0.0
    %v1896 = vmax.f32 %v1768, 0.0
    %v1897 = vmax.f32 %v1769, 0.0
    %v1898 = vadd.f32 %v208, %v1770
    %v1899 = vadd.f32 %v209, %v1771
    %v1900 = vadd.f32 %v210, %v1772
    %v1901 = vadd.f32 %v211, %v1773
    %v1902 = vadd.f32 %v212, %v1774
    %v1903 = vadd.f32 %v213, %v1775
    %v1904 = vadd.f32 %v214, %v1776
    %v1905 = vadd.f32 %v215, %v1777
    %v1906 = vadd.f32 %v216, %v1778
    %v1907 = vadd.f32 %v217, %v1779
    %v1908 = vadd.f32 %v218, %v1780
    %v1909 = vadd.f32 %v219, %v1781
    %v1910 = vadd.f32 %v220, %v1782
    %v1911 = vadd.f32 %v221, %v1783
    %v1912 = vadd.f32 %v222, %v1784
    %v1913 = vadd.f32 %v223, %v1785
    %v1914 = vadd.f32 %v224, %v1786
    %v1915 = vadd.f32 %v225, %v1787
    %v1916 = vadd.f32 %v226, %v1788
    %v1917 = vadd.f32 %v227, %v1789
    %v1918 = vadd.f32 %v228, %v1790
    %v1919 = vadd.f32 %v229, %v1791
    %v1920 = vadd.f32 %v230, %v1792
    %v1921 = vadd.f32 %v231, %v1793
    %v1922 = vadd.f32 %v232, %v1794
    %v1923 = vadd.f32 %v233, %v1795
    %v1924 = vadd.f32 %v234, %v1796
    %v1925 = vadd.f32 %v235, %v1797
    %v1926 = vadd.f32 %v236, %v1798
    %v1927 = vadd.f32 %v237, %v1799
    %v1928 = vadd.f32 %v238, %v1800
    %v1929 = vadd.f32 %v239, %v1801
    %v1930 = vadd.f32 %v240, %v1802
    %v1931 = vadd.f32 %v241, %v1803
    %v1932 = vadd.f32 %v242, %v1804
    %v1933 = vadd.f32 %v243, %v1805
    %v1934 = vadd.f32 %v244, %v1806
    %v1935 = vadd.f32 %v245, %v1807
    %v1936 = vadd.f32 %v246, %v1808
    %v1937 = vadd.f32 %v247, %v1809
    %v1938 = vadd.f32 %v248, %v1810
    %v1939 = vadd.f32 %v249, %v1811
    %v1940 = vadd.f32 %v250, %v1812
    %v1941 = vadd.f32 %v251, %v1813
    %v1942 = vadd.f32 %v252, %v1814
    %v1943 = vadd.f32 %v253, %v1815
    %v1944 = vadd.f32 %v254, %v1816
    %v1945 = vadd.f32 %v255, %v1817
    %v1946 = vadd.f32 %v256, %v1818
    %v1947 = vadd.f32 %v257, %v1819
    %v1948 = vadd.f32 %v258, %v1820
    %v1949 = vadd.f32 %v259, %v1821
    %v1950 = vadd.f32 %v260, %v1822
    %v1951 = vadd.f32 %v261, %v1823
    %v1952 = vadd.f32 %v262, %v1824
    %v1953 = vadd.f32 %v263, %v1825
    %v1954 = vadd.f32 %v264, %v1826
    %v1955 = vadd.f32 %v265, %v1827
    %v1956 = vadd.f32 %v266, %v1828
    %v1957 = vadd.f32 %v267, %v1829
    %v1958 = vadd.f32 %v268, %v1830
    %v1959 = vadd.f32 %v269, %v1831
    %v1960 = vadd.f32 %v270, %v1832
    %v1961 = vadd.f32 %v271, %v1833
    %v1962 = vadd.f32 %v272, %v1834
    %v1963 = vadd.f32 %v273, %v1835
    %v1964 = vadd.f32 %v274, %v1836
    %v1965 = vadd.f32 %v275, %v1837
    %v1966 = vadd.f32 %v276, %v1838
    %v1967 = vadd.f32 %v277, %v1839
    %v1968 = vadd.f32 %v278, %v1840
    %v1969 = vadd.f32 %v279, %v1841
    %v1970 = vadd.f32 %v280, %v1842
    %v1971 = vadd.f32 %v281, %v1843
    %v1972 = vadd.f32 %v282, %v1844
    %v1973 = vadd.f32 %v283, %v1845
    %v1974 = vadd.f32 %v284, %v1846
    %v1975 = vadd.f32 %v285, %v1847
    %v1976 = vadd.f32 %v286, %v1848
    %v1977 = vadd.f32 %v287, %v1849
    %v1978 = vadd.f32 %v288, %v1850
    %v1979 = vadd.f32 %v289, %v1851
    %v1980 = vadd.f32 %v290, %v1852
    %v1981 = vadd.f32 %v291, %v1853
    %v1982 = vadd.f32 %v292, %v1854
    %v1983 = vadd.f32 %v293, %v1855
    %v1984 = vadd.f32 %v294, %v1856
    %v1985 = vadd.f32 %v295, %v1857
    %v1986 = vadd.f32 %v296, %v1858
    %v1987 = vadd.f32 %v297, %v1859
    %v1988 = vadd.f32 %v298, %v1860
    %v1989 = vadd.f32 %v299, %v1861
    %v1990 = vadd.f32 %v300, %v1862
    %v1991 = vadd.f32 %v301, %v1863
    %v1992 = vadd.f32 %v302, %v1864
    %v1993 = vadd.f32 %v303, %v1865
    %v1994 = vadd.f32 %v304, %v1866
    %v1995 = vadd.f32 %v305, %v1867
    %v1996 = vadd.f32 %v306, %v1868
    %v1997 = vadd.f32 %v307, %v1869
    %v1998 = vadd.f32 %v308, %v1870
    %v1999 = vadd.f32 %v309, %v1871
    %v2000 = vadd.f32 %v310, %v1872
    %v2001 = vadd.f32 %v311, %v1873
    %v2002 = vadd.f32 %v312, %v1874
    %v2003 = vadd.f32 %v313, %v1875
    %v2004 = vadd.f32 %v314, %v1876
    %v2005 = vadd.f32 %v315, %v1877
    %v2006 = vadd.f32 %v316, %v1878
    %v2007 = vadd.f32 %v317, %v1879
    %v2008 = vadd.f32 %v318, %v1880
    %v2009 = vadd.f32 %v319, %v1881
    %v2010 = vadd.f32 %v320, %v1882
    %v2011 = vadd.f32 %v321, %v1883
    %v2012 = vadd.f32 %v322, %v1884
    %v2013 = vadd.f32 %v323, %v1885
    %v2014 = vadd.f32 %v324, %v1886
    %v2015 = vadd.f32 %v325, %v1887
    %v2016 = vadd.f32 %v326, %v1888
    %v2017 = vadd.f32 %v327, %v1889
    %v2018 = vadd.f32 %v328, %v1890
    %v2019 = vadd.f32 %v329, %v1891
    %v2020 = vadd.f32 %v330, %v1892
    %v2021 = vadd.f32 %v331, %v1893
    %v2022 = vadd.f32 %v332, %v1894
    %v2023 = vadd.f32 %v333, %v1895
    %v2024 = vadd.f32 %v334, %v1896
    %v2025 = vadd.f32 %v335, %v1897
    %2026 = vmatprep.subr.mxu0 %v337
    %2027 = vmatpush1.msra.mxu0 %v336
    %2028 = vmatprep.subr.mxu0 %v341
    %2029 = vmatpush1.msra.mxu0 %v340
    %2030 = vmatprep.subr.mxu0 %v345
    %2031 = vmatpush1.msra.mxu0 %v344
    %2032 = vmatprep.subr.mxu0 %v349
    %2033 = vmatpush1.msra.mxu0 %v348
    %2034 = vmatprep.subr.mxu0 %v353
    %2035 = vmatpush1.msra.mxu0 %v352
    %2036 = vmatprep.subr.mxu0 %v357
    %2037 = vmatpush1.msra.mxu0 %v356
    %2038 = vmatprep.subr.mxu0 %v361
    %2039 = vmatpush1.msra.mxu0 %v360
    %2040 = vmatprep.subr.mxu0 %v365
    %2041 = vmatpush1.msra.mxu0 %v364
    %2042 = vmatprep.subr.mxu0 %v369
    %2043 = vmatpush1.msra.mxu0 %v368
    %2044 = vmatprep.subr.mxu0 %v373
    %2045 = vmatpush1.msra.mxu0 %v372
    %2046 = vmatprep.subr.mxu0 %v377
    %2047 = vmatpush1.msra.mxu0 %v376
    %2048 = vmatprep.subr.mxu0 %v381
    %2049 = vmatpush1.msra.mxu0 %v380
    %2050 = vmatprep.subr.mxu0 %v385
    %2051 = vmatpush1.msra.mxu0 %v384
    %2052 = vmatprep.subr.mxu0 %v389
    %2053 = vmatpush1.msra.mxu0 %v388
    %2054 = vmatprep.subr.mxu0 %v393
    %2055 = vmatpush1.msra.mxu0 %v392
    %2056 = vmatprep.subr.mxu0 %v397
    %2057 = vmatpush1.msra.mxu0 %v396
    %2058 = vmatprep.subr.mxu0 %v401
    %2059 = vmatpush1.msra.mxu0 %v400
    %2060 = vmatprep.subr.mxu0 %v405
    %2061 = vmatpush1.msra.mxu0 %v404
    %2062 = vmatprep.subr.mxu0 %v409
    %2063 = vmatpush1.msra.mxu0 %v408
    %2064 = vmatprep.subr.mxu0 %v413
    %2065 = vmatpush1.msra.mxu0 %v412
    %2066 = vmatprep.subr.mxu0 %v417
    %2067 = vmatpush1.msra.mxu0 %v416
    %2068 = vmatprep.subr.mxu0 %v421
    %2069 = vmatpush1.msra.mxu0 %v420
    %2070 = vmatprep.subr.mxu0 %v425
    %2071 = vmatpush1.msra.mxu0 %v424
    %2072 = vmatprep.subr.mxu0 %v429
    %2073 = vmatpush1.msra.mxu0 %v428
    %2074 = vmatprep.subr.mxu0 %v433
    %2075 = vmatpush1.msra.mxu0 %v432
    %2076 = vmatprep.subr.mxu0 %v437
    %2077 = vmatpush1.msra.mxu0 %v436
    %2078 = vmatprep.subr.mxu0 %v441
    %2079 = vmatpush1.msra.mxu0 %v440
    %2080 = vmatprep.subr.mxu0 %v445
    %2081 = vmatpush1.msra.mxu0 %v444
    %2082 = vmatprep.subr.mxu0 %v449
    %2083 = vmatpush1.msra.mxu0 %v448
    %2084 = vmatprep.subr.mxu0 %v453
    %2085 = vmatpush1.msra.mxu0 %v452
    %2086 = vmatprep.subr.mxu0 %v457
    %2087 = vmatpush1.msra.mxu0 %v456
    %2088 = vmatprep.subr.mxu0 %v461
    %2089 = vmatpush1.msra.mxu0 %v460
    %2090 = vmatprep.mubr.f32.mxu0 %v1771
    %2091 = vmatmul.mubr.f32.gmra.mrb[0].mxu0 %v1770
    %v2092 = vpop.f32.mrb[0].mxu0
    %v2093 = vadd.f32 %v597, %v2092
    %v2094 = vpop.f32.mrb[0].mxu0
    %v2095 = vadd.f32 %v601, %v2094
    %2096 = vmatprep.mubr.f32.mxu0 %v1775
    %2097 = vmatmul.mubr.f32.gmra.mrb[0].mxu0 %v1774
    %v2098 = vpop.f32.mrb[0].mxu0
    %v2099 = vadd.f32 %v597, %v2098
    %v2100 = vpop.f32.mrb[0].mxu0
    %v2101 = vadd.f32 %v601, %v2100
    %2102 = vmatprep.mubr.f32.mxu0 %v1779
    %2103 = vmatmul.mubr.f32.gmra.mrb[0].mxu0 %v1778
    %v2104 = vpop.f32.mrb[0].mxu0
    %v2105 = vadd.f32 %v597, %v2104
    %v2106 = vpop.f32.mrb[0].mxu0
    %v2107 = vadd.f32 %v601, %v2106
    %2108 = vmatprep.mubr.f32.mxu0 %v1783
    %2109 = vmatmul.mubr.f32.gmra.mrb[0].mxu0 %v1782
    %v2110 = vpop.f32.mrb[0].mxu0
    %v2111 = vadd.f32 %v597, %v2110
    %v2112 = vpop.f32.mrb[0].mxu0
    %v2113 = vadd.f32 %v601, %v2112
    %2114 = vmatprep.mubr.f32.mxu0 %v1787
    %2115 = vmatmul.mubr.f32.gmra.mrb[0].mxu0 %v1786
    %v2116 = vpop.f32.mrb[0].mxu0
    %v2117 = vadd.f32 %v597, %v2116
    %v2118 = vpop.f32.mrb[0].mxu0
    %v2119 = vadd.f32 %v601, %v2118
    %2120 = vmatprep.mubr.f32.mxu0 %v1791
    %2121 = vmatmul.mubr.f32.gmra.mrb[0].mxu0 %v1790
    %v2122 = vpop.f32.mrb[0].mxu0
    %v2123 = vadd.f32 %v597, %v2122
    %v2124 = vpop.f32.mrb[0].mxu0
    %v2125 = vadd.f32 %v601, %v2124
    %2126 = vmatprep.mubr.f32.mxu0 %v1795
    %2127 = vmatmul.mubr.f32.gmra.mrb[0].mxu0 %v1794
    %v2128 = vpop.f32.mrb[0].mxu0
    %v2129 = vadd.f32 %v597, %v2128
    %v2130 = vpop.f32.mrb[0].mxu0
    %v2131 = vadd.f32 %v601, %v2130
    %2132 = vmatprep.mubr.f32.mxu0 %v1799
    %2133 = vmatmul.mubr.f32.gmra.mrb[0].mxu0 %v1798
    %v2134 = vpop.f32.mrb[0].mxu0
    %v2135 = vadd.f32 %v597, %v2134
    %v2136 = vpop.f32.mrb[0].mxu0
    %v2137 = vadd.f32 %v601, %v2136
    %2138 = vmatprep.mubr.f32.mxu0 %v1803
    %2139 = vmatmul.mubr.f32.gmra.mrb[0].mxu0 %v1802
    %v2140 = vpop.f32.mrb[0].mxu0
    %v2141 = vadd.f32 %v597, %v2140
    %v2142 = vpop.f32.mrb[0].mxu0
    %v2143 = vadd.f32 %v601, %v2142
    %2144 = vmatprep.mubr.f32.mxu0 %v1807
    %2145 = vmatmul.mubr.f32.gmra.mrb[0].mxu0 %v1806
    %v2146 = vpop.f32.mrb[0].mxu0
    %v2147 = vadd.f32 %v597, %v2146
    %v2148 = vpop.f32.mrb[0].mxu0
    %v2149 = vadd.f32 %v601, %v2148
    %2150 = vmatprep.mubr.f32.mxu0 %v1811
    %2151 = vmatmul.mubr.f32.gmra.mrb[0].mxu0 %v1810
    %v2152 = vpop.f32.mrb[0].mxu0
    %v2153 = vadd.f32 %v597, %v2152
    %v2154 = vpop.f32.mrb[0].mxu0
    %v2155 = vadd.f32 %v601, %v2154
    %2156 = vmatprep.mubr.f32.mxu0 %v1815
    %2157 = vmatmul.mubr.f32.gmra.mrb[0].mxu0 %v1814
    %v2158 = vpop.f32.mrb[0].mxu0
    %v2159 = vadd.f32 %v597, %v2158
    %v2160 = vpop.f32.mrb[0].mxu0
    %v2161 = vadd.f32 %v601, %v2160
    %2162 = vmatprep.mubr.f32.mxu0 %v1819
    %2163 = vmatmul.mubr.f32.gmra.mrb[0].mxu0 %v1818
    %v2164 = vpop.f32.mrb[0].mxu0
    %v2165 = vadd.f32 %v597, %v2164
    %v2166 = vpop.f32.mrb[0].mxu0
    %v2167 = vadd.f32 %v601, %v2166
    %2168 = vmatprep.mubr.f32.mxu0 %v1823
    %2169 = vmatmul.mubr.f32.gmra.mrb[0].mxu0 %v1822
    %v2170 = vpop.f32.mrb[0].mxu0
    %v2171 = vadd.f32 %v597, %v2170
    %v2172 = vpop.f32.mrb[0].mxu0
    %v2173 = vadd.f32 %v601, %v2172
    %2174 = vmatprep.mubr.f32.mxu0 %v1827
    %2175 = vmatmul.mubr.f32.gmra.mrb[0].mxu0 %v1826
    %v2176 = vpop.f32.mrb[0].mxu0
    %v2177 = vadd.f32 %v597, %v2176
    %v2178 = vpop.f32.mrb[0].mxu0
    %v2179 = vadd.f32 %v601, %v2178
    %2180 = vmatprep.mubr.f32.mxu0 %v1831
    %2181 = vmatmul.mubr.f32.gmra.mrb[0].mxu0 %v1830
    %v2182 = vpop.f32.mrb[0].mxu0
    %v2183 = vadd.f32 %v597, %v2182
    %v2184 = vpop.f32.mrb[0].mxu0
    %v2185 = vadd.f32 %v601, %v2184
    %2186 = vmatprep.mubr.f32.mxu0 %v1835
    %2187 = vmatmul.mubr.f32.gmra.mrb[0].mxu0 %v1834
    %v2188 = vpop.f32.mrb[0].mxu0
    %v2189 = vadd.f32 %v597, %v2188
    %v2190 = vpop.f32.mrb[0].mxu0
    %v2191 = vadd.f32 %v601, %v2190
    %2192 = vmatprep.mubr.f32.mxu0 %v1839
    %2193 = vmatmul.mubr.f32.gmra.mrb[0].mxu0 %v1838
    %v2194 = vpop.f32.mrb[0].mxu0
    %v2195 = vadd.f32 %v597, %v2194
    %v2196 = vpop.f32.mrb[0].mxu0
    %v2197 = vadd.f32 %v601, %v2196
    %2198 = vmatprep.mubr.f32.mxu0 %v1843
    %2199 = vmatmul.mubr.f32.gmra.mrb[0].mxu0 %v1842
    %v2200 = vpop.f32.mrb[0].mxu0
    %v2201 = vadd.f32 %v597, %v2200
    %v2202 = vpop.f32.mrb[0].mxu0
    %v2203 = vadd.f32 %v601, %v2202
    %2204 = vmatprep.mubr.f32.mxu0 %v1847
    %2205 = vmatmul.mubr.f32.gmra.mrb[0].mxu0 %v1846
    %v2206 = vpop.f32.mrb[0].mxu0
    %v2207 = vadd.f32 %v597, %v2206
    %v2208 = vpop.f32.mrb[0].mxu0
    %v2209 = vadd.f32 %v601, %v2208
    %2210 = vmatprep.mubr.f32.mxu0 %v1851
    %2211 = vmatmul.mubr.f32.gmra.mrb[0].mxu0 %v1850
    %v2212 = vpop.f32.mrb[0].mxu0
    %v2213 = vadd.f32 %v597, %v2212
    %v2214 = vpop.f32.mrb[0].mxu0
    %v2215 = vadd.f32 %v601, %v2214
    %2216 = vmatprep.mubr.f32.mxu0 %v1855
    %2217 = vmatmul.mubr.f32.gmra.mrb[0].mxu0 %v1854
    %v2218 = vpop.f32.mrb[0].mxu0
    %v2219 = vadd.f32 %v597, %v2218
    %v2220 = vpop.f32.mrb[0].mxu0
    %v2221 = vadd.f32 %v601, %v2220
    %2222 = vmatprep.mubr.f32.mxu0 %v1859
    %2223 = vmatmul.mubr.f32.gmra.mrb[0].mxu0 %v1858
    %v2224 = vpop.f32.mrb[0].mxu0
    %v2225 = vadd.f32 %v597, %v2224
    %v2226 = vpop.f32.mrb[0].mxu0
    %v2227 = vadd.f32 %v601, %v2226
    %2228 = vmatprep.mubr.f32.mxu0 %v1863
    %2229 = vmatmul.mubr.f32.gmra.mrb[0].mxu0 %v1862
    %v2230 = vpop.f32.mrb[0].mxu0
    %v2231 = vadd.f32 %v597, %v2230
    %v2232 = vpop.f32.mrb[0].mxu0
    %v2233 = vadd.f32 %v601, %v2232
    %2234 = vmatprep.mubr.f32.mxu0 %v1867
    %2235 = vmatmul.mubr.f32.gmra.mrb[0].mxu0 %v1866
    %v2236 = vpop.f32.mrb[0].mxu0
    %v2237 = vadd.f32 %v597, %v2236
    %v2238 = vpop.f32.mrb[0].mxu0
    %v2239 = vadd.f32 %v601, %v2238
    %2240 = vmatprep.mubr.f32.mxu0 %v1871
    %2241 = vmatmul.mubr.f32.gmra.mrb[0].mxu0 %v1870
    %v2242 = vpop.f32.mrb[0].mxu0
    %v2243 = vadd.f32 %v597, %v2242
    %v2244 = vpop.f32.mrb[0].mxu0
    %v2245 = vadd.f32 %v601, %v2244
    %2246 = vmatprep.mubr.f32.mxu0 %v1875
    %2247 = vmatmul.mubr.f32.gmra.mrb[0].mxu0 %v1874
    %v2248 = vpop.f32.mrb[0].mxu0
    %v2249 = vadd.f32 %v597, %v2248
    %v2250 = vpop.f32.mrb[0].mxu0
    %v2251 = vadd.f32 %v601, %v2250
    %2252 = vmatprep.mubr.f32.mxu0 %v1879
    %2253 = vmatmul.mubr.f32.gmra.mrb[0].mxu0 %v1878
    %v2254 = vpop.f32.mrb[0].mxu0
    %v2255 = vadd.f32 %v597, %v2254
    %v2256 = vpop.f32.mrb[0].mxu0
    %v2257 = vadd.f32 %v601, %v2256
    %2258 = vmatprep.mubr.f32.mxu0 %v1883
    %2259 = vmatmul.mubr.f32.gmra.mrb[0].mxu0 %v1882
    %v2260 = vpop.f32.mrb[0].mxu0
    %v2261 = vadd.f32 %v597, %v2260
    %v2262 = vpop.f32.mrb[0].mxu0
    %v2263 = vadd.f32 %v601, %v2262
    %2264 = vmatprep.mubr.f32.mxu0 %v1887
    %2265 = vmatmul.mubr.f32.gmra.mrb[0].mxu0 %v1886
    %v2266 = vpop.f32.mrb[0].mxu0
    %v2267 = vadd.f32 %v597, %v2266
    %v2268 = vpop.f32.mrb[0].mxu0
    %v2269 = vadd.f32 %v601, %v2268
    %2270 = vmatprep.mubr.f32.mxu0 %v1891
    %2271 = vmatmul.mubr.f32.gmra.mrb[0].mxu0 %v1890
    %v2272 = vpop.f32.mrb[0].mxu0
    %v2273 = vadd.f32 %v597, %v2272
    %v2274 = vpop.f32.mrb[0].mxu0
    %v2275 = vadd.f32 %v601, %v2274
    %2276 = vmatprep.mubr.f32.mxu0 %v1895
    %2277 = vmatmul.mubr.f32.gmra.mrb[0].mxu0 %v1894
    %v2278 = vpop.f32.mrb[0].mxu0
    %v2279 = vadd.f32 %v597, %v2278
    %v2280 = vpop.f32.mrb[0].mxu0
    %v2281 = vadd.f32 %v601, %v2280
    %2282 = vdwg.mxu0
    %2283 = vmatprep.subr.mxu0 %v465
    %2284 = vmatpush1.msra.mxu0 %v464
    %2285 = vmatprep.subr.mxu0 %v469
    %2286 = vmatpush1.msra.mxu0 %v468
    %2287 = vmatprep.subr.mxu0 %v473
    %2288 = vmatpush1.msra.mxu0 %v472
    %2289 = vmatprep.subr.mxu0 %v477
    %2290 = vmatpush1.msra.mxu0 %v476
    %2291 = vmatprep.subr.mxu0 %v481
    %2292 = vmatpush1.msra.mxu0 %v480
    %2293 = vmatprep.subr.mxu0 %v485
    %2294 = vmatpush1.msra.mxu0 %v484
    %2295 = vmatprep.subr.mxu0 %v489
    %2296 = vmatpush1.msra.mxu0 %v488
    %2297 = vmatprep.subr.mxu0 %v493
    %2298 = vmatpush1.msra.mxu0 %v492
    %2299 = vmatprep.subr.mxu0 %v497
    %2300 = vmatpush1.msra.mxu0 %v496
    %2301 = vmatprep.subr.mxu0 %v501
    %2302 = vmatpush1.msra.mxu0 %v500
    %2303 = vmatprep.subr.mxu0 %v505
    %2304 = vmatpush1.msra.mxu0 %v504
    %2305 = vmatprep.subr.mxu0 %v509
    %2306 = vmatpush1.msra.mxu0 %v508
    %2307 = vmatprep.subr.mxu0 %v513
    %2308 = vmatpush1.msra.mxu0 %v512
    %2309 = vmatprep.subr.mxu0 %v517
    %2310 = vmatpush1.msra.mxu0 %v516
    %2311 = vmatprep.subr.mxu0 %v521
    %2312 = vmatpush1.msra.mxu0 %v520
    %2313 = vmatprep.subr.mxu0 %v525
    %2314 = vmatpush1.msra.mxu0 %v524
    %2315 = vmatprep.subr.mxu0 %v529
    %2316 = vmatpush1.msra.mxu0 %v528
    %2317 = vmatprep.subr.mxu0 %v533
    %2318 = vmatpush1.msra.mxu0 %v532
    %2319 = vmatprep.subr.mxu0 %v537
    %2320 = vmatpush1.msra.mxu0 %v536
    %2321 = vmatprep.subr.mxu0 %v541
    %2322 = vmatpush1.msra.mxu0 %v540
    %2323 = vmatprep.subr.mxu0 %v545
    %2324 = vmatpush1.msra.mxu0 %v544
    %2325 = vmatprep.subr.mxu0 %v549
    %2326 = vmatpush1.msra.mxu0 %v548
    %2327 = vmatprep.subr.mxu0 %v553
    %2328 = vmatpush1.msra.mxu0 %v552
    %2329 = vmatprep.subr.mxu0 %v557
    %2330 = vmatpush1.msra.mxu0 %v556
    %2331 = vmatprep.subr.mxu0 %v561
    %2332 = vmatpush1.msra.mxu0 %v560
    %2333 = vmatprep.subr.mxu0 %v565
    %2334 = vmatpush1.msra.mxu0 %v564
    %2335 = vmatprep.subr.mxu0 %v569
    %2336 = vmatpush1.msra.mxu0 %v568
    %2337 = vmatprep.subr.mxu0 %v573
    %2338 = vmatpush1.msra.mxu0 %v572
    %2339 = vmatprep.subr.mxu0 %v577
    %2340 = vmatpush1.msra.mxu0 %v576
    %2341 = vmatprep.subr.mxu0 %v581
    %2342 = vmatpush1.msra.mxu0 %v580
    %2343 = vmatprep.subr.mxu0 %v585
    %2344 = vmatpush1.msra.mxu0 %v584
    %2345 = vmatprep.subr.mxu0 %v589
    %2346 = vmatpush1.msra.mxu0 %v588
    %2347 = vmatprep.mubr.f32.mxu0 %v1773
    %2348 = vmatmul.mubr.f32.gmra.mrb[0].mxu0 %v1772
    %v2349 = vpop.f32.mrb[0].mxu0
    %v2350 = vadd.f32 %v2093, %v2349
    %v2351 = vpop.f32.mrb[0].mxu0
    %v2352 = vadd.f32 %v2095, %v2351
    %2353 = vmatprep.mubr.f32.mxu0 %v1777
    %2354 = vmatmul.mubr.f32.gmra.mrb[0].mxu0 %v1776
    %v2355 = vpop.f32.mrb[0].mxu0
    %v2356 = vadd.f32 %v2099, %v2355
    %v2357 = vpop.f32.mrb[0].mxu0
    %v2358 = vadd.f32 %v2101, %v2357
    %2359 = vmatprep.mubr.f32.mxu0 %v1781
    %2360 = vmatmul.mubr.f32.gmra.mrb[0].mxu0 %v1780
    %v2361 = vpop.f32.mrb[0].mxu0
    %v2362 = vadd.f32 %v2105, %v2361
    %v2363 = vpop.f32.mrb[0].mxu0
    %v2364 = vadd.f32 %v2107, %v2363
    %2365 = vmatprep.mubr.f32.mxu0 %v1785
    %2366 = vmatmul.mubr.f32.gmra.mrb[0].mxu0 %v1784
    %v2367 = vpop.f32.mrb[0].mxu0
    %v2368 = vadd.f32 %v2111, %v2367
    %v2369 = vpop.f32.mrb[0].mxu0
    %v2370 = vadd.f32 %v2113, %v2369
    %2371 = vmatprep.mubr.f32.mxu0 %v1789
    %2372 = vmatmul.mubr.f32.gmra.mrb[0].mxu0 %v1788
    %v2373 = vpop.f32.mrb[0].mxu0
    %v2374 = vadd.f32 %v2117, %v2373
    %v2375 = vpop.f32.mrb[0].mxu0
    %v2376 = vadd.f32 %v2119, %v2375
    %2377 = vmatprep.mubr.f32.mxu0 %v1793
    %2378 = vmatmul.mubr.f32.gmra.mrb[0].mxu0 %v1792
    %v2379 = vpop.f32.mrb[0].mxu0
    %v2380 = vadd.f32 %v2123, %v2379
    %v2381 = vpop.f32.mrb[0].mxu0
    %v2382 = vadd.f32 %v2125, %v2381
    %2383 = vmatprep.mubr.f32.mxu0 %v1797
    %2384 = vmatmul.mubr.f32.gmra.mrb[0].mxu0 %v1796
    %v2385 = vpop.f32.mrb[0].mxu0
    %v2386 = vadd.f32 %v2129, %v2385
    %v2387 = vpop.f32.mrb[0].mxu0
    %v2388 = vadd.f32 %v2131, %v2387
    %2389 = vmatprep.mubr.f32.mxu0 %v1801
    %2390 = vmatmul.mubr.f32.gmra.mrb[0].mxu0 %v1800
    %v2391 = vpop.f32.mrb[0].mxu0
    %v2392 = vadd.f32 %v2135, %v2391
    %v2393 = vpop.f32.mrb[0].mxu0
    %v2394 = vadd.f32 %v2137, %v2393
    %2395 = vmatprep.mubr.f32.mxu0 %v1805
    %2396 = vmatmul.mubr.f32.gmra.mrb[0].mxu0 %v1804
    %v2397 = vpop.f32.mrb[0].mxu0
    %v2398 = vadd.f32 %v2141, %v2397
    %v2399 = vpop.f32.mrb[0].mxu0
    %v2400 = vadd.f32 %v2143, %v2399
    %2401 = vmatprep.mubr.f32.mxu0 %v1809
    %2402 = vmatmul.mubr.f32.gmra.mrb[0].mxu0 %v1808
    %v2403 = vpop.f32.mrb[0].mxu0
    %v2404 = vadd.f32 %v2147, %v2403
    %v2405 = vpop.f32.mrb[0].mxu0
    %v2406 = vadd.f32 %v2149, %v2405
    %2407 = vmatprep.mubr.f32.mxu0 %v1813
    %2408 = vmatmul.mubr.f32.gmra.mrb[0].mxu0 %v1812
    %v2409 = vpop.f32.mrb[0].mxu0
    %v2410 = vadd.f32 %v2153, %v2409
    %v2411 = vpop.f32.mrb[0].mxu0
    %v2412 = vadd.f32 %v2155, %v2411
    %2413 = vmatprep.mubr.f32.mxu0 %v1817
    %2414 = vmatmul.mubr.f32.gmra.mrb[0].mxu0 %v1816
    %v2415 = vpop.f32.mrb[0].mxu0
    %v2416 = vadd.f32 %v2159, %v2415
    %v2417 = vpop.f32.mrb[0].mxu0
    %v2418 = vadd.f32 %v2161, %v2417
    %2419 = vmatprep.mubr.f32.mxu0 %v1821
    %2420 = vmatmul.mubr.f32.gmra.mrb[0].mxu0 %v1820
    %v2421 = vpop.f32.mrb[0].mxu0
    %v2422 = vadd.f32 %v2165, %v2421
    %v2423 = vpop.f32.mrb[0].mxu0
    %v2424 = vadd.f32 %v2167, %v2423
    %2425 = vmatprep.mubr.f32.mxu0 %v1825
    %2426 = vmatmul.mubr.f32.gmra.mrb[0].mxu0 %v1824
    %v2427 = vpop.f32.mrb[0].mxu0
    %v2428 = vadd.f32 %v2171, %v2427
    %v2429 = vpop.f32.mrb[0].mxu0
    %v2430 = vadd.f32 %v2173, %v2429
    %2431 = vmatprep.mubr.f32.mxu0 %v1829
    %2432 = vmatmul.mubr.f32.gmra.mrb[0].mxu0 %v1828
    %v2433 = vpop.f32.mrb[0].mxu0
    %v2434 = vadd.f32 %v2177, %v2433
    %v2435 = vpop.f32.mrb[0].mxu0
    %v2436 = vadd.f32 %v2179, %v2435
    %2437 = vmatprep.mubr.f32.mxu0 %v1833
    %2438 = vmatmul.mubr.f32.gmra.mrb[0].mxu0 %v1832
    %v2439 = vpop.f32.mrb[0].mxu0
    %v2440 = vadd.f32 %v2183, %v2439
    %v2441 = vpop.f32.mrb[0].mxu0
    %v2442 = vadd.f32 %v2185, %v2441
    %2443 = vmatprep.mubr.f32.mxu0 %v1837
    %2444 = vmatmul.mubr.f32.gmra.mrb[0].mxu0 %v1836
    %v2445 = vpop.f32.mrb[0].mxu0
    %v2446 = vadd.f32 %v2189, %v2445
    %v2447 = vpop.f32.mrb[0].mxu0
    %v2448 = vadd.f32 %v2191, %v2447
    %2449 = vmatprep.mubr.f32.mxu0 %v1841
    %2450 = vmatmul.mubr.f32.gmra.mrb[0].mxu0 %v1840
    %v2451 = vpop.f32.mrb[0].mxu0
    %v2452 = vadd.f32 %v2195, %v2451
    %v2453 = vpop.f32.mrb[0].mxu0
    %v2454 = vadd.f32 %v2197, %v2453
    %2455 = vmatprep.mubr.f32.mxu0 %v1845
    %2456 = vmatmul.mubr.f32.gmra.mrb[0].mxu0 %v1844
    %v2457 = vpop.f32.mrb[0].mxu0
    %v2458 = vadd.f32 %v2201, %v2457
    %v2459 = vpop.f32.mrb[0].mxu0
    %v2460 = vadd.f32 %v2203, %v2459
    %2461 = vmatprep.mubr.f32.mxu0 %v1849
    %2462 = vmatmul.mubr.f32.gmra.mrb[0].mxu0 %v1848
    %v2463 = vpop.f32.mrb[0].mxu0
    %v2464 = vadd.f32 %v2207, %v2463
    %v2465 = vpop.f32.mrb[0].mxu0
    %v2466 = vadd.f32 %v2209, %v2465
    %2467 = vmatprep.mubr.f32.mxu0 %v1853
    %2468 = vmatmul.mubr.f32.gmra.mrb[0].mxu0 %v1852
    %v2469 = vpop.f32.mrb[0].mxu0
    %v2470 = vadd.f32 %v2213, %v2469
    %v2471 = vpop.f32.mrb[0].mxu0
    %v2472 = vadd.f32 %v2215, %v2471
    %2473 = vmatprep.mubr.f32.mxu0 %v1857
    %2474 = vmatmul.mubr.f32.gmra.mrb[0].mxu0 %v1856
    %v2475 = vpop.f32.mrb[0].mxu0
    %v2476 = vadd.f32 %v2219, %v2475
    %v2477 = vpop.f32.mrb[0].mxu0
    %v2478 = vadd.f32 %v2221, %v2477
    %2479 = vmatprep.mubr.f32.mxu0 %v1861
    %2480 = vmatmul.mubr.f32.gmra.mrb[0].mxu0 %v1860
    %v2481 = vpop.f32.mrb[0].mxu0
    %v2482 = vadd.f32 %v2225, %v2481
    %v2483 = vpop.f32.mrb[0].mxu0
    %v2484 = vadd.f32 %v2227, %v2483
    %2485 = vmatprep.mubr.f32.mxu0 %v1865
    %2486 = vmatmul.mubr.f32.gmra.mrb[0].mxu0 %v1864
    %v2487 = vpop.f32.mrb[0].mxu0
    %v2488 = vadd.f32 %v2231, %v2487
    %v2489 = vpop.f32.mrb[0].mxu0
    %v2490 = vadd.f32 %v2233, %v2489
    %2491 = vmatprep.mubr.f32.mxu0 %v1869
    %2492 = vmatmul.mubr.f32.gmra.mrb[0].mxu0 %v1868
    %v2493 = vpop.f32.mrb[0].mxu0
    %v2494 = vadd.f32 %v2237, %v2493
    %v2495 = vpop.f32.mrb[0].mxu0
    %v2496 = vadd.f32 %v2239, %v2495
    %2497 = vmatprep.mubr.f32.mxu0 %v1873
    %2498 = vmatmul.mubr.f32.gmra.mrb[0].mxu0 %v1872
    %v2499 = vpop.f32.mrb[0].mxu0
    %v2500 = vadd.f32 %v2243, %v2499
    %v2501 = vpop.f32.mrb[0].mxu0
    %v2502 = vadd.f32 %v2245, %v2501
    %2503 = vmatprep.mubr.f32.mxu0 %v1877
    %2504 = vmatmul.mubr.f32.gmra.mrb[0].mxu0 %v1876
    %v2505 = vpop.f32.mrb[0].mxu0
    %v2506 = vadd.f32 %v2249, %v2505
    %v2507 = vpop.f32.mrb[0].mxu0
    %v2508 = vadd.f32 %v2251, %v2507
    %2509 = vmatprep.mubr.f32.mxu0 %v1881
    %2510 = vmatmul.mubr.f32.gmra.mrb[0].mxu0 %v1880
    %v2511 = vpop.f32.mrb[0].mxu0
    %v2512 = vadd.f32 %v2255, %v2511
    %v2513 = vpop.f32.mrb[0].mxu0
    %v2514 = vadd.f32 %v2257, %v2513
    %2515 = vmatprep.mubr.f32.mxu0 %v1885
    %2516 = vmatmul.mubr.f32.gmra.mrb[0].mxu0 %v1884
    %v2517 = vpop.f32.mrb[0].mxu0
    %v2518 = vadd.f32 %v2261, %v2517
    %v2519 = vpop.f32.mrb[0].mxu0
    %v2520 = vadd.f32 %v2263, %v2519
    %2521 = vmatprep.mubr.f32.mxu0 %v1889
    %2522 = vmatmul.mubr.f32.gmra.mrb[0].mxu0 %v1888
    %v2523 = vpop.f32.mrb[0].mxu0
    %v2524 = vadd.f32 %v2267, %v2523
    %v2525 = vpop.f32.mrb[0].mxu0
    %v2526 = vadd.f32 %v2269, %v2525
    %2527 = vmatprep.mubr.f32.mxu0 %v1893
    %2528 = vmatmul.mubr.f32.gmra.mrb[0].mxu0 %v1892
    %v2529 = vpop.f32.mrb[0].mxu0
    %v2530 = vadd.f32 %v2273, %v2529
    %v2531 = vpop.f32.mrb[0].mxu0
    %v2532 = vadd.f32 %v2275, %v2531
    %2533 = vmatprep.mubr.f32.mxu0 %v1897
    %2534 = vmatmul.mubr.f32.gmra.mrb[0].mxu0 %v1896
    %v2535 = vpop.f32.mrb[0].mxu0
    %v2536 = vadd.f32 %v2279, %v2535
    %v2537 = vpop.f32.mrb[0].mxu0
    %v2538 = vadd.f32 %v2281, %v2537
    %2539 = vdwg.mxu0
    %2540 = vmatprep.subr.mxu0 %v339
    %2541 = vmatpush1.msra.mxu0 %v338
    %2542 = vmatprep.subr.mxu0 %v343
    %2543 = vmatpush1.msra.mxu0 %v342
    %2544 = vmatprep.subr.mxu0 %v347
    %2545 = vmatpush1.msra.mxu0 %v346
    %2546 = vmatprep.subr.mxu0 %v351
    %2547 = vmatpush1.msra.mxu0 %v350
    %2548 = vmatprep.subr.mxu0 %v355
    %2549 = vmatpush1.msra.mxu0 %v354
    %2550 = vmatprep.subr.mxu0 %v359
    %2551 = vmatpush1.msra.mxu0 %v358
    %2552 = vmatprep.subr.mxu0 %v363
    %2553 = vmatpush1.msra.mxu0 %v362
    %2554 = vmatprep.subr.mxu0 %v367
    %2555 = vmatpush1.msra.mxu0 %v366
    %2556 = vmatprep.subr.mxu0 %v371
    %2557 = vmatpush1.msra.mxu0 %v370
    %2558 = vmatprep.subr.mxu0 %v375
    %2559 = vmatpush1.msra.mxu0 %v374
    %2560 = vmatprep.subr.mxu0 %v379
    %2561 = vmatpush1.msra.mxu0 %v378
    %2562 = vmatprep.subr.mxu0 %v383
    %2563 = vmatpush1.msra.mxu0 %v382
    %2564 = vmatprep.subr.mxu0 %v387
    %2565 = vmatpush1.msra.mxu0 %v386
    %2566 = vmatprep.subr.mxu0 %v391
    %2567 = vmatpush1.msra.mxu0 %v390
    %2568 = vmatprep.subr.mxu0 %v395
    %2569 = vmatpush1.msra.mxu0 %v394
    %2570 = vmatprep.subr.mxu0 %v399
    %2571 = vmatpush1.msra.mxu0 %v398
    %2572 = vmatprep.subr.mxu0 %v403
    %2573 = vmatpush1.msra.mxu0 %v402
    %2574 = vmatprep.subr.mxu0 %v407
    %2575 = vmatpush1.msra.mxu0 %v406
    %2576 = vmatprep.subr.mxu0 %v411
    %2577 = vmatpush1.msra.mxu0 %v410
    %2578 = vmatprep.subr.mxu0 %v415
    %2579 = vmatpush1.msra.mxu0 %v414
    %2580 = vmatprep.subr.mxu0 %v419
    %2581 = vmatpush1.msra.mxu0 %v418
    %2582 = vmatprep.subr.mxu0 %v423
    %2583 = vmatpush1.msra.mxu0 %v422
    %2584 = vmatprep.subr.mxu0 %v427
    %2585 = vmatpush1.msra.mxu0 %v426
    %2586 = vmatprep.subr.mxu0 %v431
    %2587 = vmatpush1.msra.mxu0 %v430
    %2588 = vmatprep.subr.mxu0 %v435
    %2589 = vmatpush1.msra.mxu0 %v434
    %2590 = vmatprep.subr.mxu0 %v439
    %2591 = vmatpush1.msra.mxu0 %v438
    %2592 = vmatprep.subr.mxu0 %v443
    %2593 = vmatpush1.msra.mxu0 %v442
    %2594 = vmatprep.subr.mxu0 %v447
    %2595 = vmatpush1.msra.mxu0 %v446
    %2596 = vmatprep.subr.mxu0 %v451
    %2597 = vmatpush1.msra.mxu0 %v450
    %2598 = vmatprep.subr.mxu0 %v455
    %2599 = vmatpush1.msra.mxu0 %v454
    %2600 = vmatprep.subr.mxu0 %v459
    %2601 = vmatpush1.msra.mxu0 %v458
    %2602 = vmatprep.subr.mxu0 %v463
    %2603 = vmatpush1.msra.mxu0 %v462
    %2604 = vmatprep.mubr.f32.mxu0 %v1771
    %2605 = vmatmul.mubr.f32.gmra.mrb[0].mxu0 %v1770
    %v2606 = vpop.f32.mrb[0].mxu0
    %v2607 = vadd.f32 %v605, %v2606
    %v2608 = vpop.f32.mrb[0].mxu0
    %v2609 = vadd.f32 %v609, %v2608
    %2610 = vmatprep.mubr.f32.mxu0 %v1775
    %2611 = vmatmul.mubr.f32.gmra.mrb[0].mxu0 %v1774
    %v2612 = vpop.f32.mrb[0].mxu0
    %v2613 = vadd.f32 %v605, %v2612
    %v2614 = vpop.f32.mrb[0].mxu0
    %v2615 = vadd.f32 %v609, %v2614
    %2616 = vmatprep.mubr.f32.mxu0 %v1779
    %2617 = vmatmul.mubr.f32.gmra.mrb[0].mxu0 %v1778
    %v2618 = vpop.f32.mrb[0].mxu0
    %v2619 = vadd.f32 %v605, %v2618
    %v2620 = vpop.f32.mrb[0].mxu0
    %v2621 = vadd.f32 %v609, %v2620
    %2622 = vmatprep.mubr.f32.mxu0 %v1783
    %2623 = vmatmul.mubr.f32.gmra.mrb[0].mxu0 %v1782
    %v2624 = vpop.f32.mrb[0].mxu0
    %v2625 = vadd.f32 %v605, %v2624
    %v2626 = vpop.f32.mrb[0].mxu0
    %v2627 = vadd.f32 %v609, %v2626
    %2628 = vmatprep.mubr.f32.mxu0 %v1787
    %2629 = vmatmul.mubr.f32.gmra.mrb[0].mxu0 %v1786
    %v2630 = vpop.f32.mrb[0].mxu0
    %v2631 = vadd.f32 %v605, %v2630
    %v2632 = vpop.f32.mrb[0].mxu0
    %v2633 = vadd.f32 %v609, %v2632
    %2634 = vmatprep.mubr.f32.mxu0 %v1791
    %2635 = vmatmul.mubr.f32.gmra.mrb[0].mxu0 %v1790
    %v2636 = vpop.f32.mrb[0].mxu0
    %v2637 = vadd.f32 %v605, %v2636
    %v2638 = vpop.f32.mrb[0].mxu0
    %v2639 = vadd.f32 %v609, %v2638
    %2640 = vmatprep.mubr.f32.mxu0 %v1795
    %2641 = vmatmul.mubr.f32.gmra.mrb[0].mxu0 %v1794
    %v2642 = vpop.f32.mrb[0].mxu0
    %v2643 = vadd.f32 %v605, %v2642
    %v2644 = vpop.f32.mrb[0].mxu0
    %v2645 = vadd.f32 %v609, %v2644
    %2646 = vmatprep.mubr.f32.mxu0 %v1799
    %2647 = vmatmul.mubr.f32.gmra.mrb[0].mxu0 %v1798
    %v2648 = vpop.f32.mrb[0].mxu0
    %v2649 = vadd.f32 %v605, %v2648
    %v2650 = vpop.f32.mrb[0].mxu0
    %v2651 = vadd.f32 %v609, %v2650
    %2652 = vmatprep.mubr.f32.mxu0 %v1803
    %2653 = vmatmul.mubr.f32.gmra.mrb[0].mxu0 %v1802
    %v2654 = vpop.f32.mrb[0].mxu0
    %v2655 = vadd.f32 %v605, %v2654
    %v2656 = vpop.f32.mrb[0].mxu0
    %v2657 = vadd.f32 %v609, %v2656
    %2658 = vmatprep.mubr.f32.mxu0 %v1807
    %2659 = vmatmul.mubr.f32.gmra.mrb[0].mxu0 %v1806
    %v2660 = vpop.f32.mrb[0].mxu0
    %v2661 = vadd.f32 %v605, %v2660
    %v2662 = vpop.f32.mrb[0].mxu0
    %v2663 = vadd.f32 %v609, %v2662
    %2664 = vmatprep.mubr.f32.mxu0 %v1811
    %2665 = vmatmul.mubr.f32.gmra.mrb[0].mxu0 %v1810
    %v2666 = vpop.f32.mrb[0].mxu0
    %v2667 = vadd.f32 %v605, %v2666
    %v2668 = vpop.f32.mrb[0].mxu0
    %v2669 = vadd.f32 %v609, %v2668
    %2670 = vmatprep.mubr.f32.mxu0 %v1815
    %2671 = vmatmul.mubr.f32.gmra.mrb[0].mxu0 %v1814
    %v2672 = vpop.f32.mrb[0].mxu0
    %v2673 = vadd.f32 %v605, %v2672
    %v2674 = vpop.f32.mrb[0].mxu0
    %v2675 = vadd.f32 %v609, %v2674
    %2676 = vmatprep.mubr.f32.mxu0 %v1819
    %2677 = vmatmul.mubr.f32.gmra.mrb[0].mxu0 %v1818
    %v2678 = vpop.f32.mrb[0].mxu0
    %v2679 = vadd.f32 %v605, %v2678
    %v2680 = vpop.f32.mrb[0].mxu0
    %v2681 = vadd.f32 %v609, %v2680
    %2682 = vmatprep.mubr.f32.mxu0 %v1823
    %2683 = vmatmul.mubr.f32.gmra.mrb[0].mxu0 %v1822
    %v2684 = vpop.f32.mrb[0].mxu0
    %v2685 = vadd.f32 %v605, %v2684
    %v2686 = vpop.f32.mrb[0].mxu0
    %v2687 = vadd.f32 %v609, %v2686
    %2688 = vmatprep.mubr.f32.mxu0 %v1827
    %2689 = vmatmul.mubr.f32.gmra.mrb[0].mxu0 %v1826
    %v2690 = vpop.f32.mrb[0].mxu0
    %v2691 = vadd.f32 %v605, %v2690
    %v2692 = vpop.f32.mrb[0].mxu0
    %v2693 = vadd.f32 %v609, %v2692
    %2694 = vmatprep.mubr.f32.mxu0 %v1831
    %2695 = vmatmul.mubr.f32.gmra.mrb[0].mxu0 %v1830
    %v2696 = vpop.f32.mrb[0].mxu0
    %v2697 = vadd.f32 %v605, %v2696
    %v2698 = vpop.f32.mrb[0].mxu0
    %v2699 = vadd.f32 %v609, %v2698
    %2700 = vmatprep.mubr.f32.mxu0 %v1835
    %2701 = vmatmul.mubr.f32.gmra.mrb[0].mxu0 %v1834
    %v2702 = vpop.f32.mrb[0].mxu0
    %v2703 = vadd.f32 %v605, %v2702
    %v2704 = vpop.f32.mrb[0].mxu0
    %v2705 = vadd.f32 %v609, %v2704
    %2706 = vmatprep.mubr.f32.mxu0 %v1839
    %2707 = vmatmul.mubr.f32.gmra.mrb[0].mxu0 %v1838
    %v2708 = vpop.f32.mrb[0].mxu0
    %v2709 = vadd.f32 %v605, %v2708
    %v2710 = vpop.f32.mrb[0].mxu0
    %v2711 = vadd.f32 %v609, %v2710
    %2712 = vmatprep.mubr.f32.mxu0 %v1843
    %2713 = vmatmul.mubr.f32.gmra.mrb[0].mxu0 %v1842
    %v2714 = vpop.f32.mrb[0].mxu0
    %v2715 = vadd.f32 %v605, %v2714
    %v2716 = vpop.f32.mrb[0].mxu0
    %v2717 = vadd.f32 %v609, %v2716
    %2718 = vmatprep.mubr.f32.mxu0 %v1847
    %2719 = vmatmul.mubr.f32.gmra.mrb[0].mxu0 %v1846
    %v2720 = vpop.f32.mrb[0].mxu0
    %v2721 = vadd.f32 %v605, %v2720
    %v2722 = vpop.f32.mrb[0].mxu0
    %v2723 = vadd.f32 %v609, %v2722
    %2724 = vmatprep.mubr.f32.mxu0 %v1851
    %2725 = vmatmul.mubr.f32.gmra.mrb[0].mxu0 %v1850
    %v2726 = vpop.f32.mrb[0].mxu0
    %v2727 = vadd.f32 %v605, %v2726
    %v2728 = vpop.f32.mrb[0].mxu0
    %v2729 = vadd.f32 %v609, %v2728
    %2730 = vmatprep.mubr.f32.mxu0 %v1855
    %2731 = vmatmul.mubr.f32.gmra.mrb[0].mxu0 %v1854
    %v2732 = vpop.f32.mrb[0].mxu0
    %v2733 = vadd.f32 %v605, %v2732
    %v2734 = vpop.f32.mrb[0].mxu0
    %v2735 = vadd.f32 %v609, %v2734
    %2736 = vmatprep.mubr.f32.mxu0 %v1859
    %2737 = vmatmul.mubr.f32.gmra.mrb[0].mxu0 %v1858
    %v2738 = vpop.f32.mrb[0].mxu0
    %v2739 = vadd.f32 %v605, %v2738
    %v2740 = vpop.f32.mrb[0].mxu0
    %v2741 = vadd.f32 %v609, %v2740
    %2742 = vmatprep.mubr.f32.mxu0 %v1863
    %2743 = vmatmul.mubr.f32.gmra.mrb[0].mxu0 %v1862
    %v2744 = vpop.f32.mrb[0].mxu0
    %v2745 = vadd.f32 %v605, %v2744
    %v2746 = vpop.f32.mrb[0].mxu0
    %v2747 = vadd.f32 %v609, %v2746
    %2748 = vmatprep.mubr.f32.mxu0 %v1867
    %2749 = vmatmul.mubr.f32.gmra.mrb[0].mxu0 %v1866
    %v2750 = vpop.f32.mrb[0].mxu0
    %v2751 = vadd.f32 %v605, %v2750
    %v2752 = vpop.f32.mrb[0].mxu0
    %v2753 = vadd.f32 %v609, %v2752
    %2754 = vmatprep.mubr.f32.mxu0 %v1871
    %2755 = vmatmul.mubr.f32.gmra.mrb[0].mxu0 %v1870
    %v2756 = vpop.f32.mrb[0].mxu0
    %v2757 = vadd.f32 %v605, %v2756
    %v2758 = vpop.f32.mrb[0].mxu0
    %v2759 = vadd.f32 %v609, %v2758
    %2760 = vmatprep.mubr.f32.mxu0 %v1875
    %2761 = vmatmul.mubr.f32.gmra.mrb[0].mxu0 %v1874
    %v2762 = vpop.f32.mrb[0].mxu0
    %v2763 = vadd.f32 %v605, %v2762
    %v2764 = vpop.f32.mrb[0].mxu0
    %v2765 = vadd.f32 %v609, %v2764
    %2766 = vmatprep.mubr.f32.mxu0 %v1879
    %2767 = vmatmul.mubr.f32.gmra.mrb[0].mxu0 %v1878
    %v2768 = vpop.f32.mrb[0].mxu0
    %v2769 = vadd.f32 %v605, %v2768
    %v2770 = vpop.f32.mrb[0].mxu0
    %v2771 = vadd.f32 %v609, %v2770
    %2772 = vmatprep.mubr.f32.mxu0 %v1883
    %2773 = vmatmul.mubr.f32.gmra.mrb[0].mxu0 %v1882
    %v2774 = vpop.f32.mrb[0].mxu0
    %v2775 = vadd.f32 %v605, %v2774
    %v2776 = vpop.f32.mrb[0].mxu0
    %v2777 = vadd.f32 %v609, %v2776
    %2778 = vmatprep.mubr.f32.mxu0 %v1887
    %2779 = vmatmul.mubr.f32.gmra.mrb[0].mxu0 %v1886
    %v2780 = vpop.f32.mrb[0].mxu0
    %v2781 = vadd.f32 %v605, %v2780
    %v2782 = vpop.f32.mrb[0].mxu0
    %v2783 = vadd.f32 %v609, %v2782
    %2784 = vmatprep.mubr.f32.mxu0 %v1891
    %2785 = vmatmul.mubr.f32.gmra.mrb[0].mxu0 %v1890
    %v2786 = vpop.f32.mrb[0].mxu0
    %v2787 = vadd.f32 %v605, %v2786
    %v2788 = vpop.f32.mrb[0].mxu0
    %v2789 = vadd.f32 %v609, %v2788
    %2790 = vmatprep.mubr.f32.mxu0 %v1895
    %2791 = vmatmul.mubr.f32.gmra.mrb[0].mxu0 %v1894
    %v2792 = vpop.f32.mrb[0].mxu0
    %v2793 = vadd.f32 %v605, %v2792
    %v2794 = vpop.f32.mrb[0].mxu0
    %v2795 = vadd.f32 %v609, %v2794
    %2796 = vdwg.mxu0
    %2797 = vmatprep.subr.mxu0 %v467
    %2798 = vmatpush1.msra.mxu0 %v466
    %2799 = vmatprep.subr.mxu0 %v471
    %2800 = vmatpush1.msra.mxu0 %v470
    %2801 = vmatprep.subr.mxu0 %v475
    %2802 = vmatpush1.msra.mxu0 %v474
    %2803 = vmatprep.subr.mxu0 %v479
    %2804 = vmatpush1.msra.mxu0 %v478
    %2805 = vmatprep.subr.mxu0 %v483
    %2806 = vmatpush1.msra.mxu0 %v482
    %2807 = vmatprep.subr.mxu0 %v487
    %2808 = vmatpush1.msra.mxu0 %v486
    %2809 = vmatprep.subr.mxu0 %v491
    %2810 = vmatpush1.msra.mxu0 %v490
    %2811 = vmatprep.subr.mxu0 %v495
    %2812 = vmatpush1.msra.mxu0 %v494
    %2813 = vmatprep.subr.mxu0 %v499
    %2814 = vmatpush1.msra.mxu0 %v498
    %2815 = vmatprep.subr.mxu0 %v503
    %2816 = vmatpush1.msra.mxu0 %v502
    %2817 = vmatprep.subr.mxu0 %v507
    %2818 = vmatpush1.msra.mxu0 %v506
    %2819 = vmatprep.subr.mxu0 %v511
    %2820 = vmatpush1.msra.mxu0 %v510
    %2821 = vmatprep.subr.mxu0 %v515
    %2822 = vmatpush1.msra.mxu0 %v514
    %2823 = vmatprep.subr.mxu0 %v519
    %2824 = vmatpush1.msra.mxu0 %v518
    %2825 = vmatprep.subr.mxu0 %v523
    %2826 = vmatpush1.msra.mxu0 %v522
    %2827 = vmatprep.subr.mxu0 %v527
    %2828 = vmatpush1.msra.mxu0 %v526
    %2829 = vmatprep.subr.mxu0 %v531
    %2830 = vmatpush1.msra.mxu0 %v530
    %2831 = vmatprep.subr.mxu0 %v535
    %2832 = vmatpush1.msra.mxu0 %v534
    %2833 = vmatprep.subr.mxu0 %v539
    %2834 = vmatpush1.msra.mxu0 %v538
    %2835 = vmatprep.subr.mxu0 %v543
    %2836 = vmatpush1.msra.mxu0 %v542
    %2837 = vmatprep.subr.mxu0 %v547
    %2838 = vmatpush1.msra.mxu0 %v546
    %2839 = vmatprep.subr.mxu0 %v551
    %2840 = vmatpush1.msra.mxu0 %v550
    %2841 = vmatprep.subr.mxu0 %v555
    %2842 = vmatpush1.msra.mxu0 %v554
    %2843 = vmatprep.subr.mxu0 %v559
    %2844 = vmatpush1.msra.mxu0 %v558
    %2845 = vmatprep.subr.mxu0 %v563
    %2846 = vmatpush1.msra.mxu0 %v562
    %2847 = vmatprep.subr.mxu0 %v567
    %2848 = vmatpush1.msra.mxu0 %v566
    %2849 = vmatprep.subr.mxu0 %v571
    %2850 = vmatpush1.msra.mxu0 %v570
    %2851 = vmatprep.subr.mxu0 %v575
    %2852 = vmatpush1.msra.mxu0 %v574
    %2853 = vmatprep.subr.mxu0 %v579
    %2854 = vmatpush1.msra.mxu0 %v578
    %2855 = vmatprep.subr.mxu0 %v583
    %2856 = vmatpush1.msra.mxu0 %v582
    %2857 = vmatprep.subr.mxu0 %v587
    %2858 = vmatpush1.msra.mxu0 %v586
    %2859 = vmatprep.subr.mxu0 %v591
    %2860 = vmatpush1.msra.mxu0 %v590
    %2861 = vmatprep.mubr.f32.mxu0 %v1773
    %2862 = vmatmul.mubr.f32.gmra.mrb[0].mxu0 %v1772
    %v2863 = vpop.f32.mrb[0].mxu0
    %v2864 = vadd.f32 %v2607, %v2863
    %v2865 = vpop.f32.mrb[0].mxu0
    %v2866 = vadd.f32 %v2609, %v2865
    %2867 = vmatprep.mubr.f32.mxu0 %v1777
    %2868 = vmatmul.mubr.f32.gmra.mrb[0].mxu0 %v1776
    %v2869 = vpop.f32.mrb[0].mxu0
    %v2870 = vadd.f32 %v2613, %v2869
    %v2871 = vpop.f32.mrb[0].mxu0
    %v2872 = vadd.f32 %v2615, %v2871
    %2873 = vmatprep.mubr.f32.mxu0 %v1781
    %2874 = vmatmul.mubr.f32.gmra.mrb[0].mxu0 %v1780
    %v2875 = vpop.f32.mrb[0].mxu0
    %v2876 = vadd.f32 %v2619, %v2875
    %v2877 = vpop.f32.mrb[0].mxu0
    %v2878 = vadd.f32 %v2621, %v2877
    %2879 = vmatprep.mubr.f32.mxu0 %v1785
    %2880 = vmatmul.mubr.f32.gmra.mrb[0].mxu0 %v1784
    %v2881 = vpop.f32.mrb[0].mxu0
    %v2882 = vadd.f32 %v2625, %v2881
    %v2883 = vpop.f32.mrb[0].mxu0
    %v2884 = vadd.f32 %v2627, %v2883
    %2885 = vmatprep.mubr.f32.mxu0 %v1789
    %2886 = vmatmul.mubr.f32.gmra.mrb[0].mxu0 %v1788
    %v2887 = vpop.f32.mrb[0].mxu0
    %v2888 = vadd.f32 %v2631, %v2887
    %v2889 = vpop.f32.mrb[0].mxu0
    %v2890 = vadd.f32 %v2633, %v2889
    %2891 = vmatprep.mubr.f32.mxu0 %v1793
    %2892 = vmatmul.mubr.f32.gmra.mrb[0].mxu0 %v1792
    %v2893 = vpop.f32.mrb[0].mxu0
    %v2894 = vadd.f32 %v2637, %v2893
    %v2895 = vpop.f32.mrb[0].mxu0
    %v2896 = vadd.f32 %v2639, %v2895
    %2897 = vmatprep.mubr.f32.mxu0 %v1797
    %2898 = vmatmul.mubr.f32.gmra.mrb[0].mxu0 %v1796
    %v2899 = vpop.f32.mrb[0].mxu0
    %v2900 = vadd.f32 %v2643, %v2899
    %v2901 = vpop.f32.mrb[0].mxu0
    %v2902 = vadd.f32 %v2645, %v2901
    %2903 = vmatprep.mubr.f32.mxu0 %v1801
    %2904 = vmatmul.mubr.f32.gmra.mrb[0].mxu0 %v1800
    %v2905 = vpop.f32.mrb[0].mxu0
    %v2906 = vadd.f32 %v2649, %v2905
    %v2907 = vpop.f32.mrb[0].mxu0
    %v2908 = vadd.f32 %v2651, %v2907
    %2909 = vmatprep.mubr.f32.mxu0 %v1805
    %2910 = vmatmul.mubr.f32.gmra.mrb[0].mxu0 %v1804
    %v2911 = vpop.f32.mrb[0].mxu0
    %v2912 = vadd.f32 %v2655, %v2911
    %v2913 = vpop.f32.mrb[0].mxu0
    %v2914 = vadd.f32 %v2657, %v2913
    %2915 = vmatprep.mubr.f32.mxu0 %v1809
    %2916 = vmatmul.mubr.f32.gmra.mrb[0].mxu0 %v1808
    %v2917 = vpop.f32.mrb[0].mxu0
    %v2918 = vadd.f32 %v2661, %v2917
    %v2919 = vpop.f32.mrb[0].mxu0
    %v2920 = vadd.f32 %v2663, %v2919
    %2921 = vmatprep.mubr.f32.mxu0 %v1813
    %2922 = vmatmul.mubr.f32.gmra.mrb[0].mxu0 %v1812
    %v2923 = vpop.f32.mrb[0].mxu0
    %v2924 = vadd.f32 %v2667, %v2923
    %v2925 = vpop.f32.mrb[0].mxu0
    %v2926 = vadd.f32 %v2669, %v2925
    %2927 = vmatprep.mubr.f32.mxu0 %v1817
    %2928 = vmatmul.mubr.f32.gmra.mrb[0].mxu0 %v1816
    %v2929 = vpop.f32.mrb[0].mxu0
    %v2930 = vadd.f32 %v2673, %v2929
    %v2931 = vpop.f32.mrb[0].mxu0
    %v2932 = vadd.f32 %v2675, %v2931
    %2933 = vmatprep.mubr.f32.mxu0 %v1821
    %2934 = vmatmul.mubr.f32.gmra.mrb[0].mxu0 %v1820
    %v2935 = vpop.f32.mrb[0].mxu0
    %v2936 = vadd.f32 %v2679, %v2935
    %v2937 = vpop.f32.mrb[0].mxu0
    %v2938 = vadd.f32 %v2681, %v2937
    %2939 = vmatprep.mubr.f32.mxu0 %v1825
    %2940 = vmatmul.mubr.f32.gmra.mrb[0].mxu0 %v1824
    %v2941 = vpop.f32.mrb[0].mxu0
    %v2942 = vadd.f32 %v2685, %v2941
    %v2943 = vpop.f32.mrb[0].mxu0
    %v2944 = vadd.f32 %v2687, %v2943
    %2945 = vmatprep.mubr.f32.mxu0 %v1829
    %2946 = vmatmul.mubr.f32.gmra.mrb[0].mxu0 %v1828
    %v2947 = vpop.f32.mrb[0].mxu0
    %v2948 = vadd.f32 %v2691, %v2947
    %v2949 = vpop.f32.mrb[0].mxu0
    %v2950 = vadd.f32 %v2693, %v2949
    %2951 = vmatprep.mubr.f32.mxu0 %v1833
    %2952 = vmatmul.mubr.f32.gmra.mrb[0].mxu0 %v1832
    %v2953 = vpop.f32.mrb[0].mxu0
    %v2954 = vadd.f32 %v2697, %v2953
    %v2955 = vpop.f32.mrb[0].mxu0
    %v2956 = vadd.f32 %v2699, %v2955
    %2957 = vmatprep.mubr.f32.mxu0 %v1837
    %2958 = vmatmul.mubr.f32.gmra.mrb[0].mxu0 %v1836
    %v2959 = vpop.f32.mrb[0].mxu0
    %v2960 = vadd.f32 %v2703, %v2959
    %v2961 = vpop.f32.mrb[0].mxu0
    %v2962 = vadd.f32 %v2705, %v2961
    %2963 = vmatprep.mubr.f32.mxu0 %v1841
    %2964 = vmatmul.mubr.f32.gmra.mrb[0].mxu0 %v1840
    %v2965 = vpop.f32.mrb[0].mxu0
    %v2966 = vadd.f32 %v2709, %v2965
    %v2967 = vpop.f32.mrb[0].mxu0
    %v2968 = vadd.f32 %v2711, %v2967
    %2969 = vmatprep.mubr.f32.mxu0 %v1845
    %2970 = vmatmul.mubr.f32.gmra.mrb[0].mxu0 %v1844
    %v2971 = vpop.f32.mrb[0].mxu0
    %v2972 = vadd.f32 %v2715, %v2971
    %v2973 = vpop.f32.mrb[0].mxu0
    %v2974 = vadd.f32 %v2717, %v2973
    %2975 = vmatprep.mubr.f32.mxu0 %v1849
    %2976 = vmatmul.mubr.f32.gmra.mrb[0].mxu0 %v1848
    %v2977 = vpop.f32.mrb[0].mxu0
    %v2978 = vadd.f32 %v2721, %v2977
    %v2979 = vpop.f32.mrb[0].mxu0
    %v2980 = vadd.f32 %v2723, %v2979
    %2981 = vmatprep.mubr.f32.mxu0 %v1853
    %2982 = vmatmul.mubr.f32.gmra.mrb[0].mxu0 %v1852
    %v2983 = vpop.f32.mrb[0].mxu0
    %v2984 = vadd.f32 %v2727, %v2983
    %v2985 = vpop.f32.mrb[0].mxu0
    %v2986 = vadd.f32 %v2729, %v2985
    %2987 = vmatprep.mubr.f32.mxu0 %v1857
    %2988 = vmatmul.mubr.f32.gmra.mrb[0].mxu0 %v1856
    %v2989 = vpop.f32.mrb[0].mxu0
    %v2990 = vadd.f32 %v2733, %v2989
    %v2991 = vpop.f32.mrb[0].mxu0
    %v2992 = vadd.f32 %v2735, %v2991
    %2993 = vmatprep.mubr.f32.mxu0 %v1861
    %2994 = vmatmul.mubr.f32.gmra.mrb[0].mxu0 %v1860
    %v2995 = vpop.f32.mrb[0].mxu0
    %v2996 = vadd.f32 %v2739, %v2995
    %v2997 = vpop.f32.mrb[0].mxu0
    %v2998 = vadd.f32 %v2741, %v2997
    %2999 = vmatprep.mubr.f32.mxu0 %v1865
    %3000 = vmatmul.mubr.f32.gmra.mrb[0].mxu0 %v1864
    %v3001 = vpop.f32.mrb[0].mxu0
    %v3002 = vadd.f32 %v2745, %v3001
    %v3003 = vpop.f32.mrb[0].mxu0
    %v3004 = vadd.f32 %v2747, %v3003
    %3005 = vmatprep.mubr.f32.mxu0 %v1869
    %3006 = vmatmul.mubr.f32.gmra.mrb[0].mxu0 %v1868
    %v3007 = vpop.f32.mrb[0].mxu0
    %v3008 = vadd.f32 %v2751, %v3007
    %v3009 = vpop.f32.mrb[0].mxu0
    %v3010 = vadd.f32 %v2753, %v3009
    %3011 = vmatprep.mubr.f32.mxu0 %v1873
    %3012 = vmatmul.mubr.f32.gmra.mrb[0].mxu0 %v1872
    %v3013 = vpop.f32.mrb[0].mxu0
    %v3014 = vadd.f32 %v2757, %v3013
    %v3015 = vpop.f32.mrb[0].mxu0
    %v3016 = vadd.f32 %v2759, %v3015
    %3017 = vmatprep.mubr.f32.mxu0 %v1877
    %3018 = vmatmul.mubr.f32.gmra.mrb[0].mxu0 %v1876
    %v3019 = vpop.f32.mrb[0].mxu0
    %v3020 = vadd.f32 %v2763, %v3019
    %v3021 = vpop.f32.mrb[0].mxu0
    %v3022 = vadd.f32 %v2765, %v3021
    %3023 = vmatprep.mubr.f32.mxu0 %v1881
    %3024 = vmatmul.mubr.f32.gmra.mrb[0].mxu0 %v1880
    %v3025 = vpop.f32.mrb[0].mxu0
    %v3026 = vadd.f32 %v2769, %v3025
    %v3027 = vpop.f32.mrb[0].mxu0
    %v3028 = vadd.f32 %v2771, %v3027
    %3029 = vmatprep.mubr.f32.mxu0 %v1885
    %3030 = vmatmul.mubr.f32.gmra.mrb[0].mxu0 %v1884
    %v3031 = vpop.f32.mrb[0].mxu0
    %v3032 = vadd.f32 %v2775, %v3031
    %v3033 = vpop.f32.mrb[0].mxu0
    %v3034 = vadd.f32 %v2777, %v3033
    %3035 = vmatprep.mubr.f32.mxu0 %v1889
    %3036 = vmatmul.mubr.f32.gmra.mrb[0].mxu0 %v1888
    %v3037 = vpop.f32.mrb[0].mxu0
    %v3038 = vadd.f32 %v2781, %v3037
    %v3039 = vpop.f32.mrb[0].mxu0
    %v3040 = vadd.f32 %v2783, %v3039
    %3041 = vmatprep.mubr.f32.mxu0 %v1893
    %3042 = vmatmul.mubr.f32.gmra.mrb[0].mxu0 %v1892
    %v3043 = vpop.f32.mrb[0].mxu0
    %v3044 = vadd.f32 %v2787, %v3043
    %v3045 = vpop.f32.mrb[0].mxu0
    %v3046 = vadd.f32 %v2789, %v3045
    %3047 = vmatprep.mubr.f32.mxu0 %v1897
    %3048 = vmatmul.mubr.f32.gmra.mrb[0].mxu0 %v1896
    %v3049 = vpop.f32.mrb[0].mxu0
    %v3050 = vadd.f32 %v2793, %v3049
    %v3051 = vpop.f32.mrb[0].mxu0
    %v3052 = vadd.f32 %v2795, %v3051
    %3053 = vdwg.mxu0
    %v3054 = vadd.f32 %v2350, %v1898
    %v3055 = vadd.f32 %v2352, %v1899
    %v3056 = vadd.f32 %v2864, %v1900
    %v3057 = vadd.f32 %v2866, %v1901
    %v3058 = vadd.f32 %v2356, %v1902
    %v3059 = vadd.f32 %v2358, %v1903
    %v3060 = vadd.f32 %v2870, %v1904
    %v3061 = vadd.f32 %v2872, %v1905
    %v3062 = vadd.f32 %v2362, %v1906
    %v3063 = vadd.f32 %v2364, %v1907
    %v3064 = vadd.f32 %v2876, %v1908
    %v3065 = vadd.f32 %v2878, %v1909
    %v3066 = vadd.f32 %v2368, %v1910
    %v3067 = vadd.f32 %v2370, %v1911
    %v3068 = vadd.f32 %v2882, %v1912
    %v3069 = vadd.f32 %v2884, %v1913
    %v3070 = vadd.f32 %v2374, %v1914
    %v3071 = vadd.f32 %v2376, %v1915
    %v3072 = vadd.f32 %v2888, %v1916
    %v3073 = vadd.f32 %v2890, %v1917
    %v3074 = vadd.f32 %v2380, %v1918
    %v3075 = vadd.f32 %v2382, %v1919
    %v3076 = vadd.f32 %v2894, %v1920
    %v3077 = vadd.f32 %v2896, %v1921
    %v3078 = vadd.f32 %v2386, %v1922
    %v3079 = vadd.f32 %v2388, %v1923
    %v3080 = vadd.f32 %v2900, %v1924
    %v3081 = vadd.f32 %v2902, %v1925
    %v3082 = vadd.f32 %v2392, %v1926
    %v3083 = vadd.f32 %v2394, %v1927
    %v3084 = vadd.f32 %v2906, %v1928
    %v3085 = vadd.f32 %v2908, %v1929
    %v3086 = vadd.f32 %v2398, %v1930
    %v3087 = vadd.f32 %v2400, %v1931
    %v3088 = vadd.f32 %v2912, %v1932
    %v3089 = vadd.f32 %v2914, %v1933
    %v3090 = vadd.f32 %v2404, %v1934
    %v3091 = vadd.f32 %v2406, %v1935
    %v3092 = vadd.f32 %v2918, %v1936
    %v3093 = vadd.f32 %v2920, %v1937
    %v3094 = vadd.f32 %v2410, %v1938
    %v3095 = vadd.f32 %v2412, %v1939
    %v3096 = vadd.f32 %v2924, %v1940
    %v3097 = vadd.f32 %v2926, %v1941
    %v3098 = vadd.f32 %v2416, %v1942
    %v3099 = vadd.f32 %v2418, %v1943
    %v3100 = vadd.f32 %v2930, %v1944
    %v3101 = vadd.f32 %v2932, %v1945
    %v3102 = vadd.f32 %v2422, %v1946
    %v3103 = vadd.f32 %v2424, %v1947
    %v3104 = vadd.f32 %v2936, %v1948
    %v3105 = vadd.f32 %v2938, %v1949
    %v3106 = vadd.f32 %v2428, %v1950
    %v3107 = vadd.f32 %v2430, %v1951
    %v3108 = vadd.f32 %v2942, %v1952
    %v3109 = vadd.f32 %v2944, %v1953
    %v3110 = vadd.f32 %v2434, %v1954
    %v3111 = vadd.f32 %v2436, %v1955
    %v3112 = vadd.f32 %v2948, %v1956
    %v3113 = vadd.f32 %v2950, %v1957
    %v3114 = vadd.f32 %v2440, %v1958
    %v3115 = vadd.f32 %v2442, %v1959
    %v3116 = vadd.f32 %v2954, %v1960
    %v3117 = vadd.f32 %v2956, %v1961
    %v3118 = vadd.f32 %v2446, %v1962
    %v3119 = vadd.f32 %v2448, %v1963
    %v3120 = vadd.f32 %v2960, %v1964
    %v3121 = vadd.f32 %v2962, %v1965
    %v3122 = vadd.f32 %v2452, %v1966
    %v3123 = vadd.f32 %v2454, %v1967
    %v3124 = vadd.f32 %v2966, %v1968
    %v3125 = vadd.f32 %v2968, %v1969
    %v3126 = vadd.f32 %v2458, %v1970
    %v3127 = vadd.f32 %v2460, %v1971
    %v3128 = vadd.f32 %v2972, %v1972
    %v3129 = vadd.f32 %v2974, %v1973
    %v3130 = vadd.f32 %v2464, %v1974
    %v3131 = vadd.f32 %v2466, %v1975
    %v3132 = vadd.f32 %v2978, %v1976
    %v3133 = vadd.f32 %v2980, %v1977
    %v3134 = vadd.f32 %v2470, %v1978
    %v3135 = vadd.f32 %v2472, %v1979
    %v3136 = vadd.f32 %v2984, %v1980
    %v3137 = vadd.f32 %v2986, %v1981
    %v3138 = vadd.f32 %v2476, %v1982
    %v3139 = vadd.f32 %v2478, %v1983
    %v3140 = vadd.f32 %v2990, %v1984
    %v3141 = vadd.f32 %v2992, %v1985
    %v3142 = vadd.f32 %v2482, %v1986
    %v3143 = vadd.f32 %v2484, %v1987
    %v3144 = vadd.f32 %v2996, %v1988
    %v3145 = vadd.f32 %v2998, %v1989
    %v3146 = vadd.f32 %v2488, %v1990
    %v3147 = vadd.f32 %v2490, %v1991
    %v3148 = vadd.f32 %v3002, %v1992
    %v3149 = vadd.f32 %v3004, %v1993
    %v3150 = vadd.f32 %v2494, %v1994
    %v3151 = vadd.f32 %v2496, %v1995
    %v3152 = vadd.f32 %v3008, %v1996
    %v3153 = vadd.f32 %v3010, %v1997
    %v3154 = vadd.f32 %v2500, %v1998
    %v3155 = vadd.f32 %v2502, %v1999
    %v3156 = vadd.f32 %v3014, %v2000
    %v3157 = vadd.f32 %v3016, %v2001
    %v3158 = vadd.f32 %v2506, %v2002
    %v3159 = vadd.f32 %v2508, %v2003
    %v3160 = vadd.f32 %v3020, %v2004
    %v3161 = vadd.f32 %v3022, %v2005
    %v3162 = vadd.f32 %v2512, %v2006
    %v3163 = vadd.f32 %v2514, %v2007
    %v3164 = vadd.f32 %v3026, %v2008
    %v3165 = vadd.f32 %v3028, %v2009
    %v3166 = vadd.f32 %v2518, %v2010
    %v3167 = vadd.f32 %v2520, %v2011
    %v3168 = vadd.f32 %v3032, %v2012
    %v3169 = vadd.f32 %v3034, %v2013
    %v3170 = vadd.f32 %v2524, %v2014
    %v3171 = vadd.f32 %v2526, %v2015
    %v3172 = vadd.f32 %v3038, %v2016
    %v3173 = vadd.f32 %v3040, %v2017
    %v3174 = vadd.f32 %v2530, %v2018
    %v3175 = vadd.f32 %v2532, %v2019
    %v3176 = vadd.f32 %v3044, %v2020
    %v3177 = vadd.f32 %v3046, %v2021
    %v3178 = vadd.f32 %v2536, %v2022
    %v3179 = vadd.f32 %v2538, %v2023
    %v3180 = vadd.f32 %v3050, %v2024
    %v3181 = vadd.f32 %v3052, %v2025
    %v3182 = vmax.f32 %v3054, 0.0
    %v3183 = vmax.f32 %v3055, 0.0
    %v3184 = vmax.f32 %v3056, 0.0
    %v3185 = vmax.f32 %v3057, 0.0
    %v3186 = vmax.f32 %v3058, 0.0
    %v3187 = vmax.f32 %v3059, 0.0
    %v3188 = vmax.f32 %v3060, 0.0
    %v3189 = vmax.f32 %v3061, 0.0
    %v3190 = vmax.f32 %v3062, 0.0
    %v3191 = vmax.f32 %v3063, 0.0
    %v3192 = vmax.f32 %v3064, 0.0
    %v3193 = vmax.f32 %v3065, 0.0
    %v3194 = vmax.f32 %v3066, 0.0
    %v3195 = vmax.f32 %v3067, 0.0
    %v3196 = vmax.f32 %v3068, 0.0
    %v3197 = vmax.f32 %v3069, 0.0
    %v3198 = vmax.f32 %v3070, 0.0
    %v3199 = vmax.f32 %v3071, 0.0
    %v3200 = vmax.f32 %v3072, 0.0
    %v3201 = vmax.f32 %v3073, 0.0
    %v3202 = vmax.f32 %v3074, 0.0
    %v3203 = vmax.f32 %v3075, 0.0
    %v3204 = vmax.f32 %v3076, 0.0
    %v3205 = vmax.f32 %v3077, 0.0
    %v3206 = vmax.f32 %v3078, 0.0
    %v3207 = vmax.f32 %v3079, 0.0
    %v3208 = vmax.f32 %v3080, 0.0
    %v3209 = vmax.f32 %v3081, 0.0
    %v3210 = vmax.f32 %v3082, 0.0
    %v3211 = vmax.f32 %v3083, 0.0
    %v3212 = vmax.f32 %v3084, 0.0
    %v3213 = vmax.f32 %v3085, 0.0
    %v3214 = vmax.f32 %v3086, 0.0
    %v3215 = vmax.f32 %v3087, 0.0
    %v3216 = vmax.f32 %v3088, 0.0
    %v3217 = vmax.f32 %v3089, 0.0
    %v3218 = vmax.f32 %v3090, 0.0
    %v3219 = vmax.f32 %v3091, 0.0
    %v3220 = vmax.f32 %v3092, 0.0
    %v3221 = vmax.f32 %v3093, 0.0
    %v3222 = vmax.f32 %v3094, 0.0
    %v3223 = vmax.f32 %v3095, 0.0
    %v3224 = vmax.f32 %v3096, 0.0
    %v3225 = vmax.f32 %v3097, 0.0
    %v3226 = vmax.f32 %v3098, 0.0
    %v3227 = vmax.f32 %v3099, 0.0
    %v3228 = vmax.f32 %v3100, 0.0
    %v3229 = vmax.f32 %v3101, 0.0
    %v3230 = vmax.f32 %v3102, 0.0
    %v3231 = vmax.f32 %v3103, 0.0
    %v3232 = vmax.f32 %v3104, 0.0
    %v3233 = vmax.f32 %v3105, 0.0
    %v3234 = vmax.f32 %v3106, 0.0
    %v3235 = vmax.f32 %v3107, 0.0
    %v3236 = vmax.f32 %v3108, 0.0
    %v3237 = vmax.f32 %v3109, 0.0
    %v3238 = vmax.f32 %v3110, 0.0
    %v3239 = vmax.f32 %v3111, 0.0
    %v3240 = vmax.f32 %v3112, 0.0
    %v3241 = vmax.f32 %v3113, 0.0
    %v3242 = vmax.f32 %v3114, 0.0
    %v3243 = vmax.f32 %v3115, 0.0
    %v3244 = vmax.f32 %v3116, 0.0
    %v3245 = vmax.f32 %v3117, 0.0
    %v3246 = vmax.f32 %v3118, 0.0
    %v3247 = vmax.f32 %v3119, 0.0
    %v3248 = vmax.f32 %v3120, 0.0
    %v3249 = vmax.f32 %v3121, 0.0
    %v3250 = vmax.f32 %v3122, 0.0
    %v3251 = vmax.f32 %v3123, 0.0
    %v3252 = vmax.f32 %v3124, 0.0
    %v3253 = vmax.f32 %v3125, 0.0
    %v3254 = vmax.f32 %v3126, 0.0
    %v3255 = vmax.f32 %v3127, 0.0
    %v3256 = vmax.f32 %v3128, 0.0
    %v3257 = vmax.f32 %v3129, 0.0
    %v3258 = vmax.f32 %v3130, 0.0
    %v3259 = vmax.f32 %v3131, 0.0
    %v3260 = vmax.f32 %v3132, 0.0
    %v3261 = vmax.f32 %v3133, 0.0
    %v3262 = vmax.f32 %v3134, 0.0
    %v3263 = vmax.f32 %v3135, 0.0
    %v3264 = vmax.f32 %v3136, 0.0
    %v3265 = vmax.f32 %v3137, 0.0
    %v3266 = vmax.f32 %v3138, 0.0
    %v3267 = vmax.f32 %v3139, 0.0
    %v3268 = vmax.f32 %v3140, 0.0
    %v3269 = vmax.f32 %v3141, 0.0
    %v3270 = vmax.f32 %v3142, 0.0
    %v3271 = vmax.f32 %v3143, 0.0
    %v3272 = vmax.f32 %v3144, 0.0
    %v3273 = vmax.f32 %v3145, 0.0
    %v3274 = vmax.f32 %v3146, 0.0
    %v3275 = vmax.f32 %v3147, 0.0
    %v3276 = vmax.f32 %v3148, 0.0
    %v3277 = vmax.f32 %v3149, 0.0
    %v3278 = vmax.f32 %v3150, 0.0
    %v3279 = vmax.f32 %v3151, 0.0
    %v3280 = vmax.f32 %v3152, 0.0
    %v3281 = vmax.f32 %v3153, 0.0
    %v3282 = vmax.f32 %v3154, 0.0
    %v3283 = vmax.f32 %v3155, 0.0
    %v3284 = vmax.f32 %v3156, 0.0
    %v3285 = vmax.f32 %v3157, 0.0
    %v3286 = vmax.f32 %v3158, 0.0
    %v3287 = vmax.f32 %v3159, 0.0
    %v3288 = vmax.f32 %v3160, 0.0
    %v3289 = vmax.f32 %v3161, 0.0
    %v3290 = vmax.f32 %v3162, 0.0
    %v3291 = vmax.f32 %v3163, 0.0
    %v3292 = vmax.f32 %v3164, 0.0
    %v3293 = vmax.f32 %v3165, 0.0
    %v3294 = vmax.f32 %v3166, 0.0
    %v3295 = vmax.f32 %v3167, 0.0
    %v3296 = vmax.f32 %v3168, 0.0
    %v3297 = vmax.f32 %v3169, 0.0
    %v3298 = vmax.f32 %v3170, 0.0
    %v3299 = vmax.f32 %v3171, 0.0
    %v3300 = vmax.f32 %v3172, 0.0
    %v3301 = vmax.f32 %v3173, 0.0
    %v3302 = vmax.f32 %v3174, 0.0
    %v3303 = vmax.f32 %v3175, 0.0
    %v3304 = vmax.f32 %v3176, 0.0
    %v3305 = vmax.f32 %v3177, 0.0
    %v3306 = vmax.f32 %v3178, 0.0
    %v3307 = vmax.f32 %v3179, 0.0
    %v3308 = vmax.f32 %v3180, 0.0
    %v3309 = vmax.f32 %v3181, 0.0
    %v3310 = vadd.f32 %v1898, %v3182
    %v3311 = vadd.f32 %v1899, %v3183
    %v3312 = vadd.f32 %v1900, %v3184
    %v3313 = vadd.f32 %v1901, %v3185
    %v3314 = vadd.f32 %v1902, %v3186
    %v3315 = vadd.f32 %v1903, %v3187
    %v3316 = vadd.f32 %v1904, %v3188
    %v3317 = vadd.f32 %v1905, %v3189
    %v3318 = vadd.f32 %v1906, %v3190
    %v3319 = vadd.f32 %v1907, %v3191
    %v3320 = vadd.f32 %v1908, %v3192
    %v3321 = vadd.f32 %v1909, %v3193
    %v3322 = vadd.f32 %v1910, %v3194
    %v3323 = vadd.f32 %v1911, %v3195
    %v3324 = vadd.f32 %v1912, %v3196
    %v3325 = vadd.f32 %v1913, %v3197
    %v3326 = vadd.f32 %v1914, %v3198
    %v3327 = vadd.f32 %v1915, %v3199
    %v3328 = vadd.f32 %v1916, %v3200
    %v3329 = vadd.f32 %v1917, %v3201
    %v3330 = vadd.f32 %v1918, %v3202
    %v3331 = vadd.f32 %v1919, %v3203
    %v3332 = vadd.f32 %v1920, %v3204
    %v3333 = vadd.f32 %v1921, %v3205
    %v3334 = vadd.f32 %v1922, %v3206
    %v3335 = vadd.f32 %v1923, %v3207
    %v3336 = vadd.f32 %v1924, %v3208
    %v3337 = vadd.f32 %v1925, %v3209
    %v3338 = vadd.f32 %v1926, %v3210
    %v3339 = vadd.f32 %v1927, %v3211
    %v3340 = vadd.f32 %v1928, %v3212
    %v3341 = vadd.f32 %v1929, %v3213
    %v3342 = vadd.f32 %v1930, %v3214
    %v3343 = vadd.f32 %v1931, %v3215
    %v3344 = vadd.f32 %v1932, %v3216
    %v3345 = vadd.f32 %v1933, %v3217
    %v3346 = vadd.f32 %v1934, %v3218
    %v3347 = vadd.f32 %v1935, %v3219
    %v3348 = vadd.f32 %v1936, %v3220
    %v3349 = vadd.f32 %v1937, %v3221
    %v3350 = vadd.f32 %v1938, %v3222
    %v3351 = vadd.f32 %v1939, %v3223
    %v3352 = vadd.f32 %v1940, %v3224
    %v3353 = vadd.f32 %v1941, %v3225
    %v3354 = vadd.f32 %v1942, %v3226
    %v3355 = vadd.f32 %v1943, %v3227
    %v3356 = vadd.f32 %v1944, %v3228
    %v3357 = vadd.f32 %v1945, %v3229
    %v3358 = vadd.f32 %v1946, %v3230
    %v3359 = vadd.f32 %v1947, %v3231
    %v3360 = vadd.f32 %v1948, %v3232
    %v3361 = vadd.f32 %v1949, %v3233
    %v3362 = vadd.f32 %v1950, %v3234
    %v3363 = vadd.f32 %v1951, %v3235
    %v3364 = vadd.f32 %v1952, %v3236
    %v3365 = vadd.f32 %v1953, %v3237
    %v3366 = vadd.f32 %v1954, %v3238
    %v3367 = vadd.f32 %v1955, %v3239
    %v3368 = vadd.f32 %v1956, %v3240
    %v3369 = vadd.f32 %v1957, %v3241
    %v3370 = vadd.f32 %v1958, %v3242
    %v3371 = vadd.f32 %v1959, %v3243
    %v3372 = vadd.f32 %v1960, %v3244
    %v3373 = vadd.f32 %v1961, %v3245
    %v3374 = vadd.f32 %v1962, %v3246
    %v3375 = vadd.f32 %v1963, %v3247
    %v3376 = vadd.f32 %v1964, %v3248
    %v3377 = vadd.f32 %v1965, %v3249
    %v3378 = vadd.f32 %v1966, %v3250
    %v3379 = vadd.f32 %v1967, %v3251
    %v3380 = vadd.f32 %v1968, %v3252
    %v3381 = vadd.f32 %v1969, %v3253
    %v3382 = vadd.f32 %v1970, %v3254
    %v3383 = vadd.f32 %v1971, %v3255
    %v3384 = vadd.f32 %v1972, %v3256
    %v3385 = vadd.f32 %v1973, %v3257
    %v3386 = vadd.f32 %v1974, %v3258
    %v3387 = vadd.f32 %v1975, %v3259
    %v3388 = vadd.f32 %v1976, %v3260
    %v3389 = vadd.f32 %v1977, %v3261
    %v3390 = vadd.f32 %v1978, %v3262
    %v3391 = vadd.f32 %v1979, %v3263
    %v3392 = vadd.f32 %v1980, %v3264
    %v3393 = vadd.f32 %v1981, %v3265
    %v3394 = vadd.f32 %v1982, %v3266
    %v3395 = vadd.f32 %v1983, %v3267
    %v3396 = vadd.f32 %v1984, %v3268
    %v3397 = vadd.f32 %v1985, %v3269
    %v3398 = vadd.f32 %v1986, %v3270
    %v3399 = vadd.f32 %v1987, %v3271
    %v3400 = vadd.f32 %v1988, %v3272
    %v3401 = vadd.f32 %v1989, %v3273
    %v3402 = vadd.f32 %v1990, %v3274
    %v3403 = vadd.f32 %v1991, %v3275
    %v3404 = vadd.f32 %v1992, %v3276
    %v3405 = vadd.f32 %v1993, %v3277
    %v3406 = vadd.f32 %v1994, %v3278
    %v3407 = vadd.f32 %v1995, %v3279
    %v3408 = vadd.f32 %v1996, %v3280
    %v3409 = vadd.f32 %v1997, %v3281
    %v3410 = vadd.f32 %v1998, %v3282
    %v3411 = vadd.f32 %v1999, %v3283
    %v3412 = vadd.f32 %v2000, %v3284
    %v3413 = vadd.f32 %v2001, %v3285
    %v3414 = vadd.f32 %v2002, %v3286
    %v3415 = vadd.f32 %v2003, %v3287
    %v3416 = vadd.f32 %v2004, %v3288
    %v3417 = vadd.f32 %v2005, %v3289
    %v3418 = vadd.f32 %v2006, %v3290
    %v3419 = vadd.f32 %v2007, %v3291
    %v3420 = vadd.f32 %v2008, %v3292
    %v3421 = vadd.f32 %v2009, %v3293
    %v3422 = vadd.f32 %v2010, %v3294
    %v3423 = vadd.f32 %v2011, %v3295
    %v3424 = vadd.f32 %v2012, %v3296
    %v3425 = vadd.f32 %v2013, %v3297
    %v3426 = vadd.f32 %v2014, %v3298
    %v3427 = vadd.f32 %v2015, %v3299
    %v3428 = vadd.f32 %v2016, %v3300
    %v3429 = vadd.f32 %v2017, %v3301
    %v3430 = vadd.f32 %v2018, %v3302
    %v3431 = vadd.f32 %v2019, %v3303
    %v3432 = vadd.f32 %v2020, %v3304
    %v3433 = vadd.f32 %v2021, %v3305
    %v3434 = vadd.f32 %v2022, %v3306
    %v3435 = vadd.f32 %v2023, %v3307
    %v3436 = vadd.f32 %v2024, %v3308
    %v3437 = vadd.f32 %v2025, %v3309
    %3438 = vmatprep.subr.mxu0 %v337
    %3439 = vmatpush1.msra.mxu0 %v336
    %3440 = vmatprep.subr.mxu0 %v341
    %3441 = vmatpush1.msra.mxu0 %v340
    %3442 = vmatprep.subr.mxu0 %v345
    %3443 = vmatpush1.msra.mxu0 %v344
    %3444 = vmatprep.subr.mxu0 %v349
    %3445 = vmatpush1.msra.mxu0 %v348
    %3446 = vmatprep.subr.mxu0 %v353
    %3447 = vmatpush1.msra.mxu0 %v352
    %3448 = vmatprep.subr.mxu0 %v357
    %3449 = vmatpush1.msra.mxu0 %v356
    %3450 = vmatprep.subr.mxu0 %v361
    %3451 = vmatpush1.msra.mxu0 %v360
    %3452 = vmatprep.subr.mxu0 %v365
    %3453 = vmatpush1.msra.mxu0 %v364
    %3454 = vmatprep.subr.mxu0 %v369
    %3455 = vmatpush1.msra.mxu0 %v368
    %3456 = vmatprep.subr.mxu0 %v373
    %3457 = vmatpush1.msra.mxu0 %v372
    %3458 = vmatprep.subr.mxu0 %v377
    %3459 = vmatpush1.msra.mxu0 %v376
    %3460 = vmatprep.subr.mxu0 %v381
    %3461 = vmatpush1.msra.mxu0 %v380
    %3462 = vmatprep.subr.mxu0 %v385
    %3463 = vmatpush1.msra.mxu0 %v384
    %3464 = vmatprep.subr.mxu0 %v389
    %3465 = vmatpush1.msra.mxu0 %v388
    %3466 = vmatprep.subr.mxu0 %v393
    %3467 = vmatpush1.msra.mxu0 %v392
    %3468 = vmatprep.subr.mxu0 %v397
    %3469 = vmatpush1.msra.mxu0 %v396
    %3470 = vmatprep.subr.mxu0 %v401
    %3471 = vmatpush1.msra.mxu0 %v400
    %3472 = vmatprep.subr.mxu0 %v405
    %3473 = vmatpush1.msra.mxu0 %v404
    %3474 = vmatprep.subr.mxu0 %v409
    %3475 = vmatpush1.msra.mxu0 %v408
    %3476 = vmatprep.subr.mxu0 %v413
    %3477 = vmatpush1.msra.mxu0 %v412
    %3478 = vmatprep.subr.mxu0 %v417
    %3479 = vmatpush1.msra.mxu0 %v416
    %3480 = vmatprep.subr.mxu0 %v421
    %3481 = vmatpush1.msra.mxu0 %v420
    %3482 = vmatprep.subr.mxu0 %v425
    %3483 = vmatpush1.msra.mxu0 %v424
    %3484 = vmatprep.subr.mxu0 %v429
    %3485 = vmatpush1.msra.mxu0 %v428
    %3486 = vmatprep.subr.mxu0 %v433
    %3487 = vmatpush1.msra.mxu0 %v432
    %3488 = vmatprep.subr.mxu0 %v437
    %3489 = vmatpush1.msra.mxu0 %v436
    %3490 = vmatprep.subr.mxu0 %v441
    %3491 = vmatpush1.msra.mxu0 %v440
    %3492 = vmatprep.subr.mxu0 %v445
    %3493 = vmatpush1.msra.mxu0 %v444
    %3494 = vmatprep.subr.mxu0 %v449
    %3495 = vmatpush1.msra.mxu0 %v448
    %3496 = vmatprep.subr.mxu0 %v453
    %3497 = vmatpush1.msra.mxu0 %v452
    %3498 = vmatprep.subr.mxu0 %v457
    %3499 = vmatpush1.msra.mxu0 %v456
    %3500 = vmatprep.subr.mxu0 %v461
    %3501 = vmatpush1.msra.mxu0 %v460
    %3502 = vmatprep.mubr.f32.mxu0 %v3183
    %3503 = vmatmul.mubr.f32.gmra.mrb[0].mxu0 %v3182
    %v3504 = vpop.f32.mrb[0].mxu0
    %v3505 = vadd.f32 %v597, %v3504
    %v3506 = vpop.f32.mrb[0].mxu0
    %v3507 = vadd.f32 %v601, %v3506
    %3508 = vmatprep.mubr.f32.mxu0 %v3187
    %3509 = vmatmul.mubr.f32.gmra.mrb[0].mxu0 %v3186
    %v3510 = vpop.f32.mrb[0].mxu0
    %v3511 = vadd.f32 %v597, %v3510
    %v3512 = vpop.f32.mrb[0].mxu0
    %v3513 = vadd.f32 %v601, %v3512
    %3514 = vmatprep.mubr.f32.mxu0 %v3191
    %3515 = vmatmul.mubr.f32.gmra.mrb[0].mxu0 %v3190
    %v3516 = vpop.f32.mrb[0].mxu0
    %v3517 = vadd.f32 %v597, %v3516
    %v3518 = vpop.f32.mrb[0].mxu0
    %v3519 = vadd.f32 %v601, %v3518
    %3520 = vmatprep.mubr.f32.mxu0 %v3195
    %3521 = vmatmul.mubr.f32.gmra.mrb[0].mxu0 %v3194
    %v3522 = vpop.f32.mrb[0].mxu0
    %v3523 = vadd.f32 %v597, %v3522
    %v3524 = vpop.f32.mrb[0].mxu0
    %v3525 = vadd.f32 %v601, %v3524
    %3526 = vmatprep.mubr.f32.mxu0 %v3199
    %3527 = vmatmul.mubr.f32.gmra.mrb[0].mxu0 %v3198
    %v3528 = vpop.f32.mrb[0].mxu0
    %v3529 = vadd.f32 %v597, %v3528
    %v3530 = vpop.f32.mrb[0].mxu0
    %v3531 = vadd.f32 %v601, %v3530
    %3532 = vmatprep.mubr.f32.mxu0 %v3203
    %3533 = vmatmul.mubr.f32.gmra.mrb[0].mxu0 %v3202
    %v3534 = vpop.f32.mrb[0].mxu0
    %v3535 = vadd.f32 %v597, %v3534
    %v3536 = vpop.f32.mrb[0].mxu0
    %v3537 = vadd.f32 %v601, %v3536
    %3538 = vmatprep.mubr.f32.mxu0 %v3207
    %3539 = vmatmul.mubr.f32.gmra.mrb[0].mxu0 %v3206
    %v3540 = vpop.f32.mrb[0].mxu0
    %v3541 = vadd.f32 %v597, %v3540
    %v3542 = vpop.f32.mrb[0].mxu0
    %v3543 = vadd.f32 %v601, %v3542
    %3544 = vmatprep.mubr.f32.mxu0 %v3211
    %3545 = vmatmul.mubr.f32.gmra.mrb[0].mxu0 %v3210
    %v3546 = vpop.f32.mrb[0].mxu0
    %v3547 = vadd.f32 %v597, %v3546
    %v3548 = vpop.f32.mrb[0].mxu0
    %v3549 = vadd.f32 %v601, %v3548
    %3550 = vmatprep.mubr.f32.mxu0 %v3215
    %3551 = vmatmul.mubr.f32.gmra.mrb[0].mxu0 %v3214
    %v3552 = vpop.f32.mrb[0].mxu0
    %v3553 = vadd.f32 %v597, %v3552
    %v3554 = vpop.f32.mrb[0].mxu0
    %v3555 = vadd.f32 %v601, %v3554
    %3556 = vmatprep.mubr.f32.mxu0 %v3219
    %3557 = vmatmul.mubr.f32.gmra.mrb[0].mxu0 %v3218
    %v3558 = vpop.f32.mrb[0].mxu0
    %v3559 = vadd.f32 %v597, %v3558
    %v3560 = vpop.f32.mrb[0].mxu0
    %v3561 = vadd.f32 %v601, %v3560
    %3562 = vmatprep.mubr.f32.mxu0 %v3223
    %3563 = vmatmul.mubr.f32.gmra.mrb[0].mxu0 %v3222
    %v3564 = vpop.f32.mrb[0].mxu0
    %v3565 = vadd.f32 %v597, %v3564
    %v3566 = vpop.f32.mrb[0].mxu0
    %v3567 = vadd.f32 %v601, %v3566
    %3568 = vmatprep.mubr.f32.mxu0 %v3227
    %3569 = vmatmul.mubr.f32.gmra.mrb[0].mxu0 %v3226
    %v3570 = vpop.f32.mrb[0].mxu0
    %v3571 = vadd.f32 %v597, %v3570
    %v3572 = vpop.f32.mrb[0].mxu0
    %v3573 = vadd.f32 %v601, %v3572
    %3574 = vmatprep.mubr.f32.mxu0 %v3231
    %3575 = vmatmul.mubr.f32.gmra.mrb[0].mxu0 %v3230
    %v3576 = vpop.f32.mrb[0].mxu0
    %v3577 = vadd.f32 %v597, %v3576
    %v3578 = vpop.f32.mrb[0].mxu0
    %v3579 = vadd.f32 %v601, %v3578
    %3580 = vmatprep.mubr.f32.mxu0 %v3235
    %3581 = vmatmul.mubr.f32.gmra.mrb[0].mxu0 %v3234
    %v3582 = vpop.f32.mrb[0].mxu0
    %v3583 = vadd.f32 %v597, %v3582
    %v3584 = vpop.f32.mrb[0].mxu0
    %v3585 = vadd.f32 %v601, %v3584
    %3586 = vmatprep.mubr.f32.mxu0 %v3239
    %3587 = vmatmul.mubr.f32.gmra.mrb[0].mxu0 %v3238
    %v3588 = vpop.f32.mrb[0].mxu0
    %v3589 = vadd.f32 %v597, %v3588
    %v3590 = vpop.f32.mrb[0].mxu0
    %v3591 = vadd.f32 %v601, %v3590
    %3592 = vmatprep.mubr.f32.mxu0 %v3243
    %3593 = vmatmul.mubr.f32.gmra.mrb[0].mxu0 %v3242
    %v3594 = vpop.f32.mrb[0].mxu0
    %v3595 = vadd.f32 %v597, %v3594
    %v3596 = vpop.f32.mrb[0].mxu0
    %v3597 = vadd.f32 %v601, %v3596
    %3598 = vmatprep.mubr.f32.mxu0 %v3247
    %3599 = vmatmul.mubr.f32.gmra.mrb[0].mxu0 %v3246
    %v3600 = vpop.f32.mrb[0].mxu0
    %v3601 = vadd.f32 %v597, %v3600
    %v3602 = vpop.f32.mrb[0].mxu0
    %v3603 = vadd.f32 %v601, %v3602
    %3604 = vmatprep.mubr.f32.mxu0 %v3251
    %3605 = vmatmul.mubr.f32.gmra.mrb[0].mxu0 %v3250
    %v3606 = vpop.f32.mrb[0].mxu0
    %v3607 = vadd.f32 %v597, %v3606
    %v3608 = vpop.f32.mrb[0].mxu0
    %v3609 = vadd.f32 %v601, %v3608
    %3610 = vmatprep.mubr.f32.mxu0 %v3255
    %3611 = vmatmul.mubr.f32.gmra.mrb[0].mxu0 %v3254
    %v3612 = vpop.f32.mrb[0].mxu0
    %v3613 = vadd.f32 %v597, %v3612
    %v3614 = vpop.f32.mrb[0].mxu0
    %v3615 = vadd.f32 %v601, %v3614
    %3616 = vmatprep.mubr.f32.mxu0 %v3259
    %3617 = vmatmul.mubr.f32.gmra.mrb[0].mxu0 %v3258
    %v3618 = vpop.f32.mrb[0].mxu0
    %v3619 = vadd.f32 %v597, %v3618
    %v3620 = vpop.f32.mrb[0].mxu0
    %v3621 = vadd.f32 %v601, %v3620
    %3622 = vmatprep.mubr.f32.mxu0 %v3263
    %3623 = vmatmul.mubr.f32.gmra.mrb[0].mxu0 %v3262
    %v3624 = vpop.f32.mrb[0].mxu0
    %v3625 = vadd.f32 %v597, %v3624
    %v3626 = vpop.f32.mrb[0].mxu0
    %v3627 = vadd.f32 %v601, %v3626
    %3628 = vmatprep.mubr.f32.mxu0 %v3267
    %3629 = vmatmul.mubr.f32.gmra.mrb[0].mxu0 %v3266
    %v3630 = vpop.f32.mrb[0].mxu0
    %v3631 = vadd.f32 %v597, %v3630
    %v3632 = vpop.f32.mrb[0].mxu0
    %v3633 = vadd.f32 %v601, %v3632
    %3634 = vmatprep.mubr.f32.mxu0 %v3271
    %3635 = vmatmul.mubr.f32.gmra.mrb[0].mxu0 %v3270
    %v3636 = vpop.f32.mrb[0].mxu0
    %v3637 = vadd.f32 %v597, %v3636
    %v3638 = vpop.f32.mrb[0].mxu0
    %v3639 = vadd.f32 %v601, %v3638
    %3640 = vmatprep.mubr.f32.mxu0 %v3275
    %3641 = vmatmul.mubr.f32.gmra.mrb[0].mxu0 %v3274
    %v3642 = vpop.f32.mrb[0].mxu0
    %v3643 = vadd.f32 %v597, %v3642
    %v3644 = vpop.f32.mrb[0].mxu0
    %v3645 = vadd.f32 %v601, %v3644
    %3646 = vmatprep.mubr.f32.mxu0 %v3279
    %3647 = vmatmul.mubr.f32.gmra.mrb[0].mxu0 %v3278
    %v3648 = vpop.f32.mrb[0].mxu0
    %v3649 = vadd.f32 %v597, %v3648
    %v3650 = vpop.f32.mrb[0].mxu0
    %v3651 = vadd.f32 %v601, %v3650
    %3652 = vmatprep.mubr.f32.mxu0 %v3283
    %3653 = vmatmul.mubr.f32.gmra.mrb[0].mxu0 %v3282
    %v3654 = vpop.f32.mrb[0].mxu0
    %v3655 = vadd.f32 %v597, %v3654
    %v3656 = vpop.f32.mrb[0].mxu0
    %v3657 = vadd.f32 %v601, %v3656
    %3658 = vmatprep.mubr.f32.mxu0 %v3287
    %3659 = vmatmul.mubr.f32.gmra.mrb[0].mxu0 %v3286
    %v3660 = vpop.f32.mrb[0].mxu0
    %v3661 = vadd.f32 %v597, %v3660
    %v3662 = vpop.f32.mrb[0].mxu0
    %v3663 = vadd.f32 %v601, %v3662
    %3664 = vmatprep.mubr.f32.mxu0 %v3291
    %3665 = vmatmul.mubr.f32.gmra.mrb[0].mxu0 %v3290
    %v3666 = vpop.f32.mrb[0].mxu0
    %v3667 = vadd.f32 %v597, %v3666
    %v3668 = vpop.f32.mrb[0].mxu0
    %v3669 = vadd.f32 %v601, %v3668
    %3670 = vmatprep.mubr.f32.mxu0 %v3295
    %3671 = vmatmul.mubr.f32.gmra.mrb[0].mxu0 %v3294
    %v3672 = vpop.f32.mrb[0].mxu0
    %v3673 = vadd.f32 %v597, %v3672
    %v3674 = vpop.f32.mrb[0].mxu0
    %v3675 = vadd.f32 %v601, %v3674
    %3676 = vmatprep.mubr.f32.mxu0 %v3299
    %3677 = vmatmul.mubr.f32.gmra.mrb[0].mxu0 %v3298
    %v3678 = vpop.f32.mrb[0].mxu0
    %v3679 = vadd.f32 %v597, %v3678
    %v3680 = vpop.f32.mrb[0].mxu0
    %v3681 = vadd.f32 %v601, %v3680
    %3682 = vmatprep.mubr.f32.mxu0 %v3303
    %3683 = vmatmul.mubr.f32.gmra.mrb[0].mxu0 %v3302
    %v3684 = vpop.f32.mrb[0].mxu0
    %v3685 = vadd.f32 %v597, %v3684
    %v3686 = vpop.f32.mrb[0].mxu0
    %v3687 = vadd.f32 %v601, %v3686
    %3688 = vmatprep.mubr.f32.mxu0 %v3307
    %3689 = vmatmul.mubr.f32.gmra.mrb[0].mxu0 %v3306
    %v3690 = vpop.f32.mrb[0].mxu0
    %v3691 = vadd.f32 %v597, %v3690
    %v3692 = vpop.f32.mrb[0].mxu0
    %v3693 = vadd.f32 %v601, %v3692
    %3694 = vdwg.mxu0
    %3695 = vmatprep.subr.mxu0 %v465
    %3696 = vmatpush1.msra.mxu0 %v464
    %3697 = vmatprep.subr.mxu0 %v469
    %3698 = vmatpush1.msra.mxu0 %v468
    %3699 = vmatprep.subr.mxu0 %v473
    %3700 = vmatpush1.msra.mxu0 %v472
    %3701 = vmatprep.subr.mxu0 %v477
    %3702 = vmatpush1.msra.mxu0 %v476
    %3703 = vmatprep.subr.mxu0 %v481
    %3704 = vmatpush1.msra.mxu0 %v480
    %3705 = vmatprep.subr.mxu0 %v485
    %3706 = vmatpush1.msra.mxu0 %v484
    %3707 = vmatprep.subr.mxu0 %v489
    %3708 = vmatpush1.msra.mxu0 %v488
    %3709 = vmatprep.subr.mxu0 %v493
    %3710 = vmatpush1.msra.mxu0 %v492
    %3711 = vmatprep.subr.mxu0 %v497
    %3712 = vmatpush1.msra.mxu0 %v496
    %3713 = vmatprep.subr.mxu0 %v501
    %3714 = vmatpush1.msra.mxu0 %v500
    %3715 = vmatprep.subr.mxu0 %v505
    %3716 = vmatpush1.msra.mxu0 %v504
    %3717 = vmatprep.subr.mxu0 %v509
    %3718 = vmatpush1.msra.mxu0 %v508
    %3719 = vmatprep.subr.mxu0 %v513
    %3720 = vmatpush1.msra.mxu0 %v512
    %3721 = vmatprep.subr.mxu0 %v517
    %3722 = vmatpush1.msra.mxu0 %v516
    %3723 = vmatprep.subr.mxu0 %v521
    %3724 = vmatpush1.msra.mxu0 %v520
    %3725 = vmatprep.subr.mxu0 %v525
    %3726 = vmatpush1.msra.mxu0 %v524
    %3727 = vmatprep.subr.mxu0 %v529
    %3728 = vmatpush1.msra.mxu0 %v528
    %3729 = vmatprep.subr.mxu0 %v533
    %3730 = vmatpush1.msra.mxu0 %v532
    %3731 = vmatprep.subr.mxu0 %v537
    %3732 = vmatpush1.msra.mxu0 %v536
    %3733 = vmatprep.subr.mxu0 %v541
    %3734 = vmatpush1.msra.mxu0 %v540
    %3735 = vmatprep.subr.mxu0 %v545
    %3736 = vmatpush1.msra.mxu0 %v544
    %3737 = vmatprep.subr.mxu0 %v549
    %3738 = vmatpush1.msra.mxu0 %v548
    %3739 = vmatprep.subr.mxu0 %v553
    %3740 = vmatpush1.msra.mxu0 %v552
    %3741 = vmatprep.subr.mxu0 %v557
    %3742 = vmatpush1.msra.mxu0 %v556
    %3743 = vmatprep.subr.mxu0 %v561
    %3744 = vmatpush1.msra.mxu0 %v560
    %3745 = vmatprep.subr.mxu0 %v565
    %3746 = vmatpush1.msra.mxu0 %v564
    %3747 = vmatprep.subr.mxu0 %v569
    %3748 = vmatpush1.msra.mxu0 %v568
    %3749 = vmatprep.subr.mxu0 %v573
    %3750 = vmatpush1.msra.mxu0 %v572
    %3751 = vmatprep.subr.mxu0 %v577
    %3752 = vmatpush1.msra.mxu0 %v576
    %3753 = vmatprep.subr.mxu0 %v581
    %3754 = vmatpush1.msra.mxu0 %v580
    %3755 = vmatprep.subr.mxu0 %v585
    %3756 = vmatpush1.msra.mxu0 %v584
    %3757 = vmatprep.subr.mxu0 %v589
    %3758 = vmatpush1.msra.mxu0 %v588
    %3759 = vmatprep.mubr.f32.mxu0 %v3185
    %3760 = vmatmul.mubr.f32.gmra.mrb[0].mxu0 %v3184
    %v3761 = vpop.f32.mrb[0].mxu0
    %v3762 = vadd.f32 %v3505, %v3761
    %v3763 = vpop.f32.mrb[0].mxu0
    %v3764 = vadd.f32 %v3507, %v3763
    %3765 = vmatprep.mubr.f32.mxu0 %v3189
    %3766 = vmatmul.mubr.f32.gmra.mrb[0].mxu0 %v3188
    %v3767 = vpop.f32.mrb[0].mxu0
    %v3768 = vadd.f32 %v3511, %v3767
    %v3769 = vpop.f32.mrb[0].mxu0
    %v3770 = vadd.f32 %v3513, %v3769
    %3771 = vmatprep.mubr.f32.mxu0 %v3193
    %3772 = vmatmul.mubr.f32.gmra.mrb[0].mxu0 %v3192
    %v3773 = vpop.f32.mrb[0].mxu0
    %v3774 = vadd.f32 %v3517, %v3773
    %v3775 = vpop.f32.mrb[0].mxu0
    %v3776 = vadd.f32 %v3519, %v3775
    %3777 = vmatprep.mubr.f32.mxu0 %v3197
    %3778 = vmatmul.mubr.f32.gmra.mrb[0].mxu0 %v3196
    %v3779 = vpop.f32.mrb[0].mxu0
    %v3780 = vadd.f32 %v3523, %v3779
    %v3781 = vpop.f32.mrb[0].mxu0
    %v3782 = vadd.f32 %v3525, %v3781
    %3783 = vmatprep.mubr.f32.mxu0 %v3201
    %3784 = vmatmul.mubr.f32.gmra.mrb[0].mxu0 %v3200
    %v3785 = vpop.f32.mrb[0].mxu0
    %v3786 = vadd.f32 %v3529, %v3785
    %v3787 = vpop.f32.mrb[0].mxu0
    %v3788 = vadd.f32 %v3531, %v3787
    %3789 = vmatprep.mubr.f32.mxu0 %v3205
    %3790 = vmatmul.mubr.f32.gmra.mrb[0].mxu0 %v3204
    %v3791 = vpop.f32.mrb[0].mxu0
    %v3792 = vadd.f32 %v3535, %v3791
    %v3793 = vpop.f32.mrb[0].mxu0
    %v3794 = vadd.f32 %v3537, %v3793
    %3795 = vmatprep.mubr.f32.mxu0 %v3209
    %3796 = vmatmul.mubr.f32.gmra.mrb[0].mxu0 %v3208
    %v3797 = vpop.f32.mrb[0].mxu0
    %v3798 = vadd.f32 %v3541, %v3797
    %v3799 = vpop.f32.mrb[0].mxu0
    %v3800 = vadd.f32 %v3543, %v3799
    %3801 = vmatprep.mubr.f32.mxu0 %v3213
    %3802 = vmatmul.mubr.f32.gmra.mrb[0].mxu0 %v3212
    %v3803 = vpop.f32.mrb[0].mxu0
    %v3804 = vadd.f32 %v3547, %v3803
    %v3805 = vpop.f32.mrb[0].mxu0
    %v3806 = vadd.f32 %v3549, %v3805
    %3807 = vmatprep.mubr.f32.mxu0 %v3217
    %3808 = vmatmul.mubr.f32.gmra.mrb[0].mxu0 %v3216
    %v3809 = vpop.f32.mrb[0].mxu0
    %v3810 = vadd.f32 %v3553, %v3809
    %v3811 = vpop.f32.mrb[0].mxu0
    %v3812 = vadd.f32 %v3555, %v3811
    %3813 = vmatprep.mubr.f32.mxu0 %v3221
    %3814 = vmatmul.mubr.f32.gmra.mrb[0].mxu0 %v3220
    %v3815 = vpop.f32.mrb[0].mxu0
    %v3816 = vadd.f32 %v3559, %v3815
    %v3817 = vpop.f32.mrb[0].mxu0
    %v3818 = vadd.f32 %v3561, %v3817
    %3819 = vmatprep.mubr.f32.mxu0 %v3225
    %3820 = vmatmul.mubr.f32.gmra.mrb[0].mxu0 %v3224
    %v3821 = vpop.f32.mrb[0].mxu0
    %v3822 = vadd.f32 %v3565, %v3821
    %v3823 = vpop.f32.mrb[0].mxu0
    %v3824 = vadd.f32 %v3567, %v3823
    %3825 = vmatprep.mubr.f32.mxu0 %v3229
    %3826 = vmatmul.mubr.f32.gmra.mrb[0].mxu0 %v3228
    %v3827 = vpop.f32.mrb[0].mxu0
    %v3828 = vadd.f32 %v3571, %v3827
    %v3829 = vpop.f32.mrb[0].mxu0
    %v3830 = vadd.f32 %v3573, %v3829
    %3831 = vmatprep.mubr.f32.mxu0 %v3233
    %3832 = vmatmul.mubr.f32.gmra.mrb[0].mxu0 %v3232
    %v3833 = vpop.f32.mrb[0].mxu0
    %v3834 = vadd.f32 %v3577, %v3833
    %v3835 = vpop.f32.mrb[0].mxu0
    %v3836 = vadd.f32 %v3579, %v3835
    %3837 = vmatprep.mubr.f32.mxu0 %v3237
    %3838 = vmatmul.mubr.f32.gmra.mrb[0].mxu0 %v3236
    %v3839 = vpop.f32.mrb[0].mxu0
    %v3840 = vadd.f32 %v3583, %v3839
    %v3841 = vpop.f32.mrb[0].mxu0
    %v3842 = vadd.f32 %v3585, %v3841
    %3843 = vmatprep.mubr.f32.mxu0 %v3241
    %3844 = vmatmul.mubr.f32.gmra.mrb[0].mxu0 %v3240
    %v3845 = vpop.f32.mrb[0].mxu0
    %v3846 = vadd.f32 %v3589, %v3845
    %v3847 = vpop.f32.mrb[0].mxu0
    %v3848 = vadd.f32 %v3591, %v3847
    %3849 = vmatprep.mubr.f32.mxu0 %v3245
    %3850 = vmatmul.mubr.f32.gmra.mrb[0].mxu0 %v3244
    %v3851 = vpop.f32.mrb[0].mxu0
    %v3852 = vadd.f32 %v3595, %v3851
    %v3853 = vpop.f32.mrb[0].mxu0
    %v3854 = vadd.f32 %v3597, %v3853
    %3855 = vmatprep.mubr.f32.mxu0 %v3249
    %3856 = vmatmul.mubr.f32.gmra.mrb[0].mxu0 %v3248
    %v3857 = vpop.f32.mrb[0].mxu0
    %v3858 = vadd.f32 %v3601, %v3857
    %v3859 = vpop.f32.mrb[0].mxu0
    %v3860 = vadd.f32 %v3603, %v3859
    %3861 = vmatprep.mubr.f32.mxu0 %v3253
    %3862 = vmatmul.mubr.f32.gmra.mrb[0].mxu0 %v3252
    %v3863 = vpop.f32.mrb[0].mxu0
    %v3864 = vadd.f32 %v3607, %v3863
    %v3865 = vpop.f32.mrb[0].mxu0
    %v3866 = vadd.f32 %v3609, %v3865
    %3867 = vmatprep.mubr.f32.mxu0 %v3257
    %3868 = vmatmul.mubr.f32.gmra.mrb[0].mxu0 %v3256
    %v3869 = vpop.f32.mrb[0].mxu0
    %v3870 = vadd.f32 %v3613, %v3869
    %v3871 = vpop.f32.mrb[0].mxu0
    %v3872 = vadd.f32 %v3615, %v3871
    %3873 = vmatprep.mubr.f32.mxu0 %v3261
    %3874 = vmatmul.mubr.f32.gmra.mrb[0].mxu0 %v3260
    %v3875 = vpop.f32.mrb[0].mxu0
    %v3876 = vadd.f32 %v3619, %v3875
    %v3877 = vpop.f32.mrb[0].mxu0
    %v3878 = vadd.f32 %v3621, %v3877
    %3879 = vmatprep.mubr.f32.mxu0 %v3265
    %3880 = vmatmul.mubr.f32.gmra.mrb[0].mxu0 %v3264
    %v3881 = vpop.f32.mrb[0].mxu0
    %v3882 = vadd.f32 %v3625, %v3881
    %v3883 = vpop.f32.mrb[0].mxu0
    %v3884 = vadd.f32 %v3627, %v3883
    %3885 = vmatprep.mubr.f32.mxu0 %v3269
    %3886 = vmatmul.mubr.f32.gmra.mrb[0].mxu0 %v3268
    %v3887 = vpop.f32.mrb[0].mxu0
    %v3888 = vadd.f32 %v3631, %v3887
    %v3889 = vpop.f32.mrb[0].mxu0
    %v3890 = vadd.f32 %v3633, %v3889
    %3891 = vmatprep.mubr.f32.mxu0 %v3273
    %3892 = vmatmul.mubr.f32.gmra.mrb[0].mxu0 %v3272
    %v3893 = vpop.f32.mrb[0].mxu0
    %v3894 = vadd.f32 %v3637, %v3893
    %v3895 = vpop.f32.mrb[0].mxu0
    %v3896 = vadd.f32 %v3639, %v3895
    %3897 = vmatprep.mubr.f32.mxu0 %v3277
    %3898 = vmatmul.mubr.f32.gmra.mrb[0].mxu0 %v3276
    %v3899 = vpop.f32.mrb[0].mxu0
    %v3900 = vadd.f32 %v3643, %v3899
    %v3901 = vpop.f32.mrb[0].mxu0
    %v3902 = vadd.f32 %v3645, %v3901
    %3903 = vmatprep.mubr.f32.mxu0 %v3281
    %3904 = vmatmul.mubr.f32.gmra.mrb[0].mxu0 %v3280
    %v3905 = vpop.f32.mrb[0].mxu0
    %v3906 = vadd.f32 %v3649, %v3905
    %v3907 = vpop.f32.mrb[0].mxu0
    %v3908 = vadd.f32 %v3651, %v3907
    %3909 = vmatprep.mubr.f32.mxu0 %v3285
    %3910 = vmatmul.mubr.f32.gmra.mrb[0].mxu0 %v3284
    %v3911 = vpop.f32.mrb[0].mxu0
    %v3912 = vadd.f32 %v3655, %v3911
    %v3913 = vpop.f32.mrb[0].mxu0
    %v3914 = vadd.f32 %v3657, %v3913
    %3915 = vmatprep.mubr.f32.mxu0 %v3289
    %3916 = vmatmul.mubr.f32.gmra.mrb[0].mxu0 %v3288
    %v3917 = vpop.f32.mrb[0].mxu0
    %v3918 = vadd.f32 %v3661, %v3917
    %v3919 = vpop.f32.mrb[0].mxu0
    %v3920 = vadd.f32 %v3663, %v3919
    %3921 = vmatprep.mubr.f32.mxu0 %v3293
    %3922 = vmatmul.mubr.f32.gmra.mrb[0].mxu0 %v3292
    %v3923 = vpop.f32.mrb[0].mxu0
    %v3924 = vadd.f32 %v3667, %v3923
    %v3925 = vpop.f32.mrb[0].mxu0
    %v3926 = vadd.f32 %v3669, %v3925
    %3927 = vmatprep.mubr.f32.mxu0 %v3297
    %3928 = vmatmul.mubr.f32.gmra.mrb[0].mxu0 %v3296
    %v3929 = vpop.f32.mrb[0].mxu0
    %v3930 = vadd.f32 %v3673, %v3929
    %v3931 = vpop.f32.mrb[0].mxu0
    %v3932 = vadd.f32 %v3675, %v3931
    %3933 = vmatprep.mubr.f32.mxu0 %v3301
    %3934 = vmatmul.mubr.f32.gmra.mrb[0].mxu0 %v3300
    %v3935 = vpop.f32.mrb[0].mxu0
    %v3936 = vadd.f32 %v3679, %v3935
    %v3937 = vpop.f32.mrb[0].mxu0
    %v3938 = vadd.f32 %v3681, %v3937
    %3939 = vmatprep.mubr.f32.mxu0 %v3305
    %3940 = vmatmul.mubr.f32.gmra.mrb[0].mxu0 %v3304
    %v3941 = vpop.f32.mrb[0].mxu0
    %v3942 = vadd.f32 %v3685, %v3941
    %v3943 = vpop.f32.mrb[0].mxu0
    %v3944 = vadd.f32 %v3687, %v3943
    %3945 = vmatprep.mubr.f32.mxu0 %v3309
    %3946 = vmatmul.mubr.f32.gmra.mrb[0].mxu0 %v3308
    %v3947 = vpop.f32.mrb[0].mxu0
    %v3948 = vadd.f32 %v3691, %v3947
    %v3949 = vpop.f32.mrb[0].mxu0
    %v3950 = vadd.f32 %v3693, %v3949
    %3951 = vdwg.mxu0
    %3952 = vmatprep.subr.mxu0 %v339
    %3953 = vmatpush1.msra.mxu0 %v338
    %3954 = vmatprep.subr.mxu0 %v343
    %3955 = vmatpush1.msra.mxu0 %v342
    %3956 = vmatprep.subr.mxu0 %v347
    %3957 = vmatpush1.msra.mxu0 %v346
    %3958 = vmatprep.subr.mxu0 %v351
    %3959 = vmatpush1.msra.mxu0 %v350
    %3960 = vmatprep.subr.mxu0 %v355
    %3961 = vmatpush1.msra.mxu0 %v354
    %3962 = vmatprep.subr.mxu0 %v359
    %3963 = vmatpush1.msra.mxu0 %v358
    %3964 = vmatprep.subr.mxu0 %v363
    %3965 = vmatpush1.msra.mxu0 %v362
    %3966 = vmatprep.subr.mxu0 %v367
    %3967 = vmatpush1.msra.mxu0 %v366
    %3968 = vmatprep.subr.mxu0 %v371
    %3969 = vmatpush1.msra.mxu0 %v370
    %3970 = vmatprep.subr.mxu0 %v375
    %3971 = vmatpush1.msra.mxu0 %v374
    %3972 = vmatprep.subr.mxu0 %v379
    %3973 = vmatpush1.msra.mxu0 %v378
    %3974 = vmatprep.subr.mxu0 %v383
    %3975 = vmatpush1.msra.mxu0 %v382
    %3976 = vmatprep.subr.mxu0 %v387
    %3977 = vmatpush1.msra.mxu0 %v386
    %3978 = vmatprep.subr.mxu0 %v391
    %3979 = vmatpush1.msra.mxu0 %v390
    %3980 = vmatprep.subr.mxu0 %v395
    %3981 = vmatpush1.msra.mxu0 %v394
    %3982 = vmatprep.subr.mxu0 %v399
    %3983 = vmatpush1.msra.mxu0 %v398
    %3984 = vmatprep.subr.mxu0 %v403
    %3985 = vmatpush1.msra.mxu0 %v402
    %3986 = vmatprep.subr.mxu0 %v407
    %3987 = vmatpush1.msra.mxu0 %v406
    %3988 = vmatprep.subr.mxu0 %v411
    %3989 = vmatpush1.msra.mxu0 %v410
    %3990 = vmatprep.subr.mxu0 %v415
    %3991 = vmatpush1.msra.mxu0 %v414
    %3992 = vmatprep.subr.mxu0 %v419
    %3993 = vmatpush1.msra.mxu0 %v418
    %3994 = vmatprep.subr.mxu0 %v423
    %3995 = vmatpush1.msra.mxu0 %v422
    %3996 = vmatprep.subr.mxu0 %v427
    %3997 = vmatpush1.msra.mxu0 %v426
    %3998 = vmatprep.subr.mxu0 %v431
    %3999 = vmatpush1.msra.mxu0 %v430
    %4000 = vmatprep.subr.mxu0 %v435
    %4001 = vmatpush1.msra.mxu0 %v434
    %4002 = vmatprep.subr.mxu0 %v439
    %4003 = vmatpush1.msra.mxu0 %v438
    %4004 = vmatprep.subr.mxu0 %v443
    %4005 = vmatpush1.msra.mxu0 %v442
    %4006 = vmatprep.subr.mxu0 %v447
    %4007 = vmatpush1.msra.mxu0 %v446
    %4008 = vmatprep.subr.mxu0 %v451
    %4009 = vmatpush1.msra.mxu0 %v450
    %4010 = vmatprep.subr.mxu0 %v455
    %4011 = vmatpush1.msra.mxu0 %v454
    %4012 = vmatprep.subr.mxu0 %v459
    %4013 = vmatpush1.msra.mxu0 %v458
    %4014 = vmatprep.subr.mxu0 %v463
    %4015 = vmatpush1.msra.mxu0 %v462
    %4016 = vmatprep.mubr.f32.mxu0 %v3183
    %4017 = vmatmul.mubr.f32.gmra.mrb[0].mxu0 %v3182
    %v4018 = vpop.f32.mrb[0].mxu0
    %v4019 = vadd.f32 %v605, %v4018
    %v4020 = vpop.f32.mrb[0].mxu0
    %v4021 = vadd.f32 %v609, %v4020
    %4022 = vmatprep.mubr.f32.mxu0 %v3187
    %4023 = vmatmul.mubr.f32.gmra.mrb[0].mxu0 %v3186
    %v4024 = vpop.f32.mrb[0].mxu0
    %v4025 = vadd.f32 %v605, %v4024
    %v4026 = vpop.f32.mrb[0].mxu0
    %v4027 = vadd.f32 %v609, %v4026
    %4028 = vmatprep.mubr.f32.mxu0 %v3191
    %4029 = vmatmul.mubr.f32.gmra.mrb[0].mxu0 %v3190
    %v4030 = vpop.f32.mrb[0].mxu0
    %v4031 = vadd.f32 %v605, %v4030
    %v4032 = vpop.f32.mrb[0].mxu0
    %v4033 = vadd.f32 %v609, %v4032
    %4034 = vmatprep.mubr.f32.mxu0 %v3195
    %4035 = vmatmul.mubr.f32.gmra.mrb[0].mxu0 %v3194
    %v4036 = vpop.f32.mrb[0].mxu0
    %v4037 = vadd.f32 %v605, %v4036
    %v4038 = vpop.f32.mrb[0].mxu0
    %v4039 = vadd.f32 %v609, %v4038
    %4040 = vmatprep.mubr.f32.mxu0 %v3199
    %4041 = vmatmul.mubr.f32.gmra.mrb[0].mxu0 %v3198
    %v4042 = vpop.f32.mrb[0].mxu0
    %v4043 = vadd.f32 %v605, %v4042
    %v4044 = vpop.f32.mrb[0].mxu0
    %v4045 = vadd.f32 %v609, %v4044
    %4046 = vmatprep.mubr.f32.mxu0 %v3203
    %4047 = vmatmul.mubr.f32.gmra.mrb[0].mxu0 %v3202
    %v4048 = vpop.f32.mrb[0].mxu0
    %v4049 = vadd.f32 %v605, %v4048
    %v4050 = vpop.f32.mrb[0].mxu0
    %v4051 = vadd.f32 %v609, %v4050
    %4052 = vmatprep.mubr.f32.mxu0 %v3207
    %4053 = vmatmul.mubr.f32.gmra.mrb[0].mxu0 %v3206
    %v4054 = vpop.f32.mrb[0].mxu0
    %v4055 = vadd.f32 %v605, %v4054
    %v4056 = vpop.f32.mrb[0].mxu0
    %v4057 = vadd.f32 %v609, %v4056
    %4058 = vmatprep.mubr.f32.mxu0 %v3211
    %4059 = vmatmul.mubr.f32.gmra.mrb[0].mxu0 %v3210
    %v4060 = vpop.f32.mrb[0].mxu0
    %v4061 = vadd.f32 %v605, %v4060
    %v4062 = vpop.f32.mrb[0].mxu0
    %v4063 = vadd.f32 %v609, %v4062
    %4064 = vmatprep.mubr.f32.mxu0 %v3215
    %4065 = vmatmul.mubr.f32.gmra.mrb[0].mxu0 %v3214
    %v4066 = vpop.f32.mrb[0].mxu0
    %v4067 = vadd.f32 %v605, %v4066
    %v4068 = vpop.f32.mrb[0].mxu0
    %v4069 = vadd.f32 %v609, %v4068
    %4070 = vmatprep.mubr.f32.mxu0 %v3219
    %4071 = vmatmul.mubr.f32.gmra.mrb[0].mxu0 %v3218
    %v4072 = vpop.f32.mrb[0].mxu0
    %v4073 = vadd.f32 %v605, %v4072
    %v4074 = vpop.f32.mrb[0].mxu0
    %v4075 = vadd.f32 %v609, %v4074
    %4076 = vmatprep.mubr.f32.mxu0 %v3223
    %4077 = vmatmul.mubr.f32.gmra.mrb[0].mxu0 %v3222
    %v4078 = vpop.f32.mrb[0].mxu0
    %v4079 = vadd.f32 %v605, %v4078
    %v4080 = vpop.f32.mrb[0].mxu0
    %v4081 = vadd.f32 %v609, %v4080
    %4082 = vmatprep.mubr.f32.mxu0 %v3227
    %4083 = vmatmul.mubr.f32.gmra.mrb[0].mxu0 %v3226
    %v4084 = vpop.f32.mrb[0].mxu0
    %v4085 = vadd.f32 %v605, %v4084
    %v4086 = vpop.f32.mrb[0].mxu0
    %v4087 = vadd.f32 %v609, %v4086
    %4088 = vmatprep.mubr.f32.mxu0 %v3231
    %4089 = vmatmul.mubr.f32.gmra.mrb[0].mxu0 %v3230
    %v4090 = vpop.f32.mrb[0].mxu0
    %v4091 = vadd.f32 %v605, %v4090
    %v4092 = vpop.f32.mrb[0].mxu0
    %v4093 = vadd.f32 %v609, %v4092
    %4094 = vmatprep.mubr.f32.mxu0 %v3235
    %4095 = vmatmul.mubr.f32.gmra.mrb[0].mxu0 %v3234
    %v4096 = vpop.f32.mrb[0].mxu0
    %v4097 = vadd.f32 %v605, %v4096
    %v4098 = vpop.f32.mrb[0].mxu0
    %v4099 = vadd.f32 %v609, %v4098
    %4100 = vmatprep.mubr.f32.mxu0 %v3239
    %4101 = vmatmul.mubr.f32.gmra.mrb[0].mxu0 %v3238
    %v4102 = vpop.f32.mrb[0].mxu0
    %v4103 = vadd.f32 %v605, %v4102
    %v4104 = vpop.f32.mrb[0].mxu0
    %v4105 = vadd.f32 %v609, %v4104
    %4106 = vmatprep.mubr.f32.mxu0 %v3243
    %4107 = vmatmul.mubr.f32.gmra.mrb[0].mxu0 %v3242
    %v4108 = vpop.f32.mrb[0].mxu0
    %v4109 = vadd.f32 %v605, %v4108
    %v4110 = vpop.f32.mrb[0].mxu0
    %v4111 = vadd.f32 %v609, %v4110
    %4112 = vmatprep.mubr.f32.mxu0 %v3247
    %4113 = vmatmul.mubr.f32.gmra.mrb[0].mxu0 %v3246
    %v4114 = vpop.f32.mrb[0].mxu0
    %v4115 = vadd.f32 %v605, %v4114
    %v4116 = vpop.f32.mrb[0].mxu0
    %v4117 = vadd.f32 %v609, %v4116
    %4118 = vmatprep.mubr.f32.mxu0 %v3251
    %4119 = vmatmul.mubr.f32.gmra.mrb[0].mxu0 %v3250
    %v4120 = vpop.f32.mrb[0].mxu0
    %v4121 = vadd.f32 %v605, %v4120
    %v4122 = vpop.f32.mrb[0].mxu0
    %v4123 = vadd.f32 %v609, %v4122
    %4124 = vmatprep.mubr.f32.mxu0 %v3255
    %4125 = vmatmul.mubr.f32.gmra.mrb[0].mxu0 %v3254
    %v4126 = vpop.f32.mrb[0].mxu0
    %v4127 = vadd.f32 %v605, %v4126
    %v4128 = vpop.f32.mrb[0].mxu0
    %v4129 = vadd.f32 %v609, %v4128
    %4130 = vmatprep.mubr.f32.mxu0 %v3259
    %4131 = vmatmul.mubr.f32.gmra.mrb[0].mxu0 %v3258
    %v4132 = vpop.f32.mrb[0].mxu0
    %v4133 = vadd.f32 %v605, %v4132
    %v4134 = vpop.f32.mrb[0].mxu0
    %v4135 = vadd.f32 %v609, %v4134
    %4136 = vmatprep.mubr.f32.mxu0 %v3263
    %4137 = vmatmul.mubr.f32.gmra.mrb[0].mxu0 %v3262
    %v4138 = vpop.f32.mrb[0].mxu0
    %v4139 = vadd.f32 %v605, %v4138
    %v4140 = vpop.f32.mrb[0].mxu0
    %v4141 = vadd.f32 %v609, %v4140
    %4142 = vmatprep.mubr.f32.mxu0 %v3267
    %4143 = vmatmul.mubr.f32.gmra.mrb[0].mxu0 %v3266
    %v4144 = vpop.f32.mrb[0].mxu0
    %v4145 = vadd.f32 %v605, %v4144
    %v4146 = vpop.f32.mrb[0].mxu0
    %v4147 = vadd.f32 %v609, %v4146
    %4148 = vmatprep.mubr.f32.mxu0 %v3271
    %4149 = vmatmul.mubr.f32.gmra.mrb[0].mxu0 %v3270
    %v4150 = vpop.f32.mrb[0].mxu0
    %v4151 = vadd.f32 %v605, %v4150
    %v4152 = vpop.f32.mrb[0].mxu0
    %v4153 = vadd.f32 %v609, %v4152
    %4154 = vmatprep.mubr.f32.mxu0 %v3275
    %4155 = vmatmul.mubr.f32.gmra.mrb[0].mxu0 %v3274
    %v4156 = vpop.f32.mrb[0].mxu0
    %v4157 = vadd.f32 %v605, %v4156
    %v4158 = vpop.f32.mrb[0].mxu0
    %v4159 = vadd.f32 %v609, %v4158
    %4160 = vmatprep.mubr.f32.mxu0 %v3279
    %4161 = vmatmul.mubr.f32.gmra.mrb[0].mxu0 %v3278
    %v4162 = vpop.f32.mrb[0].mxu0
    %v4163 = vadd.f32 %v605, %v4162
    %v4164 = vpop.f32.mrb[0].mxu0
    %v4165 = vadd.f32 %v609, %v4164
    %4166 = vmatprep.mubr.f32.mxu0 %v3283
    %4167 = vmatmul.mubr.f32.gmra.mrb[0].mxu0 %v3282
    %v4168 = vpop.f32.mrb[0].mxu0
    %v4169 = vadd.f32 %v605, %v4168
    %v4170 = vpop.f32.mrb[0].mxu0
    %v4171 = vadd.f32 %v609, %v4170
    %4172 = vmatprep.mubr.f32.mxu0 %v3287
    %4173 = vmatmul.mubr.f32.gmra.mrb[0].mxu0 %v3286
    %v4174 = vpop.f32.mrb[0].mxu0
    %v4175 = vadd.f32 %v605, %v4174
    %v4176 = vpop.f32.mrb[0].mxu0
    %v4177 = vadd.f32 %v609, %v4176
    %4178 = vmatprep.mubr.f32.mxu0 %v3291
    %4179 = vmatmul.mubr.f32.gmra.mrb[0].mxu0 %v3290
    %v4180 = vpop.f32.mrb[0].mxu0
    %v4181 = vadd.f32 %v605, %v4180
    %v4182 = vpop.f32.mrb[0].mxu0
    %v4183 = vadd.f32 %v609, %v4182
    %4184 = vmatprep.mubr.f32.mxu0 %v3295
    %4185 = vmatmul.mubr.f32.gmra.mrb[0].mxu0 %v3294
    %v4186 = vpop.f32.mrb[0].mxu0
    %v4187 = vadd.f32 %v605, %v4186
    %v4188 = vpop.f32.mrb[0].mxu0
    %v4189 = vadd.f32 %v609, %v4188
    %4190 = vmatprep.mubr.f32.mxu0 %v3299
    %4191 = vmatmul.mubr.f32.gmra.mrb[0].mxu0 %v3298
    %v4192 = vpop.f32.mrb[0].mxu0
    %v4193 = vadd.f32 %v605, %v4192
    %v4194 = vpop.f32.mrb[0].mxu0
    %v4195 = vadd.f32 %v609, %v4194
    %4196 = vmatprep.mubr.f32.mxu0 %v3303
    %4197 = vmatmul.mubr.f32.gmra.mrb[0].mxu0 %v3302
    %v4198 = vpop.f32.mrb[0].mxu0
    %v4199 = vadd.f32 %v605, %v4198
    %v4200 = vpop.f32.mrb[0].mxu0
    %v4201 = vadd.f32 %v609, %v4200
    %4202 = vmatprep.mubr.f32.mxu0 %v3307
    %4203 = vmatmul.mubr.f32.gmra.mrb[0].mxu0 %v3306
    %v4204 = vpop.f32.mrb[0].mxu0
    %v4205 = vadd.f32 %v605, %v4204
    %v4206 = vpop.f32.mrb[0].mxu0
    %v4207 = vadd.f32 %v609, %v4206
    %4208 = vdwg.mxu0
    %4209 = vmatprep.subr.mxu0 %v467
    %4210 = vmatpush1.msra.mxu0 %v466
    %4211 = vmatprep.subr.mxu0 %v471
    %4212 = vmatpush1.msra.mxu0 %v470
    %4213 = vmatprep.subr.mxu0 %v475
    %4214 = vmatpush1.msra.mxu0 %v474
    %4215 = vmatprep.subr.mxu0 %v479
    %4216 = vmatpush1.msra.mxu0 %v478
    %4217 = vmatprep.subr.mxu0 %v483
    %4218 = vmatpush1.msra.mxu0 %v482
    %4219 = vmatprep.subr.mxu0 %v487
    %4220 = vmatpush1.msra.mxu0 %v486
    %4221 = vmatprep.subr.mxu0 %v491
    %4222 = vmatpush1.msra.mxu0 %v490
    %4223 = vmatprep.subr.mxu0 %v495
    %4224 = vmatpush1.msra.mxu0 %v494
    %4225 = vmatprep.subr.mxu0 %v499
    %4226 = vmatpush1.msra.mxu0 %v498
    %4227 = vmatprep.subr.mxu0 %v503
    %4228 = vmatpush1.msra.mxu0 %v502
    %4229 = vmatprep.subr.mxu0 %v507
    %4230 = vmatpush1.msra.mxu0 %v506
    %4231 = vmatprep.subr.mxu0 %v511
    %4232 = vmatpush1.msra.mxu0 %v510
    %4233 = vmatprep.subr.mxu0 %v515
    %4234 = vmatpush1.msra.mxu0 %v514
    %4235 = vmatprep.subr.mxu0 %v519
    %4236 = vmatpush1.msra.mxu0 %v518
    %4237 = vmatprep.subr.mxu0 %v523
    %4238 = vmatpush1.msra.mxu0 %v522
    %4239 = vmatprep.subr.mxu0 %v527
    %4240 = vmatpush1.msra.mxu0 %v526
    %4241 = vmatprep.subr.mxu0 %v531
    %4242 = vmatpush1.msra.mxu0 %v530
    %4243 = vmatprep.subr.mxu0 %v535
    %4244 = vmatpush1.msra.mxu0 %v534
    %4245 = vmatprep.subr.mxu0 %v539
    %4246 = vmatpush1.msra.mxu0 %v538
    %4247 = vmatprep.subr.mxu0 %v543
    %4248 = vmatpush1.msra.mxu0 %v542
    %4249 = vmatprep.subr.mxu0 %v547
    %4250 = vmatpush1.msra.mxu0 %v546
    %4251 = vmatprep.subr.mxu0 %v551
    %4252 = vmatpush1.msra.mxu0 %v550
    %4253 = vmatprep.subr.mxu0 %v555
    %4254 = vmatpush1.msra.mxu0 %v554
    %4255 = vmatprep.subr.mxu0 %v559
    %4256 = vmatpush1.msra.mxu0 %v558
    %4257 = vmatprep.subr.mxu0 %v563
    %4258 = vmatpush1.msra.mxu0 %v562
    %4259 = vmatprep.subr.mxu0 %v567
    %4260 = vmatpush1.msra.mxu0 %v566
    %4261 = vmatprep.subr.mxu0 %v571
    %4262 = vmatpush1.msra.mxu0 %v570
    %4263 = vmatprep.subr.mxu0 %v575
    %4264 = vmatpush1.msra.mxu0 %v574
    %4265 = vmatprep.subr.mxu0 %v579
    %4266 = vmatpush1.msra.mxu0 %v578
    %4267 = vmatprep.subr.mxu0 %v583
    %4268 = vmatpush1.msra.mxu0 %v582
    %4269 = vmatprep.subr.mxu0 %v587
    %4270 = vmatpush1.msra.mxu0 %v586
    %4271 = vmatprep.subr.mxu0 %v591
    %4272 = vmatpush1.msra.mxu0 %v590
    %4273 = vmatprep.mubr.f32.mxu0 %v3185
    %4274 = vmatmul.mubr.f32.gmra.mrb[0].mxu0 %v3184
    %v4275 = vpop.f32.mrb[0].mxu0
    %v4276 = vadd.f32 %v4019, %v4275
    %v4277 = vpop.f32.mrb[0].mxu0
    %v4278 = vadd.f32 %v4021, %v4277
    %4279 = vmatprep.mubr.f32.mxu0 %v3189
    %4280 = vmatmul.mubr.f32.gmra.mrb[0].mxu0 %v3188
    %v4281 = vpop.f32.mrb[0].mxu0
    %v4282 = vadd.f32 %v4025, %v4281
    %v4283 = vpop.f32.mrb[0].mxu0
    %v4284 = vadd.f32 %v4027, %v4283
    %4285 = vmatprep.mubr.f32.mxu0 %v3193
    %4286 = vmatmul.mubr.f32.gmra.mrb[0].mxu0 %v3192
    %v4287 = vpop.f32.mrb[0].mxu0
    %v4288 = vadd.f32 %v4031, %v4287
    %v4289 = vpop.f32.mrb[0].mxu0
    %v4290 = vadd.f32 %v4033, %v4289
    %4291 = vmatprep.mubr.f32.mxu0 %v3197
    %4292 = vmatmul.mubr.f32.gmra.mrb[0].mxu0 %v3196
    %v4293 = vpop.f32.mrb[0].mxu0
    %v4294 = vadd.f32 %v4037, %v4293
    %v4295 = vpop.f32.mrb[0].mxu0
    %v4296 = vadd.f32 %v4039, %v4295
    %4297 = vmatprep.mubr.f32.mxu0 %v3201
    %4298 = vmatmul.mubr.f32.gmra.mrb[0].mxu0 %v3200
    %v4299 = vpop.f32.mrb[0].mxu0
    %v4300 = vadd.f32 %v4043, %v4299
    %v4301 = vpop.f32.mrb[0].mxu0
    %v4302 = vadd.f32 %v4045, %v4301
    %4303 = vmatprep.mubr.f32.mxu0 %v3205
    %4304 = vmatmul.mubr.f32.gmra.mrb[0].mxu0 %v3204
    %v4305 = vpop.f32.mrb[0].mxu0
    %v4306 = vadd.f32 %v4049, %v4305
    %v4307 = vpop.f32.mrb[0].mxu0
    %v4308 = vadd.f32 %v4051, %v4307
    %4309 = vmatprep.mubr.f32.mxu0 %v3209
    %4310 = vmatmul.mubr.f32.gmra.mrb[0].mxu0 %v3208
    %v4311 = vpop.f32.mrb[0].mxu0
    %v4312 = vadd.f32 %v4055, %v4311
    %v4313 = vpop.f32.mrb[0].mxu0
    %v4314 = vadd.f32 %v4057, %v4313
    %4315 = vmatprep.mubr.f32.mxu0 %v3213
    %4316 = vmatmul.mubr.f32.gmra.mrb[0].mxu0 %v3212
    %v4317 = vpop.f32.mrb[0].mxu0
    %v4318 = vadd.f32 %v4061, %v4317
    %v4319 = vpop.f32.mrb[0].mxu0
    %v4320 = vadd.f32 %v4063, %v4319
    %4321 = vmatprep.mubr.f32.mxu0 %v3217
    %4322 = vmatmul.mubr.f32.gmra.mrb[0].mxu0 %v3216
    %v4323 = vpop.f32.mrb[0].mxu0
    %v4324 = vadd.f32 %v4067, %v4323
    %v4325 = vpop.f32.mrb[0].mxu0
    %v4326 = vadd.f32 %v4069, %v4325
    %4327 = vmatprep.mubr.f32.mxu0 %v3221
    %4328 = vmatmul.mubr.f32.gmra.mrb[0].mxu0 %v3220
    %v4329 = vpop.f32.mrb[0].mxu0
    %v4330 = vadd.f32 %v4073, %v4329
    %v4331 = vpop.f32.mrb[0].mxu0
    %v4332 = vadd.f32 %v4075, %v4331
    %4333 = vmatprep.mubr.f32.mxu0 %v3225
    %4334 = vmatmul.mubr.f32.gmra.mrb[0].mxu0 %v3224
    %v4335 = vpop.f32.mrb[0].mxu0
    %v4336 = vadd.f32 %v4079, %v4335
    %v4337 = vpop.f32.mrb[0].mxu0
    %v4338 = vadd.f32 %v4081, %v4337
    %4339 = vmatprep.mubr.f32.mxu0 %v3229
    %4340 = vmatmul.mubr.f32.gmra.mrb[0].mxu0 %v3228
    %v4341 = vpop.f32.mrb[0].mxu0
    %v4342 = vadd.f32 %v4085, %v4341
    %v4343 = vpop.f32.mrb[0].mxu0
    %v4344 = vadd.f32 %v4087, %v4343
    %4345 = vmatprep.mubr.f32.mxu0 %v3233
    %4346 = vmatmul.mubr.f32.gmra.mrb[0].mxu0 %v3232
    %v4347 = vpop.f32.mrb[0].mxu0
    %v4348 = vadd.f32 %v4091, %v4347
    %v4349 = vpop.f32.mrb[0].mxu0
    %v4350 = vadd.f32 %v4093, %v4349
    %4351 = vmatprep.mubr.f32.mxu0 %v3237
    %4352 = vmatmul.mubr.f32.gmra.mrb[0].mxu0 %v3236
    %v4353 = vpop.f32.mrb[0].mxu0
    %v4354 = vadd.f32 %v4097, %v4353
    %v4355 = vpop.f32.mrb[0].mxu0
    %v4356 = vadd.f32 %v4099, %v4355
    %4357 = vmatprep.mubr.f32.mxu0 %v3241
    %4358 = vmatmul.mubr.f32.gmra.mrb[0].mxu0 %v3240
    %v4359 = vpop.f32.mrb[0].mxu0
    %v4360 = vadd.f32 %v4103, %v4359
    %v4361 = vpop.f32.mrb[0].mxu0
    %v4362 = vadd.f32 %v4105, %v4361
    %4363 = vmatprep.mubr.f32.mxu0 %v3245
    %4364 = vmatmul.mubr.f32.gmra.mrb[0].mxu0 %v3244
    %v4365 = vpop.f32.mrb[0].mxu0
    %v4366 = vadd.f32 %v4109, %v4365
    %v4367 = vpop.f32.mrb[0].mxu0
    %v4368 = vadd.f32 %v4111, %v4367
    %4369 = vmatprep.mubr.f32.mxu0 %v3249
    %4370 = vmatmul.mubr.f32.gmra.mrb[0].mxu0 %v3248
    %v4371 = vpop.f32.mrb[0].mxu0
    %v4372 = vadd.f32 %v4115, %v4371
    %v4373 = vpop.f32.mrb[0].mxu0
    %v4374 = vadd.f32 %v4117, %v4373
    %4375 = vmatprep.mubr.f32.mxu0 %v3253
    %4376 = vmatmul.mubr.f32.gmra.mrb[0].mxu0 %v3252
    %v4377 = vpop.f32.mrb[0].mxu0
    %v4378 = vadd.f32 %v4121, %v4377
    %v4379 = vpop.f32.mrb[0].mxu0
    %v4380 = vadd.f32 %v4123, %v4379
    %4381 = vmatprep.mubr.f32.mxu0 %v3257
    %4382 = vmatmul.mubr.f32.gmra.mrb[0].mxu0 %v3256
    %v4383 = vpop.f32.mrb[0].mxu0
    %v4384 = vadd.f32 %v4127, %v4383
    %v4385 = vpop.f32.mrb[0].mxu0
    %v4386 = vadd.f32 %v4129, %v4385
    %4387 = vmatprep.mubr.f32.mxu0 %v3261
    %4388 = vmatmul.mubr.f32.gmra.mrb[0].mxu0 %v3260
    %v4389 = vpop.f32.mrb[0].mxu0
    %v4390 = vadd.f32 %v4133, %v4389
    %v4391 = vpop.f32.mrb[0].mxu0
    %v4392 = vadd.f32 %v4135, %v4391
    %4393 = vmatprep.mubr.f32.mxu0 %v3265
    %4394 = vmatmul.mubr.f32.gmra.mrb[0].mxu0 %v3264
    %v4395 = vpop.f32.mrb[0].mxu0
    %v4396 = vadd.f32 %v4139, %v4395
    %v4397 = vpop.f32.mrb[0].mxu0
    %v4398 = vadd.f32 %v4141, %v4397
    %4399 = vmatprep.mubr.f32.mxu0 %v3269
    %4400 = vmatmul.mubr.f32.gmra.mrb[0].mxu0 %v3268
    %v4401 = vpop.f32.mrb[0].mxu0
    %v4402 = vadd.f32 %v4145, %v4401
    %v4403 = vpop.f32.mrb[0].mxu0
    %v4404 = vadd.f32 %v4147, %v4403
    %4405 = vmatprep.mubr.f32.mxu0 %v3273
    %4406 = vmatmul.mubr.f32.gmra.mrb[0].mxu0 %v3272
    %v4407 = vpop.f32.mrb[0].mxu0
    %v4408 = vadd.f32 %v4151, %v4407
    %v4409 = vpop.f32.mrb[0].mxu0
    %v4410 = vadd.f32 %v4153, %v4409
    %4411 = vmatprep.mubr.f32.mxu0 %v3277
    %4412 = vmatmul.mubr.f32.gmra.mrb[0].mxu0 %v3276
    %v4413 = vpop.f32.mrb[0].mxu0
    %v4414 = vadd.f32 %v4157, %v4413
    %v4415 = vpop.f32.mrb[0].mxu0
    %v4416 = vadd.f32 %v4159, %v4415
    %4417 = vmatprep.mubr.f32.mxu0 %v3281
    %4418 = vmatmul.mubr.f32.gmra.mrb[0].mxu0 %v3280
    %v4419 = vpop.f32.mrb[0].mxu0
    %v4420 = vadd.f32 %v4163, %v4419
    %v4421 = vpop.f32.mrb[0].mxu0
    %v4422 = vadd.f32 %v4165, %v4421
    %4423 = vmatprep.mubr.f32.mxu0 %v3285
    %4424 = vmatmul.mubr.f32.gmra.mrb[0].mxu0 %v3284
    %v4425 = vpop.f32.mrb[0].mxu0
    %v4426 = vadd.f32 %v4169, %v4425
    %v4427 = vpop.f32.mrb[0].mxu0
    %v4428 = vadd.f32 %v4171, %v4427
    %4429 = vmatprep.mubr.f32.mxu0 %v3289
    %4430 = vmatmul.mubr.f32.gmra.mrb[0].mxu0 %v3288
    %v4431 = vpop.f32.mrb[0].mxu0
    %v4432 = vadd.f32 %v4175, %v4431
    %v4433 = vpop.f32.mrb[0].mxu0
    %v4434 = vadd.f32 %v4177, %v4433
    %4435 = vmatprep.mubr.f32.mxu0 %v3293
    %4436 = vmatmul.mubr.f32.gmra.mrb[0].mxu0 %v3292
    %v4437 = vpop.f32.mrb[0].mxu0
    %v4438 = vadd.f32 %v4181, %v4437
    %v4439 = vpop.f32.mrb[0].mxu0
    %v4440 = vadd.f32 %v4183, %v4439
    %4441 = vmatprep.mubr.f32.mxu0 %v3297
    %4442 = vmatmul.mubr.f32.gmra.mrb[0].mxu0 %v3296
    %v4443 = vpop.f32.mrb[0].mxu0
    %v4444 = vadd.f32 %v4187, %v4443
    %v4445 = vpop.f32.mrb[0].mxu0
    %v4446 = vadd.f32 %v4189, %v4445
    %4447 = vmatprep.mubr.f32.mxu0 %v3301
    %4448 = vmatmul.mubr.f32.gmra.mrb[0].mxu0 %v3300
    %v4449 = vpop.f32.mrb[0].mxu0
    %v4450 = vadd.f32 %v4193, %v4449
    %v4451 = vpop.f32.mrb[0].mxu0
    %v4452 = vadd.f32 %v4195, %v4451
    %4453 = vmatprep.mubr.f32.mxu0 %v3305
    %4454 = vmatmul.mubr.f32.gmra.mrb[0].mxu0 %v3304
    %v4455 = vpop.f32.mrb[0].mxu0
    %v4456 = vadd.f32 %v4199, %v4455
    %v4457 = vpop.f32.mrb[0].mxu0
    %v4458 = vadd.f32 %v4201, %v4457
    %4459 = vmatprep.mubr.f32.mxu0 %v3309
    %4460 = vmatmul.mubr.f32.gmra.mrb[0].mxu0 %v3308
    %v4461 = vpop.f32.mrb[0].mxu0
    %v4462 = vadd.f32 %v4205, %v4461
    %v4463 = vpop.f32.mrb[0].mxu0
    %v4464 = vadd.f32 %v4207, %v4463
    %4465 = vdwg.mxu0
    %v4466 = vadd.f32 %v3762, %v3310
    %v4467 = vadd.f32 %v3764, %v3311
    %v4468 = vadd.f32 %v4276, %v3312
    %v4469 = vadd.f32 %v4278, %v3313
    %v4470 = vadd.f32 %v3768, %v3314
    %v4471 = vadd.f32 %v3770, %v3315
    %v4472 = vadd.f32 %v4282, %v3316
    %v4473 = vadd.f32 %v4284, %v3317
    %v4474 = vadd.f32 %v3774, %v3318
    %v4475 = vadd.f32 %v3776, %v3319
    %v4476 = vadd.f32 %v4288, %v3320
    %v4477 = vadd.f32 %v4290, %v3321
    %v4478 = vadd.f32 %v3780, %v3322
    %v4479 = vadd.f32 %v3782, %v3323
    %v4480 = vadd.f32 %v4294, %v3324
    %v4481 = vadd.f32 %v4296, %v3325
    %v4482 = vadd.f32 %v3786, %v3326
    %v4483 = vadd.f32 %v3788, %v3327
    %v4484 = vadd.f32 %v4300, %v3328
    %v4485 = vadd.f32 %v4302, %v3329
    %v4486 = vadd.f32 %v3792, %v3330
    %v4487 = vadd.f32 %v3794, %v3331
    %v4488 = vadd.f32 %v4306, %v3332
    %v4489 = vadd.f32 %v4308, %v3333
    %v4490 = vadd.f32 %v3798, %v3334
    %v4491 = vadd.f32 %v3800, %v3335
    %v4492 = vadd.f32 %v4312, %v3336
    %v4493 = vadd.f32 %v4314, %v3337
    %v4494 = vadd.f32 %v3804, %v3338
    %v4495 = vadd.f32 %v3806, %v3339
    %v4496 = vadd.f32 %v4318, %v3340
    %v4497 = vadd.f32 %v4320, %v3341
    %v4498 = vadd.f32 %v3810, %v3342
    %v4499 = vadd.f32 %v3812, %v3343
    %v4500 = vadd.f32 %v4324, %v3344
    %v4501 = vadd.f32 %v4326, %v3345
    %v4502 = vadd.f32 %v3816, %v3346
    %v4503 = vadd.f32 %v3818, %v3347
    %v4504 = vadd.f32 %v4330, %v3348
    %v4505 = vadd.f32 %v4332, %v3349
    %v4506 = vadd.f32 %v3822, %v3350
    %v4507 = vadd.f32 %v3824, %v3351
    %v4508 = vadd.f32 %v4336, %v3352
    %v4509 = vadd.f32 %v4338, %v3353
    %v4510 = vadd.f32 %v3828, %v3354
    %v4511 = vadd.f32 %v3830, %v3355
    %v4512 = vadd.f32 %v4342, %v3356
    %v4513 = vadd.f32 %v4344, %v3357
    %v4514 = vadd.f32 %v3834, %v3358
    %v4515 = vadd.f32 %v3836, %v3359
    %v4516 = vadd.f32 %v4348, %v3360
    %v4517 = vadd.f32 %v4350, %v3361
    %v4518 = vadd.f32 %v3840, %v3362
    %v4519 = vadd.f32 %v3842, %v3363
    %v4520 = vadd.f32 %v4354, %v3364
    %v4521 = vadd.f32 %v4356, %v3365
    %v4522 = vadd.f32 %v3846, %v3366
    %v4523 = vadd.f32 %v3848, %v3367
    %v4524 = vadd.f32 %v4360, %v3368
    %v4525 = vadd.f32 %v4362, %v3369
    %v4526 = vadd.f32 %v3852, %v3370
    %v4527 = vadd.f32 %v3854, %v3371
    %v4528 = vadd.f32 %v4366, %v3372
    %v4529 = vadd.f32 %v4368, %v3373
    %v4530 = vadd.f32 %v3858, %v3374
    %v4531 = vadd.f32 %v3860, %v3375
    %v4532 = vadd.f32 %v4372, %v3376
    %v4533 = vadd.f32 %v4374, %v3377
    %v4534 = vadd.f32 %v3864, %v3378
    %v4535 = vadd.f32 %v3866, %v3379
    %v4536 = vadd.f32 %v4378, %v3380
    %v4537 = vadd.f32 %v4380, %v3381
    %v4538 = vadd.f32 %v3870, %v3382
    %v4539 = vadd.f32 %v3872, %v3383
    %v4540 = vadd.f32 %v4384, %v3384
    %v4541 = vadd.f32 %v4386, %v3385
    %v4542 = vadd.f32 %v3876, %v3386
    %v4543 = vadd.f32 %v3878, %v3387
    %v4544 = vadd.f32 %v4390, %v3388
    %v4545 = vadd.f32 %v4392, %v3389
    %v4546 = vadd.f32 %v3882, %v3390
    %v4547 = vadd.f32 %v3884, %v3391
    %v4548 = vadd.f32 %v4396, %v3392
    %v4549 = vadd.f32 %v4398, %v3393
    %v4550 = vadd.f32 %v3888, %v3394
    %v4551 = vadd.f32 %v3890, %v3395
    %v4552 = vadd.f32 %v4402, %v3396
    %v4553 = vadd.f32 %v4404, %v3397
    %v4554 = vadd.f32 %v3894, %v3398
    %v4555 = vadd.f32 %v3896, %v3399
    %v4556 = vadd.f32 %v4408, %v3400
    %v4557 = vadd.f32 %v4410, %v3401
    %v4558 = vadd.f32 %v3900, %v3402
    %v4559 = vadd.f32 %v3902, %v3403
    %v4560 = vadd.f32 %v4414, %v3404
    %v4561 = vadd.f32 %v4416, %v3405
    %v4562 = vadd.f32 %v3906, %v3406
    %v4563 = vadd.f32 %v3908, %v3407
    %v4564 = vadd.f32 %v4420, %v3408
    %v4565 = vadd.f32 %v4422, %v3409
    %v4566 = vadd.f32 %v3912, %v3410
    %v4567 = vadd.f32 %v3914, %v3411
    %v4568 = vadd.f32 %v4426, %v3412
    %v4569 = vadd.f32 %v4428, %v3413
    %v4570 = vadd.f32 %v3918, %v3414
    %v4571 = vadd.f32 %v3920, %v3415
    %v4572 = vadd.f32 %v4432, %v3416
    %v4573 = vadd.f32 %v4434, %v3417
    %v4574 = vadd.f32 %v3924, %v3418
    %v4575 = vadd.f32 %v3926, %v3419
    %v4576 = vadd.f32 %v4438, %v3420
    %v4577 = vadd.f32 %v4440, %v3421
    %v4578 = vadd.f32 %v3930, %v3422
    %v4579 = vadd.f32 %v3932, %v3423
    %v4580 = vadd.f32 %v4444, %v3424
    %v4581 = vadd.f32 %v4446, %v3425
    %v4582 = vadd.f32 %v3936, %v3426
    %v4583 = vadd.f32 %v3938, %v3427
    %v4584 = vadd.f32 %v4450, %v3428
    %v4585 = vadd.f32 %v4452, %v3429
    %v4586 = vadd.f32 %v3942, %v3430
    %v4587 = vadd.f32 %v3944, %v3431
    %v4588 = vadd.f32 %v4456, %v3432
    %v4589 = vadd.f32 %v4458, %v3433
    %v4590 = vadd.f32 %v3948, %v3434
    %v4591 = vadd.f32 %v3950, %v3435
    %v4592 = vadd.f32 %v4462, %v3436
    %v4593 = vadd.f32 %v4464, %v3437
    %v4594 = vmax.f32 %v4466, 0.0
    %v4595 = vmax.f32 %v4467, 0.0
    %v4596 = vmax.f32 %v4468, 0.0
    %v4597 = vmax.f32 %v4469, 0.0
    %v4598 = vmax.f32 %v4470, 0.0
    %v4599 = vmax.f32 %v4471, 0.0
    %v4600 = vmax.f32 %v4472, 0.0
    %v4601 = vmax.f32 %v4473, 0.0
    %v4602 = vmax.f32 %v4474, 0.0
    %v4603 = vmax.f32 %v4475, 0.0
    %v4604 = vmax.f32 %v4476, 0.0
    %v4605 = vmax.f32 %v4477, 0.0
    %v4606 = vmax.f32 %v4478, 0.0
    %v4607 = vmax.f32 %v4479, 0.0
    %v4608 = vmax.f32 %v4480, 0.0
    %v4609 = vmax.f32 %v4481, 0.0
    %v4610 = vmax.f32 %v4482, 0.0
    %v4611 = vmax.f32 %v4483, 0.0
    %v4612 = vmax.f32 %v4484, 0.0
    %v4613 = vmax.f32 %v4485, 0.0
    %v4614 = vmax.f32 %v4486, 0.0
    %v4615 = vmax.f32 %v4487, 0.0
    %v4616 = vmax.f32 %v4488, 0.0
    %v4617 = vmax.f32 %v4489, 0.0
    %v4618 = vmax.f32 %v4490, 0.0
    %v4619 = vmax.f32 %v4491, 0.0
    %v4620 = vmax.f32 %v4492, 0.0
    %v4621 = vmax.f32 %v4493, 0.0
    %v4622 = vmax.f32 %v4494, 0.0
    %v4623 = vmax.f32 %v4495, 0.0
    %v4624 = vmax.f32 %v4496, 0.0
    %v4625 = vmax.f32 %v4497, 0.0
    %v4626 = vmax.f32 %v4498, 0.0
    %v4627 = vmax.f32 %v4499, 0.0
    %v4628 = vmax.f32 %v4500, 0.0
    %v4629 = vmax.f32 %v4501, 0.0
    %v4630 = vmax.f32 %v4502, 0.0
    %v4631 = vmax.f32 %v4503, 0.0
    %v4632 = vmax.f32 %v4504, 0.0
    %v4633 = vmax.f32 %v4505, 0.0
    %v4634 = vmax.f32 %v4506, 0.0
    %v4635 = vmax.f32 %v4507, 0.0
    %v4636 = vmax.f32 %v4508, 0.0
    %v4637 = vmax.f32 %v4509, 0.0
    %v4638 = vmax.f32 %v4510, 0.0
    %v4639 = vmax.f32 %v4511, 0.0
    %v4640 = vmax.f32 %v4512, 0.0
    %v4641 = vmax.f32 %v4513, 0.0
    %v4642 = vmax.f32 %v4514, 0.0
    %v4643 = vmax.f32 %v4515, 0.0
    %v4644 = vmax.f32 %v4516, 0.0
    %v4645 = vmax.f32 %v4517, 0.0
    %v4646 = vmax.f32 %v4518, 0.0
    %v4647 = vmax.f32 %v4519, 0.0
    %v4648 = vmax.f32 %v4520, 0.0
    %v4649 = vmax.f32 %v4521, 0.0
    %v4650 = vmax.f32 %v4522, 0.0
    %v4651 = vmax.f32 %v4523, 0.0
    %v4652 = vmax.f32 %v4524, 0.0
    %v4653 = vmax.f32 %v4525, 0.0
    %v4654 = vmax.f32 %v4526, 0.0
    %v4655 = vmax.f32 %v4527, 0.0
    %v4656 = vmax.f32 %v4528, 0.0
    %v4657 = vmax.f32 %v4529, 0.0
    %v4658 = vmax.f32 %v4530, 0.0
    %v4659 = vmax.f32 %v4531, 0.0
    %v4660 = vmax.f32 %v4532, 0.0
    %v4661 = vmax.f32 %v4533, 0.0
    %v4662 = vmax.f32 %v4534, 0.0
    %v4663 = vmax.f32 %v4535, 0.0
    %v4664 = vmax.f32 %v4536, 0.0
    %v4665 = vmax.f32 %v4537, 0.0
    %v4666 = vmax.f32 %v4538, 0.0
    %v4667 = vmax.f32 %v4539, 0.0
    %v4668 = vmax.f32 %v4540, 0.0
    %v4669 = vmax.f32 %v4541, 0.0
    %v4670 = vmax.f32 %v4542, 0.0
    %v4671 = vmax.f32 %v4543, 0.0
    %v4672 = vmax.f32 %v4544, 0.0
    %v4673 = vmax.f32 %v4545, 0.0
    %v4674 = vmax.f32 %v4546, 0.0
    %v4675 = vmax.f32 %v4547, 0.0
    %v4676 = vmax.f32 %v4548, 0.0
    %v4677 = vmax.f32 %v4549, 0.0
    %v4678 = vmax.f32 %v4550, 0.0
    %v4679 = vmax.f32 %v4551, 0.0
    %v4680 = vmax.f32 %v4552, 0.0
    %v4681 = vmax.f32 %v4553, 0.0
    %v4682 = vmax.f32 %v4554, 0.0
    %v4683 = vmax.f32 %v4555, 0.0
    %v4684 = vmax.f32 %v4556, 0.0
    %v4685 = vmax.f32 %v4557, 0.0
    %v4686 = vmax.f32 %v4558, 0.0
    %v4687 = vmax.f32 %v4559, 0.0
    %v4688 = vmax.f32 %v4560, 0.0
    %v4689 = vmax.f32 %v4561, 0.0
    %v4690 = vmax.f32 %v4562, 0.0
    %v4691 = vmax.f32 %v4563, 0.0
    %v4692 = vmax.f32 %v4564, 0.0
    %v4693 = vmax.f32 %v4565, 0.0
    %v4694 = vmax.f32 %v4566, 0.0
    %v4695 = vmax.f32 %v4567, 0.0
    %v4696 = vmax.f32 %v4568, 0.0
    %v4697 = vmax.f32 %v4569, 0.0
    %v4698 = vmax.f32 %v4570, 0.0
    %v4699 = vmax.f32 %v4571, 0.0
    %v4700 = vmax.f32 %v4572, 0.0
    %v4701 = vmax.f32 %v4573, 0.0
    %v4702 = vmax.f32 %v4574, 0.0
    %v4703 = vmax.f32 %v4575, 0.0
    %v4704 = vmax.f32 %v4576, 0.0
    %v4705 = vmax.f32 %v4577, 0.0
    %v4706 = vmax.f32 %v4578, 0.0
    %v4707 = vmax.f32 %v4579, 0.0
    %v4708 = vmax.f32 %v4580, 0.0
    %v4709 = vmax.f32 %v4581, 0.0
    %v4710 = vmax.f32 %v4582, 0.0
    %v4711 = vmax.f32 %v4583, 0.0
    %v4712 = vmax.f32 %v4584, 0.0
    %v4713 = vmax.f32 %v4585, 0.0
    %v4714 = vmax.f32 %v4586, 0.0
    %v4715 = vmax.f32 %v4587, 0.0
    %v4716 = vmax.f32 %v4588, 0.0
    %v4717 = vmax.f32 %v4589, 0.0
    %v4718 = vmax.f32 %v4590, 0.0
    %v4719 = vmax.f32 %v4591, 0.0
    %v4720 = vmax.f32 %v4592, 0.0
    %v4721 = vmax.f32 %v4593, 0.0
    %v4722 = vld [vmem:[%s3] sm:$0xff]
    %v4723 = vld [vmem:[%s3 + $0x8] sm:$0xff]
    %v4724 = vld [vmem:[%s3 + $0x10] sm:$0xff]
    %v4725 = vld [vmem:[%s3 + $0x18] sm:$0xff]
    %v4726 = vld [vmem:[%s3 + $0x20] sm:$0xff]
    %v4727 = vld [vmem:[%s3 + $0x28] sm:$0xff]
    %v4728 = vld [vmem:[%s3 + $0x30] sm:$0xff]
    %v4729 = vld [vmem:[%s3 + $0x38] sm:$0xff]
    %v4730 = vld [vmem:[%s3 + $0x40] sm:$0xff]
    %v4731 = vld [vmem:[%s3 + $0x48] sm:$0xff]
    %v4732 = vld [vmem:[%s3 + $0x50] sm:$0xff]
    %v4733 = vld [vmem:[%s3 + $0x58] sm:$0xff]
    %v4734 = vld [vmem:[%s3 + $0x60] sm:$0xff]
    %v4735 = vld [vmem:[%s3 + $0x68] sm:$0xff]
    %v4736 = vld [vmem:[%s3 + $0x70] sm:$0xff]
    %v4737 = vld [vmem:[%s3 + $0x78] sm:$0xff]
    %v4738 = vld [vmem:[%s3 + $0x80] sm:$0xff]
    %v4739 = vld [vmem:[%s3 + $0x88] sm:$0xff]
    %v4740 = vld [vmem:[%s3 + $0x90] sm:$0xff]
    %v4741 = vld [vmem:[%s3 + $0x98] sm:$0xff]
    %v4742 = vld [vmem:[%s3 + $0xa0] sm:$0xff]
    %v4743 = vld [vmem:[%s3 + $0xa8] sm:$0xff]
    %v4744 = vld [vmem:[%s3 + $0xb0] sm:$0xff]
    %v4745 = vld [vmem:[%s3 + $0xb8] sm:$0xff]
    %v4746 = vld [vmem:[%s3 + $0xc0] sm:$0xff]
    %v4747 = vld [vmem:[%s3 + $0xc8] sm:$0xff]
    %v4748 = vld [vmem:[%s3 + $0xd0] sm:$0xff]
    %v4749 = vld [vmem:[%s3 + $0xd8] sm:$0xff]
    %v4750 = vld [vmem:[%s3 + $0xe0] sm:$0xff]
    %v4751 = vld [vmem:[%s3 + $0xe8] sm:$0xff]
    %v4752 = vld [vmem:[%s3 + $0xf0] sm:$0xff]
    %v4753 = vld [vmem:[%s3 + $0xf8] sm:$0xff]
    %v4754 = vld [vmem:[%s3 + $0x100] sm:$0xff]
    %v4755 = vld [vmem:[%s3 + $0x108] sm:$0xff]
    %v4756 = vld [vmem:[%s3 + $0x110] sm:$0xff]
    %v4757 = vld [vmem:[%s3 + $0x118] sm:$0xff]
    %v4758 = vld [vmem:[%s3 + $0x120] sm:$0xff]
    %v4759 = vld [vmem:[%s3 + $0x128] sm:$0xff]
    %v4760 = vld [vmem:[%s3 + $0x130] sm:$0xff]
    %v4761 = vld [vmem:[%s3 + $0x138] sm:$0xff]
    %v4762 = vld [vmem:[%s3 + $0x140] sm:$0xff]
    %v4763 = vld [vmem:[%s3 + $0x148] sm:$0xff]
    %v4764 = vld [vmem:[%s3 + $0x150] sm:$0xff]
    %v4765 = vld [vmem:[%s3 + $0x158] sm:$0xff]
    %v4766 = vld [vmem:[%s3 + $0x160] sm:$0xff]
    %v4767 = vld [vmem:[%s3 + $0x168] sm:$0xff]
    %v4768 = vld [vmem:[%s3 + $0x170] sm:$0xff]
    %v4769 = vld [vmem:[%s3 + $0x178] sm:$0xff]
    %v4770 = vld [vmem:[%s3 + $0x180] sm:$0xff]
    %v4771 = vld [vmem:[%s3 + $0x188] sm:$0xff]
    %v4772 = vld [vmem:[%s3 + $0x190] sm:$0xff]
    %v4773 = vld [vmem:[%s3 + $0x198] sm:$0xff]
    %v4774 = vld [vmem:[%s3 + $0x1a0] sm:$0xff]
    %v4775 = vld [vmem:[%s3 + $0x1a8] sm:$0xff]
    %v4776 = vld [vmem:[%s3 + $0x1b0] sm:$0xff]
    %v4777 = vld [vmem:[%s3 + $0x1b8] sm:$0xff]
    %v4778 = vld [vmem:[%s3 + $0x1c0] sm:$0xff]
    %v4779 = vld [vmem:[%s3 + $0x1c8] sm:$0xff]
    %v4780 = vld [vmem:[%s3 + $0x1d0] sm:$0xff]
    %v4781 = vld [vmem:[%s3 + $0x1d8] sm:$0xff]
    %v4782 = vld [vmem:[%s3 + $0x1e0] sm:$0xff]
    %v4783 = vld [vmem:[%s3 + $0x1e8] sm:$0xff]
    %v4784 = vld [vmem:[%s3 + $0x1f0] sm:$0xff]
    %v4785 = vld [vmem:[%s3 + $0x1f8] sm:$0xff]
    %v4786 = vld [vmem:[%s3 + $0x200] sm:$0xff]
    %v4787 = vld [vmem:[%s3 + $0x208] sm:$0xff]
    %v4788 = vld [vmem:[%s3 + $0x210] sm:$0xff]
    %v4789 = vld [vmem:[%s3 + $0x218] sm:$0xff]
    %v4790 = vld [vmem:[%s3 + $0x220] sm:$0xff]
    %v4791 = vld [vmem:[%s3 + $0x228] sm:$0xff]
    %v4792 = vld [vmem:[%s3 + $0x230] sm:$0xff]
    %v4793 = vld [vmem:[%s3 + $0x238] sm:$0xff]
    %v4794 = vld [vmem:[%s3 + $0x240] sm:$0xff]
    %v4795 = vld [vmem:[%s3 + $0x248] sm:$0xff]
    %v4796 = vld [vmem:[%s3 + $0x250] sm:$0xff]
    %v4797 = vld [vmem:[%s3 + $0x258] sm:$0xff]
    %v4798 = vld [vmem:[%s3 + $0x260] sm:$0xff]
    %v4799 = vld [vmem:[%s3 + $0x268] sm:$0xff]
    %v4800 = vld [vmem:[%s3 + $0x270] sm:$0xff]
    %v4801 = vld [vmem:[%s3 + $0x278] sm:$0xff]
    %v4802 = vld [vmem:[%s3 + $0x280] sm:$0xff]
    %v4803 = vld [vmem:[%s3 + $0x288] sm:$0xff]
    %v4804 = vld [vmem:[%s3 + $0x290] sm:$0xff]
    %v4805 = vld [vmem:[%s3 + $0x298] sm:$0xff]
    %v4806 = vld [vmem:[%s3 + $0x2a0] sm:$0xff]
    %v4807 = vld [vmem:[%s3 + $0x2a8] sm:$0xff]
    %v4808 = vld [vmem:[%s3 + $0x2b0] sm:$0xff]
    %v4809 = vld [vmem:[%s3 + $0x2b8] sm:$0xff]
    %v4810 = vld [vmem:[%s3 + $0x2c0] sm:$0xff]
    %v4811 = vld [vmem:[%s3 + $0x2c8] sm:$0xff]
    %v4812 = vld [vmem:[%s3 + $0x2d0] sm:$0xff]
    %v4813 = vld [vmem:[%s3 + $0x2d8] sm:$0xff]
    %v4814 = vld [vmem:[%s3 + $0x2e0] sm:$0xff]
    %v4815 = vld [vmem:[%s3 + $0x2e8] sm:$0xff]
    %v4816 = vld [vmem:[%s3 + $0x2f0] sm:$0xff]
    %v4817 = vld [vmem:[%s3 + $0x2f8] sm:$0xff]
    %v4818 = vld [vmem:[%s3 + $0x300] sm:$0xff]
    %v4819 = vld [vmem:[%s3 + $0x308] sm:$0xff]
    %v4820 = vld [vmem:[%s3 + $0x310] sm:$0xff]
    %v4821 = vld [vmem:[%s3 + $0x318] sm:$0xff]
    %v4822 = vld [vmem:[%s3 + $0x320] sm:$0xff]
    %v4823 = vld [vmem:[%s3 + $0x328] sm:$0xff]
    %v4824 = vld [vmem:[%s3 + $0x330] sm:$0xff]
    %v4825 = vld [vmem:[%s3 + $0x338] sm:$0xff]
    %v4826 = vld [vmem:[%s3 + $0x340] sm:$0xff]
    %v4827 = vld [vmem:[%s3 + $0x348] sm:$0xff]
    %v4828 = vld [vmem:[%s3 + $0x350] sm:$0xff]
    %v4829 = vld [vmem:[%s3 + $0x358] sm:$0xff]
    %v4830 = vld [vmem:[%s3 + $0x360] sm:$0xff]
    %v4831 = vld [vmem:[%s3 + $0x368] sm:$0xff]
    %v4832 = vld [vmem:[%s3 + $0x370] sm:$0xff]
    %v4833 = vld [vmem:[%s3 + $0x378] sm:$0xff]
    %v4834 = vld [vmem:[%s3 + $0x380] sm:$0xff]
    %v4835 = vld [vmem:[%s3 + $0x388] sm:$0xff]
    %v4836 = vld [vmem:[%s3 + $0x390] sm:$0xff]
    %v4837 = vld [vmem:[%s3 + $0x398] sm:$0xff]
    %v4838 = vld [vmem:[%s3 + $0x3a0] sm:$0xff]
    %v4839 = vld [vmem:[%s3 + $0x3a8] sm:$0xff]
    %v4840 = vld [vmem:[%s3 + $0x3b0] sm:$0xff]
    %v4841 = vld [vmem:[%s3 + $0x3b8] sm:$0xff]
    %v4842 = vld [vmem:[%s3 + $0x3c0] sm:$0xff]
    %v4843 = vld [vmem:[%s3 + $0x3c8] sm:$0xff]
    %v4844 = vld [vmem:[%s3 + $0x3d0] sm:$0xff]
    %v4845 = vld [vmem:[%s3 + $0x3d8] sm:$0xff]
    %v4846 = vld [vmem:[%s3 + $0x3e0] sm:$0xff]
    %v4847 = vld [vmem:[%s3 + $0x3e8] sm:$0xff]
    %v4848 = vld [vmem:[%s3 + $0x3f0] sm:$0xff]
    %v4849 = vld [vmem:[%s3 + $0x3f8] sm:$0xff]
    %v4850 = vld [vmem:[#allocation8] sm:$0x3]
    %v4852 = vlaneseq
    %v4853 = vshrl.u32 %v4852, 7
    %v4854 = vsub.s32 0, %v4853
    %v4855 = vrot.slane %v4850, %v4854
    %v4856 = vlaneseq
    %v4857 = vshrl.u32 %v4856, 7
    %v4858 = vsub.s32 1, %v4857
    %v4859 = vrot.slane %v4850, %v4858
    %4862 = vmatprep.subr.mxu0 %v4723
    %4863 = vmatpush1.msra.mxu0 %v4722
    %4864 = vmatprep.subr.mxu0 %v4725
    %4865 = vmatpush1.msra.mxu0 %v4724
    %4866 = vmatprep.subr.mxu0 %v4727
    %4867 = vmatpush1.msra.mxu0 %v4726
    %4868 = vmatprep.subr.mxu0 %v4729
    %4869 = vmatpush1.msra.mxu0 %v4728
    %4870 = vmatprep.subr.mxu0 %v4731
    %4871 = vmatpush1.msra.mxu0 %v4730
    %4872 = vmatprep.subr.mxu0 %v4733
    %4873 = vmatpush1.msra.mxu0 %v4732
    %4874 = vmatprep.subr.mxu0 %v4735
    %4875 = vmatpush1.msra.mxu0 %v4734
    %4876 = vmatprep.subr.mxu0 %v4737
    %4877 = vmatpush1.msra.mxu0 %v4736
    %4878 = vmatprep.subr.mxu0 %v4739
    %4879 = vmatpush1.msra.mxu0 %v4738
    %4880 = vmatprep.subr.mxu0 %v4741
    %4881 = vmatpush1.msra.mxu0 %v4740
    %4882 = vmatprep.subr.mxu0 %v4743
    %4883 = vmatpush1.msra.mxu0 %v4742
    %4884 = vmatprep.subr.mxu0 %v4745
    %4885 = vmatpush1.msra.mxu0 %v4744
    %4886 = vmatprep.subr.mxu0 %v4747
    %4887 = vmatpush1.msra.mxu0 %v4746
    %4888 = vmatprep.subr.mxu0 %v4749
    %4889 = vmatpush1.msra.mxu0 %v4748
    %4890 = vmatprep.subr.mxu0 %v4751
    %4891 = vmatpush1.msra.mxu0 %v4750
    %4892 = vmatprep.subr.mxu0 %v4753
    %4893 = vmatpush1.msra.mxu0 %v4752
    %4894 = vmatprep.subr.mxu0 %v4755
    %4895 = vmatpush1.msra.mxu0 %v4754
    %4896 = vmatprep.subr.mxu0 %v4757
    %4897 = vmatpush1.msra.mxu0 %v4756
    %4898 = vmatprep.subr.mxu0 %v4759
    %4899 = vmatpush1.msra.mxu0 %v4758
    %4900 = vmatprep.subr.mxu0 %v4761
    %4901 = vmatpush1.msra.mxu0 %v4760
    %4902 = vmatprep.subr.mxu0 %v4763
    %4903 = vmatpush1.msra.mxu0 %v4762
    %4904 = vmatprep.subr.mxu0 %v4765
    %4905 = vmatpush1.msra.mxu0 %v4764
    %4906 = vmatprep.subr.mxu0 %v4767
    %4907 = vmatpush1.msra.mxu0 %v4766
    %4908 = vmatprep.subr.mxu0 %v4769
    %4909 = vmatpush1.msra.mxu0 %v4768
    %4910 = vmatprep.subr.mxu0 %v4771
    %4911 = vmatpush1.msra.mxu0 %v4770
    %4912 = vmatprep.subr.mxu0 %v4773
    %4913 = vmatpush1.msra.mxu0 %v4772
    %4914 = vmatprep.subr.mxu0 %v4775
    %4915 = vmatpush1.msra.mxu0 %v4774
    %4916 = vmatprep.subr.mxu0 %v4777
    %4917 = vmatpush1.msra.mxu0 %v4776
    %4918 = vmatprep.subr.mxu0 %v4779
    %4919 = vmatpush1.msra.mxu0 %v4778
    %4920 = vmatprep.subr.mxu0 %v4781
    %4921 = vmatpush1.msra.mxu0 %v4780
    %4922 = vmatprep.subr.mxu0 %v4783
    %4923 = vmatpush1.msra.mxu0 %v4782
    %4924 = vmatprep.subr.mxu0 %v4785
    %4925 = vmatpush1.msra.mxu0 %v4784
    %4926 = vmatprep.mubr.f32.mxu0 %v4595
    %4927 = vmatmul.mubr.f32.gmra.mrb[0].mxu0 %v4594
    %v4928 = vpop.f32.mrb[0].mxu0
    %v4929 = vadd.f32 %v4855, %v4928
    %v4930 = vpop.f32.mrb[0].mxu0
    %v4931 = vadd.f32 %v4859, %v4930
    %4932 = vmatprep.mubr.f32.mxu0 %v4599
    %4933 = vmatmul.mubr.f32.gmra.mrb[0].mxu0 %v4598
    %v4934 = vpop.f32.mrb[0].mxu0
    %v4935 = vadd.f32 %v4855, %v4934
    %v4936 = vpop.f32.mrb[0].mxu0
    %v4937 = vadd.f32 %v4859, %v4936
    %4938 = vmatprep.mubr.f32.mxu0 %v4603
    %4939 = vmatmul.mubr.f32.gmra.mrb[0].mxu0 %v4602
    %v4940 = vpop.f32.mrb[0].mxu0
    %v4941 = vadd.f32 %v4855, %v4940
    %v4942 = vpop.f32.mrb[0].mxu0
    %v4943 = vadd.f32 %v4859, %v4942
    %4944 = vmatprep.mubr.f32.mxu0 %v4607
    %4945 = vmatmul.mubr.f32.gmra.mrb[0].mxu0 %v4606
    %v4946 = vpop.f32.mrb[0].mxu0
    %v4947 = vadd.f32 %v4855, %v4946
    %v4948 = vpop.f32.mrb[0].mxu0
    %v4949 = vadd.f32 %v4859, %v4948
    %4950 = vmatprep.mubr.f32.mxu0 %v4611
    %4951 = vmatmul.mubr.f32.gmra.mrb[0].mxu0 %v4610
    %v4952 = vpop.f32.mrb[0].mxu0
    %v4953 = vadd.f32 %v4855, %v4952
    %v4954 = vpop.f32.mrb[0].mxu0
    %v4955 = vadd.f32 %v4859, %v4954
    %4956 = vmatprep.mubr.f32.mxu0 %v4615
    %4957 = vmatmul.mubr.f32.gmra.mrb[0].mxu0 %v4614
    %v4958 = vpop.f32.mrb[0].mxu0
    %v4959 = vadd.f32 %v4855, %v4958
    %v4960 = vpop.f32.mrb[0].mxu0
    %v4961 = vadd.f32 %v4859, %v4960
    %4962 = vmatprep.mubr.f32.mxu0 %v4619
    %4963 = vmatmul.mubr.f32.gmra.mrb[0].mxu0 %v4618
    %v4964 = vpop.f32.mrb[0].mxu0
    %v4965 = vadd.f32 %v4855, %v4964
    %v4966 = vpop.f32.mrb[0].mxu0
    %v4967 = vadd.f32 %v4859, %v4966
    %4968 = vmatprep.mubr.f32.mxu0 %v4623
    %4969 = vmatmul.mubr.f32.gmra.mrb[0].mxu0 %v4622
    %v4970 = vpop.f32.mrb[0].mxu0
    %v4971 = vadd.f32 %v4855, %v4970
    %v4972 = vpop.f32.mrb[0].mxu0
    %v4973 = vadd.f32 %v4859, %v4972
    %4974 = vmatprep.mubr.f32.mxu0 %v4627
    %4975 = vmatmul.mubr.f32.gmra.mrb[0].mxu0 %v4626
    %v4976 = vpop.f32.mrb[0].mxu0
    %v4977 = vadd.f32 %v4855, %v4976
    %v4978 = vpop.f32.mrb[0].mxu0
    %v4979 = vadd.f32 %v4859, %v4978
    %4980 = vmatprep.mubr.f32.mxu0 %v4631
    %4981 = vmatmul.mubr.f32.gmra.mrb[0].mxu0 %v4630
    %v4982 = vpop.f32.mrb[0].mxu0
    %v4983 = vadd.f32 %v4855, %v4982
    %v4984 = vpop.f32.mrb[0].mxu0
    %v4985 = vadd.f32 %v4859, %v4984
    %4986 = vmatprep.mubr.f32.mxu0 %v4635
    %4987 = vmatmul.mubr.f32.gmra.mrb[0].mxu0 %v4634
    %v4988 = vpop.f32.mrb[0].mxu0
    %v4989 = vadd.f32 %v4855, %v4988
    %v4990 = vpop.f32.mrb[0].mxu0
    %v4991 = vadd.f32 %v4859, %v4990
    %4992 = vmatprep.mubr.f32.mxu0 %v4639
    %4993 = vmatmul.mubr.f32.gmra.mrb[0].mxu0 %v4638
    %v4994 = vpop.f32.mrb[0].mxu0
    %v4995 = vadd.f32 %v4855, %v4994
    %v4996 = vpop.f32.mrb[0].mxu0
    %v4997 = vadd.f32 %v4859, %v4996
    %4998 = vmatprep.mubr.f32.mxu0 %v4643
    %4999 = vmatmul.mubr.f32.gmra.mrb[0].mxu0 %v4642
    %v5000 = vpop.f32.mrb[0].mxu0
    %v5001 = vadd.f32 %v4855, %v5000
    %v5002 = vpop.f32.mrb[0].mxu0
    %v5003 = vadd.f32 %v4859, %v5002
    %5004 = vmatprep.mubr.f32.mxu0 %v4647
    %5005 = vmatmul.mubr.f32.gmra.mrb[0].mxu0 %v4646
    %v5006 = vpop.f32.mrb[0].mxu0
    %v5007 = vadd.f32 %v4855, %v5006
    %v5008 = vpop.f32.mrb[0].mxu0
    %v5009 = vadd.f32 %v4859, %v5008
    %5010 = vmatprep.mubr.f32.mxu0 %v4651
    %5011 = vmatmul.mubr.f32.gmra.mrb[0].mxu0 %v4650
    %v5012 = vpop.f32.mrb[0].mxu0
    %v5013 = vadd.f32 %v4855, %v5012
    %v5014 = vpop.f32.mrb[0].mxu0
    %v5015 = vadd.f32 %v4859, %v5014
    %5016 = vmatprep.mubr.f32.mxu0 %v4655
    %5017 = vmatmul.mubr.f32.gmra.mrb[0].mxu0 %v4654
    %v5018 = vpop.f32.mrb[0].mxu0
    %v5019 = vadd.f32 %v4855, %v5018
    %v5020 = vpop.f32.mrb[0].mxu0
    %v5021 = vadd.f32 %v4859, %v5020
    %5022 = vmatprep.mubr.f32.mxu0 %v4659
    %5023 = vmatmul.mubr.f32.gmra.mrb[0].mxu0 %v4658
    %v5024 = vpop.f32.mrb[0].mxu0
    %v5025 = vadd.f32 %v4855, %v5024
    %v5026 = vpop.f32.mrb[0].mxu0
    %v5027 = vadd.f32 %v4859, %v5026
    %5028 = vmatprep.mubr.f32.mxu0 %v4663
    %5029 = vmatmul.mubr.f32.gmra.mrb[0].mxu0 %v4662
    %v5030 = vpop.f32.mrb[0].mxu0
    %v5031 = vadd.f32 %v4855, %v5030
    %v5032 = vpop.f32.mrb[0].mxu0
    %v5033 = vadd.f32 %v4859, %v5032
    %5034 = vmatprep.mubr.f32.mxu0 %v4667
    %5035 = vmatmul.mubr.f32.gmra.mrb[0].mxu0 %v4666
    %v5036 = vpop.f32.mrb[0].mxu0
    %v5037 = vadd.f32 %v4855, %v5036
    %v5038 = vpop.f32.mrb[0].mxu0
    %v5039 = vadd.f32 %v4859, %v5038
    %5040 = vmatprep.mubr.f32.mxu0 %v4671
    %5041 = vmatmul.mubr.f32.gmra.mrb[0].mxu0 %v4670
    %v5042 = vpop.f32.mrb[0].mxu0
    %v5043 = vadd.f32 %v4855, %v5042
    %v5044 = vpop.f32.mrb[0].mxu0
    %v5045 = vadd.f32 %v4859, %v5044
    %5046 = vmatprep.mubr.f32.mxu0 %v4675
    %5047 = vmatmul.mubr.f32.gmra.mrb[0].mxu0 %v4674
    %v5048 = vpop.f32.mrb[0].mxu0
    %v5049 = vadd.f32 %v4855, %v5048
    %v5050 = vpop.f32.mrb[0].mxu0
    %v5051 = vadd.f32 %v4859, %v5050
    %5052 = vmatprep.mubr.f32.mxu0 %v4679
    %5053 = vmatmul.mubr.f32.gmra.mrb[0].mxu0 %v4678
    %v5054 = vpop.f32.mrb[0].mxu0
    %v5055 = vadd.f32 %v4855, %v5054
    %v5056 = vpop.f32.mrb[0].mxu0
    %v5057 = vadd.f32 %v4859, %v5056
    %5058 = vmatprep.mubr.f32.mxu0 %v4683
    %5059 = vmatmul.mubr.f32.gmra.mrb[0].mxu0 %v4682
    %v5060 = vpop.f32.mrb[0].mxu0
    %v5061 = vadd.f32 %v4855, %v5060
    %v5062 = vpop.f32.mrb[0].mxu0
    %v5063 = vadd.f32 %v4859, %v5062
    %5064 = vmatprep.mubr.f32.mxu0 %v4687
    %5065 = vmatmul.mubr.f32.gmra.mrb[0].mxu0 %v4686
    %v5066 = vpop.f32.mrb[0].mxu0
    %v5067 = vadd.f32 %v4855, %v5066
    %v5068 = vpop.f32.mrb[0].mxu0
    %v5069 = vadd.f32 %v4859, %v5068
    %5070 = vmatprep.mubr.f32.mxu0 %v4691
    %5071 = vmatmul.mubr.f32.gmra.mrb[0].mxu0 %v4690
    %v5072 = vpop.f32.mrb[0].mxu0
    %v5073 = vadd.f32 %v4855, %v5072
    %v5074 = vpop.f32.mrb[0].mxu0
    %v5075 = vadd.f32 %v4859, %v5074
    %5076 = vmatprep.mubr.f32.mxu0 %v4695
    %5077 = vmatmul.mubr.f32.gmra.mrb[0].mxu0 %v4694
    %v5078 = vpop.f32.mrb[0].mxu0
    %v5079 = vadd.f32 %v4855, %v5078
    %v5080 = vpop.f32.mrb[0].mxu0
    %v5081 = vadd.f32 %v4859, %v5080
    %5082 = vmatprep.mubr.f32.mxu0 %v4699
    %5083 = vmatmul.mubr.f32.gmra.mrb[0].mxu0 %v4698
    %v5084 = vpop.f32.mrb[0].mxu0
    %v5085 = vadd.f32 %v4855, %v5084
    %v5086 = vpop.f32.mrb[0].mxu0
    %v5087 = vadd.f32 %v4859, %v5086
    %5088 = vmatprep.mubr.f32.mxu0 %v4703
    %5089 = vmatmul.mubr.f32.gmra.mrb[0].mxu0 %v4702
    %v5090 = vpop.f32.mrb[0].mxu0
    %v5091 = vadd.f32 %v4855, %v5090
    %v5092 = vpop.f32.mrb[0].mxu0
    %v5093 = vadd.f32 %v4859, %v5092
    %5094 = vmatprep.mubr.f32.mxu0 %v4707
    %5095 = vmatmul.mubr.f32.gmra.mrb[0].mxu0 %v4706
    %v5096 = vpop.f32.mrb[0].mxu0
    %v5097 = vadd.f32 %v4855, %v5096
    %v5098 = vpop.f32.mrb[0].mxu0
    %v5099 = vadd.f32 %v4859, %v5098
    %5100 = vmatprep.mubr.f32.mxu0 %v4711
    %5101 = vmatmul.mubr.f32.gmra.mrb[0].mxu0 %v4710
    %v5102 = vpop.f32.mrb[0].mxu0
    %v5103 = vadd.f32 %v4855, %v5102
    %v5104 = vpop.f32.mrb[0].mxu0
    %v5105 = vadd.f32 %v4859, %v5104
    %5106 = vmatprep.mubr.f32.mxu0 %v4715
    %5107 = vmatmul.mubr.f32.gmra.mrb[0].mxu0 %v4714
    %v5108 = vpop.f32.mrb[0].mxu0
    %v5109 = vadd.f32 %v4855, %v5108
    %v5110 = vpop.f32.mrb[0].mxu0
    %v5111 = vadd.f32 %v4859, %v5110
    %5112 = vmatprep.mubr.f32.mxu0 %v4719
    %5113 = vmatmul.mubr.f32.gmra.mrb[0].mxu0 %v4718
    %v5114 = vpop.f32.mrb[0].mxu0
    %v5115 = vadd.f32 %v4855, %v5114
    %v5116 = vpop.f32.mrb[0].mxu0
    %v5117 = vadd.f32 %v4859, %v5116
    %5118 = vdwg.mxu0
    %5119 = vmatprep.subr.mxu0 %v4787
    %5120 = vmatpush1.msra.mxu0 %v4786
    %5121 = vmatprep.subr.mxu0 %v4789
    %5122 = vmatpush1.msra.mxu0 %v4788
    %5123 = vmatprep.subr.mxu0 %v4791
    %5124 = vmatpush1.msra.mxu0 %v4790
    %5125 = vmatprep.subr.mxu0 %v4793
    %5126 = vmatpush1.msra.mxu0 %v4792
    %5127 = vmatprep.subr.mxu0 %v4795
    %5128 = vmatpush1.msra.mxu0 %v4794
    %5129 = vmatprep.subr.mxu0 %v4797
    %5130 = vmatpush1.msra.mxu0 %v4796
    %5131 = vmatprep.subr.mxu0 %v4799
    %5132 = vmatpush1.msra.mxu0 %v4798
    %5133 = vmatprep.subr.mxu0 %v4801
    %5134 = vmatpush1.msra.mxu0 %v4800
    %5135 = vmatprep.subr.mxu0 %v4803
    %5136 = vmatpush1.msra.mxu0 %v4802
    %5137 = vmatprep.subr.mxu0 %v4805
    %5138 = vmatpush1.msra.mxu0 %v4804
    %5139 = vmatprep.subr.mxu0 %v4807
    %5140 = vmatpush1.msra.mxu0 %v4806
    %5141 = vmatprep.subr.mxu0 %v4809
    %5142 = vmatpush1.msra.mxu0 %v4808
    %5143 = vmatprep.subr.mxu0 %v4811
    %5144 = vmatpush1.msra.mxu0 %v4810
    %5145 = vmatprep.subr.mxu0 %v4813
    %5146 = vmatpush1.msra.mxu0 %v4812
    %5147 = vmatprep.subr.mxu0 %v4815
    %5148 = vmatpush1.msra.mxu0 %v4814
    %5149 = vmatprep.subr.mxu0 %v4817
    %5150 = vmatpush1.msra.mxu0 %v4816
    %5151 = vmatprep.subr.mxu0 %v4819
    %5152 = vmatpush1.msra.mxu0 %v4818
    %5153 = vmatprep.subr.mxu0 %v4821
    %5154 = vmatpush1.msra.mxu0 %v4820
    %5155 = vmatprep.subr.mxu0 %v4823
    %5156 = vmatpush1.msra.mxu0 %v4822
    %5157 = vmatprep.subr.mxu0 %v4825
    %5158 = vmatpush1.msra.mxu0 %v4824
    %5159 = vmatprep.subr.mxu0 %v4827
    %5160 = vmatpush1.msra.mxu0 %v4826
    %5161 = vmatprep.subr.mxu0 %v4829
    %5162 = vmatpush1.msra.mxu0 %v4828
    %5163 = vmatprep.subr.mxu0 %v4831
    %5164 = vmatpush1.msra.mxu0 %v4830
    %5165 = vmatprep.subr.mxu0 %v4833
    %5166 = vmatpush1.msra.mxu0 %v4832
    %5167 = vmatprep.subr.mxu0 %v4835
    %5168 = vmatpush1.msra.mxu0 %v4834
    %5169 = vmatprep.subr.mxu0 %v4837
    %5170 = vmatpush1.msra.mxu0 %v4836
    %5171 = vmatprep.subr.mxu0 %v4839
    %5172 = vmatpush1.msra.mxu0 %v4838
    %5173 = vmatprep.subr.mxu0 %v4841
    %5174 = vmatpush1.msra.mxu0 %v4840
    %5175 = vmatprep.subr.mxu0 %v4843
    %5176 = vmatpush1.msra.mxu0 %v4842
    %5177 = vmatprep.subr.mxu0 %v4845
    %5178 = vmatpush1.msra.mxu0 %v4844
    %5179 = vmatprep.subr.mxu0 %v4847
    %5180 = vmatpush1.msra.mxu0 %v4846
    %5181 = vmatprep.subr.mxu0 %v4849
    %5182 = vmatpush1.msra.mxu0 %v4848
    %5183 = vmatprep.mubr.f32.mxu0 %v4597
    %5184 = vmatmul.mubr.f32.gmra.mrb[0].mxu0 %v4596
    %v5185 = vpop.f32.mrb[0].mxu0
    %v5186 = vadd.f32 %v4929, %v5185
    %v5187 = vpop.f32.mrb[0].mxu0
    %v5188 = vadd.f32 %v4931, %v5187
    %5189 = vmatprep.mubr.f32.mxu0 %v4601
    %5190 = vmatmul.mubr.f32.gmra.mrb[0].mxu0 %v4600
    %v5191 = vpop.f32.mrb[0].mxu0
    %v5192 = vadd.f32 %v4935, %v5191
    %v5193 = vpop.f32.mrb[0].mxu0
    %v5194 = vadd.f32 %v4937, %v5193
    %5195 = vmatprep.mubr.f32.mxu0 %v4605
    %5196 = vmatmul.mubr.f32.gmra.mrb[0].mxu0 %v4604
    %v5197 = vpop.f32.mrb[0].mxu0
    %v5198 = vadd.f32 %v4941, %v5197
    %v5199 = vpop.f32.mrb[0].mxu0
    %v5200 = vadd.f32 %v4943, %v5199
    %5201 = vmatprep.mubr.f32.mxu0 %v4609
    %5202 = vmatmul.mubr.f32.gmra.mrb[0].mxu0 %v4608
    %v5203 = vpop.f32.mrb[0].mxu0
    %v5204 = vadd.f32 %v4947, %v5203
    %v5205 = vpop.f32.mrb[0].mxu0
    %v5206 = vadd.f32 %v4949, %v5205
    %5207 = vmatprep.mubr.f32.mxu0 %v4613
    %5208 = vmatmul.mubr.f32.gmra.mrb[0].mxu0 %v4612
    %v5209 = vpop.f32.mrb[0].mxu0
    %v5210 = vadd.f32 %v4953, %v5209
    %v5211 = vpop.f32.mrb[0].mxu0
    %v5212 = vadd.f32 %v4955, %v5211
    %5213 = vmatprep.mubr.f32.mxu0 %v4617
    %5214 = vmatmul.mubr.f32.gmra.mrb[0].mxu0 %v4616
    %v5215 = vpop.f32.mrb[0].mxu0
    %v5216 = vadd.f32 %v4959, %v5215
    %v5217 = vpop.f32.mrb[0].mxu0
    %v5218 = vadd.f32 %v4961, %v5217
    %5219 = vmatprep.mubr.f32.mxu0 %v4621
    %5220 = vmatmul.mubr.f32.gmra.mrb[0].mxu0 %v4620
    %v5221 = vpop.f32.mrb[0].mxu0
    %v5222 = vadd.f32 %v4965, %v5221
    %v5223 = vpop.f32.mrb[0].mxu0
    %v5224 = vadd.f32 %v4967, %v5223
    %5225 = vmatprep.mubr.f32.mxu0 %v4625
    %5226 = vmatmul.mubr.f32.gmra.mrb[0].mxu0 %v4624
    %v5227 = vpop.f32.mrb[0].mxu0
    %v5228 = vadd.f32 %v4971, %v5227
    %v5229 = vpop.f32.mrb[0].mxu0
    %v5230 = vadd.f32 %v4973, %v5229
    %5231 = vmatprep.mubr.f32.mxu0 %v4629
    %5232 = vmatmul.mubr.f32.gmra.mrb[0].mxu0 %v4628
    %v5233 = vpop.f32.mrb[0].mxu0
    %v5234 = vadd.f32 %v4977, %v5233
    %v5235 = vpop.f32.mrb[0].mxu0
    %v5236 = vadd.f32 %v4979, %v5235
    %5237 = vmatprep.mubr.f32.mxu0 %v4633
    %5238 = vmatmul.mubr.f32.gmra.mrb[0].mxu0 %v4632
    %v5239 = vpop.f32.mrb[0].mxu0
    %v5240 = vadd.f32 %v4983, %v5239
    %v5241 = vpop.f32.mrb[0].mxu0
    %v5242 = vadd.f32 %v4985, %v5241
    %5243 = vmatprep.mubr.f32.mxu0 %v4637
    %5244 = vmatmul.mubr.f32.gmra.mrb[0].mxu0 %v4636
    %v5245 = vpop.f32.mrb[0].mxu0
    %v5246 = vadd.f32 %v4989, %v5245
    %v5247 = vpop.f32.mrb[0].mxu0
    %v5248 = vadd.f32 %v4991, %v5247
    %5249 = vmatprep.mubr.f32.mxu0 %v4641
    %5250 = vmatmul.mubr.f32.gmra.mrb[0].mxu0 %v4640
    %v5251 = vpop.f32.mrb[0].mxu0
    %v5252 = vadd.f32 %v4995, %v5251
    %v5253 = vpop.f32.mrb[0].mxu0
    %v5254 = vadd.f32 %v4997, %v5253
    %5255 = vmatprep.mubr.f32.mxu0 %v4645
    %5256 = vmatmul.mubr.f32.gmra.mrb[0].mxu0 %v4644
    %v5257 = vpop.f32.mrb[0].mxu0
    %v5258 = vadd.f32 %v5001, %v5257
    %v5259 = vpop.f32.mrb[0].mxu0
    %v5260 = vadd.f32 %v5003, %v5259
    %5261 = vmatprep.mubr.f32.mxu0 %v4649
    %5262 = vmatmul.mubr.f32.gmra.mrb[0].mxu0 %v4648
    %v5263 = vpop.f32.mrb[0].mxu0
    %v5264 = vadd.f32 %v5007, %v5263
    %v5265 = vpop.f32.mrb[0].mxu0
    %v5266 = vadd.f32 %v5009, %v5265
    %5267 = vmatprep.mubr.f32.mxu0 %v4653
    %5268 = vmatmul.mubr.f32.gmra.mrb[0].mxu0 %v4652
    %v5269 = vpop.f32.mrb[0].mxu0
    %v5270 = vadd.f32 %v5013, %v5269
    %v5271 = vpop.f32.mrb[0].mxu0
    %v5272 = vadd.f32 %v5015, %v5271
    %5273 = vmatprep.mubr.f32.mxu0 %v4657
    %5274 = vmatmul.mubr.f32.gmra.mrb[0].mxu0 %v4656
    %v5275 = vpop.f32.mrb[0].mxu0
    %v5276 = vadd.f32 %v5019, %v5275
    %v5277 = vpop.f32.mrb[0].mxu0
    %v5278 = vadd.f32 %v5021, %v5277
    %5279 = vmatprep.mubr.f32.mxu0 %v4661
    %5280 = vmatmul.mubr.f32.gmra.mrb[0].mxu0 %v4660
    %v5281 = vpop.f32.mrb[0].mxu0
    %v5282 = vadd.f32 %v5025, %v5281
    %v5283 = vpop.f32.mrb[0].mxu0
    %v5284 = vadd.f32 %v5027, %v5283
    %5285 = vmatprep.mubr.f32.mxu0 %v4665
    %5286 = vmatmul.mubr.f32.gmra.mrb[0].mxu0 %v4664
    %v5287 = vpop.f32.mrb[0].mxu0
    %v5288 = vadd.f32 %v5031, %v5287
    %v5289 = vpop.f32.mrb[0].mxu0
    %v5290 = vadd.f32 %v5033, %v5289
    %5291 = vmatprep.mubr.f32.mxu0 %v4669
    %5292 = vmatmul.mubr.f32.gmra.mrb[0].mxu0 %v4668
    %v5293 = vpop.f32.mrb[0].mxu0
    %v5294 = vadd.f32 %v5037, %v5293
    %v5295 = vpop.f32.mrb[0].mxu0
    %v5296 = vadd.f32 %v5039, %v5295
    %5297 = vmatprep.mubr.f32.mxu0 %v4673
    %5298 = vmatmul.mubr.f32.gmra.mrb[0].mxu0 %v4672
    %v5299 = vpop.f32.mrb[0].mxu0
    %v5300 = vadd.f32 %v5043, %v5299
    %v5301 = vpop.f32.mrb[0].mxu0
    %v5302 = vadd.f32 %v5045, %v5301
    %5303 = vmatprep.mubr.f32.mxu0 %v4677
    %5304 = vmatmul.mubr.f32.gmra.mrb[0].mxu0 %v4676
    %v5305 = vpop.f32.mrb[0].mxu0
    %v5306 = vadd.f32 %v5049, %v5305
    %v5307 = vpop.f32.mrb[0].mxu0
    %v5308 = vadd.f32 %v5051, %v5307
    %5309 = vmatprep.mubr.f32.mxu0 %v4681
    %5310 = vmatmul.mubr.f32.gmra.mrb[0].mxu0 %v4680
    %v5311 = vpop.f32.mrb[0].mxu0
    %v5312 = vadd.f32 %v5055, %v5311
    %v5313 = vpop.f32.mrb[0].mxu0
    %v5314 = vadd.f32 %v5057, %v5313
    %5315 = vmatprep.mubr.f32.mxu0 %v4685
    %5316 = vmatmul.mubr.f32.gmra.mrb[0].mxu0 %v4684
    %v5317 = vpop.f32.mrb[0].mxu0
    %v5318 = vadd.f32 %v5061, %v5317
    %v5319 = vpop.f32.mrb[0].mxu0
    %v5320 = vadd.f32 %v5063, %v5319
    %5321 = vmatprep.mubr.f32.mxu0 %v4689
    %5322 = vmatmul.mubr.f32.gmra.mrb[0].mxu0 %v4688
    %v5323 = vpop.f32.mrb[0].mxu0
    %v5324 = vadd.f32 %v5067, %v5323
    %v5325 = vpop.f32.mrb[0].mxu0
    %v5326 = vadd.f32 %v5069, %v5325
    %5327 = vmatprep.mubr.f32.mxu0 %v4693
    %5328 = vmatmul.mubr.f32.gmra.mrb[0].mxu0 %v4692
    %v5329 = vpop.f32.mrb[0].mxu0
    %v5330 = vadd.f32 %v5073, %v5329
    %v5331 = vpop.f32.mrb[0].mxu0
    %v5332 = vadd.f32 %v5075, %v5331
    %5333 = vmatprep.mubr.f32.mxu0 %v4697
    %5334 = vmatmul.mubr.f32.gmra.mrb[0].mxu0 %v4696
    %v5335 = vpop.f32.mrb[0].mxu0
    %v5336 = vadd.f32 %v5079, %v5335
    %v5337 = vpop.f32.mrb[0].mxu0
    %v5338 = vadd.f32 %v5081, %v5337
    %5339 = vmatprep.mubr.f32.mxu0 %v4701
    %5340 = vmatmul.mubr.f32.gmra.mrb[0].mxu0 %v4700
    %v5341 = vpop.f32.mrb[0].mxu0
    %v5342 = vadd.f32 %v5085, %v5341
    %v5343 = vpop.f32.mrb[0].mxu0
    %v5344 = vadd.f32 %v5087, %v5343
    %5345 = vmatprep.mubr.f32.mxu0 %v4705
    %5346 = vmatmul.mubr.f32.gmra.mrb[0].mxu0 %v4704
    %v5347 = vpop.f32.mrb[0].mxu0
    %v5348 = vadd.f32 %v5091, %v5347
    %v5349 = vpop.f32.mrb[0].mxu0
    %v5350 = vadd.f32 %v5093, %v5349
    %5351 = vmatprep.mubr.f32.mxu0 %v4709
    %5352 = vmatmul.mubr.f32.gmra.mrb[0].mxu0 %v4708
    %v5353 = vpop.f32.mrb[0].mxu0
    %v5354 = vadd.f32 %v5097, %v5353
    %v5355 = vpop.f32.mrb[0].mxu0
    %v5356 = vadd.f32 %v5099, %v5355
    %5357 = vmatprep.mubr.f32.mxu0 %v4713
    %5358 = vmatmul.mubr.f32.gmra.mrb[0].mxu0 %v4712
    %v5359 = vpop.f32.mrb[0].mxu0
    %v5360 = vadd.f32 %v5103, %v5359
    %v5361 = vpop.f32.mrb[0].mxu0
    %v5362 = vadd.f32 %v5105, %v5361
    %5363 = vmatprep.mubr.f32.mxu0 %v4717
    %5364 = vmatmul.mubr.f32.gmra.mrb[0].mxu0 %v4716
    %v5365 = vpop.f32.mrb[0].mxu0
    %v5366 = vadd.f32 %v5109, %v5365
    %v5367 = vpop.f32.mrb[0].mxu0
    %v5368 = vadd.f32 %v5111, %v5367
    %5369 = vmatprep.mubr.f32.mxu0 %v4721
    %5370 = vmatmul.mubr.f32.gmra.mrb[0].mxu0 %v4720
    %v5371 = vpop.f32.mrb[0].mxu0
    %v5372 = vadd.f32 %v5115, %v5371
    %v5373 = vpop.f32.mrb[0].mxu0
    %v5374 = vadd.f32 %v5117, %v5373
    %5375 = vdwg.mxu0
    %v5376 = vmax.f32 %v5186, 0.0
    %v5377 = vmax.f32 %v5188, 0.0
    %v5378 = vmax.f32 %v5192, 0.0
    %v5379 = vmax.f32 %v5194, 0.0
    %v5380 = vmax.f32 %v5198, 0.0
    %v5381 = vmax.f32 %v5200, 0.0
    %v5382 = vmax.f32 %v5204, 0.0
    %v5383 = vmax.f32 %v5206, 0.0
    %v5384 = vmax.f32 %v5210, 0.0
    %v5385 = vmax.f32 %v5212, 0.0
    %v5386 = vmax.f32 %v5216, 0.0
    %v5387 = vmax.f32 %v5218, 0.0
    %v5388 = vmax.f32 %v5222, 0.0
    %v5389 = vmax.f32 %v5224, 0.0
    %v5390 = vmax.f32 %v5228, 0.0
    %v5391 = vmax.f32 %v5230, 0.0
    %v5392 = vmax.f32 %v5234, 0.0
    %v5393 = vmax.f32 %v5236, 0.0
    %v5394 = vmax.f32 %v5240, 0.0
    %v5395 = vmax.f32 %v5242, 0.0
    %v5396 = vmax.f32 %v5246, 0.0
    %v5397 = vmax.f32 %v5248, 0.0
    %v5398 = vmax.f32 %v5252, 0.0
    %v5399 = vmax.f32 %v5254, 0.0
    %v5400 = vmax.f32 %v5258, 0.0
    %v5401 = vmax.f32 %v5260, 0.0
    %v5402 = vmax.f32 %v5264, 0.0
    %v5403 = vmax.f32 %v5266, 0.0
    %v5404 = vmax.f32 %v5270, 0.0
    %v5405 = vmax.f32 %v5272, 0.0
    %v5406 = vmax.f32 %v5276, 0.0
    %v5407 = vmax.f32 %v5278, 0.0
    %v5408 = vmax.f32 %v5282, 0.0
    %v5409 = vmax.f32 %v5284, 0.0
    %v5410 = vmax.f32 %v5288, 0.0
    %v5411 = vmax.f32 %v5290, 0.0
    %v5412 = vmax.f32 %v5294, 0.0
    %v5413 = vmax.f32 %v5296, 0.0
    %v5414 = vmax.f32 %v5300, 0.0
    %v5415 = vmax.f32 %v5302, 0.0
    %v5416 = vmax.f32 %v5306, 0.0
    %v5417 = vmax.f32 %v5308, 0.0
    %v5418 = vmax.f32 %v5312, 0.0
    %v5419 = vmax.f32 %v5314, 0.0
    %v5420 = vmax.f32 %v5318, 0.0
    %v5421 = vmax.f32 %v5320, 0.0
    %v5422 = vmax.f32 %v5324, 0.0
    %v5423 = vmax.f32 %v5326, 0.0
    %v5424 = vmax.f32 %v5330, 0.0
    %v5425 = vmax.f32 %v5332, 0.0
    %v5426 = vmax.f32 %v5336, 0.0
    %v5427 = vmax.f32 %v5338, 0.0
    %v5428 = vmax.f32 %v5342, 0.0
    %v5429 = vmax.f32 %v5344, 0.0
    %v5430 = vmax.f32 %v5348, 0.0
    %v5431 = vmax.f32 %v5350, 0.0
    %v5432 = vmax.f32 %v5354, 0.0
    %v5433 = vmax.f32 %v5356, 0.0
    %v5434 = vmax.f32 %v5360, 0.0
    %v5435 = vmax.f32 %v5362, 0.0
    %v5436 = vmax.f32 %v5366, 0.0
    %v5437 = vmax.f32 %v5368, 0.0
    %v5438 = vmax.f32 %v5372, 0.0
    %v5439 = vmax.f32 %v5374, 0.0
    %v5440 = vld [vmem:[#allocation9] sm:$0xff]
    %v5441 = vld [vmem:[#allocation9 + $0x8] sm:$0xff]
    %v5442 = vld [vmem:[#allocation9 + $0x10] sm:$0xff]
    %v5443 = vld [vmem:[#allocation9 + $0x18] sm:$0xff]
    %v5444 = vld [vmem:[#allocation9 + $0x20] sm:$0xff]
    %v5445 = vld [vmem:[#allocation9 + $0x28] sm:$0xff]
    %v5446 = vld [vmem:[#allocation9 + $0x30] sm:$0xff]
    %v5447 = vld [vmem:[#allocation9 + $0x38] sm:$0xff]
    %v5448 = vld [vmem:[#allocation9 + $0x40] sm:$0xff]
    %v5449 = vld [vmem:[#allocation9 + $0x48] sm:$0xff]
    %v5450 = vld [vmem:[#allocation9 + $0x50] sm:$0xff]
    %v5451 = vld [vmem:[#allocation9 + $0x58] sm:$0xff]
    %v5452 = vld [vmem:[#allocation9 + $0x60] sm:$0xff]
    %v5453 = vld [vmem:[#allocation9 + $0x68] sm:$0xff]
    %v5454 = vld [vmem:[#allocation9 + $0x70] sm:$0xff]
    %v5455 = vld [vmem:[#allocation9 + $0x78] sm:$0xff]
    %v5456 = vld [vmem:[#allocation9 + $0x80] sm:$0xff]
    %v5457 = vld [vmem:[#allocation9 + $0x88] sm:$0xff]
    %v5458 = vld [vmem:[#allocation9 + $0x90] sm:$0xff]
    %v5459 = vld [vmem:[#allocation9 + $0x98] sm:$0xff]
    %v5460 = vld [vmem:[#allocation9 + $0xa0] sm:$0xff]
    %v5461 = vld [vmem:[#allocation9 + $0xa8] sm:$0xff]
    %v5462 = vld [vmem:[#allocation9 + $0xb0] sm:$0xff]
    %v5463 = vld [vmem:[#allocation9 + $0xb8] sm:$0xff]
    %v5464 = vld [vmem:[#allocation9 + $0xc0] sm:$0xff]
    %v5465 = vld [vmem:[#allocation9 + $0xc8] sm:$0xff]
    %v5466 = vld [vmem:[#allocation9 + $0xd0] sm:$0xff]
    %v5467 = vld [vmem:[#allocation9 + $0xd8] sm:$0xff]
    %v5468 = vld [vmem:[#allocation9 + $0xe0] sm:$0xff]
    %v5469 = vld [vmem:[#allocation9 + $0xe8] sm:$0xff]
    %v5470 = vld [vmem:[#allocation9 + $0xf0] sm:$0xff]
    %v5471 = vld [vmem:[#allocation9 + $0xf8] sm:$0xff]
    %v5472 = vld [vmem:[#allocation9 + $0x100] sm:$0xff]
    %v5473 = vld [vmem:[#allocation9 + $0x108] sm:$0xff]
    %v5474 = vld [vmem:[#allocation9 + $0x110] sm:$0xff]
    %v5475 = vld [vmem:[#allocation9 + $0x118] sm:$0xff]
    %v5476 = vld [vmem:[#allocation9 + $0x120] sm:$0xff]
    %v5477 = vld [vmem:[#allocation9 + $0x128] sm:$0xff]
    %v5478 = vld [vmem:[#allocation9 + $0x130] sm:$0xff]
    %v5479 = vld [vmem:[#allocation9 + $0x138] sm:$0xff]
    %v5480 = vld [vmem:[#allocation9 + $0x140] sm:$0xff]
    %v5481 = vld [vmem:[#allocation9 + $0x148] sm:$0xff]
    %v5482 = vld [vmem:[#allocation9 + $0x150] sm:$0xff]
    %v5483 = vld [vmem:[#allocation9 + $0x158] sm:$0xff]
    %v5484 = vld [vmem:[#allocation9 + $0x160] sm:$0xff]
    %v5485 = vld [vmem:[#allocation9 + $0x168] sm:$0xff]
    %v5486 = vld [vmem:[#allocation9 + $0x170] sm:$0xff]
    %v5487 = vld [vmem:[#allocation9 + $0x178] sm:$0xff]
    %v5488 = vld [vmem:[#allocation9 + $0x180] sm:$0xff]
    %v5489 = vld [vmem:[#allocation9 + $0x188] sm:$0xff]
    %v5490 = vld [vmem:[#allocation9 + $0x190] sm:$0xff]
    %v5491 = vld [vmem:[#allocation9 + $0x198] sm:$0xff]
    %v5492 = vld [vmem:[#allocation9 + $0x1a0] sm:$0xff]
    %v5493 = vld [vmem:[#allocation9 + $0x1a8] sm:$0xff]
    %v5494 = vld [vmem:[#allocation9 + $0x1b0] sm:$0xff]
    %v5495 = vld [vmem:[#allocation9 + $0x1b8] sm:$0xff]
    %v5496 = vld [vmem:[#allocation9 + $0x1c0] sm:$0xff]
    %v5497 = vld [vmem:[#allocation9 + $0x1c8] sm:$0xff]
    %v5498 = vld [vmem:[#allocation9 + $0x1d0] sm:$0xff]
    %v5499 = vld [vmem:[#allocation9 + $0x1d8] sm:$0xff]
    %v5500 = vld [vmem:[#allocation9 + $0x1e0] sm:$0xff]
    %v5501 = vld [vmem:[#allocation9 + $0x1e8] sm:$0xff]
    %v5502 = vld [vmem:[#allocation9 + $0x1f0] sm:$0xff]
    %v5503 = vld [vmem:[#allocation9 + $0x1f8] sm:$0xff]
    %v5504 = vld [vmem:[#allocation11] sm:$0x3]
    %v5506 = vlaneseq
    %v5507 = vshrl.u32 %v5506, 7
    %v5508 = vsub.s32 0, %v5507
    %v5509 = vrot.slane %v5504, %v5508
    %v5510 = vlaneseq
    %v5511 = vshrl.u32 %v5510, 7
    %v5512 = vsub.s32 1, %v5511
    %v5513 = vrot.slane %v5504, %v5512
    %5516 = vmatprep.subr.mxu0 %v5441
    %5517 = vmatpush1.msra.mxu0 %v5440
    %5518 = vmatprep.subr.mxu0 %v5443
    %5519 = vmatpush1.msra.mxu0 %v5442
    %5520 = vmatprep.subr.mxu0 %v5445
    %5521 = vmatpush1.msra.mxu0 %v5444
    %5522 = vmatprep.subr.mxu0 %v5447
    %5523 = vmatpush1.msra.mxu0 %v5446
    %5524 = vmatprep.subr.mxu0 %v5449
    %5525 = vmatpush1.msra.mxu0 %v5448
    %5526 = vmatprep.subr.mxu0 %v5451
    %5527 = vmatpush1.msra.mxu0 %v5450
    %5528 = vmatprep.subr.mxu0 %v5453
    %5529 = vmatpush1.msra.mxu0 %v5452
    %5530 = vmatprep.subr.mxu0 %v5455
    %5531 = vmatpush1.msra.mxu0 %v5454
    %5532 = vmatprep.subr.mxu0 %v5457
    %5533 = vmatpush1.msra.mxu0 %v5456
    %5534 = vmatprep.subr.mxu0 %v5459
    %5535 = vmatpush1.msra.mxu0 %v5458
    %5536 = vmatprep.subr.mxu0 %v5461
    %5537 = vmatpush1.msra.mxu0 %v5460
    %5538 = vmatprep.subr.mxu0 %v5463
    %5539 = vmatpush1.msra.mxu0 %v5462
    %5540 = vmatprep.subr.mxu0 %v5465
    %5541 = vmatpush1.msra.mxu0 %v5464
    %5542 = vmatprep.subr.mxu0 %v5467
    %5543 = vmatpush1.msra.mxu0 %v5466
    %5544 = vmatprep.subr.mxu0 %v5469
    %5545 = vmatpush1.msra.mxu0 %v5468
    %5546 = vmatprep.subr.mxu0 %v5471
    %5547 = vmatpush1.msra.mxu0 %v5470
    %5548 = vmatprep.subr.mxu0 %v5473
    %5549 = vmatpush1.msra.mxu0 %v5472
    %5550 = vmatprep.subr.mxu0 %v5475
    %5551 = vmatpush1.msra.mxu0 %v5474
    %5552 = vmatprep.subr.mxu0 %v5477
    %5553 = vmatpush1.msra.mxu0 %v5476
    %5554 = vmatprep.subr.mxu0 %v5479
    %5555 = vmatpush1.msra.mxu0 %v5478
    %5556 = vmatprep.subr.mxu0 %v5481
    %5557 = vmatpush1.msra.mxu0 %v5480
    %5558 = vmatprep.subr.mxu0 %v5483
    %5559 = vmatpush1.msra.mxu0 %v5482
    %5560 = vmatprep.subr.mxu0 %v5485
    %5561 = vmatpush1.msra.mxu0 %v5484
    %5562 = vmatprep.subr.mxu0 %v5487
    %5563 = vmatpush1.msra.mxu0 %v5486
    %5564 = vmatprep.subr.mxu0 %v5489
    %5565 = vmatpush1.msra.mxu0 %v5488
    %5566 = vmatprep.subr.mxu0 %v5491
    %5567 = vmatpush1.msra.mxu0 %v5490
    %5568 = vmatprep.subr.mxu0 %v5493
    %5569 = vmatpush1.msra.mxu0 %v5492
    %5570 = vmatprep.subr.mxu0 %v5495
    %5571 = vmatpush1.msra.mxu0 %v5494
    %5572 = vmatprep.subr.mxu0 %v5497
    %5573 = vmatpush1.msra.mxu0 %v5496
    %5574 = vmatprep.subr.mxu0 %v5499
    %5575 = vmatpush1.msra.mxu0 %v5498
    %5576 = vmatprep.subr.mxu0 %v5501
    %5577 = vmatpush1.msra.mxu0 %v5500
    %5578 = vmatprep.subr.mxu0 %v5503
    %5579 = vmatpush1.msra.mxu0 %v5502
    %5580 = vmatprep.mubr.f32.mxu0 %v5377
    %5581 = vmatmul.mubr.f32.gmra.mrb[0].mxu0 %v5376
    %v5582 = vpop.f32.mrb[0].mxu0
    %v5583 = vadd.f32 %v5509, %v5582
    %v5584 = vpop.f32.mrb[0].mxu0
    %v5585 = vadd.f32 %v5513, %v5584
    %5586 = vmatprep.mubr.f32.mxu0 %v5379
    %5587 = vmatmul.mubr.f32.gmra.mrb[0].mxu0 %v5378
    %v5588 = vpop.f32.mrb[0].mxu0
    %v5589 = vadd.f32 %v5509, %v5588
    %v5590 = vpop.f32.mrb[0].mxu0
    %v5591 = vadd.f32 %v5513, %v5590
    %5592 = vmatprep.mubr.f32.mxu0 %v5381
    %5593 = vmatmul.mubr.f32.gmra.mrb[0].mxu0 %v5380
    %v5594 = vpop.f32.mrb[0].mxu0
    %v5595 = vadd.f32 %v5509, %v5594
    %v5596 = vpop.f32.mrb[0].mxu0
    %v5597 = vadd.f32 %v5513, %v5596
    %5598 = vmatprep.mubr.f32.mxu0 %v5383
    %5599 = vmatmul.mubr.f32.gmra.mrb[0].mxu0 %v5382
    %v5600 = vpop.f32.mrb[0].mxu0
    %v5601 = vadd.f32 %v5509, %v5600
    %v5602 = vpop.f32.mrb[0].mxu0
    %v5603 = vadd.f32 %v5513, %v5602
    %5604 = vmatprep.mubr.f32.mxu0 %v5385
    %5605 = vmatmul.mubr.f32.gmra.mrb[0].mxu0 %v5384
    %v5606 = vpop.f32.mrb[0].mxu0
    %v5607 = vadd.f32 %v5509, %v5606
    %v5608 = vpop.f32.mrb[0].mxu0
    %v5609 = vadd.f32 %v5513, %v5608
    %5610 = vmatprep.mubr.f32.mxu0 %v5387
    %5611 = vmatmul.mubr.f32.gmra.mrb[0].mxu0 %v5386
    %v5612 = vpop.f32.mrb[0].mxu0
    %v5613 = vadd.f32 %v5509, %v5612
    %v5614 = vpop.f32.mrb[0].mxu0
    %v5615 = vadd.f32 %v5513, %v5614
    %5616 = vmatprep.mubr.f32.mxu0 %v5389
    %5617 = vmatmul.mubr.f32.gmra.mrb[0].mxu0 %v5388
    %v5618 = vpop.f32.mrb[0].mxu0
    %v5619 = vadd.f32 %v5509, %v5618
    %v5620 = vpop.f32.mrb[0].mxu0
    %v5621 = vadd.f32 %v5513, %v5620
    %5622 = vmatprep.mubr.f32.mxu0 %v5391
    %5623 = vmatmul.mubr.f32.gmra.mrb[0].mxu0 %v5390
    %v5624 = vpop.f32.mrb[0].mxu0
    %v5625 = vadd.f32 %v5509, %v5624
    %v5626 = vpop.f32.mrb[0].mxu0
    %v5627 = vadd.f32 %v5513, %v5626
    %5628 = vmatprep.mubr.f32.mxu0 %v5393
    %5629 = vmatmul.mubr.f32.gmra.mrb[0].mxu0 %v5392
    %v5630 = vpop.f32.mrb[0].mxu0
    %v5631 = vadd.f32 %v5509, %v5630
    %v5632 = vpop.f32.mrb[0].mxu0
    %v5633 = vadd.f32 %v5513, %v5632
    %5634 = vmatprep.mubr.f32.mxu0 %v5395
    %5635 = vmatmul.mubr.f32.gmra.mrb[0].mxu0 %v5394
    %v5636 = vpop.f32.mrb[0].mxu0
    %v5637 = vadd.f32 %v5509, %v5636
    %v5638 = vpop.f32.mrb[0].mxu0
    %v5639 = vadd.f32 %v5513, %v5638
    %5640 = vmatprep.mubr.f32.mxu0 %v5397
    %5641 = vmatmul.mubr.f32.gmra.mrb[0].mxu0 %v5396
    %v5642 = vpop.f32.mrb[0].mxu0
    %v5643 = vadd.f32 %v5509, %v5642
    %v5644 = vpop.f32.mrb[0].mxu0
    %v5645 = vadd.f32 %v5513, %v5644
    %5646 = vmatprep.mubr.f32.mxu0 %v5399
    %5647 = vmatmul.mubr.f32.gmra.mrb[0].mxu0 %v5398
    %v5648 = vpop.f32.mrb[0].mxu0
    %v5649 = vadd.f32 %v5509, %v5648
    %v5650 = vpop.f32.mrb[0].mxu0
    %v5651 = vadd.f32 %v5513, %v5650
    %5652 = vmatprep.mubr.f32.mxu0 %v5401
    %5653 = vmatmul.mubr.f32.gmra.mrb[0].mxu0 %v5400
    %v5654 = vpop.f32.mrb[0].mxu0
    %v5655 = vadd.f32 %v5509, %v5654
    %v5656 = vpop.f32.mrb[0].mxu0
    %v5657 = vadd.f32 %v5513, %v5656
    %5658 = vmatprep.mubr.f32.mxu0 %v5403
    %5659 = vmatmul.mubr.f32.gmra.mrb[0].mxu0 %v5402
    %v5660 = vpop.f32.mrb[0].mxu0
    %v5661 = vadd.f32 %v5509, %v5660
    %v5662 = vpop.f32.mrb[0].mxu0
    %v5663 = vadd.f32 %v5513, %v5662
    %5664 = vmatprep.mubr.f32.mxu0 %v5405
    %5665 = vmatmul.mubr.f32.gmra.mrb[0].mxu0 %v5404
    %v5666 = vpop.f32.mrb[0].mxu0
    %v5667 = vadd.f32 %v5509, %v5666
    %v5668 = vpop.f32.mrb[0].mxu0
    %v5669 = vadd.f32 %v5513, %v5668
    %5670 = vmatprep.mubr.f32.mxu0 %v5407
    %5671 = vmatmul.mubr.f32.gmra.mrb[0].mxu0 %v5406
    %v5672 = vpop.f32.mrb[0].mxu0
    %v5673 = vadd.f32 %v5509, %v5672
    %v5674 = vpop.f32.mrb[0].mxu0
    %v5675 = vadd.f32 %v5513, %v5674
    %5676 = vmatprep.mubr.f32.mxu0 %v5409
    %5677 = vmatmul.mubr.f32.gmra.mrb[0].mxu0 %v5408
    %v5678 = vpop.f32.mrb[0].mxu0
    %v5679 = vadd.f32 %v5509, %v5678
    %v5680 = vpop.f32.mrb[0].mxu0
    %v5681 = vadd.f32 %v5513, %v5680
    %5682 = vmatprep.mubr.f32.mxu0 %v5411
    %5683 = vmatmul.mubr.f32.gmra.mrb[0].mxu0 %v5410
    %v5684 = vpop.f32.mrb[0].mxu0
    %v5685 = vadd.f32 %v5509, %v5684
    %v5686 = vpop.f32.mrb[0].mxu0
    %v5687 = vadd.f32 %v5513, %v5686
    %5688 = vmatprep.mubr.f32.mxu0 %v5413
    %5689 = vmatmul.mubr.f32.gmra.mrb[0].mxu0 %v5412
    %v5690 = vpop.f32.mrb[0].mxu0
    %v5691 = vadd.f32 %v5509, %v5690
    %v5692 = vpop.f32.mrb[0].mxu0
    %v5693 = vadd.f32 %v5513, %v5692
    %5694 = vmatprep.mubr.f32.mxu0 %v5415
    %5695 = vmatmul.mubr.f32.gmra.mrb[0].mxu0 %v5414
    %v5696 = vpop.f32.mrb[0].mxu0
    %v5697 = vadd.f32 %v5509, %v5696
    %v5698 = vpop.f32.mrb[0].mxu0
    %v5699 = vadd.f32 %v5513, %v5698
    %5700 = vmatprep.mubr.f32.mxu0 %v5417
    %5701 = vmatmul.mubr.f32.gmra.mrb[0].mxu0 %v5416
    %v5702 = vpop.f32.mrb[0].mxu0
    %v5703 = vadd.f32 %v5509, %v5702
    %v5704 = vpop.f32.mrb[0].mxu0
    %v5705 = vadd.f32 %v5513, %v5704
    %5706 = vmatprep.mubr.f32.mxu0 %v5419
    %5707 = vmatmul.mubr.f32.gmra.mrb[0].mxu0 %v5418
    %v5708 = vpop.f32.mrb[0].mxu0
    %v5709 = vadd.f32 %v5509, %v5708
    %v5710 = vpop.f32.mrb[0].mxu0
    %v5711 = vadd.f32 %v5513, %v5710
    %5712 = vmatprep.mubr.f32.mxu0 %v5421
    %5713 = vmatmul.mubr.f32.gmra.mrb[0].mxu0 %v5420
    %v5714 = vpop.f32.mrb[0].mxu0
    %v5715 = vadd.f32 %v5509, %v5714
    %v5716 = vpop.f32.mrb[0].mxu0
    %v5717 = vadd.f32 %v5513, %v5716
    %5718 = vmatprep.mubr.f32.mxu0 %v5423
    %5719 = vmatmul.mubr.f32.gmra.mrb[0].mxu0 %v5422
    %v5720 = vpop.f32.mrb[0].mxu0
    %v5721 = vadd.f32 %v5509, %v5720
    %v5722 = vpop.f32.mrb[0].mxu0
    %v5723 = vadd.f32 %v5513, %v5722
    %5724 = vmatprep.mubr.f32.mxu0 %v5425
    %5725 = vmatmul.mubr.f32.gmra.mrb[0].mxu0 %v5424
    %v5726 = vpop.f32.mrb[0].mxu0
    %v5727 = vadd.f32 %v5509, %v5726
    %v5728 = vpop.f32.mrb[0].mxu0
    %v5729 = vadd.f32 %v5513, %v5728
    %5730 = vmatprep.mubr.f32.mxu0 %v5427
    %5731 = vmatmul.mubr.f32.gmra.mrb[0].mxu0 %v5426
    %v5732 = vpop.f32.mrb[0].mxu0
    %v5733 = vadd.f32 %v5509, %v5732
    %v5734 = vpop.f32.mrb[0].mxu0
    %v5735 = vadd.f32 %v5513, %v5734
    %5736 = vmatprep.mubr.f32.mxu0 %v5429
    %5737 = vmatmul.mubr.f32.gmra.mrb[0].mxu0 %v5428
    %v5738 = vpop.f32.mrb[0].mxu0
    %v5739 = vadd.f32 %v5509, %v5738
    %v5740 = vpop.f32.mrb[0].mxu0
    %v5741 = vadd.f32 %v5513, %v5740
    %5742 = vmatprep.mubr.f32.mxu0 %v5431
    %5743 = vmatmul.mubr.f32.gmra.mrb[0].mxu0 %v5430
    %v5744 = vpop.f32.mrb[0].mxu0
    %v5745 = vadd.f32 %v5509, %v5744
    %v5746 = vpop.f32.mrb[0].mxu0
    %v5747 = vadd.f32 %v5513, %v5746
    %5748 = vmatprep.mubr.f32.mxu0 %v5433
    %5749 = vmatmul.mubr.f32.gmra.mrb[0].mxu0 %v5432
    %v5750 = vpop.f32.mrb[0].mxu0
    %v5751 = vadd.f32 %v5509, %v5750
    %v5752 = vpop.f32.mrb[0].mxu0
    %v5753 = vadd.f32 %v5513, %v5752
    %5754 = vmatprep.mubr.f32.mxu0 %v5435
    %5755 = vmatmul.mubr.f32.gmra.mrb[0].mxu0 %v5434
    %v5756 = vpop.f32.mrb[0].mxu0
    %v5757 = vadd.f32 %v5509, %v5756
    %v5758 = vpop.f32.mrb[0].mxu0
    %v5759 = vadd.f32 %v5513, %v5758
    %5760 = vmatprep.mubr.f32.mxu0 %v5437
    %5761 = vmatmul.mubr.f32.gmra.mrb[0].mxu0 %v5436
    %v5762 = vpop.f32.mrb[0].mxu0
    %v5763 = vadd.f32 %v5509, %v5762
    %v5764 = vpop.f32.mrb[0].mxu0
    %v5765 = vadd.f32 %v5513, %v5764
    %5766 = vmatprep.mubr.f32.mxu0 %v5439
    %5767 = vmatmul.mubr.f32.gmra.mrb[0].mxu0 %v5438
    %v5768 = vpop.f32.mrb[0].mxu0
    %v5769 = vadd.f32 %v5509, %v5768
    %v5770 = vpop.f32.mrb[0].mxu0
    %v5771 = vadd.f32 %v5513, %v5770
    %5772 = vdwg.mxu0
    %v5773 = vadd.f32 %v5583, %v5376
    %v5774 = vadd.f32 %v5585, %v5377
    %v5775 = vadd.f32 %v5589, %v5378
    %v5776 = vadd.f32 %v5591, %v5379
    %v5777 = vadd.f32 %v5595, %v5380
    %v5778 = vadd.f32 %v5597, %v5381
    %v5779 = vadd.f32 %v5601, %v5382
    %v5780 = vadd.f32 %v5603, %v5383
    %v5781 = vadd.f32 %v5607, %v5384
    %v5782 = vadd.f32 %v5609, %v5385
    %v5783 = vadd.f32 %v5613, %v5386
    %v5784 = vadd.f32 %v5615, %v5387
    %v5785 = vadd.f32 %v5619, %v5388
    %v5786 = vadd.f32 %v5621, %v5389
    %v5787 = vadd.f32 %v5625, %v5390
    %v5788 = vadd.f32 %v5627, %v5391
    %v5789 = vadd.f32 %v5631, %v5392
    %v5790 = vadd.f32 %v5633, %v5393
    %v5791 = vadd.f32 %v5637, %v5394
    %v5792 = vadd.f32 %v5639, %v5395
    %v5793 = vadd.f32 %v5643, %v5396
    %v5794 = vadd.f32 %v5645, %v5397
    %v5795 = vadd.f32 %v5649, %v5398
    %v5796 = vadd.f32 %v5651, %v5399
    %v5797 = vadd.f32 %v5655, %v5400
    %v5798 = vadd.f32 %v5657, %v5401
    %v5799 = vadd.f32 %v5661, %v5402
    %v5800 = vadd.f32 %v5663, %v5403
    %v5801 = vadd.f32 %v5667, %v5404
    %v5802 = vadd.f32 %v5669, %v5405
    %v5803 = vadd.f32 %v5673, %v5406
    %v5804 = vadd.f32 %v5675, %v5407
    %v5805 = vadd.f32 %v5679, %v5408
    %v5806 = vadd.f32 %v5681, %v5409
    %v5807 = vadd.f32 %v5685, %v5410
    %v5808 = vadd.f32 %v5687, %v5411
    %v5809 = vadd.f32 %v5691, %v5412
    %v5810 = vadd.f32 %v5693, %v5413
    %v5811 = vadd.f32 %v5697, %v5414
    %v5812 = vadd.f32 %v5699, %v5415
    %v5813 = vadd.f32 %v5703, %v5416
    %v5814 = vadd.f32 %v5705, %v5417
    %v5815 = vadd.f32 %v5709, %v5418
    %v5816 = vadd.f32 %v5711, %v5419
    %v5817 = vadd.f32 %v5715, %v5420
    %v5818 = vadd.f32 %v5717, %v5421
    %v5819 = vadd.f32 %v5721, %v5422
    %v5820 = vadd.f32 %v5723, %v5423
    %v5821 = vadd.f32 %v5727, %v5424
    %v5822 = vadd.f32 %v5729, %v5425
    %v5823 = vadd.f32 %v5733, %v5426
    %v5824 = vadd.f32 %v5735, %v5427
    %v5825 = vadd.f32 %v5739, %v5428
    %v5826 = vadd.f32 %v5741, %v5429
    %v5827 = vadd.f32 %v5745, %v5430
    %v5828 = vadd.f32 %v5747, %v5431
    %v5829 = vadd.f32 %v5751, %v5432
    %v5830 = vadd.f32 %v5753, %v5433
    %v5831 = vadd.f32 %v5757, %v5434
    %v5832 = vadd.f32 %v5759, %v5435
    %v5833 = vadd.f32 %v5763, %v5436
    %v5834 = vadd.f32 %v5765, %v5437
    %v5835 = vadd.f32 %v5769, %v5438
    %v5836 = vadd.f32 %v5771, %v5439
    %v5837 = vmax.f32 %v5773, 0.0
    %v5838 = vmax.f32 %v5774, 0.0
    %v5839 = vmax.f32 %v5775, 0.0
    %v5840 = vmax.f32 %v5776, 0.0
    %v5841 = vmax.f32 %v5777, 0.0
    %v5842 = vmax.f32 %v5778, 0.0
    %v5843 = vmax.f32 %v5779, 0.0
    %v5844 = vmax.f32 %v5780, 0.0
    %v5845 = vmax.f32 %v5781, 0.0
    %v5846 = vmax.f32 %v5782, 0.0
    %v5847 = vmax.f32 %v5783, 0.0
    %v5848 = vmax.f32 %v5784, 0.0
    %v5849 = vmax.f32 %v5785, 0.0
    %v5850 = vmax.f32 %v5786, 0.0
    %v5851 = vmax.f32 %v5787, 0.0
    %v5852 = vmax.f32 %v5788, 0.0
    %v5853 = vmax.f32 %v5789, 0.0
    %v5854 = vmax.f32 %v5790, 0.0
    %v5855 = vmax.f32 %v5791, 0.0
    %v5856 = vmax.f32 %v5792, 0.0
    %v5857 = vmax.f32 %v5793, 0.0
    %v5858 = vmax.f32 %v5794, 0.0
    %v5859 = vmax.f32 %v5795, 0.0
    %v5860 = vmax.f32 %v5796, 0.0
    %v5861 = vmax.f32 %v5797, 0.0
    %v5862 = vmax.f32 %v5798, 0.0
    %v5863 = vmax.f32 %v5799, 0.0
    %v5864 = vmax.f32 %v5800, 0.0
    %v5865 = vmax.f32 %v5801, 0.0
    %v5866 = vmax.f32 %v5802, 0.0
    %v5867 = vmax.f32 %v5803, 0.0
    %v5868 = vmax.f32 %v5804, 0.0
    %v5869 = vmax.f32 %v5805, 0.0
    %v5870 = vmax.f32 %v5806, 0.0
    %v5871 = vmax.f32 %v5807, 0.0
    %v5872 = vmax.f32 %v5808, 0.0
    %v5873 = vmax.f32 %v5809, 0.0
    %v5874 = vmax.f32 %v5810, 0.0
    %v5875 = vmax.f32 %v5811, 0.0
    %v5876 = vmax.f32 %v5812, 0.0
    %v5877 = vmax.f32 %v5813, 0.0
    %v5878 = vmax.f32 %v5814, 0.0
    %v5879 = vmax.f32 %v5815, 0.0
    %v5880 = vmax.f32 %v5816, 0.0
    %v5881 = vmax.f32 %v5817, 0.0
    %v5882 = vmax.f32 %v5818, 0.0
    %v5883 = vmax.f32 %v5819, 0.0
    %v5884 = vmax.f32 %v5820, 0.0
    %v5885 = vmax.f32 %v5821, 0.0
    %v5886 = vmax.f32 %v5822, 0.0
    %v5887 = vmax.f32 %v5823, 0.0
    %v5888 = vmax.f32 %v5824, 0.0
    %v5889 = vmax.f32 %v5825, 0.0
    %v5890 = vmax.f32 %v5826, 0.0
    %v5891 = vmax.f32 %v5827, 0.0
    %v5892 = vmax.f32 %v5828, 0.0
    %v5893 = vmax.f32 %v5829, 0.0
    %v5894 = vmax.f32 %v5830, 0.0
    %v5895 = vmax.f32 %v5831, 0.0
    %v5896 = vmax.f32 %v5832, 0.0
    %v5897 = vmax.f32 %v5833, 0.0
    %v5898 = vmax.f32 %v5834, 0.0
    %v5899 = vmax.f32 %v5835, 0.0
    %v5900 = vmax.f32 %v5836, 0.0
    %v5901 = vadd.f32 %v5376, %v5837
    %v5902 = vadd.f32 %v5377, %v5838
    %v5903 = vadd.f32 %v5378, %v5839
    %v5904 = vadd.f32 %v5379, %v5840
    %v5905 = vadd.f32 %v5380, %v5841
    %v5906 = vadd.f32 %v5381, %v5842
    %v5907 = vadd.f32 %v5382, %v5843
    %v5908 = vadd.f32 %v5383, %v5844
    %v5909 = vadd.f32 %v5384, %v5845
    %v5910 = vadd.f32 %v5385, %v5846
    %v5911 = vadd.f32 %v5386, %v5847
    %v5912 = vadd.f32 %v5387, %v5848
    %v5913 = vadd.f32 %v5388, %v5849
    %v5914 = vadd.f32 %v5389, %v5850
    %v5915 = vadd.f32 %v5390, %v5851
    %v5916 = vadd.f32 %v5391, %v5852
    %v5917 = vadd.f32 %v5392, %v5853
    %v5918 = vadd.f32 %v5393, %v5854
    %v5919 = vadd.f32 %v5394, %v5855
    %v5920 = vadd.f32 %v5395, %v5856
    %v5921 = vadd.f32 %v5396, %v5857
    %v5922 = vadd.f32 %v5397, %v5858
    %v5923 = vadd.f32 %v5398, %v5859
    %v5924 = vadd.f32 %v5399, %v5860
    %v5925 = vadd.f32 %v5400, %v5861
    %v5926 = vadd.f32 %v5401, %v5862
    %v5927 = vadd.f32 %v5402, %v5863
    %v5928 = vadd.f32 %v5403, %v5864
    %v5929 = vadd.f32 %v5404, %v5865
    %v5930 = vadd.f32 %v5405, %v5866
    %v5931 = vadd.f32 %v5406, %v5867
    %v5932 = vadd.f32 %v5407, %v5868
    %v5933 = vadd.f32 %v5408, %v5869
    %v5934 = vadd.f32 %v5409, %v5870
    %v5935 = vadd.f32 %v5410, %v5871
    %v5936 = vadd.f32 %v5411, %v5872
    %v5937 = vadd.f32 %v5412, %v5873
    %v5938 = vadd.f32 %v5413, %v5874
    %v5939 = vadd.f32 %v5414, %v5875
    %v5940 = vadd.f32 %v5415, %v5876
    %v5941 = vadd.f32 %v5416, %v5877
    %v5942 = vadd.f32 %v5417, %v5878
    %v5943 = vadd.f32 %v5418, %v5879
    %v5944 = vadd.f32 %v5419, %v5880
    %v5945 = vadd.f32 %v5420, %v5881
    %v5946 = vadd.f32 %v5421, %v5882
    %v5947 = vadd.f32 %v5422, %v5883
    %v5948 = vadd.f32 %v5423, %v5884
    %v5949 = vadd.f32 %v5424, %v5885
    %v5950 = vadd.f32 %v5425, %v5886
    %v5951 = vadd.f32 %v5426, %v5887
    %v5952 = vadd.f32 %v5427, %v5888
    %v5953 = vadd.f32 %v5428, %v5889
    %v5954 = vadd.f32 %v5429, %v5890
    %v5955 = vadd.f32 %v5430, %v5891
    %v5956 = vadd.f32 %v5431, %v5892
    %v5957 = vadd.f32 %v5432, %v5893
    %v5958 = vadd.f32 %v5433, %v5894
    %v5959 = vadd.f32 %v5434, %v5895
    %v5960 = vadd.f32 %v5435, %v5896
    %v5961 = vadd.f32 %v5436, %v5897
    %v5962 = vadd.f32 %v5437, %v5898
    %v5963 = vadd.f32 %v5438, %v5899
    %v5964 = vadd.f32 %v5439, %v5900
    %5965 = vmatprep.subr.mxu0 %v5441
    %5966 = vmatpush1.msra.mxu0 %v5440
    %5967 = vmatprep.subr.mxu0 %v5443
    %5968 = vmatpush1.msra.mxu0 %v5442
    %5969 = vmatprep.subr.mxu0 %v5445
    %5970 = vmatpush1.msra.mxu0 %v5444
    %5971 = vmatprep.subr.mxu0 %v5447
    %5972 = vmatpush1.msra.mxu0 %v5446
    %5973 = vmatprep.subr.mxu0 %v5449
    %5974 = vmatpush1.msra.mxu0 %v5448
    %5975 = vmatprep.subr.mxu0 %v5451
    %5976 = vmatpush1.msra.mxu0 %v5450
    %5977 = vmatprep.subr.mxu0 %v5453
    %5978 = vmatpush1.msra.mxu0 %v5452
    %5979 = vmatprep.subr.mxu0 %v5455
    %5980 = vmatpush1.msra.mxu0 %v5454
    %5981 = vmatprep.subr.mxu0 %v5457
    %5982 = vmatpush1.msra.mxu0 %v5456
    %5983 = vmatprep.subr.mxu0 %v5459
    %5984 = vmatpush1.msra.mxu0 %v5458
    %5985 = vmatprep.subr.mxu0 %v5461
    %5986 = vmatpush1.msra.mxu0 %v5460
    %5987 = vmatprep.subr.mxu0 %v5463
    %5988 = vmatpush1.msra.mxu0 %v5462
    %5989 = vmatprep.subr.mxu0 %v5465
    %5990 = vmatpush1.msra.mxu0 %v5464
    %5991 = vmatprep.subr.mxu0 %v5467
    %5992 = vmatpush1.msra.mxu0 %v5466
    %5993 = vmatprep.subr.mxu0 %v5469
    %5994 = vmatpush1.msra.mxu0 %v5468
    %5995 = vmatprep.subr.mxu0 %v5471
    %5996 = vmatpush1.msra.mxu0 %v5470
    %5997 = vmatprep.subr.mxu0 %v5473
    %5998 = vmatpush1.msra.mxu0 %v5472
    %5999 = vmatprep.subr.mxu0 %v5475
    %6000 = vmatpush1.msra.mxu0 %v5474
    %6001 = vmatprep.subr.mxu0 %v5477
    %6002 = vmatpush1.msra.mxu0 %v5476
    %6003 = vmatprep.subr.mxu0 %v5479
    %6004 = vmatpush1.msra.mxu0 %v5478
    %6005 = vmatprep.subr.mxu0 %v5481
    %6006 = vmatpush1.msra.mxu0 %v5480
    %6007 = vmatprep.subr.mxu0 %v5483
    %6008 = vmatpush1.msra.mxu0 %v5482
    %6009 = vmatprep.subr.mxu0 %v5485
    %6010 = vmatpush1.msra.mxu0 %v5484
    %6011 = vmatprep.subr.mxu0 %v5487
    %6012 = vmatpush1.msra.mxu0 %v5486
    %6013 = vmatprep.subr.mxu0 %v5489
    %6014 = vmatpush1.msra.mxu0 %v5488
    %6015 = vmatprep.subr.mxu0 %v5491
    %6016 = vmatpush1.msra.mxu0 %v5490
    %6017 = vmatprep.subr.mxu0 %v5493
    %6018 = vmatpush1.msra.mxu0 %v5492
    %6019 = vmatprep.subr.mxu0 %v5495
    %6020 = vmatpush1.msra.mxu0 %v5494
    %6021 = vmatprep.subr.mxu0 %v5497
    %6022 = vmatpush1.msra.mxu0 %v5496
    %6023 = vmatprep.subr.mxu0 %v5499
    %6024 = vmatpush1.msra.mxu0 %v5498
    %6025 = vmatprep.subr.mxu0 %v5501
    %6026 = vmatpush1.msra.mxu0 %v5500
    %6027 = vmatprep.subr.mxu0 %v5503
    %6028 = vmatpush1.msra.mxu0 %v5502
    %6029 = vmatprep.mubr.f32.mxu0 %v5838
    %6030 = vmatmul.mubr.f32.gmra.mrb[0].mxu0 %v5837
    %v6031 = vpop.f32.mrb[0].mxu0
    %v6032 = vadd.f32 %v5509, %v6031
    %v6033 = vpop.f32.mrb[0].mxu0
    %v6034 = vadd.f32 %v5513, %v6033
    %6035 = vmatprep.mubr.f32.mxu0 %v5840
    %6036 = vmatmul.mubr.f32.gmra.mrb[0].mxu0 %v5839
    %v6037 = vpop.f32.mrb[0].mxu0
    %v6038 = vadd.f32 %v5509, %v6037
    %v6039 = vpop.f32.mrb[0].mxu0
    %v6040 = vadd.f32 %v5513, %v6039
    %6041 = vmatprep.mubr.f32.mxu0 %v5842
    %6042 = vmatmul.mubr.f32.gmra.mrb[0].mxu0 %v5841
    %v6043 = vpop.f32.mrb[0].mxu0
    %v6044 = vadd.f32 %v5509, %v6043
    %v6045 = vpop.f32.mrb[0].mxu0
    %v6046 = vadd.f32 %v5513, %v6045
    %6047 = vmatprep.mubr.f32.mxu0 %v5844
    %6048 = vmatmul.mubr.f32.gmra.mrb[0].mxu0 %v5843
    %v6049 = vpop.f32.mrb[0].mxu0
    %v6050 = vadd.f32 %v5509, %v6049
    %v6051 = vpop.f32.mrb[0].mxu0
    %v6052 = vadd.f32 %v5513, %v6051
    %6053 = vmatprep.mubr.f32.mxu0 %v5846
    %6054 = vmatmul.mubr.f32.gmra.mrb[0].mxu0 %v5845
    %v6055 = vpop.f32.mrb[0].mxu0
    %v6056 = vadd.f32 %v5509, %v6055
    %v6057 = vpop.f32.mrb[0].mxu0
    %v6058 = vadd.f32 %v5513, %v6057
    %6059 = vmatprep.mubr.f32.mxu0 %v5848
    %6060 = vmatmul.mubr.f32.gmra.mrb[0].mxu0 %v5847
    %v6061 = vpop.f32.mrb[0].mxu0
    %v6062 = vadd.f32 %v5509, %v6061
    %v6063 = vpop.f32.mrb[0].mxu0
    %v6064 = vadd.f32 %v5513, %v6063
    %6065 = vmatprep.mubr.f32.mxu0 %v5850
    %6066 = vmatmul.mubr.f32.gmra.mrb[0].mxu0 %v5849
    %v6067 = vpop.f32.mrb[0].mxu0
    %v6068 = vadd.f32 %v5509, %v6067
    %v6069 = vpop.f32.mrb[0].mxu0
    %v6070 = vadd.f32 %v5513, %v6069
    %6071 = vmatprep.mubr.f32.mxu0 %v5852
    %6072 = vmatmul.mubr.f32.gmra.mrb[0].mxu0 %v5851
    %v6073 = vpop.f32.mrb[0].mxu0
    %v6074 = vadd.f32 %v5509, %v6073
    %v6075 = vpop.f32.mrb[0].mxu0
    %v6076 = vadd.f32 %v5513, %v6075
    %6077 = vmatprep.mubr.f32.mxu0 %v5854
    %6078 = vmatmul.mubr.f32.gmra.mrb[0].mxu0 %v5853
    %v6079 = vpop.f32.mrb[0].mxu0
    %v6080 = vadd.f32 %v5509, %v6079
    %v6081 = vpop.f32.mrb[0].mxu0
    %v6082 = vadd.f32 %v5513, %v6081
    %6083 = vmatprep.mubr.f32.mxu0 %v5856
    %6084 = vmatmul.mubr.f32.gmra.mrb[0].mxu0 %v5855
    %v6085 = vpop.f32.mrb[0].mxu0
    %v6086 = vadd.f32 %v5509, %v6085
    %v6087 = vpop.f32.mrb[0].mxu0
    %v6088 = vadd.f32 %v5513, %v6087
    %6089 = vmatprep.mubr.f32.mxu0 %v5858
    %6090 = vmatmul.mubr.f32.gmra.mrb[0].mxu0 %v5857
    %v6091 = vpop.f32.mrb[0].mxu0
    %v6092 = vadd.f32 %v5509, %v6091
    %v6093 = vpop.f32.mrb[0].mxu0
    %v6094 = vadd.f32 %v5513, %v6093
    %6095 = vmatprep.mubr.f32.mxu0 %v5860
    %6096 = vmatmul.mubr.f32.gmra.mrb[0].mxu0 %v5859
    %v6097 = vpop.f32.mrb[0].mxu0
    %v6098 = vadd.f32 %v5509, %v6097
    %v6099 = vpop.f32.mrb[0].mxu0
    %v6100 = vadd.f32 %v5513, %v6099
    %6101 = vmatprep.mubr.f32.mxu0 %v5862
    %6102 = vmatmul.mubr.f32.gmra.mrb[0].mxu0 %v5861
    %v6103 = vpop.f32.mrb[0].mxu0
    %v6104 = vadd.f32 %v5509, %v6103
    %v6105 = vpop.f32.mrb[0].mxu0
    %v6106 = vadd.f32 %v5513, %v6105
    %6107 = vmatprep.mubr.f32.mxu0 %v5864
    %6108 = vmatmul.mubr.f32.gmra.mrb[0].mxu0 %v5863
    %v6109 = vpop.f32.mrb[0].mxu0
    %v6110 = vadd.f32 %v5509, %v6109
    %v6111 = vpop.f32.mrb[0].mxu0
    %v6112 = vadd.f32 %v5513, %v6111
    %6113 = vmatprep.mubr.f32.mxu0 %v5866
    %6114 = vmatmul.mubr.f32.gmra.mrb[0].mxu0 %v5865
    %v6115 = vpop.f32.mrb[0].mxu0
    %v6116 = vadd.f32 %v5509, %v6115
    %v6117 = vpop.f32.mrb[0].mxu0
    %v6118 = vadd.f32 %v5513, %v6117
    %6119 = vmatprep.mubr.f32.mxu0 %v5868
    %6120 = vmatmul.mubr.f32.gmra.mrb[0].mxu0 %v5867
    %v6121 = vpop.f32.mrb[0].mxu0
    %v6122 = vadd.f32 %v5509, %v6121
    %v6123 = vpop.f32.mrb[0].mxu0
    %v6124 = vadd.f32 %v5513, %v6123
    %6125 = vmatprep.mubr.f32.mxu0 %v5870
    %6126 = vmatmul.mubr.f32.gmra.mrb[0].mxu0 %v5869
    %v6127 = vpop.f32.mrb[0].mxu0
    %v6128 = vadd.f32 %v5509, %v6127
    %v6129 = vpop.f32.mrb[0].mxu0
    %v6130 = vadd.f32 %v5513, %v6129
    %6131 = vmatprep.mubr.f32.mxu0 %v5872
    %6132 = vmatmul.mubr.f32.gmra.mrb[0].mxu0 %v5871
    %v6133 = vpop.f32.mrb[0].mxu0
    %v6134 = vadd.f32 %v5509, %v6133
    %v6135 = vpop.f32.mrb[0].mxu0
    %v6136 = vadd.f32 %v5513, %v6135
    %6137 = vmatprep.mubr.f32.mxu0 %v5874
    %6138 = vmatmul.mubr.f32.gmra.mrb[0].mxu0 %v5873
    %v6139 = vpop.f32.mrb[0].mxu0
    %v6140 = vadd.f32 %v5509, %v6139
    %v6141 = vpop.f32.mrb[0].mxu0
    %v6142 = vadd.f32 %v5513, %v6141
    %6143 = vmatprep.mubr.f32.mxu0 %v5876
    %6144 = vmatmul.mubr.f32.gmra.mrb[0].mxu0 %v5875
    %v6145 = vpop.f32.mrb[0].mxu0
    %v6146 = vadd.f32 %v5509, %v6145
    %v6147 = vpop.f32.mrb[0].mxu0
    %v6148 = vadd.f32 %v5513, %v6147
    %6149 = vmatprep.mubr.f32.mxu0 %v5878
    %6150 = vmatmul.mubr.f32.gmra.mrb[0].mxu0 %v5877
    %v6151 = vpop.f32.mrb[0].mxu0
    %v6152 = vadd.f32 %v5509, %v6151
    %v6153 = vpop.f32.mrb[0].mxu0
    %v6154 = vadd.f32 %v5513, %v6153
    %6155 = vmatprep.mubr.f32.mxu0 %v5880
    %6156 = vmatmul.mubr.f32.gmra.mrb[0].mxu0 %v5879
    %v6157 = vpop.f32.mrb[0].mxu0
    %v6158 = vadd.f32 %v5509, %v6157
    %v6159 = vpop.f32.mrb[0].mxu0
    %v6160 = vadd.f32 %v5513, %v6159
    %6161 = vmatprep.mubr.f32.mxu0 %v5882
    %6162 = vmatmul.mubr.f32.gmra.mrb[0].mxu0 %v5881
    %v6163 = vpop.f32.mrb[0].mxu0
    %v6164 = vadd.f32 %v5509, %v6163
    %v6165 = vpop.f32.mrb[0].mxu0
    %v6166 = vadd.f32 %v5513, %v6165
    %6167 = vmatprep.mubr.f32.mxu0 %v5884
    %6168 = vmatmul.mubr.f32.gmra.mrb[0].mxu0 %v5883
    %v6169 = vpop.f32.mrb[0].mxu0
    %v6170 = vadd.f32 %v5509, %v6169
    %v6171 = vpop.f32.mrb[0].mxu0
    %v6172 = vadd.f32 %v5513, %v6171
    %6173 = vmatprep.mubr.f32.mxu0 %v5886
    %6174 = vmatmul.mubr.f32.gmra.mrb[0].mxu0 %v5885
    %v6175 = vpop.f32.mrb[0].mxu0
    %v6176 = vadd.f32 %v5509, %v6175
    %v6177 = vpop.f32.mrb[0].mxu0
    %v6178 = vadd.f32 %v5513, %v6177
    %6179 = vmatprep.mubr.f32.mxu0 %v5888
    %6180 = vmatmul.mubr.f32.gmra.mrb[0].mxu0 %v5887
    %v6181 = vpop.f32.mrb[0].mxu0
    %v6182 = vadd.f32 %v5509, %v6181
    %v6183 = vpop.f32.mrb[0].mxu0
    %v6184 = vadd.f32 %v5513, %v6183
    %6185 = vmatprep.mubr.f32.mxu0 %v5890
    %6186 = vmatmul.mubr.f32.gmra.mrb[0].mxu0 %v5889
    %v6187 = vpop.f32.mrb[0].mxu0
    %v6188 = vadd.f32 %v5509, %v6187
    %v6189 = vpop.f32.mrb[0].mxu0
    %v6190 = vadd.f32 %v5513, %v6189
    %6191 = vmatprep.mubr.f32.mxu0 %v5892
    %6192 = vmatmul.mubr.f32.gmra.mrb[0].mxu0 %v5891
    %v6193 = vpop.f32.mrb[0].mxu0
    %v6194 = vadd.f32 %v5509, %v6193
    %v6195 = vpop.f32.mrb[0].mxu0
    %v6196 = vadd.f32 %v5513, %v6195
    %6197 = vmatprep.mubr.f32.mxu0 %v5894
    %6198 = vmatmul.mubr.f32.gmra.mrb[0].mxu0 %v5893
    %v6199 = vpop.f32.mrb[0].mxu0
    %v6200 = vadd.f32 %v5509, %v6199
    %v6201 = vpop.f32.mrb[0].mxu0
    %v6202 = vadd.f32 %v5513, %v6201
    %6203 = vmatprep.mubr.f32.mxu0 %v5896
    %6204 = vmatmul.mubr.f32.gmra.mrb[0].mxu0 %v5895
    %v6205 = vpop.f32.mrb[0].mxu0
    %v6206 = vadd.f32 %v5509, %v6205
    %v6207 = vpop.f32.mrb[0].mxu0
    %v6208 = vadd.f32 %v5513, %v6207
    %6209 = vmatprep.mubr.f32.mxu0 %v5898
    %6210 = vmatmul.mubr.f32.gmra.mrb[0].mxu0 %v5897
    %v6211 = vpop.f32.mrb[0].mxu0
    %v6212 = vadd.f32 %v5509, %v6211
    %v6213 = vpop.f32.mrb[0].mxu0
    %v6214 = vadd.f32 %v5513, %v6213
    %6215 = vmatprep.mubr.f32.mxu0 %v5900
    %6216 = vmatmul.mubr.f32.gmra.mrb[0].mxu0 %v5899
    %v6217 = vpop.f32.mrb[0].mxu0
    %v6218 = vadd.f32 %v5509, %v6217
    %v6219 = vpop.f32.mrb[0].mxu0
    %v6220 = vadd.f32 %v5513, %v6219
    %6221 = vdwg.mxu0
    %v6222 = vadd.f32 %v6032, %v5901
    %v6223 = vadd.f32 %v6034, %v5902
    %v6224 = vadd.f32 %v6038, %v5903
    %v6225 = vadd.f32 %v6040, %v5904
    %v6226 = vadd.f32 %v6044, %v5905
    %v6227 = vadd.f32 %v6046, %v5906
    %v6228 = vadd.f32 %v6050, %v5907
    %v6229 = vadd.f32 %v6052, %v5908
    %v6230 = vadd.f32 %v6056, %v5909
    %v6231 = vadd.f32 %v6058, %v5910
    %v6232 = vadd.f32 %v6062, %v5911
    %v6233 = vadd.f32 %v6064, %v5912
    %v6234 = vadd.f32 %v6068, %v5913
    %v6235 = vadd.f32 %v6070, %v5914
    %v6236 = vadd.f32 %v6074, %v5915
    %v6237 = vadd.f32 %v6076, %v5916
    %v6238 = vadd.f32 %v6080, %v5917
    %v6239 = vadd.f32 %v6082, %v5918
    %v6240 = vadd.f32 %v6086, %v5919
    %v6241 = vadd.f32 %v6088, %v5920
    %v6242 = vadd.f32 %v6092, %v5921
    %v6243 = vadd.f32 %v6094, %v5922
    %v6244 = vadd.f32 %v6098, %v5923
    %v6245 = vadd.f32 %v6100, %v5924
    %v6246 = vadd.f32 %v6104, %v5925
    %v6247 = vadd.f32 %v6106, %v5926
    %v6248 = vadd.f32 %v6110, %v5927
    %v6249 = vadd.f32 %v6112, %v5928
    %v6250 = vadd.f32 %v6116, %v5929
    %v6251 = vadd.f32 %v6118, %v5930
    %v6252 = vadd.f32 %v6122, %v5931
    %v6253 = vadd.f32 %v6124, %v5932
    %v6254 = vadd.f32 %v6128, %v5933
    %v6255 = vadd.f32 %v6130, %v5934
    %v6256 = vadd.f32 %v6134, %v5935
    %v6257 = vadd.f32 %v6136, %v5936
    %v6258 = vadd.f32 %v6140, %v5937
    %v6259 = vadd.f32 %v6142, %v5938
    %v6260 = vadd.f32 %v6146, %v5939
    %v6261 = vadd.f32 %v6148, %v5940
    %v6262 = vadd.f32 %v6152, %v5941
    %v6263 = vadd.f32 %v6154, %v5942
    %v6264 = vadd.f32 %v6158, %v5943
    %v6265 = vadd.f32 %v6160, %v5944
    %v6266 = vadd.f32 %v6164, %v5945
    %v6267 = vadd.f32 %v6166, %v5946
    %v6268 = vadd.f32 %v6170, %v5947
    %v6269 = vadd.f32 %v6172, %v5948
    %v6270 = vadd.f32 %v6176, %v5949
    %v6271 = vadd.f32 %v6178, %v5950
    %v6272 = vadd.f32 %v6182, %v5951
    %v6273 = vadd.f32 %v6184, %v5952
    %v6274 = vadd.f32 %v6188, %v5953
    %v6275 = vadd.f32 %v6190, %v5954
    %v6276 = vadd.f32 %v6194, %v5955
    %v6277 = vadd.f32 %v6196, %v5956
    %v6278 = vadd.f32 %v6200, %v5957
    %v6279 = vadd.f32 %v6202, %v5958
    %v6280 = vadd.f32 %v6206, %v5959
    %v6281 = vadd.f32 %v6208, %v5960
    %v6282 = vadd.f32 %v6212, %v5961
    %v6283 = vadd.f32 %v6214, %v5962
    %v6284 = vadd.f32 %v6218, %v5963
    %v6285 = vadd.f32 %v6220, %v5964
    %v6286 = vmax.f32 %v6222, 0.0
    %v6287 = vmax.f32 %v6223, 0.0
    %v6288 = vmax.f32 %v6224, 0.0
    %v6289 = vmax.f32 %v6225, 0.0
    %v6290 = vmax.f32 %v6226, 0.0
    %v6291 = vmax.f32 %v6227, 0.0
    %v6292 = vmax.f32 %v6228, 0.0
    %v6293 = vmax.f32 %v6229, 0.0
    %v6294 = vmax.f32 %v6230, 0.0
    %v6295 = vmax.f32 %v6231, 0.0
    %v6296 = vmax.f32 %v6232, 0.0
    %v6297 = vmax.f32 %v6233, 0.0
    %v6298 = vmax.f32 %v6234, 0.0
    %v6299 = vmax.f32 %v6235, 0.0
    %v6300 = vmax.f32 %v6236, 0.0
    %v6301 = vmax.f32 %v6237, 0.0
    %v6302 = vmax.f32 %v6238, 0.0
    %v6303 = vmax.f32 %v6239, 0.0
    %v6304 = vmax.f32 %v6240, 0.0
    %v6305 = vmax.f32 %v6241, 0.0
    %v6306 = vmax.f32 %v6242, 0.0
    %v6307 = vmax.f32 %v6243, 0.0
    %v6308 = vmax.f32 %v6244, 0.0
    %v6309 = vmax.f32 %v6245, 0.0
    %v6310 = vmax.f32 %v6246, 0.0
    %v6311 = vmax.f32 %v6247, 0.0
    %v6312 = vmax.f32 %v6248, 0.0
    %v6313 = vmax.f32 %v6249, 0.0
    %v6314 = vmax.f32 %v6250, 0.0
    %v6315 = vmax.f32 %v6251, 0.0
    %v6316 = vmax.f32 %v6252, 0.0
    %v6317 = vmax.f32 %v6253, 0.0
    %v6318 = vmax.f32 %v6254, 0.0
    %v6319 = vmax.f32 %v6255, 0.0
    %v6320 = vmax.f32 %v6256, 0.0
    %v6321 = vmax.f32 %v6257, 0.0
    %v6322 = vmax.f32 %v6258, 0.0
    %v6323 = vmax.f32 %v6259, 0.0
    %v6324 = vmax.f32 %v6260, 0.0
    %v6325 = vmax.f32 %v6261, 0.0
    %v6326 = vmax.f32 %v6262, 0.0
    %v6327 = vmax.f32 %v6263, 0.0
    %v6328 = vmax.f32 %v6264, 0.0
    %v6329 = vmax.f32 %v6265, 0.0
    %v6330 = vmax.f32 %v6266, 0.0
    %v6331 = vmax.f32 %v6267, 0.0
    %v6332 = vmax.f32 %v6268, 0.0
    %v6333 = vmax.f32 %v6269, 0.0
    %v6334 = vmax.f32 %v6270, 0.0
    %v6335 = vmax.f32 %v6271, 0.0
    %v6336 = vmax.f32 %v6272, 0.0
    %v6337 = vmax.f32 %v6273, 0.0
    %v6338 = vmax.f32 %v6274, 0.0
    %v6339 = vmax.f32 %v6275, 0.0
    %v6340 = vmax.f32 %v6276, 0.0
    %v6341 = vmax.f32 %v6277, 0.0
    %v6342 = vmax.f32 %v6278, 0.0
    %v6343 = vmax.f32 %v6279, 0.0
    %v6344 = vmax.f32 %v6280, 0.0
    %v6345 = vmax.f32 %v6281, 0.0
    %v6346 = vmax.f32 %v6282, 0.0
    %v6347 = vmax.f32 %v6283, 0.0
    %v6348 = vmax.f32 %v6284, 0.0
    %v6349 = vmax.f32 %v6285, 0.0
    %v6350 = vadd.f32 %v5901, %v6286
    %v6351 = vadd.f32 %v5902, %v6287
    %v6352 = vadd.f32 %v5903, %v6288
    %v6353 = vadd.f32 %v5904, %v6289
    %v6354 = vadd.f32 %v5905, %v6290
    %v6355 = vadd.f32 %v5906, %v6291
    %v6356 = vadd.f32 %v5907, %v6292
    %v6357 = vadd.f32 %v5908, %v6293
    %v6358 = vadd.f32 %v5909, %v6294
    %v6359 = vadd.f32 %v5910, %v6295
    %v6360 = vadd.f32 %v5911, %v6296
    %v6361 = vadd.f32 %v5912, %v6297
    %v6362 = vadd.f32 %v5913, %v6298
    %v6363 = vadd.f32 %v5914, %v6299
    %v6364 = vadd.f32 %v5915, %v6300
    %v6365 = vadd.f32 %v5916, %v6301
    %v6366 = vadd.f32 %v5917, %v6302
    %v6367 = vadd.f32 %v5918, %v6303
    %v6368 = vadd.f32 %v5919, %v6304
    %v6369 = vadd.f32 %v5920, %v6305
    %v6370 = vadd.f32 %v5921, %v6306
    %v6371 = vadd.f32 %v5922, %v6307
    %v6372 = vadd.f32 %v5923, %v6308
    %v6373 = vadd.f32 %v5924, %v6309
    %v6374 = vadd.f32 %v5925, %v6310
    %v6375 = vadd.f32 %v5926, %v6311
    %v6376 = vadd.f32 %v5927, %v6312
    %v6377 = vadd.f32 %v5928, %v6313
    %v6378 = vadd.f32 %v5929, %v6314
    %v6379 = vadd.f32 %v5930, %v6315
    %v6380 = vadd.f32 %v5931, %v6316
    %v6381 = vadd.f32 %v5932, %v6317
    %v6382 = vadd.f32 %v5933, %v6318
    %v6383 = vadd.f32 %v5934, %v6319
    %v6384 = vadd.f32 %v5935, %v6320
    %v6385 = vadd.f32 %v5936, %v6321
    %v6386 = vadd.f32 %v5937, %v6322
    %v6387 = vadd.f32 %v5938, %v6323
    %v6388 = vadd.f32 %v5939, %v6324
    %v6389 = vadd.f32 %v5940, %v6325
    %v6390 = vadd.f32 %v5941, %v6326
    %v6391 = vadd.f32 %v5942, %v6327
    %v6392 = vadd.f32 %v5943, %v6328
    %v6393 = vadd.f32 %v5944, %v6329
    %v6394 = vadd.f32 %v5945, %v6330
    %v6395 = vadd.f32 %v5946, %v6331
    %v6396 = vadd.f32 %v5947, %v6332
    %v6397 = vadd.f32 %v5948, %v6333
    %v6398 = vadd.f32 %v5949, %v6334
    %v6399 = vadd.f32 %v5950, %v6335
    %v6400 = vadd.f32 %v5951, %v6336
    %v6401 = vadd.f32 %v5952, %v6337
    %v6402 = vadd.f32 %v5953, %v6338
    %v6403 = vadd.f32 %v5954, %v6339
    %v6404 = vadd.f32 %v5955, %v6340
    %v6405 = vadd.f32 %v5956, %v6341
    %v6406 = vadd.f32 %v5957, %v6342
    %v6407 = vadd.f32 %v5958, %v6343
    %v6408 = vadd.f32 %v5959, %v6344
    %v6409 = vadd.f32 %v5960, %v6345
    %v6410 = vadd.f32 %v5961, %v6346
    %v6411 = vadd.f32 %v5962, %v6347
    %v6412 = vadd.f32 %v5963, %v6348
    %v6413 = vadd.f32 %v5964, %v6349
    %6414 = vmatprep.subr.mxu0 %v5441
    %6415 = vmatpush1.msra.mxu0 %v5440
    %6416 = vmatprep.subr.mxu0 %v5443
    %6417 = vmatpush1.msra.mxu0 %v5442
    %6418 = vmatprep.subr.mxu0 %v5445
    %6419 = vmatpush1.msra.mxu0 %v5444
    %6420 = vmatprep.subr.mxu0 %v5447
    %6421 = vmatpush1.msra.mxu0 %v5446
    %6422 = vmatprep.subr.mxu0 %v5449
    %6423 = vmatpush1.msra.mxu0 %v5448
    %6424 = vmatprep.subr.mxu0 %v5451
    %6425 = vmatpush1.msra.mxu0 %v5450
    %6426 = vmatprep.subr.mxu0 %v5453
    %6427 = vmatpush1.msra.mxu0 %v5452
    %6428 = vmatprep.subr.mxu0 %v5455
    %6429 = vmatpush1.msra.mxu0 %v5454
    %6430 = vmatprep.subr.mxu0 %v5457
    %6431 = vmatpush1.msra.mxu0 %v5456
    %6432 = vmatprep.subr.mxu0 %v5459
    %6433 = vmatpush1.msra.mxu0 %v5458
    %6434 = vmatprep.subr.mxu0 %v5461
    %6435 = vmatpush1.msra.mxu0 %v5460
    %6436 = vmatprep.subr.mxu0 %v5463
    %6437 = vmatpush1.msra.mxu0 %v5462
    %6438 = vmatprep.subr.mxu0 %v5465
    %6439 = vmatpush1.msra.mxu0 %v5464
    %6440 = vmatprep.subr.mxu0 %v5467
    %6441 = vmatpush1.msra.mxu0 %v5466
    %6442 = vmatprep.subr.mxu0 %v5469
    %6443 = vmatpush1.msra.mxu0 %v5468
    %6444 = vmatprep.subr.mxu0 %v5471
    %6445 = vmatpush1.msra.mxu0 %v5470
    %6446 = vmatprep.subr.mxu0 %v5473
    %6447 = vmatpush1.msra.mxu0 %v5472
    %6448 = vmatprep.subr.mxu0 %v5475
    %6449 = vmatpush1.msra.mxu0 %v5474
    %6450 = vmatprep.subr.mxu0 %v5477
    %6451 = vmatpush1.msra.mxu0 %v5476
    %6452 = vmatprep.subr.mxu0 %v5479
    %6453 = vmatpush1.msra.mxu0 %v5478
    %6454 = vmatprep.subr.mxu0 %v5481
    %6455 = vmatpush1.msra.mxu0 %v5480
    %6456 = vmatprep.subr.mxu0 %v5483
    %6457 = vmatpush1.msra.mxu0 %v5482
    %6458 = vmatprep.subr.mxu0 %v5485
    %6459 = vmatpush1.msra.mxu0 %v5484
    %6460 = vmatprep.subr.mxu0 %v5487
    %6461 = vmatpush1.msra.mxu0 %v5486
    %6462 = vmatprep.subr.mxu0 %v5489
    %6463 = vmatpush1.msra.mxu0 %v5488
    %6464 = vmatprep.subr.mxu0 %v5491
    %6465 = vmatpush1.msra.mxu0 %v5490
    %6466 = vmatprep.subr.mxu0 %v5493
    %6467 = vmatpush1.msra.mxu0 %v5492
    %6468 = vmatprep.subr.mxu0 %v5495
    %6469 = vmatpush1.msra.mxu0 %v5494
    %6470 = vmatprep.subr.mxu0 %v5497
    %6471 = vmatpush1.msra.mxu0 %v5496
    %6472 = vmatprep.subr.mxu0 %v5499
    %6473 = vmatpush1.msra.mxu0 %v5498
    %6474 = vmatprep.subr.mxu0 %v5501
    %6475 = vmatpush1.msra.mxu0 %v5500
    %6476 = vmatprep.subr.mxu0 %v5503
    %6477 = vmatpush1.msra.mxu0 %v5502
    %6478 = vmatprep.mubr.f32.mxu0 %v6287
    %6479 = vmatmul.mubr.f32.gmra.mrb[0].mxu0 %v6286
    %v6480 = vpop.f32.mrb[0].mxu0
    %v6481 = vadd.f32 %v5509, %v6480
    %v6482 = vpop.f32.mrb[0].mxu0
    %v6483 = vadd.f32 %v5513, %v6482
    %6484 = vmatprep.mubr.f32.mxu0 %v6289
    %6485 = vmatmul.mubr.f32.gmra.mrb[0].mxu0 %v6288
    %v6486 = vpop.f32.mrb[0].mxu0
    %v6487 = vadd.f32 %v5509, %v6486
    %v6488 = vpop.f32.mrb[0].mxu0
    %v6489 = vadd.f32 %v5513, %v6488
    %6490 = vmatprep.mubr.f32.mxu0 %v6291
    %6491 = vmatmul.mubr.f32.gmra.mrb[0].mxu0 %v6290
    %v6492 = vpop.f32.mrb[0].mxu0
    %v6493 = vadd.f32 %v5509, %v6492
    %v6494 = vpop.f32.mrb[0].mxu0
    %v6495 = vadd.f32 %v5513, %v6494
    %6496 = vmatprep.mubr.f32.mxu0 %v6293
    %6497 = vmatmul.mubr.f32.gmra.mrb[0].mxu0 %v6292
    %v6498 = vpop.f32.mrb[0].mxu0
    %v6499 = vadd.f32 %v5509, %v6498
    %v6500 = vpop.f32.mrb[0].mxu0
    %v6501 = vadd.f32 %v5513, %v6500
    %6502 = vmatprep.mubr.f32.mxu0 %v6295
    %6503 = vmatmul.mubr.f32.gmra.mrb[0].mxu0 %v6294
    %v6504 = vpop.f32.mrb[0].mxu0
    %v6505 = vadd.f32 %v5509, %v6504
    %v6506 = vpop.f32.mrb[0].mxu0
    %v6507 = vadd.f32 %v5513, %v6506
    %6508 = vmatprep.mubr.f32.mxu0 %v6297
    %6509 = vmatmul.mubr.f32.gmra.mrb[0].mxu0 %v6296
    %v6510 = vpop.f32.mrb[0].mxu0
    %v6511 = vadd.f32 %v5509, %v6510
    %v6512 = vpop.f32.mrb[0].mxu0
    %v6513 = vadd.f32 %v5513, %v6512
    %6514 = vmatprep.mubr.f32.mxu0 %v6299
    %6515 = vmatmul.mubr.f32.gmra.mrb[0].mxu0 %v6298
    %v6516 = vpop.f32.mrb[0].mxu0
    %v6517 = vadd.f32 %v5509, %v6516
    %v6518 = vpop.f32.mrb[0].mxu0
    %v6519 = vadd.f32 %v5513, %v6518
    %6520 = vmatprep.mubr.f32.mxu0 %v6301
    %6521 = vmatmul.mubr.f32.gmra.mrb[0].mxu0 %v6300
    %v6522 = vpop.f32.mrb[0].mxu0
    %v6523 = vadd.f32 %v5509, %v6522
    %v6524 = vpop.f32.mrb[0].mxu0
    %v6525 = vadd.f32 %v5513, %v6524
    %6526 = vmatprep.mubr.f32.mxu0 %v6303
    %6527 = vmatmul.mubr.f32.gmra.mrb[0].mxu0 %v6302
    %v6528 = vpop.f32.mrb[0].mxu0
    %v6529 = vadd.f32 %v5509, %v6528
    %v6530 = vpop.f32.mrb[0].mxu0
    %v6531 = vadd.f32 %v5513, %v6530
    %6532 = vmatprep.mubr.f32.mxu0 %v6305
    %6533 = vmatmul.mubr.f32.gmra.mrb[0].mxu0 %v6304
    %v6534 = vpop.f32.mrb[0].mxu0
    %v6535 = vadd.f32 %v5509, %v6534
    %v6536 = vpop.f32.mrb[0].mxu0
    %v6537 = vadd.f32 %v5513, %v6536
    %6538 = vmatprep.mubr.f32.mxu0 %v6307
    %6539 = vmatmul.mubr.f32.gmra.mrb[0].mxu0 %v6306
    %v6540 = vpop.f32.mrb[0].mxu0
    %v6541 = vadd.f32 %v5509, %v6540
    %v6542 = vpop.f32.mrb[0].mxu0
    %v6543 = vadd.f32 %v5513, %v6542
    %6544 = vmatprep.mubr.f32.mxu0 %v6309
    %6545 = vmatmul.mubr.f32.gmra.mrb[0].mxu0 %v6308
    %v6546 = vpop.f32.mrb[0].mxu0
    %v6547 = vadd.f32 %v5509, %v6546
    %v6548 = vpop.f32.mrb[0].mxu0
    %v6549 = vadd.f32 %v5513, %v6548
    %6550 = vmatprep.mubr.f32.mxu0 %v6311
    %6551 = vmatmul.mubr.f32.gmra.mrb[0].mxu0 %v6310
    %v6552 = vpop.f32.mrb[0].mxu0
    %v6553 = vadd.f32 %v5509, %v6552
    %v6554 = vpop.f32.mrb[0].mxu0
    %v6555 = vadd.f32 %v5513, %v6554
    %6556 = vmatprep.mubr.f32.mxu0 %v6313
    %6557 = vmatmul.mubr.f32.gmra.mrb[0].mxu0 %v6312
    %v6558 = vpop.f32.mrb[0].mxu0
    %v6559 = vadd.f32 %v5509, %v6558
    %v6560 = vpop.f32.mrb[0].mxu0
    %v6561 = vadd.f32 %v5513, %v6560
    %6562 = vmatprep.mubr.f32.mxu0 %v6315
    %6563 = vmatmul.mubr.f32.gmra.mrb[0].mxu0 %v6314
    %v6564 = vpop.f32.mrb[0].mxu0
    %v6565 = vadd.f32 %v5509, %v6564
    %v6566 = vpop.f32.mrb[0].mxu0
    %v6567 = vadd.f32 %v5513, %v6566
    %6568 = vmatprep.mubr.f32.mxu0 %v6317
    %6569 = vmatmul.mubr.f32.gmra.mrb[0].mxu0 %v6316
    %v6570 = vpop.f32.mrb[0].mxu0
    %v6571 = vadd.f32 %v5509, %v6570
    %v6572 = vpop.f32.mrb[0].mxu0
    %v6573 = vadd.f32 %v5513, %v6572
    %6574 = vmatprep.mubr.f32.mxu0 %v6319
    %6575 = vmatmul.mubr.f32.gmra.mrb[0].mxu0 %v6318
    %v6576 = vpop.f32.mrb[0].mxu0
    %v6577 = vadd.f32 %v5509, %v6576
    %v6578 = vpop.f32.mrb[0].mxu0
    %v6579 = vadd.f32 %v5513, %v6578
    %6580 = vmatprep.mubr.f32.mxu0 %v6321
    %6581 = vmatmul.mubr.f32.gmra.mrb[0].mxu0 %v6320
    %v6582 = vpop.f32.mrb[0].mxu0
    %v6583 = vadd.f32 %v5509, %v6582
    %v6584 = vpop.f32.mrb[0].mxu0
    %v6585 = vadd.f32 %v5513, %v6584
    %6586 = vmatprep.mubr.f32.mxu0 %v6323
    %6587 = vmatmul.mubr.f32.gmra.mrb[0].mxu0 %v6322
    %v6588 = vpop.f32.mrb[0].mxu0
    %v6589 = vadd.f32 %v5509, %v6588
    %v6590 = vpop.f32.mrb[0].mxu0
    %v6591 = vadd.f32 %v5513, %v6590
    %6592 = vmatprep.mubr.f32.mxu0 %v6325
    %6593 = vmatmul.mubr.f32.gmra.mrb[0].mxu0 %v6324
    %v6594 = vpop.f32.mrb[0].mxu0
    %v6595 = vadd.f32 %v5509, %v6594
    %v6596 = vpop.f32.mrb[0].mxu0
    %v6597 = vadd.f32 %v5513, %v6596
    %6598 = vmatprep.mubr.f32.mxu0 %v6327
    %6599 = vmatmul.mubr.f32.gmra.mrb[0].mxu0 %v6326
    %v6600 = vpop.f32.mrb[0].mxu0
    %v6601 = vadd.f32 %v5509, %v6600
    %v6602 = vpop.f32.mrb[0].mxu0
    %v6603 = vadd.f32 %v5513, %v6602
    %6604 = vmatprep.mubr.f32.mxu0 %v6329
    %6605 = vmatmul.mubr.f32.gmra.mrb[0].mxu0 %v6328
    %v6606 = vpop.f32.mrb[0].mxu0
    %v6607 = vadd.f32 %v5509, %v6606
    %v6608 = vpop.f32.mrb[0].mxu0
    %v6609 = vadd.f32 %v5513, %v6608
    %6610 = vmatprep.mubr.f32.mxu0 %v6331
    %6611 = vmatmul.mubr.f32.gmra.mrb[0].mxu0 %v6330
    %v6612 = vpop.f32.mrb[0].mxu0
    %v6613 = vadd.f32 %v5509, %v6612
    %v6614 = vpop.f32.mrb[0].mxu0
    %v6615 = vadd.f32 %v5513, %v6614
    %6616 = vmatprep.mubr.f32.mxu0 %v6333
    %6617 = vmatmul.mubr.f32.gmra.mrb[0].mxu0 %v6332
    %v6618 = vpop.f32.mrb[0].mxu0
    %v6619 = vadd.f32 %v5509, %v6618
    %v6620 = vpop.f32.mrb[0].mxu0
    %v6621 = vadd.f32 %v5513, %v6620
    %6622 = vmatprep.mubr.f32.mxu0 %v6335
    %6623 = vmatmul.mubr.f32.gmra.mrb[0].mxu0 %v6334
    %v6624 = vpop.f32.mrb[0].mxu0
    %v6625 = vadd.f32 %v5509, %v6624
    %v6626 = vpop.f32.mrb[0].mxu0
    %v6627 = vadd.f32 %v5513, %v6626
    %6628 = vmatprep.mubr.f32.mxu0 %v6337
    %6629 = vmatmul.mubr.f32.gmra.mrb[0].mxu0 %v6336
    %v6630 = vpop.f32.mrb[0].mxu0
    %v6631 = vadd.f32 %v5509, %v6630
    %v6632 = vpop.f32.mrb[0].mxu0
    %v6633 = vadd.f32 %v5513, %v6632
    %6634 = vmatprep.mubr.f32.mxu0 %v6339
    %6635 = vmatmul.mubr.f32.gmra.mrb[0].mxu0 %v6338
    %v6636 = vpop.f32.mrb[0].mxu0
    %v6637 = vadd.f32 %v5509, %v6636
    %v6638 = vpop.f32.mrb[0].mxu0
    %v6639 = vadd.f32 %v5513, %v6638
    %6640 = vmatprep.mubr.f32.mxu0 %v6341
    %6641 = vmatmul.mubr.f32.gmra.mrb[0].mxu0 %v6340
    %v6642 = vpop.f32.mrb[0].mxu0
    %v6643 = vadd.f32 %v5509, %v6642
    %v6644 = vpop.f32.mrb[0].mxu0
    %v6645 = vadd.f32 %v5513, %v6644
    %6646 = vmatprep.mubr.f32.mxu0 %v6343
    %6647 = vmatmul.mubr.f32.gmra.mrb[0].mxu0 %v6342
    %v6648 = vpop.f32.mrb[0].mxu0
    %v6649 = vadd.f32 %v5509, %v6648
    %v6650 = vpop.f32.mrb[0].mxu0
    %v6651 = vadd.f32 %v5513, %v6650
    %6652 = vmatprep.mubr.f32.mxu0 %v6345
    %6653 = vmatmul.mubr.f32.gmra.mrb[0].mxu0 %v6344
    %v6654 = vpop.f32.mrb[0].mxu0
    %v6655 = vadd.f32 %v5509, %v6654
    %v6656 = vpop.f32.mrb[0].mxu0
    %v6657 = vadd.f32 %v5513, %v6656
    %6658 = vmatprep.mubr.f32.mxu0 %v6347
    %6659 = vmatmul.mubr.f32.gmra.mrb[0].mxu0 %v6346
    %v6660 = vpop.f32.mrb[0].mxu0
    %v6661 = vadd.f32 %v5509, %v6660
    %v6662 = vpop.f32.mrb[0].mxu0
    %v6663 = vadd.f32 %v5513, %v6662
    %6664 = vmatprep.mubr.f32.mxu0 %v6349
    %6665 = vmatmul.mubr.f32.gmra.mrb[0].mxu0 %v6348
    %v6666 = vpop.f32.mrb[0].mxu0
    %v6667 = vadd.f32 %v5509, %v6666
    %v6668 = vpop.f32.mrb[0].mxu0
    %v6669 = vadd.f32 %v5513, %v6668
    %6670 = vdwg.mxu0
    %v6671 = vadd.f32 %v6481, %v6350
    %v6672 = vadd.f32 %v6483, %v6351
    %v6673 = vadd.f32 %v6487, %v6352
    %v6674 = vadd.f32 %v6489, %v6353
    %v6675 = vadd.f32 %v6493, %v6354
    %v6676 = vadd.f32 %v6495, %v6355
    %v6677 = vadd.f32 %v6499, %v6356
    %v6678 = vadd.f32 %v6501, %v6357
    %v6679 = vadd.f32 %v6505, %v6358
    %v6680 = vadd.f32 %v6507, %v6359
    %v6681 = vadd.f32 %v6511, %v6360
    %v6682 = vadd.f32 %v6513, %v6361
    %v6683 = vadd.f32 %v6517, %v6362
    %v6684 = vadd.f32 %v6519, %v6363
    %v6685 = vadd.f32 %v6523, %v6364
    %v6686 = vadd.f32 %v6525, %v6365
    %v6687 = vadd.f32 %v6529, %v6366
    %v6688 = vadd.f32 %v6531, %v6367
    %v6689 = vadd.f32 %v6535, %v6368
    %v6690 = vadd.f32 %v6537, %v6369
    %v6691 = vadd.f32 %v6541, %v6370
    %v6692 = vadd.f32 %v6543, %v6371
    %v6693 = vadd.f32 %v6547, %v6372
    %v6694 = vadd.f32 %v6549, %v6373
    %v6695 = vadd.f32 %v6553, %v6374
    %v6696 = vadd.f32 %v6555, %v6375
    %v6697 = vadd.f32 %v6559, %v6376
    %v6698 = vadd.f32 %v6561, %v6377
    %v6699 = vadd.f32 %v6565, %v6378
    %v6700 = vadd.f32 %v6567, %v6379
    %v6701 = vadd.f32 %v6571, %v6380
    %v6702 = vadd.f32 %v6573, %v6381
    %v6703 = vadd.f32 %v6577, %v6382
    %v6704 = vadd.f32 %v6579, %v6383
    %v6705 = vadd.f32 %v6583, %v6384
    %v6706 = vadd.f32 %v6585, %v6385
    %v6707 = vadd.f32 %v6589, %v6386
    %v6708 = vadd.f32 %v6591, %v6387
    %v6709 = vadd.f32 %v6595, %v6388
    %v6710 = vadd.f32 %v6597, %v6389
    %v6711 = vadd.f32 %v6601, %v6390
    %v6712 = vadd.f32 %v6603, %v6391
    %v6713 = vadd.f32 %v6607, %v6392
    %v6714 = vadd.f32 %v6609, %v6393
    %v6715 = vadd.f32 %v6613, %v6394
    %v6716 = vadd.f32 %v6615, %v6395
    %v6717 = vadd.f32 %v6619, %v6396
    %v6718 = vadd.f32 %v6621, %v6397
    %v6719 = vadd.f32 %v6625, %v6398
    %v6720 = vadd.f32 %v6627, %v6399
    %v6721 = vadd.f32 %v6631, %v6400
    %v6722 = vadd.f32 %v6633, %v6401
    %v6723 = vadd.f32 %v6637, %v6402
    %v6724 = vadd.f32 %v6639, %v6403
    %v6725 = vadd.f32 %v6643, %v6404
    %v6726 = vadd.f32 %v6645, %v6405
    %v6727 = vadd.f32 %v6649, %v6406
    %v6728 = vadd.f32 %v6651, %v6407
    %v6729 = vadd.f32 %v6655, %v6408
    %v6730 = vadd.f32 %v6657, %v6409
    %v6731 = vadd.f32 %v6661, %v6410
    %v6732 = vadd.f32 %v6663, %v6411
    %v6733 = vadd.f32 %v6667, %v6412
    %v6734 = vadd.f32 %v6669, %v6413
    %v6735 = vmax.f32 %v6671, 0.0
    %v6736 = vmax.f32 %v6672, 0.0
    %v6737 = vmax.f32 %v6673, 0.0
    %v6738 = vmax.f32 %v6674, 0.0
    %v6739 = vmax.f32 %v6675, 0.0
    %v6740 = vmax.f32 %v6676, 0.0
    %v6741 = vmax.f32 %v6677, 0.0
    %v6742 = vmax.f32 %v6678, 0.0
    %v6743 = vmax.f32 %v6679, 0.0
    %v6744 = vmax.f32 %v6680, 0.0
    %v6745 = vmax.f32 %v6681, 0.0
    %v6746 = vmax.f32 %v6682, 0.0
    %v6747 = vmax.f32 %v6683, 0.0
    %v6748 = vmax.f32 %v6684, 0.0
    %v6749 = vmax.f32 %v6685, 0.0
    %v6750 = vmax.f32 %v6686, 0.0
    %v6751 = vmax.f32 %v6687, 0.0
    %v6752 = vmax.f32 %v6688, 0.0
    %v6753 = vmax.f32 %v6689, 0.0
    %v6754 = vmax.f32 %v6690, 0.0
    %v6755 = vmax.f32 %v6691, 0.0
    %v6756 = vmax.f32 %v6692, 0.0
    %v6757 = vmax.f32 %v6693, 0.0
    %v6758 = vmax.f32 %v6694, 0.0
    %v6759 = vmax.f32 %v6695, 0.0
    %v6760 = vmax.f32 %v6696, 0.0
    %v6761 = vmax.f32 %v6697, 0.0
    %v6762 = vmax.f32 %v6698, 0.0
    %v6763 = vmax.f32 %v6699, 0.0
    %v6764 = vmax.f32 %v6700, 0.0
    %v6765 = vmax.f32 %v6701, 0.0
    %v6766 = vmax.f32 %v6702, 0.0
    %v6767 = vmax.f32 %v6703, 0.0
    %v6768 = vmax.f32 %v6704, 0.0
    %v6769 = vmax.f32 %v6705, 0.0
    %v6770 = vmax.f32 %v6706, 0.0
    %v6771 = vmax.f32 %v6707, 0.0
    %v6772 = vmax.f32 %v6708, 0.0
    %v6773 = vmax.f32 %v6709, 0.0
    %v6774 = vmax.f32 %v6710, 0.0
    %v6775 = vmax.f32 %v6711, 0.0
    %v6776 = vmax.f32 %v6712, 0.0
    %v6777 = vmax.f32 %v6713, 0.0
    %v6778 = vmax.f32 %v6714, 0.0
    %v6779 = vmax.f32 %v6715, 0.0
    %v6780 = vmax.f32 %v6716, 0.0
    %v6781 = vmax.f32 %v6717, 0.0
    %v6782 = vmax.f32 %v6718, 0.0
    %v6783 = vmax.f32 %v6719, 0.0
    %v6784 = vmax.f32 %v6720, 0.0
    %v6785 = vmax.f32 %v6721, 0.0
    %v6786 = vmax.f32 %v6722, 0.0
    %v6787 = vmax.f32 %v6723, 0.0
    %v6788 = vmax.f32 %v6724, 0.0
    %v6789 = vmax.f32 %v6725, 0.0
    %v6790 = vmax.f32 %v6726, 0.0
    %v6791 = vmax.f32 %v6727, 0.0
    %v6792 = vmax.f32 %v6728, 0.0
    %v6793 = vmax.f32 %v6729, 0.0
    %v6794 = vmax.f32 %v6730, 0.0
    %v6795 = vmax.f32 %v6731, 0.0
    %v6796 = vmax.f32 %v6732, 0.0
    %v6797 = vmax.f32 %v6733, 0.0
    %v6798 = vmax.f32 %v6734, 0.0
    %v6799 = vadd.f32 %v6350, %v6735
    %v6800 = vadd.f32 %v6351, %v6736
    %v6801 = vadd.f32 %v6352, %v6737
    %v6802 = vadd.f32 %v6353, %v6738
    %v6803 = vadd.f32 %v6354, %v6739
    %v6804 = vadd.f32 %v6355, %v6740
    %v6805 = vadd.f32 %v6356, %v6741
    %v6806 = vadd.f32 %v6357, %v6742
    %v6807 = vadd.f32 %v6358, %v6743
    %v6808 = vadd.f32 %v6359, %v6744
    %v6809 = vadd.f32 %v6360, %v6745
    %v6810 = vadd.f32 %v6361, %v6746
    %v6811 = vadd.f32 %v6362, %v6747
    %v6812 = vadd.f32 %v6363, %v6748
    %v6813 = vadd.f32 %v6364, %v6749
    %v6814 = vadd.f32 %v6365, %v6750
    %v6815 = vadd.f32 %v6366, %v6751
    %v6816 = vadd.f32 %v6367, %v6752
    %v6817 = vadd.f32 %v6368, %v6753
    %v6818 = vadd.f32 %v6369, %v6754
    %v6819 = vadd.f32 %v6370, %v6755
    %v6820 = vadd.f32 %v6371, %v6756
    %v6821 = vadd.f32 %v6372, %v6757
    %v6822 = vadd.f32 %v6373, %v6758
    %v6823 = vadd.f32 %v6374, %v6759
    %v6824 = vadd.f32 %v6375, %v6760
    %v6825 = vadd.f32 %v6376, %v6761
    %v6826 = vadd.f32 %v6377, %v6762
    %v6827 = vadd.f32 %v6378, %v6763
    %v6828 = vadd.f32 %v6379, %v6764
    %v6829 = vadd.f32 %v6380, %v6765
    %v6830 = vadd.f32 %v6381, %v6766
    %v6831 = vadd.f32 %v6382, %v6767
    %v6832 = vadd.f32 %v6383, %v6768
    %v6833 = vadd.f32 %v6384, %v6769
    %v6834 = vadd.f32 %v6385, %v6770
    %v6835 = vadd.f32 %v6386, %v6771
    %v6836 = vadd.f32 %v6387, %v6772
    %v6837 = vadd.f32 %v6388, %v6773
    %v6838 = vadd.f32 %v6389, %v6774
    %v6839 = vadd.f32 %v6390, %v6775
    %v6840 = vadd.f32 %v6391, %v6776
    %v6841 = vadd.f32 %v6392, %v6777
    %v6842 = vadd.f32 %v6393, %v6778
    %v6843 = vadd.f32 %v6394, %v6779
    %v6844 = vadd.f32 %v6395, %v6780
    %v6845 = vadd.f32 %v6396, %v6781
    %v6846 = vadd.f32 %v6397, %v6782
    %v6847 = vadd.f32 %v6398, %v6783
    %v6848 = vadd.f32 %v6399, %v6784
    %v6849 = vadd.f32 %v6400, %v6785
    %v6850 = vadd.f32 %v6401, %v6786
    %v6851 = vadd.f32 %v6402, %v6787
    %v6852 = vadd.f32 %v6403, %v6788
    %v6853 = vadd.f32 %v6404, %v6789
    %v6854 = vadd.f32 %v6405, %v6790
    %v6855 = vadd.f32 %v6406, %v6791
    %v6856 = vadd.f32 %v6407, %v6792
    %v6857 = vadd.f32 %v6408, %v6793
    %v6858 = vadd.f32 %v6409, %v6794
    %v6859 = vadd.f32 %v6410, %v6795
    %v6860 = vadd.f32 %v6411, %v6796
    %v6861 = vadd.f32 %v6412, %v6797
    %v6862 = vadd.f32 %v6413, %v6798
    %6863 = vmatprep.subr.mxu0 %v5441
    %6864 = vmatpush1.msra.mxu0 %v5440
    %6865 = vmatprep.subr.mxu0 %v5443
    %6866 = vmatpush1.msra.mxu0 %v5442
    %6867 = vmatprep.subr.mxu0 %v5445
    %6868 = vmatpush1.msra.mxu0 %v5444
    %6869 = vmatprep.subr.mxu0 %v5447
    %6870 = vmatpush1.msra.mxu0 %v5446
    %6871 = vmatprep.subr.mxu0 %v5449
    %6872 = vmatpush1.msra.mxu0 %v5448
    %6873 = vmatprep.subr.mxu0 %v5451
    %6874 = vmatpush1.msra.mxu0 %v5450
    %6875 = vmatprep.subr.mxu0 %v5453
    %6876 = vmatpush1.msra.mxu0 %v5452
    %6877 = vmatprep.subr.mxu0 %v5455
    %6878 = vmatpush1.msra.mxu0 %v5454
    %6879 = vmatprep.subr.mxu0 %v5457
    %6880 = vmatpush1.msra.mxu0 %v5456
    %6881 = vmatprep.subr.mxu0 %v5459
    %6882 = vmatpush1.msra.mxu0 %v5458
    %6883 = vmatprep.subr.mxu0 %v5461
    %6884 = vmatpush1.msra.mxu0 %v5460
    %6885 = vmatprep.subr.mxu0 %v5463
    %6886 = vmatpush1.msra.mxu0 %v5462
    %6887 = vmatprep.subr.mxu0 %v5465
    %6888 = vmatpush1.msra.mxu0 %v5464
    %6889 = vmatprep.subr.mxu0 %v5467
    %6890 = vmatpush1.msra.mxu0 %v5466
    %6891 = vmatprep.subr.mxu0 %v5469
    %6892 = vmatpush1.msra.mxu0 %v5468
    %6893 = vmatprep.subr.mxu0 %v5471
    %6894 = vmatpush1.msra.mxu0 %v5470
    %6895 = vmatprep.subr.mxu0 %v5473
    %6896 = vmatpush1.msra.mxu0 %v5472
    %6897 = vmatprep.subr.mxu0 %v5475
    %6898 = vmatpush1.msra.mxu0 %v5474
    %6899 = vmatprep.subr.mxu0 %v5477
    %6900 = vmatpush1.msra.mxu0 %v5476
    %6901 = vmatprep.subr.mxu0 %v5479
    %6902 = vmatpush1.msra.mxu0 %v5478
    %6903 = vmatprep.subr.mxu0 %v5481
    %6904 = vmatpush1.msra.mxu0 %v5480
    %6905 = vmatprep.subr.mxu0 %v5483
    %6906 = vmatpush1.msra.mxu0 %v5482
    %6907 = vmatprep.subr.mxu0 %v5485
    %6908 = vmatpush1.msra.mxu0 %v5484
    %6909 = vmatprep.subr.mxu0 %v5487
    %6910 = vmatpush1.msra.mxu0 %v5486
    %6911 = vmatprep.subr.mxu0 %v5489
    %6912 = vmatpush1.msra.mxu0 %v5488
    %6913 = vmatprep.subr.mxu0 %v5491
    %6914 = vmatpush1.msra.mxu0 %v5490
    %6915 = vmatprep.subr.mxu0 %v5493
    %6916 = vmatpush1.msra.mxu0 %v5492
    %6917 = vmatprep.subr.mxu0 %v5495
    %6918 = vmatpush1.msra.mxu0 %v5494
    %6919 = vmatprep.subr.mxu0 %v5497
    %6920 = vmatpush1.msra.mxu0 %v5496
    %6921 = vmatprep.subr.mxu0 %v5499
    %6922 = vmatpush1.msra.mxu0 %v5498
    %6923 = vmatprep.subr.mxu0 %v5501
    %6924 = vmatpush1.msra.mxu0 %v5500
    %6925 = vmatprep.subr.mxu0 %v5503
    %6926 = vmatpush1.msra.mxu0 %v5502
    %6927 = vmatprep.mubr.f32.mxu0 %v6736
    %6928 = vmatmul.mubr.f32.gmra.mrb[0].mxu0 %v6735
    %v6929 = vpop.f32.mrb[0].mxu0
    %v6930 = vadd.f32 %v5509, %v6929
    %v6931 = vpop.f32.mrb[0].mxu0
    %v6932 = vadd.f32 %v5513, %v6931
    %6933 = vmatprep.mubr.f32.mxu0 %v6738
    %6934 = vmatmul.mubr.f32.gmra.mrb[0].mxu0 %v6737
    %v6935 = vpop.f32.mrb[0].mxu0
    %v6936 = vadd.f32 %v5509, %v6935
    %v6937 = vpop.f32.mrb[0].mxu0
    %v6938 = vadd.f32 %v5513, %v6937
    %6939 = vmatprep.mubr.f32.mxu0 %v6740
    %6940 = vmatmul.mubr.f32.gmra.mrb[0].mxu0 %v6739
    %v6941 = vpop.f32.mrb[0].mxu0
    %v6942 = vadd.f32 %v5509, %v6941
    %v6943 = vpop.f32.mrb[0].mxu0
    %v6944 = vadd.f32 %v5513, %v6943
    %6945 = vmatprep.mubr.f32.mxu0 %v6742
    %6946 = vmatmul.mubr.f32.gmra.mrb[0].mxu0 %v6741
    %v6947 = vpop.f32.mrb[0].mxu0
    %v6948 = vadd.f32 %v5509, %v6947
    %v6949 = vpop.f32.mrb[0].mxu0
    %v6950 = vadd.f32 %v5513, %v6949
    %6951 = vmatprep.mubr.f32.mxu0 %v6744
    %6952 = vmatmul.mubr.f32.gmra.mrb[0].mxu0 %v6743
    %v6953 = vpop.f32.mrb[0].mxu0
    %v6954 = vadd.f32 %v5509, %v6953
    %v6955 = vpop.f32.mrb[0].mxu0
    %v6956 = vadd.f32 %v5513, %v6955
    %6957 = vmatprep.mubr.f32.mxu0 %v6746
    %6958 = vmatmul.mubr.f32.gmra.mrb[0].mxu0 %v6745
    %v6959 = vpop.f32.mrb[0].mxu0
    %v6960 = vadd.f32 %v5509, %v6959
    %v6961 = vpop.f32.mrb[0].mxu0
    %v6962 = vadd.f32 %v5513, %v6961
    %6963 = vmatprep.mubr.f32.mxu0 %v6748
    %6964 = vmatmul.mubr.f32.gmra.mrb[0].mxu0 %v6747
    %v6965 = vpop.f32.mrb[0].mxu0
    %v6966 = vadd.f32 %v5509, %v6965
    %v6967 = vpop.f32.mrb[0].mxu0
    %v6968 = vadd.f32 %v5513, %v6967
    %6969 = vmatprep.mubr.f32.mxu0 %v6750
    %6970 = vmatmul.mubr.f32.gmra.mrb[0].mxu0 %v6749
    %v6971 = vpop.f32.mrb[0].mxu0
    %v6972 = vadd.f32 %v5509, %v6971
    %v6973 = vpop.f32.mrb[0].mxu0
    %v6974 = vadd.f32 %v5513, %v6973
    %6975 = vmatprep.mubr.f32.mxu0 %v6752
    %6976 = vmatmul.mubr.f32.gmra.mrb[0].mxu0 %v6751
    %v6977 = vpop.f32.mrb[0].mxu0
    %v6978 = vadd.f32 %v5509, %v6977
    %v6979 = vpop.f32.mrb[0].mxu0
    %v6980 = vadd.f32 %v5513, %v6979
    %6981 = vmatprep.mubr.f32.mxu0 %v6754
    %6982 = vmatmul.mubr.f32.gmra.mrb[0].mxu0 %v6753
    %v6983 = vpop.f32.mrb[0].mxu0
    %v6984 = vadd.f32 %v5509, %v6983
    %v6985 = vpop.f32.mrb[0].mxu0
    %v6986 = vadd.f32 %v5513, %v6985
    %6987 = vmatprep.mubr.f32.mxu0 %v6756
    %6988 = vmatmul.mubr.f32.gmra.mrb[0].mxu0 %v6755
    %v6989 = vpop.f32.mrb[0].mxu0
    %v6990 = vadd.f32 %v5509, %v6989
    %v6991 = vpop.f32.mrb[0].mxu0
    %v6992 = vadd.f32 %v5513, %v6991
    %6993 = vmatprep.mubr.f32.mxu0 %v6758
    %6994 = vmatmul.mubr.f32.gmra.mrb[0].mxu0 %v6757
    %v6995 = vpop.f32.mrb[0].mxu0
    %v6996 = vadd.f32 %v5509, %v6995
    %v6997 = vpop.f32.mrb[0].mxu0
    %v6998 = vadd.f32 %v5513, %v6997
    %6999 = vmatprep.mubr.f32.mxu0 %v6760
    %7000 = vmatmul.mubr.f32.gmra.mrb[0].mxu0 %v6759
    %v7001 = vpop.f32.mrb[0].mxu0
    %v7002 = vadd.f32 %v5509, %v7001
    %v7003 = vpop.f32.mrb[0].mxu0
    %v7004 = vadd.f32 %v5513, %v7003
    %7005 = vmatprep.mubr.f32.mxu0 %v6762
    %7006 = vmatmul.mubr.f32.gmra.mrb[0].mxu0 %v6761
    %v7007 = vpop.f32.mrb[0].mxu0
    %v7008 = vadd.f32 %v5509, %v7007
    %v7009 = vpop.f32.mrb[0].mxu0
    %v7010 = vadd.f32 %v5513, %v7009
    %7011 = vmatprep.mubr.f32.mxu0 %v6764
    %7012 = vmatmul.mubr.f32.gmra.mrb[0].mxu0 %v6763
    %v7013 = vpop.f32.mrb[0].mxu0
    %v7014 = vadd.f32 %v5509, %v7013
    %v7015 = vpop.f32.mrb[0].mxu0
    %v7016 = vadd.f32 %v5513, %v7015
    %7017 = vmatprep.mubr.f32.mxu0 %v6766
    %7018 = vmatmul.mubr.f32.gmra.mrb[0].mxu0 %v6765
    %v7019 = vpop.f32.mrb[0].mxu0
    %v7020 = vadd.f32 %v5509, %v7019
    %v7021 = vpop.f32.mrb[0].mxu0
    %v7022 = vadd.f32 %v5513, %v7021
    %7023 = vmatprep.mubr.f32.mxu0 %v6768
    %7024 = vmatmul.mubr.f32.gmra.mrb[0].mxu0 %v6767
    %v7025 = vpop.f32.mrb[0].mxu0
    %v7026 = vadd.f32 %v5509, %v7025
    %v7027 = vpop.f32.mrb[0].mxu0
    %v7028 = vadd.f32 %v5513, %v7027
    %7029 = vmatprep.mubr.f32.mxu0 %v6770
    %7030 = vmatmul.mubr.f32.gmra.mrb[0].mxu0 %v6769
    %v7031 = vpop.f32.mrb[0].mxu0
    %v7032 = vadd.f32 %v5509, %v7031
    %v7033 = vpop.f32.mrb[0].mxu0
    %v7034 = vadd.f32 %v5513, %v7033
    %7035 = vmatprep.mubr.f32.mxu0 %v6772
    %7036 = vmatmul.mubr.f32.gmra.mrb[0].mxu0 %v6771
    %v7037 = vpop.f32.mrb[0].mxu0
    %v7038 = vadd.f32 %v5509, %v7037
    %v7039 = vpop.f32.mrb[0].mxu0
    %v7040 = vadd.f32 %v5513, %v7039
    %7041 = vmatprep.mubr.f32.mxu0 %v6774
    %7042 = vmatmul.mubr.f32.gmra.mrb[0].mxu0 %v6773
    %v7043 = vpop.f32.mrb[0].mxu0
    %v7044 = vadd.f32 %v5509, %v7043
    %v7045 = vpop.f32.mrb[0].mxu0
    %v7046 = vadd.f32 %v5513, %v7045
    %7047 = vmatprep.mubr.f32.mxu0 %v6776
    %7048 = vmatmul.mubr.f32.gmra.mrb[0].mxu0 %v6775
    %v7049 = vpop.f32.mrb[0].mxu0
    %v7050 = vadd.f32 %v5509, %v7049
    %v7051 = vpop.f32.mrb[0].mxu0
    %v7052 = vadd.f32 %v5513, %v7051
    %7053 = vmatprep.mubr.f32.mxu0 %v6778
    %7054 = vmatmul.mubr.f32.gmra.mrb[0].mxu0 %v6777
    %v7055 = vpop.f32.mrb[0].mxu0
    %v7056 = vadd.f32 %v5509, %v7055
    %v7057 = vpop.f32.mrb[0].mxu0
    %v7058 = vadd.f32 %v5513, %v7057
    %7059 = vmatprep.mubr.f32.mxu0 %v6780
    %7060 = vmatmul.mubr.f32.gmra.mrb[0].mxu0 %v6779
    %v7061 = vpop.f32.mrb[0].mxu0
    %v7062 = vadd.f32 %v5509, %v7061
    %v7063 = vpop.f32.mrb[0].mxu0
    %v7064 = vadd.f32 %v5513, %v7063
    %7065 = vmatprep.mubr.f32.mxu0 %v6782
    %7066 = vmatmul.mubr.f32.gmra.mrb[0].mxu0 %v6781
    %v7067 = vpop.f32.mrb[0].mxu0
    %v7068 = vadd.f32 %v5509, %v7067
    %v7069 = vpop.f32.mrb[0].mxu0
    %v7070 = vadd.f32 %v5513, %v7069
    %7071 = vmatprep.mubr.f32.mxu0 %v6784
    %7072 = vmatmul.mubr.f32.gmra.mrb[0].mxu0 %v6783
    %v7073 = vpop.f32.mrb[0].mxu0
    %v7074 = vadd.f32 %v5509, %v7073
    %v7075 = vpop.f32.mrb[0].mxu0
    %v7076 = vadd.f32 %v5513, %v7075
    %7077 = vmatprep.mubr.f32.mxu0 %v6786
    %7078 = vmatmul.mubr.f32.gmra.mrb[0].mxu0 %v6785
    %v7079 = vpop.f32.mrb[0].mxu0
    %v7080 = vadd.f32 %v5509, %v7079
    %v7081 = vpop.f32.mrb[0].mxu0
    %v7082 = vadd.f32 %v5513, %v7081
    %7083 = vmatprep.mubr.f32.mxu0 %v6788
    %7084 = vmatmul.mubr.f32.gmra.mrb[0].mxu0 %v6787
    %v7085 = vpop.f32.mrb[0].mxu0
    %v7086 = vadd.f32 %v5509, %v7085
    %v7087 = vpop.f32.mrb[0].mxu0
    %v7088 = vadd.f32 %v5513, %v7087
    %7089 = vmatprep.mubr.f32.mxu0 %v6790
    %7090 = vmatmul.mubr.f32.gmra.mrb[0].mxu0 %v6789
    %v7091 = vpop.f32.mrb[0].mxu0
    %v7092 = vadd.f32 %v5509, %v7091
    %v7093 = vpop.f32.mrb[0].mxu0
    %v7094 = vadd.f32 %v5513, %v7093
    %7095 = vmatprep.mubr.f32.mxu0 %v6792
    %7096 = vmatmul.mubr.f32.gmra.mrb[0].mxu0 %v6791
    %v7097 = vpop.f32.mrb[0].mxu0
    %v7098 = vadd.f32 %v5509, %v7097
    %v7099 = vpop.f32.mrb[0].mxu0
    %v7100 = vadd.f32 %v5513, %v7099
    %7101 = vmatprep.mubr.f32.mxu0 %v6794
    %7102 = vmatmul.mubr.f32.gmra.mrb[0].mxu0 %v6793
    %v7103 = vpop.f32.mrb[0].mxu0
    %v7104 = vadd.f32 %v5509, %v7103
    %v7105 = vpop.f32.mrb[0].mxu0
    %v7106 = vadd.f32 %v5513, %v7105
    %7107 = vmatprep.mubr.f32.mxu0 %v6796
    %7108 = vmatmul.mubr.f32.gmra.mrb[0].mxu0 %v6795
    %v7109 = vpop.f32.mrb[0].mxu0
    %v7110 = vadd.f32 %v5509, %v7109
    %v7111 = vpop.f32.mrb[0].mxu0
    %v7112 = vadd.f32 %v5513, %v7111
    %7113 = vmatprep.mubr.f32.mxu0 %v6798
    %7114 = vmatmul.mubr.f32.gmra.mrb[0].mxu0 %v6797
    %v7115 = vpop.f32.mrb[0].mxu0
    %v7116 = vadd.f32 %v5509, %v7115
    %v7117 = vpop.f32.mrb[0].mxu0
    %v7118 = vadd.f32 %v5513, %v7117
    %7119 = vdwg.mxu0
    %v7120 = vadd.f32 %v6930, %v6799
    %v7121 = vadd.f32 %v6932, %v6800
    %v7122 = vadd.f32 %v6936, %v6801
    %v7123 = vadd.f32 %v6938, %v6802
    %v7124 = vadd.f32 %v6942, %v6803
    %v7125 = vadd.f32 %v6944, %v6804
    %v7126 = vadd.f32 %v6948, %v6805
    %v7127 = vadd.f32 %v6950, %v6806
    %v7128 = vadd.f32 %v6954, %v6807
    %v7129 = vadd.f32 %v6956, %v6808
    %v7130 = vadd.f32 %v6960, %v6809
    %v7131 = vadd.f32 %v6962, %v6810
    %v7132 = vadd.f32 %v6966, %v6811
    %v7133 = vadd.f32 %v6968, %v6812
    %v7134 = vadd.f32 %v6972, %v6813
    %v7135 = vadd.f32 %v6974, %v6814
    %v7136 = vadd.f32 %v6978, %v6815
    %v7137 = vadd.f32 %v6980, %v6816
    %v7138 = vadd.f32 %v6984, %v6817
    %v7139 = vadd.f32 %v6986, %v6818
    %v7140 = vadd.f32 %v6990, %v6819
    %v7141 = vadd.f32 %v6992, %v6820
    %v7142 = vadd.f32 %v6996, %v6821
    %v7143 = vadd.f32 %v6998, %v6822
    %v7144 = vadd.f32 %v7002, %v6823
    %v7145 = vadd.f32 %v7004, %v6824
    %v7146 = vadd.f32 %v7008, %v6825
    %v7147 = vadd.f32 %v7010, %v6826
    %v7148 = vadd.f32 %v7014, %v6827
    %v7149 = vadd.f32 %v7016, %v6828
    %v7150 = vadd.f32 %v7020, %v6829
    %v7151 = vadd.f32 %v7022, %v6830
    %v7152 = vadd.f32 %v7026, %v6831
    %v7153 = vadd.f32 %v7028, %v6832
    %v7154 = vadd.f32 %v7032, %v6833
    %v7155 = vadd.f32 %v7034, %v6834
    %v7156 = vadd.f32 %v7038, %v6835
    %v7157 = vadd.f32 %v7040, %v6836
    %v7158 = vadd.f32 %v7044, %v6837
    %v7159 = vadd.f32 %v7046, %v6838
    %v7160 = vadd.f32 %v7050, %v6839
    %v7161 = vadd.f32 %v7052, %v6840
    %v7162 = vadd.f32 %v7056, %v6841
    %v7163 = vadd.f32 %v7058, %v6842
    %v7164 = vadd.f32 %v7062, %v6843
    %v7165 = vadd.f32 %v7064, %v6844
    %v7166 = vadd.f32 %v7068, %v6845
    %v7167 = vadd.f32 %v7070, %v6846
    %v7168 = vadd.f32 %v7074, %v6847
    %v7169 = vadd.f32 %v7076, %v6848
    %v7170 = vadd.f32 %v7080, %v6849
    %v7171 = vadd.f32 %v7082, %v6850
    %v7172 = vadd.f32 %v7086, %v6851
    %v7173 = vadd.f32 %v7088, %v6852
    %v7174 = vadd.f32 %v7092, %v6853
    %v7175 = vadd.f32 %v7094, %v6854
    %v7176 = vadd.f32 %v7098, %v6855
    %v7177 = vadd.f32 %v7100, %v6856
    %v7178 = vadd.f32 %v7104, %v6857
    %v7179 = vadd.f32 %v7106, %v6858
    %v7180 = vadd.f32 %v7110, %v6859
    %v7181 = vadd.f32 %v7112, %v6860
    %v7182 = vadd.f32 %v7116, %v6861
    %v7183 = vadd.f32 %v7118, %v6862
    %v7184 = vmax.f32 %v7120, 0.0
    %v7185 = vmax.f32 %v7121, 0.0
    %v7186 = vmax.f32 %v7122, 0.0
    %v7187 = vmax.f32 %v7123, 0.0
    %v7188 = vmax.f32 %v7124, 0.0
    %v7189 = vmax.f32 %v7125, 0.0
    %v7190 = vmax.f32 %v7126, 0.0
    %v7191 = vmax.f32 %v7127, 0.0
    %v7192 = vmax.f32 %v7128, 0.0
    %v7193 = vmax.f32 %v7129, 0.0
    %v7194 = vmax.f32 %v7130, 0.0
    %v7195 = vmax.f32 %v7131, 0.0
    %v7196 = vmax.f32 %v7132, 0.0
    %v7197 = vmax.f32 %v7133, 0.0
    %v7198 = vmax.f32 %v7134, 0.0
    %v7199 = vmax.f32 %v7135, 0.0
    %v7200 = vmax.f32 %v7136, 0.0
    %v7201 = vmax.f32 %v7137, 0.0
    %v7202 = vmax.f32 %v7138, 0.0
    %v7203 = vmax.f32 %v7139, 0.0
    %v7204 = vmax.f32 %v7140, 0.0
    %v7205 = vmax.f32 %v7141, 0.0
    %v7206 = vmax.f32 %v7142, 0.0
    %v7207 = vmax.f32 %v7143, 0.0
    %v7208 = vmax.f32 %v7144, 0.0
    %v7209 = vmax.f32 %v7145, 0.0
    %v7210 = vmax.f32 %v7146, 0.0
    %v7211 = vmax.f32 %v7147, 0.0
    %v7212 = vmax.f32 %v7148, 0.0
    %v7213 = vmax.f32 %v7149, 0.0
    %v7214 = vmax.f32 %v7150, 0.0
    %v7215 = vmax.f32 %v7151, 0.0
    %v7216 = vmax.f32 %v7152, 0.0
    %v7217 = vmax.f32 %v7153, 0.0
    %v7218 = vmax.f32 %v7154, 0.0
    %v7219 = vmax.f32 %v7155, 0.0
    %v7220 = vmax.f32 %v7156, 0.0
    %v7221 = vmax.f32 %v7157, 0.0
    %v7222 = vmax.f32 %v7158, 0.0
    %v7223 = vmax.f32 %v7159, 0.0
    %v7224 = vmax.f32 %v7160, 0.0
    %v7225 = vmax.f32 %v7161, 0.0
    %v7226 = vmax.f32 %v7162, 0.0
    %v7227 = vmax.f32 %v7163, 0.0
    %v7228 = vmax.f32 %v7164, 0.0
    %v7229 = vmax.f32 %v7165, 0.0
    %v7230 = vmax.f32 %v7166, 0.0
    %v7231 = vmax.f32 %v7167, 0.0
    %v7232 = vmax.f32 %v7168, 0.0
    %v7233 = vmax.f32 %v7169, 0.0
    %v7234 = vmax.f32 %v7170, 0.0
    %v7235 = vmax.f32 %v7171, 0.0
    %v7236 = vmax.f32 %v7172, 0.0
    %v7237 = vmax.f32 %v7173, 0.0
    %v7238 = vmax.f32 %v7174, 0.0
    %v7239 = vmax.f32 %v7175, 0.0
    %v7240 = vmax.f32 %v7176, 0.0
    %v7241 = vmax.f32 %v7177, 0.0
    %v7242 = vmax.f32 %v7178, 0.0
    %v7243 = vmax.f32 %v7179, 0.0
    %v7244 = vmax.f32 %v7180, 0.0
    %v7245 = vmax.f32 %v7181, 0.0
    %v7246 = vmax.f32 %v7182, 0.0
    %v7247 = vmax.f32 %v7183, 0.0
    %v7248 = vld [vmem:[%s7] sm:$0xff]
    %v7249 = vld [vmem:[%s7 + $0x8] sm:$0xff]
    %v7250 = vld [vmem:[%s7 + $0x10] sm:$0xff]
    %v7251 = vld [vmem:[%s7 + $0x18] sm:$0xff]
    %v7252 = vld [vmem:[%s7 + $0x20] sm:$0xff]
    %v7253 = vld [vmem:[%s7 + $0x28] sm:$0xff]
    %v7254 = vld [vmem:[%s7 + $0x30] sm:$0xff]
    %v7255 = vld [vmem:[%s7 + $0x38] sm:$0xff]
    %v7256 = vld [vmem:[%s7 + $0x40] sm:$0xff]
    %v7257 = vld [vmem:[%s7 + $0x48] sm:$0xff]
    %v7258 = vld [vmem:[%s7 + $0x50] sm:$0xff]
    %v7259 = vld [vmem:[%s7 + $0x58] sm:$0xff]
    %v7260 = vld [vmem:[%s7 + $0x60] sm:$0xff]
    %v7261 = vld [vmem:[%s7 + $0x68] sm:$0xff]
    %v7262 = vld [vmem:[%s7 + $0x70] sm:$0xff]
    %v7263 = vld [vmem:[%s7 + $0x78] sm:$0xff]
    %v7264 = vld [vmem:[%s7 + $0x80] sm:$0xff]
    %v7265 = vld [vmem:[%s7 + $0x88] sm:$0xff]
    %v7266 = vld [vmem:[%s7 + $0x90] sm:$0xff]
    %v7267 = vld [vmem:[%s7 + $0x98] sm:$0xff]
    %v7268 = vld [vmem:[%s7 + $0xa0] sm:$0xff]
    %v7269 = vld [vmem:[%s7 + $0xa8] sm:$0xff]
    %v7270 = vld [vmem:[%s7 + $0xb0] sm:$0xff]
    %v7271 = vld [vmem:[%s7 + $0xb8] sm:$0xff]
    %v7272 = vld [vmem:[%s7 + $0xc0] sm:$0xff]
    %v7273 = vld [vmem:[%s7 + $0xc8] sm:$0xff]
    %v7274 = vld [vmem:[%s7 + $0xd0] sm:$0xff]
    %v7275 = vld [vmem:[%s7 + $0xd8] sm:$0xff]
    %v7276 = vld [vmem:[%s7 + $0xe0] sm:$0xff]
    %v7277 = vld [vmem:[%s7 + $0xe8] sm:$0xff]
    %v7278 = vld [vmem:[%s7 + $0xf0] sm:$0xff]
    %v7279 = vld [vmem:[%s7 + $0xf8] sm:$0xff]
    %v7280 = vld [vmem:[#allocation12] sm:$0x1]
    %v7282 = vlaneseq
    %v7283 = vshrl.u32 %v7282, 7
    %v7284 = vsub.s32 0, %v7283
    %v7285 = vrot.slane %v7280, %v7284
    %7287 = vmatprep.subr.mxu0 0.0
    %7288 = vmatpush1.msra.mxu0 %v7248
    %7289 = vmatprep.subr.mxu0 0.0
    %7290 = vmatpush1.msra.mxu0 %v7249
    %7291 = vmatprep.subr.mxu0 0.0
    %7292 = vmatpush1.msra.mxu0 %v7250
    %7293 = vmatprep.subr.mxu0 0.0
    %7294 = vmatpush1.msra.mxu0 %v7251
    %7295 = vmatprep.subr.mxu0 0.0
    %7296 = vmatpush1.msra.mxu0 %v7252
    %7297 = vmatprep.subr.mxu0 0.0
    %7298 = vmatpush1.msra.mxu0 %v7253
    %7299 = vmatprep.subr.mxu0 0.0
    %7300 = vmatpush1.msra.mxu0 %v7254
    %7301 = vmatprep.subr.mxu0 0.0
    %7302 = vmatpush1.msra.mxu0 %v7255
    %7303 = vmatprep.subr.mxu0 0.0
    %7304 = vmatpush1.msra.mxu0 %v7256
    %7305 = vmatprep.subr.mxu0 0.0
    %7306 = vmatpush1.msra.mxu0 %v7257
    %7307 = vmatprep.subr.mxu0 0.0
    %7308 = vmatpush1.msra.mxu0 %v7258
    %7309 = vmatprep.subr.mxu0 0.0
    %7310 = vmatpush1.msra.mxu0 %v7259
    %7311 = vmatprep.subr.mxu0 0.0
    %7312 = vmatpush1.msra.mxu0 %v7260
    %7313 = vmatprep.subr.mxu0 0.0
    %7314 = vmatpush1.msra.mxu0 %v7261
    %7315 = vmatprep.subr.mxu0 0.0
    %7316 = vmatpush1.msra.mxu0 %v7262
    %7317 = vmatprep.subr.mxu0 0.0
    %7318 = vmatpush1.msra.mxu0 %v7263
    %7319 = vmatprep.subr.mxu0 0.0
    %7320 = vmatpush1.msra.mxu0 %v7264
    %7321 = vmatprep.subr.mxu0 0.0
    %7322 = vmatpush1.msra.mxu0 %v7265
    %7323 = vmatprep.subr.mxu0 0.0
    %7324 = vmatpush1.msra.mxu0 %v7266
    %7325 = vmatprep.subr.mxu0 0.0
    %7326 = vmatpush1.msra.mxu0 %v7267
    %7327 = vmatprep.subr.mxu0 0.0
    %7328 = vmatpush1.msra.mxu0 %v7268
    %7329 = vmatprep.subr.mxu0 0.0
    %7330 = vmatpush1.msra.mxu0 %v7269
    %7331 = vmatprep.subr.mxu0 0.0
    %7332 = vmatpush1.msra.mxu0 %v7270
    %7333 = vmatprep.subr.mxu0 0.0
    %7334 = vmatpush1.msra.mxu0 %v7271
    %7335 = vmatprep.subr.mxu0 0.0
    %7336 = vmatpush1.msra.mxu0 %v7272
    %7337 = vmatprep.subr.mxu0 0.0
    %7338 = vmatpush1.msra.mxu0 %v7273
    %7339 = vmatprep.subr.mxu0 0.0
    %7340 = vmatpush1.msra.mxu0 %v7274
    %7341 = vmatprep.subr.mxu0 0.0
    %7342 = vmatpush1.msra.mxu0 %v7275
    %7343 = vmatprep.subr.mxu0 0.0
    %7344 = vmatpush1.msra.mxu0 %v7276
    %7345 = vmatprep.subr.mxu0 0.0
    %7346 = vmatpush1.msra.mxu0 %v7277
    %7347 = vmatprep.subr.mxu0 0.0
    %7348 = vmatpush1.msra.mxu0 %v7278
    %7349 = vmatprep.subr.mxu0 0.0
    %7350 = vmatpush1.msra.mxu0 %v7279
    %7351 = vmatprep.mubr.f32.mxu0 %v7185
    %7352 = vmatmul.mubr.f32.gmra.mrb[0].mxu0 %v7184
    %v7353 = vpop.f32.mrb[0].mxu0
    %v7354 = vadd.f32 %v7285, %v7353
    %v7355 = vpop.f32.mrb[0].mxu0
    %7356 = vmatprep.mubr.f32.mxu0 %v7187
    %7357 = vmatmul.mubr.f32.gmra.mrb[0].mxu0 %v7186
    %v7358 = vpop.f32.mrb[0].mxu0
    %v7359 = vadd.f32 %v7285, %v7358
    %v7360 = vpop.f32.mrb[0].mxu0
    %7361 = vmatprep.mubr.f32.mxu0 %v7189
    %7362 = vmatmul.mubr.f32.gmra.mrb[0].mxu0 %v7188
    %v7363 = vpop.f32.mrb[0].mxu0
    %v7364 = vadd.f32 %v7285, %v7363
    %v7365 = vpop.f32.mrb[0].mxu0
    %7366 = vmatprep.mubr.f32.mxu0 %v7191
    %7367 = vmatmul.mubr.f32.gmra.mrb[0].mxu0 %v7190
    %v7368 = vpop.f32.mrb[0].mxu0
    %v7369 = vadd.f32 %v7285, %v7368
    %v7370 = vpop.f32.mrb[0].mxu0
    %7371 = vmatprep.mubr.f32.mxu0 %v7193
    %7372 = vmatmul.mubr.f32.gmra.mrb[0].mxu0 %v7192
    %v7373 = vpop.f32.mrb[0].mxu0
    %v7374 = vadd.f32 %v7285, %v7373
    %v7375 = vpop.f32.mrb[0].mxu0
    %7376 = vmatprep.mubr.f32.mxu0 %v7195
    %7377 = vmatmul.mubr.f32.gmra.mrb[0].mxu0 %v7194
    %v7378 = vpop.f32.mrb[0].mxu0
    %v7379 = vadd.f32 %v7285, %v7378
    %v7380 = vpop.f32.mrb[0].mxu0
    %7381 = vmatprep.mubr.f32.mxu0 %v7197
    %7382 = vmatmul.mubr.f32.gmra.mrb[0].mxu0 %v7196
    %v7383 = vpop.f32.mrb[0].mxu0
    %v7384 = vadd.f32 %v7285, %v7383
    %v7385 = vpop.f32.mrb[0].mxu0
    %7386 = vmatprep.mubr.f32.mxu0 %v7199
    %7387 = vmatmul.mubr.f32.gmra.mrb[0].mxu0 %v7198
    %v7388 = vpop.f32.mrb[0].mxu0
    %v7389 = vadd.f32 %v7285, %v7388
    %v7390 = vpop.f32.mrb[0].mxu0
    %7391 = vmatprep.mubr.f32.mxu0 %v7201
    %7392 = vmatmul.mubr.f32.gmra.mrb[0].mxu0 %v7200
    %v7393 = vpop.f32.mrb[0].mxu0
    %v7394 = vadd.f32 %v7285, %v7393
    %v7395 = vpop.f32.mrb[0].mxu0
    %7396 = vmatprep.mubr.f32.mxu0 %v7203
    %7397 = vmatmul.mubr.f32.gmra.mrb[0].mxu0 %v7202
    %v7398 = vpop.f32.mrb[0].mxu0
    %v7399 = vadd.f32 %v7285, %v7398
    %v7400 = vpop.f32.mrb[0].mxu0
    %7401 = vmatprep.mubr.f32.mxu0 %v7205
    %7402 = vmatmul.mubr.f32.gmra.mrb[0].mxu0 %v7204
    %v7403 = vpop.f32.mrb[0].mxu0
    %v7404 = vadd.f32 %v7285, %v7403
    %v7405 = vpop.f32.mrb[0].mxu0
    %7406 = vmatprep.mubr.f32.mxu0 %v7207
    %7407 = vmatmul.mubr.f32.gmra.mrb[0].mxu0 %v7206
    %v7408 = vpop.f32.mrb[0].mxu0
    %v7409 = vadd.f32 %v7285, %v7408
    %v7410 = vpop.f32.mrb[0].mxu0
    %7411 = vmatprep.mubr.f32.mxu0 %v7209
    %7412 = vmatmul.mubr.f32.gmra.mrb[0].mxu0 %v7208
    %v7413 = vpop.f32.mrb[0].mxu0
    %v7414 = vadd.f32 %v7285, %v7413
    %v7415 = vpop.f32.mrb[0].mxu0
    %7416 = vmatprep.mubr.f32.mxu0 %v7211
    %7417 = vmatmul.mubr.f32.gmra.mrb[0].mxu0 %v7210
    %v7418 = vpop.f32.mrb[0].mxu0
    %v7419 = vadd.f32 %v7285, %v7418
    %v7420 = vpop.f32.mrb[0].mxu0
    %7421 = vmatprep.mubr.f32.mxu0 %v7213
    %7422 = vmatmul.mubr.f32.gmra.mrb[0].mxu0 %v7212
    %v7423 = vpop.f32.mrb[0].mxu0
    %v7424 = vadd.f32 %v7285, %v7423
    %v7425 = vpop.f32.mrb[0].mxu0
    %7426 = vmatprep.mubr.f32.mxu0 %v7215
    %7427 = vmatmul.mubr.f32.gmra.mrb[0].mxu0 %v7214
    %v7428 = vpop.f32.mrb[0].mxu0
    %v7429 = vadd.f32 %v7285, %v7428
    %v7430 = vpop.f32.mrb[0].mxu0
    %7431 = vmatprep.mubr.f32.mxu0 %v7217
    %7432 = vmatmul.mubr.f32.gmra.mrb[0].mxu0 %v7216
    %v7433 = vpop.f32.mrb[0].mxu0
    %v7434 = vadd.f32 %v7285, %v7433
    %v7435 = vpop.f32.mrb[0].mxu0
    %7436 = vmatprep.mubr.f32.mxu0 %v7219
    %7437 = vmatmul.mubr.f32.gmra.mrb[0].mxu0 %v7218
    %v7438 = vpop.f32.mrb[0].mxu0
    %v7439 = vadd.f32 %v7285, %v7438
    %v7440 = vpop.f32.mrb[0].mxu0
    %7441 = vmatprep.mubr.f32.mxu0 %v7221
    %7442 = vmatmul.mubr.f32.gmra.mrb[0].mxu0 %v7220
    %v7443 = vpop.f32.mrb[0].mxu0
    %v7444 = vadd.f32 %v7285, %v7443
    %v7445 = vpop.f32.mrb[0].mxu0
    %7446 = vmatprep.mubr.f32.mxu0 %v7223
    %7447 = vmatmul.mubr.f32.gmra.mrb[0].mxu0 %v7222
    %v7448 = vpop.f32.mrb[0].mxu0
    %v7449 = vadd.f32 %v7285, %v7448
    %v7450 = vpop.f32.mrb[0].mxu0
    %7451 = vmatprep.mubr.f32.mxu0 %v7225
    %7452 = vmatmul.mubr.f32.gmra.mrb[0].mxu0 %v7224
    %v7453 = vpop.f32.mrb[0].mxu0
    %v7454 = vadd.f32 %v7285, %v7453
    %v7455 = vpop.f32.mrb[0].mxu0
    %7456 = vmatprep.mubr.f32.mxu0 %v7227
    %7457 = vmatmul.mubr.f32.gmra.mrb[0].mxu0 %v7226
    %v7458 = vpop.f32.mrb[0].mxu0
    %v7459 = vadd.f32 %v7285, %v7458
    %v7460 = vpop.f32.mrb[0].mxu0
    %7461 = vmatprep.mubr.f32.mxu0 %v7229
    %7462 = vmatmul.mubr.f32.gmra.mrb[0].mxu0 %v7228
    %v7463 = vpop.f32.mrb[0].mxu0
    %v7464 = vadd.f32 %v7285, %v7463
    %v7465 = vpop.f32.mrb[0].mxu0
    %7466 = vmatprep.mubr.f32.mxu0 %v7231
    %7467 = vmatmul.mubr.f32.gmra.mrb[0].mxu0 %v7230
    %v7468 = vpop.f32.mrb[0].mxu0
    %v7469 = vadd.f32 %v7285, %v7468
    %v7470 = vpop.f32.mrb[0].mxu0
    %7471 = vmatprep.mubr.f32.mxu0 %v7233
    %7472 = vmatmul.mubr.f32.gmra.mrb[0].mxu0 %v7232
    %v7473 = vpop.f32.mrb[0].mxu0
    %v7474 = vadd.f32 %v7285, %v7473
    %v7475 = vpop.f32.mrb[0].mxu0
    %7476 = vmatprep.mubr.f32.mxu0 %v7235
    %7477 = vmatmul.mubr.f32.gmra.mrb[0].mxu0 %v7234
    %v7478 = vpop.f32.mrb[0].mxu0
    %v7479 = vadd.f32 %v7285, %v7478
    %v7480 = vpop.f32.mrb[0].mxu0
    %7481 = vmatprep.mubr.f32.mxu0 %v7237
    %7482 = vmatmul.mubr.f32.gmra.mrb[0].mxu0 %v7236
    %v7483 = vpop.f32.mrb[0].mxu0
    %v7484 = vadd.f32 %v7285, %v7483
    %v7485 = vpop.f32.mrb[0].mxu0
    %7486 = vmatprep.mubr.f32.mxu0 %v7239
    %7487 = vmatmul.mubr.f32.gmra.mrb[0].mxu0 %v7238
    %v7488 = vpop.f32.mrb[0].mxu0
    %v7489 = vadd.f32 %v7285, %v7488
    %v7490 = vpop.f32.mrb[0].mxu0
    %7491 = vmatprep.mubr.f32.mxu0 %v7241
    %7492 = vmatmul.mubr.f32.gmra.mrb[0].mxu0 %v7240
    %v7493 = vpop.f32.mrb[0].mxu0
    %v7494 = vadd.f32 %v7285, %v7493
    %v7495 = vpop.f32.mrb[0].mxu0
    %7496 = vmatprep.mubr.f32.mxu0 %v7243
    %7497 = vmatmul.mubr.f32.gmra.mrb[0].mxu0 %v7242
    %v7498 = vpop.f32.mrb[0].mxu0
    %v7499 = vadd.f32 %v7285, %v7498
    %v7500 = vpop.f32.mrb[0].mxu0
    %7501 = vmatprep.mubr.f32.mxu0 %v7245
    %7502 = vmatmul.mubr.f32.gmra.mrb[0].mxu0 %v7244
    %v7503 = vpop.f32.mrb[0].mxu0
    %v7504 = vadd.f32 %v7285, %v7503
    %v7505 = vpop.f32.mrb[0].mxu0
    %7506 = vmatprep.mubr.f32.mxu0 %v7247
    %7507 = vmatmul.mubr.f32.gmra.mrb[0].mxu0 %v7246
    %v7508 = vpop.f32.mrb[0].mxu0
    %v7509 = vadd.f32 %v7285, %v7508
    %v7510 = vpop.f32.mrb[0].mxu0
    %7511 = vdwg.mxu0
    %v7512 = vmax.f32 %v7354, 0.0
    %v7513 = vmax.f32 %v7359, 0.0
    %v7514 = vmax.f32 %v7364, 0.0
    %v7515 = vmax.f32 %v7369, 0.0
    %v7516 = vmax.f32 %v7374, 0.0
    %v7517 = vmax.f32 %v7379, 0.0
    %v7518 = vmax.f32 %v7384, 0.0
    %v7519 = vmax.f32 %v7389, 0.0
    %v7520 = vmax.f32 %v7394, 0.0
    %v7521 = vmax.f32 %v7399, 0.0
    %v7522 = vmax.f32 %v7404, 0.0
    %v7523 = vmax.f32 %v7409, 0.0
    %v7524 = vmax.f32 %v7414, 0.0
    %v7525 = vmax.f32 %v7419, 0.0
    %v7526 = vmax.f32 %v7424, 0.0
    %v7527 = vmax.f32 %v7429, 0.0
    %v7528 = vmax.f32 %v7434, 0.0
    %v7529 = vmax.f32 %v7439, 0.0
    %v7530 = vmax.f32 %v7444, 0.0
    %v7531 = vmax.f32 %v7449, 0.0
    %v7532 = vmax.f32 %v7454, 0.0
    %v7533 = vmax.f32 %v7459, 0.0
    %v7534 = vmax.f32 %v7464, 0.0
    %v7535 = vmax.f32 %v7469, 0.0
    %v7536 = vmax.f32 %v7474, 0.0
    %v7537 = vmax.f32 %v7479, 0.0
    %v7538 = vmax.f32 %v7484, 0.0
    %v7539 = vmax.f32 %v7489, 0.0
    %v7540 = vmax.f32 %v7494, 0.0
    %v7541 = vmax.f32 %v7499, 0.0
    %v7542 = vmax.f32 %v7504, 0.0
    %v7543 = vmax.f32 %v7509, 0.0
    %v7544 = vld [vmem:[%s9] sm:$0xff]
    %v7545 = vld [vmem:[%s9 + $0x8] sm:$0xff]
    %v7546 = vld [vmem:[%s9 + $0x10] sm:$0xff]
    %v7547 = vld [vmem:[%s9 + $0x18] sm:$0xff]
    %v7548 = vld [vmem:[%s9 + $0x20] sm:$0xff]
    %v7549 = vld [vmem:[%s9 + $0x28] sm:$0xff]
    %v7550 = vld [vmem:[%s9 + $0x30] sm:$0xff]
    %v7551 = vld [vmem:[%s9 + $0x38] sm:$0xff]
    %v7552 = vld [vmem:[%s9 + $0x40] sm:$0xff]
    %v7553 = vld [vmem:[%s9 + $0x48] sm:$0xff]
    %v7554 = vld [vmem:[%s9 + $0x50] sm:$0xff]
    %v7555 = vld [vmem:[%s9 + $0x58] sm:$0xff]
    %v7556 = vld [vmem:[%s9 + $0x60] sm:$0xff]
    %v7557 = vld [vmem:[%s9 + $0x68] sm:$0xff]
    %v7558 = vld [vmem:[%s9 + $0x70] sm:$0xff]
    %v7559 = vld [vmem:[%s9 + $0x78] sm:$0xff]
    %v7560 = vld [vmem:[#allocation14] sm:$0x1]
    %v7562 = vlaneseq
    %v7563 = vshrl.u32 %v7562, 7
    %v7564 = vsub.s32 0, %v7563
    %v7565 = vrot.slane %v7560, %v7564
    %7567 = vmatprep.subr.mxu0 0.0
    %7568 = vmatpush1.msra.mxu0 %v7544
    %7569 = vmatprep.subr.mxu0 0.0
    %7570 = vmatpush1.msra.mxu0 %v7545
    %7571 = vmatprep.subr.mxu0 0.0
    %7572 = vmatpush1.msra.mxu0 %v7546
    %7573 = vmatprep.subr.mxu0 0.0
    %7574 = vmatpush1.msra.mxu0 %v7547
    %7575 = vmatprep.subr.mxu0 0.0
    %7576 = vmatpush1.msra.mxu0 %v7548
    %7577 = vmatprep.subr.mxu0 0.0
    %7578 = vmatpush1.msra.mxu0 %v7549
    %7579 = vmatprep.subr.mxu0 0.0
    %7580 = vmatpush1.msra.mxu0 %v7550
    %7581 = vmatprep.subr.mxu0 0.0
    %7582 = vmatpush1.msra.mxu0 %v7551
    %7583 = vmatprep.subr.mxu0 0.0
    %7584 = vmatpush1.msra.mxu0 %v7552
    %7585 = vmatprep.subr.mxu0 0.0
    %7586 = vmatpush1.msra.mxu0 %v7553
    %7587 = vmatprep.subr.mxu0 0.0
    %7588 = vmatpush1.msra.mxu0 %v7554
    %7589 = vmatprep.subr.mxu0 0.0
    %7590 = vmatpush1.msra.mxu0 %v7555
    %7591 = vmatprep.subr.mxu0 0.0
    %7592 = vmatpush1.msra.mxu0 %v7556
    %7593 = vmatprep.subr.mxu0 0.0
    %7594 = vmatpush1.msra.mxu0 %v7557
    %7595 = vmatprep.subr.mxu0 0.0
    %7596 = vmatpush1.msra.mxu0 %v7558
    %7597 = vmatprep.subr.mxu0 0.0
    %7598 = vmatpush1.msra.mxu0 %v7559
    %7599 = vmatprep.subr.mxu0 0.0
    %7600 = vmatpush1.msra.mxu0 0.0
    %7601 = vmatprep.subr.mxu0 0.0
    %7602 = vmatpush1.msra.mxu0 0.0
    %7603 = vmatprep.subr.mxu0 0.0
    %7604 = vmatpush1.msra.mxu0 0.0
    %7605 = vmatprep.subr.mxu0 0.0
    %7606 = vmatpush1.msra.mxu0 0.0
    %7607 = vmatprep.subr.mxu0 0.0
    %7608 = vmatpush1.msra.mxu0 0.0
    %7609 = vmatprep.subr.mxu0 0.0
    %7610 = vmatpush1.msra.mxu0 0.0
    %7611 = vmatprep.subr.mxu0 0.0
    %7612 = vmatpush1.msra.mxu0 0.0
    %7613 = vmatprep.subr.mxu0 0.0
    %7614 = vmatpush1.msra.mxu0 0.0
    %7615 = vmatprep.subr.mxu0 0.0
    %7616 = vmatpush1.msra.mxu0 0.0
    %7617 = vmatprep.subr.mxu0 0.0
    %7618 = vmatpush1.msra.mxu0 0.0
    %7619 = vmatprep.subr.mxu0 0.0
    %7620 = vmatpush1.msra.mxu0 0.0
    %7621 = vmatprep.subr.mxu0 0.0
    %7622 = vmatpush1.msra.mxu0 0.0
    %7623 = vmatprep.subr.mxu0 0.0
    %7624 = vmatpush1.msra.mxu0 0.0
    %7625 = vmatprep.subr.mxu0 0.0
    %7626 = vmatpush1.msra.mxu0 0.0
    %7627 = vmatprep.subr.mxu0 0.0
    %7628 = vmatpush1.msra.mxu0 0.0
    %7629 = vmatprep.subr.mxu0 0.0
    %7630 = vmatpush1.msra.mxu0 0.0
    %7631 = vmatprep.mubr.f32.mxu0 0.0
    %7632 = vmatmul.mubr.f32.gmra.mrb[0].mxu0 %v7512
    %v7633 = vpop.f32.mrb[0].mxu0
    %v7634 = vadd.f32 %v7565, %v7633
    %v7635 = vpop.f32.mrb[0].mxu0
    %7636 = vmatprep.mubr.f32.mxu0 0.0
    %7637 = vmatmul.mubr.f32.gmra.mrb[0].mxu0 %v7513
    %v7638 = vpop.f32.mrb[0].mxu0
    %v7639 = vadd.f32 %v7565, %v7638
    %v7640 = vpop.f32.mrb[0].mxu0
    %7641 = vmatprep.mubr.f32.mxu0 0.0
    %7642 = vmatmul.mubr.f32.gmra.mrb[0].mxu0 %v7514
    %v7643 = vpop.f32.mrb[0].mxu0
    %v7644 = vadd.f32 %v7565, %v7643
    %v7645 = vpop.f32.mrb[0].mxu0
    %7646 = vmatprep.mubr.f32.mxu0 0.0
    %7647 = vmatmul.mubr.f32.gmra.mrb[0].mxu0 %v7515
    %v7648 = vpop.f32.mrb[0].mxu0
    %v7649 = vadd.f32 %v7565, %v7648
    %v7650 = vpop.f32.mrb[0].mxu0
    %7651 = vmatprep.mubr.f32.mxu0 0.0
    %7652 = vmatmul.mubr.f32.gmra.mrb[0].mxu0 %v7516
    %v7653 = vpop.f32.mrb[0].mxu0
    %v7654 = vadd.f32 %v7565, %v7653
    %v7655 = vpop.f32.mrb[0].mxu0
    %7656 = vmatprep.mubr.f32.mxu0 0.0
    %7657 = vmatmul.mubr.f32.gmra.mrb[0].mxu0 %v7517
    %v7658 = vpop.f32.mrb[0].mxu0
    %v7659 = vadd.f32 %v7565, %v7658
    %v7660 = vpop.f32.mrb[0].mxu0
    %7661 = vmatprep.mubr.f32.mxu0 0.0
    %7662 = vmatmul.mubr.f32.gmra.mrb[0].mxu0 %v7518
    %v7663 = vpop.f32.mrb[0].mxu0
    %v7664 = vadd.f32 %v7565, %v7663
    %v7665 = vpop.f32.mrb[0].mxu0
    %7666 = vmatprep.mubr.f32.mxu0 0.0
    %7667 = vmatmul.mubr.f32.gmra.mrb[0].mxu0 %v7519
    %v7668 = vpop.f32.mrb[0].mxu0
    %v7669 = vadd.f32 %v7565, %v7668
    %v7670 = vpop.f32.mrb[0].mxu0
    %7671 = vmatprep.mubr.f32.mxu0 0.0
    %7672 = vmatmul.mubr.f32.gmra.mrb[0].mxu0 %v7520
    %v7673 = vpop.f32.mrb[0].mxu0
    %v7674 = vadd.f32 %v7565, %v7673
    %v7675 = vpop.f32.mrb[0].mxu0
    %7676 = vmatprep.mubr.f32.mxu0 0.0
    %7677 = vmatmul.mubr.f32.gmra.mrb[0].mxu0 %v7521
    %v7678 = vpop.f32.mrb[0].mxu0
    %v7679 = vadd.f32 %v7565, %v7678
    %v7680 = vpop.f32.mrb[0].mxu0
    %7681 = vmatprep.mubr.f32.mxu0 0.0
    %7682 = vmatmul.mubr.f32.gmra.mrb[0].mxu0 %v7522
    %v7683 = vpop.f32.mrb[0].mxu0
    %v7684 = vadd.f32 %v7565, %v7683
    %v7685 = vpop.f32.mrb[0].mxu0
    %7686 = vmatprep.mubr.f32.mxu0 0.0
    %7687 = vmatmul.mubr.f32.gmra.mrb[0].mxu0 %v7523
    %v7688 = vpop.f32.mrb[0].mxu0
    %v7689 = vadd.f32 %v7565, %v7688
    %v7690 = vpop.f32.mrb[0].mxu0
    %7691 = vmatprep.mubr.f32.mxu0 0.0
    %7692 = vmatmul.mubr.f32.gmra.mrb[0].mxu0 %v7524
    %v7693 = vpop.f32.mrb[0].mxu0
    %v7694 = vadd.f32 %v7565, %v7693
    %v7695 = vpop.f32.mrb[0].mxu0
    %7696 = vmatprep.mubr.f32.mxu0 0.0
    %7697 = vmatmul.mubr.f32.gmra.mrb[0].mxu0 %v7525
    %v7698 = vpop.f32.mrb[0].mxu0
    %v7699 = vadd.f32 %v7565, %v7698
    %v7700 = vpop.f32.mrb[0].mxu0
    %7701 = vmatprep.mubr.f32.mxu0 0.0
    %7702 = vmatmul.mubr.f32.gmra.mrb[0].mxu0 %v7526
    %v7703 = vpop.f32.mrb[0].mxu0
    %v7704 = vadd.f32 %v7565, %v7703
    %v7705 = vpop.f32.mrb[0].mxu0
    %7706 = vmatprep.mubr.f32.mxu0 0.0
    %7707 = vmatmul.mubr.f32.gmra.mrb[0].mxu0 %v7527
    %v7708 = vpop.f32.mrb[0].mxu0
    %v7709 = vadd.f32 %v7565, %v7708
    %v7710 = vpop.f32.mrb[0].mxu0
    %7711 = vmatprep.mubr.f32.mxu0 0.0
    %7712 = vmatmul.mubr.f32.gmra.mrb[0].mxu0 %v7528
    %v7713 = vpop.f32.mrb[0].mxu0
    %v7714 = vadd.f32 %v7565, %v7713
    %v7715 = vpop.f32.mrb[0].mxu0
    %7716 = vmatprep.mubr.f32.mxu0 0.0
    %7717 = vmatmul.mubr.f32.gmra.mrb[0].mxu0 %v7529
    %v7718 = vpop.f32.mrb[0].mxu0
    %v7719 = vadd.f32 %v7565, %v7718
    %v7720 = vpop.f32.mrb[0].mxu0
    %7721 = vmatprep.mubr.f32.mxu0 0.0
    %7722 = vmatmul.mubr.f32.gmra.mrb[0].mxu0 %v7530
    %v7723 = vpop.f32.mrb[0].mxu0
    %v7724 = vadd.f32 %v7565, %v7723
    %v7725 = vpop.f32.mrb[0].mxu0
    %7726 = vmatprep.mubr.f32.mxu0 0.0
    %7727 = vmatmul.mubr.f32.gmra.mrb[0].mxu0 %v7531
    %v7728 = vpop.f32.mrb[0].mxu0
    %v7729 = vadd.f32 %v7565, %v7728
    %v7730 = vpop.f32.mrb[0].mxu0
    %7731 = vmatprep.mubr.f32.mxu0 0.0
    %7732 = vmatmul.mubr.f32.gmra.mrb[0].mxu0 %v7532
    %v7733 = vpop.f32.mrb[0].mxu0
    %v7734 = vadd.f32 %v7565, %v7733
    %v7735 = vpop.f32.mrb[0].mxu0
    %7736 = vmatprep.mubr.f32.mxu0 0.0
    %7737 = vmatmul.mubr.f32.gmra.mrb[0].mxu0 %v7533
    %v7738 = vpop.f32.mrb[0].mxu0
    %v7739 = vadd.f32 %v7565, %v7738
    %v7740 = vpop.f32.mrb[0].mxu0
    %7741 = vmatprep.mubr.f32.mxu0 0.0
    %7742 = vmatmul.mubr.f32.gmra.mrb[0].mxu0 %v7534
    %v7743 = vpop.f32.mrb[0].mxu0
    %v7744 = vadd.f32 %v7565, %v7743
    %v7745 = vpop.f32.mrb[0].mxu0
    %7746 = vmatprep.mubr.f32.mxu0 0.0
    %7747 = vmatmul.mubr.f32.gmra.mrb[0].mxu0 %v7535
    %v7748 = vpop.f32.mrb[0].mxu0
    %v7749 = vadd.f32 %v7565, %v7748
    %v7750 = vpop.f32.mrb[0].mxu0
    %7751 = vmatprep.mubr.f32.mxu0 0.0
    %7752 = vmatmul.mubr.f32.gmra.mrb[0].mxu0 %v7536
    %v7753 = vpop.f32.mrb[0].mxu0
    %v7754 = vadd.f32 %v7565, %v7753
    %v7755 = vpop.f32.mrb[0].mxu0
    %7756 = vmatprep.mubr.f32.mxu0 0.0
    %7757 = vmatmul.mubr.f32.gmra.mrb[0].mxu0 %v7537
    %v7758 = vpop.f32.mrb[0].mxu0
    %v7759 = vadd.f32 %v7565, %v7758
    %v7760 = vpop.f32.mrb[0].mxu0
    %7761 = vmatprep.mubr.f32.mxu0 0.0
    %7762 = vmatmul.mubr.f32.gmra.mrb[0].mxu0 %v7538
    %v7763 = vpop.f32.mrb[0].mxu0
    %v7764 = vadd.f32 %v7565, %v7763
    %v7765 = vpop.f32.mrb[0].mxu0
    %7766 = vmatprep.mubr.f32.mxu0 0.0
    %7767 = vmatmul.mubr.f32.gmra.mrb[0].mxu0 %v7539
    %v7768 = vpop.f32.mrb[0].mxu0
    %v7769 = vadd.f32 %v7565, %v7768
    %v7770 = vpop.f32.mrb[0].mxu0
    %7771 = vmatprep.mubr.f32.mxu0 0.0
    %7772 = vmatmul.mubr.f32.gmra.mrb[0].mxu0 %v7540
    %v7773 = vpop.f32.mrb[0].mxu0
    %v7774 = vadd.f32 %v7565, %v7773
    %v7775 = vpop.f32.mrb[0].mxu0
    %7776 = vmatprep.mubr.f32.mxu0 0.0
    %7777 = vmatmul.mubr.f32.gmra.mrb[0].mxu0 %v7541
    %v7778 = vpop.f32.mrb[0].mxu0
    %v7779 = vadd.f32 %v7565, %v7778
    %v7780 = vpop.f32.mrb[0].mxu0
    %7781 = vmatprep.mubr.f32.mxu0 0.0
    %7782 = vmatmul.mubr.f32.gmra.mrb[0].mxu0 %v7542
    %v7783 = vpop.f32.mrb[0].mxu0
    %v7784 = vadd.f32 %v7565, %v7783
    %v7785 = vpop.f32.mrb[0].mxu0
    %7786 = vmatprep.mubr.f32.mxu0 0.0
    %7787 = vmatmul.mubr.f32.gmra.mrb[0].mxu0 %v7543
    %v7788 = vpop.f32.mrb[0].mxu0
    %v7789 = vadd.f32 %v7565, %v7788
    %v7790 = vpop.f32.mrb[0].mxu0
    %7791 = vdwg.mxu0
    %v7792 = vadd.f32 %v7634, %v7512
    %v7793 = vadd.f32 %v7639, %v7513
    %v7794 = vadd.f32 %v7644, %v7514
    %v7795 = vadd.f32 %v7649, %v7515
    %v7796 = vadd.f32 %v7654, %v7516
    %v7797 = vadd.f32 %v7659, %v7517
    %v7798 = vadd.f32 %v7664, %v7518
    %v7799 = vadd.f32 %v7669, %v7519
    %v7800 = vadd.f32 %v7674, %v7520
    %v7801 = vadd.f32 %v7679, %v7521
    %v7802 = vadd.f32 %v7684, %v7522
    %v7803 = vadd.f32 %v7689, %v7523
    %v7804 = vadd.f32 %v7694, %v7524
    %v7805 = vadd.f32 %v7699, %v7525
    %v7806 = vadd.f32 %v7704, %v7526
    %v7807 = vadd.f32 %v7709, %v7527
    %v7808 = vadd.f32 %v7714, %v7528
    %v7809 = vadd.f32 %v7719, %v7529
    %v7810 = vadd.f32 %v7724, %v7530
    %v7811 = vadd.f32 %v7729, %v7531
    %v7812 = vadd.f32 %v7734, %v7532
    %v7813 = vadd.f32 %v7739, %v7533
    %v7814 = vadd.f32 %v7744, %v7534
    %v7815 = vadd.f32 %v7749, %v7535
    %v7816 = vadd.f32 %v7754, %v7536
    %v7817 = vadd.f32 %v7759, %v7537
    %v7818 = vadd.f32 %v7764, %v7538
    %v7819 = vadd.f32 %v7769, %v7539
    %v7820 = vadd.f32 %v7774, %v7540
    %v7821 = vadd.f32 %v7779, %v7541
    %v7822 = vadd.f32 %v7784, %v7542
    %v7823 = vadd.f32 %v7789, %v7543
    %v7824 = vmax.f32 %v7792, 0.0
    %v7825 = vmax.f32 %v7793, 0.0
    %v7826 = vmax.f32 %v7794, 0.0
    %v7827 = vmax.f32 %v7795, 0.0
    %v7828 = vmax.f32 %v7796, 0.0
    %v7829 = vmax.f32 %v7797, 0.0
    %v7830 = vmax.f32 %v7798, 0.0
    %v7831 = vmax.f32 %v7799, 0.0
    %v7832 = vmax.f32 %v7800, 0.0
    %v7833 = vmax.f32 %v7801, 0.0
    %v7834 = vmax.f32 %v7802, 0.0
    %v7835 = vmax.f32 %v7803, 0.0
    %v7836 = vmax.f32 %v7804, 0.0
    %v7837 = vmax.f32 %v7805, 0.0
    %v7838 = vmax.f32 %v7806, 0.0
    %v7839 = vmax.f32 %v7807, 0.0
    %v7840 = vmax.f32 %v7808, 0.0
    %v7841 = vmax.f32 %v7809, 0.0
    %v7842 = vmax.f32 %v7810, 0.0
    %v7843 = vmax.f32 %v7811, 0.0
    %v7844 = vmax.f32 %v7812, 0.0
    %v7845 = vmax.f32 %v7813, 0.0
    %v7846 = vmax.f32 %v7814, 0.0
    %v7847 = vmax.f32 %v7815, 0.0
    %v7848 = vmax.f32 %v7816, 0.0
    %v7849 = vmax.f32 %v7817, 0.0
    %v7850 = vmax.f32 %v7818, 0.0
    %v7851 = vmax.f32 %v7819, 0.0
    %v7852 = vmax.f32 %v7820, 0.0
    %v7853 = vmax.f32 %v7821, 0.0
    %v7854 = vmax.f32 %v7822, 0.0
    %v7855 = vmax.f32 %v7823, 0.0
    %v7856 = vadd.f32 %v7512, %v7824
    %v7857 = vadd.f32 %v7513, %v7825
    %v7858 = vadd.f32 %v7514, %v7826
    %v7859 = vadd.f32 %v7515, %v7827
    %v7860 = vadd.f32 %v7516, %v7828
    %v7861 = vadd.f32 %v7517, %v7829
    %v7862 = vadd.f32 %v7518, %v7830
    %v7863 = vadd.f32 %v7519, %v7831
    %v7864 = vadd.f32 %v7520, %v7832
    %v7865 = vadd.f32 %v7521, %v7833
    %v7866 = vadd.f32 %v7522, %v7834
    %v7867 = vadd.f32 %v7523, %v7835
    %v7868 = vadd.f32 %v7524, %v7836
    %v7869 = vadd.f32 %v7525, %v7837
    %v7870 = vadd.f32 %v7526, %v7838
    %v7871 = vadd.f32 %v7527, %v7839
    %v7872 = vadd.f32 %v7528, %v7840
    %v7873 = vadd.f32 %v7529, %v7841
    %v7874 = vadd.f32 %v7530, %v7842
    %v7875 = vadd.f32 %v7531, %v7843
    %v7876 = vadd.f32 %v7532, %v7844
    %v7877 = vadd.f32 %v7533, %v7845
    %v7878 = vadd.f32 %v7534, %v7846
    %v7879 = vadd.f32 %v7535, %v7847
    %v7880 = vadd.f32 %v7536, %v7848
    %v7881 = vadd.f32 %v7537, %v7849
    %v7882 = vadd.f32 %v7538, %v7850
    %v7883 = vadd.f32 %v7539, %v7851
    %v7884 = vadd.f32 %v7540, %v7852
    %v7885 = vadd.f32 %v7541, %v7853
    %v7886 = vadd.f32 %v7542, %v7854
    %v7887 = vadd.f32 %v7543, %v7855
    %7888 = vmatprep.subr.mxu0 0.0
    %7889 = vmatpush1.msra.mxu0 %v7544
    %7890 = vmatprep.subr.mxu0 0.0
    %7891 = vmatpush1.msra.mxu0 %v7545
    %7892 = vmatprep.subr.mxu0 0.0
    %7893 = vmatpush1.msra.mxu0 %v7546
    %7894 = vmatprep.subr.mxu0 0.0
    %7895 = vmatpush1.msra.mxu0 %v7547
    %7896 = vmatprep.subr.mxu0 0.0
    %7897 = vmatpush1.msra.mxu0 %v7548
    %7898 = vmatprep.subr.mxu0 0.0
    %7899 = vmatpush1.msra.mxu0 %v7549
    %7900 = vmatprep.subr.mxu0 0.0
    %7901 = vmatpush1.msra.mxu0 %v7550
    %7902 = vmatprep.subr.mxu0 0.0
    %7903 = vmatpush1.msra.mxu0 %v7551
    %7904 = vmatprep.subr.mxu0 0.0
    %7905 = vmatpush1.msra.mxu0 %v7552
    %7906 = vmatprep.subr.mxu0 0.0
    %7907 = vmatpush1.msra.mxu0 %v7553
    %7908 = vmatprep.subr.mxu0 0.0
    %7909 = vmatpush1.msra.mxu0 %v7554
    %7910 = vmatprep.subr.mxu0 0.0
    %7911 = vmatpush1.msra.mxu0 %v7555
    %7912 = vmatprep.subr.mxu0 0.0
    %7913 = vmatpush1.msra.mxu0 %v7556
    %7914 = vmatprep.subr.mxu0 0.0
    %7915 = vmatpush1.msra.mxu0 %v7557
    %7916 = vmatprep.subr.mxu0 0.0
    %7917 = vmatpush1.msra.mxu0 %v7558
    %7918 = vmatprep.subr.mxu0 0.0
    %7919 = vmatpush1.msra.mxu0 %v7559
    %7920 = vmatprep.subr.mxu0 0.0
    %7921 = vmatpush1.msra.mxu0 0.0
    %7922 = vmatprep.subr.mxu0 0.0
    %7923 = vmatpush1.msra.mxu0 0.0
    %7924 = vmatprep.subr.mxu0 0.0
    %7925 = vmatpush1.msra.mxu0 0.0
    %7926 = vmatprep.subr.mxu0 0.0
    %7927 = vmatpush1.msra.mxu0 0.0
    %7928 = vmatprep.subr.mxu0 0.0
    %7929 = vmatpush1.msra.mxu0 0.0
    %7930 = vmatprep.subr.mxu0 0.0
    %7931 = vmatpush1.msra.mxu0 0.0
    %7932 = vmatprep.subr.mxu0 0.0
    %7933 = vmatpush1.msra.mxu0 0.0
    %7934 = vmatprep.subr.mxu0 0.0
    %7935 = vmatpush1.msra.mxu0 0.0
    %7936 = vmatprep.subr.mxu0 0.0
    %7937 = vmatpush1.msra.mxu0 0.0
    %7938 = vmatprep.subr.mxu0 0.0
    %7939 = vmatpush1.msra.mxu0 0.0
    %7940 = vmatprep.subr.mxu0 0.0
    %7941 = vmatpush1.msra.mxu0 0.0
    %7942 = vmatprep.subr.mxu0 0.0
    %7943 = vmatpush1.msra.mxu0 0.0
    %7944 = vmatprep.subr.mxu0 0.0
    %7945 = vmatpush1.msra.mxu0 0.0
    %7946 = vmatprep.subr.mxu0 0.0
    %7947 = vmatpush1.msra.mxu0 0.0
    %7948 = vmatprep.subr.mxu0 0.0
    %7949 = vmatpush1.msra.mxu0 0.0
    %7950 = vmatprep.subr.mxu0 0.0
    %7951 = vmatpush1.msra.mxu0 0.0
    %7952 = vmatprep.mubr.f32.mxu0 0.0
    %7953 = vmatmul.mubr.f32.gmra.mrb[0].mxu0 %v7824
    %v7954 = vpop.f32.mrb[0].mxu0
    %v7955 = vadd.f32 %v7565, %v7954
    %v7956 = vpop.f32.mrb[0].mxu0
    %7957 = vmatprep.mubr.f32.mxu0 0.0
    %7958 = vmatmul.mubr.f32.gmra.mrb[0].mxu0 %v7825
    %v7959 = vpop.f32.mrb[0].mxu0
    %v7960 = vadd.f32 %v7565, %v7959
    %v7961 = vpop.f32.mrb[0].mxu0
    %7962 = vmatprep.mubr.f32.mxu0 0.0
    %7963 = vmatmul.mubr.f32.gmra.mrb[0].mxu0 %v7826
    %v7964 = vpop.f32.mrb[0].mxu0
    %v7965 = vadd.f32 %v7565, %v7964
    %v7966 = vpop.f32.mrb[0].mxu0
    %7967 = vmatprep.mubr.f32.mxu0 0.0
    %7968 = vmatmul.mubr.f32.gmra.mrb[0].mxu0 %v7827
    %v7969 = vpop.f32.mrb[0].mxu0
    %v7970 = vadd.f32 %v7565, %v7969
    %v7971 = vpop.f32.mrb[0].mxu0
    %7972 = vmatprep.mubr.f32.mxu0 0.0
    %7973 = vmatmul.mubr.f32.gmra.mrb[0].mxu0 %v7828
    %v7974 = vpop.f32.mrb[0].mxu0
    %v7975 = vadd.f32 %v7565, %v7974
    %v7976 = vpop.f32.mrb[0].mxu0
    %7977 = vmatprep.mubr.f32.mxu0 0.0
    %7978 = vmatmul.mubr.f32.gmra.mrb[0].mxu0 %v7829
    %v7979 = vpop.f32.mrb[0].mxu0
    %v7980 = vadd.f32 %v7565, %v7979
    %v7981 = vpop.f32.mrb[0].mxu0
    %7982 = vmatprep.mubr.f32.mxu0 0.0
    %7983 = vmatmul.mubr.f32.gmra.mrb[0].mxu0 %v7830
    %v7984 = vpop.f32.mrb[0].mxu0
    %v7985 = vadd.f32 %v7565, %v7984
    %v7986 = vpop.f32.mrb[0].mxu0
    %7987 = vmatprep.mubr.f32.mxu0 0.0
    %7988 = vmatmul.mubr.f32.gmra.mrb[0].mxu0 %v7831
    %v7989 = vpop.f32.mrb[0].mxu0
    %v7990 = vadd.f32 %v7565, %v7989
    %v7991 = vpop.f32.mrb[0].mxu0
    %7992 = vmatprep.mubr.f32.mxu0 0.0
    %7993 = vmatmul.mubr.f32.gmra.mrb[0].mxu0 %v7832
    %v7994 = vpop.f32.mrb[0].mxu0
    %v7995 = vadd.f32 %v7565, %v7994
    %v7996 = vpop.f32.mrb[0].mxu0
    %7997 = vmatprep.mubr.f32.mxu0 0.0
    %7998 = vmatmul.mubr.f32.gmra.mrb[0].mxu0 %v7833
    %v7999 = vpop.f32.mrb[0].mxu0
    %v8000 = vadd.f32 %v7565, %v7999
    %v8001 = vpop.f32.mrb[0].mxu0
    %8002 = vmatprep.mubr.f32.mxu0 0.0
    %8003 = vmatmul.mubr.f32.gmra.mrb[0].mxu0 %v7834
    %v8004 = vpop.f32.mrb[0].mxu0
    %v8005 = vadd.f32 %v7565, %v8004
    %v8006 = vpop.f32.mrb[0].mxu0
    %8007 = vmatprep.mubr.f32.mxu0 0.0
    %8008 = vmatmul.mubr.f32.gmra.mrb[0].mxu0 %v7835
    %v8009 = vpop.f32.mrb[0].mxu0
    %v8010 = vadd.f32 %v7565, %v8009
    %v8011 = vpop.f32.mrb[0].mxu0
    %8012 = vmatprep.mubr.f32.mxu0 0.0
    %8013 = vmatmul.mubr.f32.gmra.mrb[0].mxu0 %v7836
    %v8014 = vpop.f32.mrb[0].mxu0
    %v8015 = vadd.f32 %v7565, %v8014
    %v8016 = vpop.f32.mrb[0].mxu0
    %8017 = vmatprep.mubr.f32.mxu0 0.0
    %8018 = vmatmul.mubr.f32.gmra.mrb[0].mxu0 %v7837
    %v8019 = vpop.f32.mrb[0].mxu0
    %v8020 = vadd.f32 %v7565, %v8019
    %v8021 = vpop.f32.mrb[0].mxu0
    %8022 = vmatprep.mubr.f32.mxu0 0.0
    %8023 = vmatmul.mubr.f32.gmra.mrb[0].mxu0 %v7838
    %v8024 = vpop.f32.mrb[0].mxu0
    %v8025 = vadd.f32 %v7565, %v8024
    %v8026 = vpop.f32.mrb[0].mxu0
    %8027 = vmatprep.mubr.f32.mxu0 0.0
    %8028 = vmatmul.mubr.f32.gmra.mrb[0].mxu0 %v7839
    %v8029 = vpop.f32.mrb[0].mxu0
    %v8030 = vadd.f32 %v7565, %v8029
    %v8031 = vpop.f32.mrb[0].mxu0
    %8032 = vmatprep.mubr.f32.mxu0 0.0
    %8033 = vmatmul.mubr.f32.gmra.mrb[0].mxu0 %v7840
    %v8034 = vpop.f32.mrb[0].mxu0
    %v8035 = vadd.f32 %v7565, %v8034
    %v8036 = vpop.f32.mrb[0].mxu0
    %8037 = vmatprep.mubr.f32.mxu0 0.0
    %8038 = vmatmul.mubr.f32.gmra.mrb[0].mxu0 %v7841
    %v8039 = vpop.f32.mrb[0].mxu0
    %v8040 = vadd.f32 %v7565, %v8039
    %v8041 = vpop.f32.mrb[0].mxu0
    %8042 = vmatprep.mubr.f32.mxu0 0.0
    %8043 = vmatmul.mubr.f32.gmra.mrb[0].mxu0 %v7842
    %v8044 = vpop.f32.mrb[0].mxu0
    %v8045 = vadd.f32 %v7565, %v8044
    %v8046 = vpop.f32.mrb[0].mxu0
    %8047 = vmatprep.mubr.f32.mxu0 0.0
    %8048 = vmatmul.mubr.f32.gmra.mrb[0].mxu0 %v7843
    %v8049 = vpop.f32.mrb[0].mxu0
    %v8050 = vadd.f32 %v7565, %v8049
    %v8051 = vpop.f32.mrb[0].mxu0
    %8052 = vmatprep.mubr.f32.mxu0 0.0
    %8053 = vmatmul.mubr.f32.gmra.mrb[0].mxu0 %v7844
    %v8054 = vpop.f32.mrb[0].mxu0
    %v8055 = vadd.f32 %v7565, %v8054
    %v8056 = vpop.f32.mrb[0].mxu0
    %8057 = vmatprep.mubr.f32.mxu0 0.0
    %8058 = vmatmul.mubr.f32.gmra.mrb[0].mxu0 %v7845
    %v8059 = vpop.f32.mrb[0].mxu0
    %v8060 = vadd.f32 %v7565, %v8059
    %v8061 = vpop.f32.mrb[0].mxu0
    %8062 = vmatprep.mubr.f32.mxu0 0.0
    %8063 = vmatmul.mubr.f32.gmra.mrb[0].mxu0 %v7846
    %v8064 = vpop.f32.mrb[0].mxu0
    %v8065 = vadd.f32 %v7565, %v8064
    %v8066 = vpop.f32.mrb[0].mxu0
    %8067 = vmatprep.mubr.f32.mxu0 0.0
    %8068 = vmatmul.mubr.f32.gmra.mrb[0].mxu0 %v7847
    %v8069 = vpop.f32.mrb[0].mxu0
    %v8070 = vadd.f32 %v7565, %v8069
    %v8071 = vpop.f32.mrb[0].mxu0
    %8072 = vmatprep.mubr.f32.mxu0 0.0
    %8073 = vmatmul.mubr.f32.gmra.mrb[0].mxu0 %v7848
    %v8074 = vpop.f32.mrb[0].mxu0
    %v8075 = vadd.f32 %v7565, %v8074
    %v8076 = vpop.f32.mrb[0].mxu0
    %8077 = vmatprep.mubr.f32.mxu0 0.0
    %8078 = vmatmul.mubr.f32.gmra.mrb[0].mxu0 %v7849
    %v8079 = vpop.f32.mrb[0].mxu0
    %v8080 = vadd.f32 %v7565, %v8079
    %v8081 = vpop.f32.mrb[0].mxu0
    %8082 = vmatprep.mubr.f32.mxu0 0.0
    %8083 = vmatmul.mubr.f32.gmra.mrb[0].mxu0 %v7850
    %v8084 = vpop.f32.mrb[0].mxu0
    %v8085 = vadd.f32 %v7565, %v8084
    %v8086 = vpop.f32.mrb[0].mxu0
    %8087 = vmatprep.mubr.f32.mxu0 0.0
    %8088 = vmatmul.mubr.f32.gmra.mrb[0].mxu0 %v7851
    %v8089 = vpop.f32.mrb[0].mxu0
    %v8090 = vadd.f32 %v7565, %v8089
    %v8091 = vpop.f32.mrb[0].mxu0
    %8092 = vmatprep.mubr.f32.mxu0 0.0
    %8093 = vmatmul.mubr.f32.gmra.mrb[0].mxu0 %v7852
    %v8094 = vpop.f32.mrb[0].mxu0
    %v8095 = vadd.f32 %v7565, %v8094
    %v8096 = vpop.f32.mrb[0].mxu0
    %8097 = vmatprep.mubr.f32.mxu0 0.0
    %8098 = vmatmul.mubr.f32.gmra.mrb[0].mxu0 %v7853
    %v8099 = vpop.f32.mrb[0].mxu0
    %v8100 = vadd.f32 %v7565, %v8099
    %v8101 = vpop.f32.mrb[0].mxu0
    %8102 = vmatprep.mubr.f32.mxu0 0.0
    %8103 = vmatmul.mubr.f32.gmra.mrb[0].mxu0 %v7854
    %v8104 = vpop.f32.mrb[0].mxu0
    %v8105 = vadd.f32 %v7565, %v8104
    %v8106 = vpop.f32.mrb[0].mxu0
    %8107 = vmatprep.mubr.f32.mxu0 0.0
    %8108 = vmatmul.mubr.f32.gmra.mrb[0].mxu0 %v7855
    %v8109 = vpop.f32.mrb[0].mxu0
    %v8110 = vadd.f32 %v7565, %v8109
    %v8111 = vpop.f32.mrb[0].mxu0
    %8112 = vdwg.mxu0
    %v8113 = vadd.f32 %v7955, %v7856
    %v8114 = vadd.f32 %v7960, %v7857
    %v8115 = vadd.f32 %v7965, %v7858
    %v8116 = vadd.f32 %v7970, %v7859
    %v8117 = vadd.f32 %v7975, %v7860
    %v8118 = vadd.f32 %v7980, %v7861
    %v8119 = vadd.f32 %v7985, %v7862
    %v8120 = vadd.f32 %v7990, %v7863
    %v8121 = vadd.f32 %v7995, %v7864
    %v8122 = vadd.f32 %v8000, %v7865
    %v8123 = vadd.f32 %v8005, %v7866
    %v8124 = vadd.f32 %v8010, %v7867
    %v8125 = vadd.f32 %v8015, %v7868
    %v8126 = vadd.f32 %v8020, %v7869
    %v8127 = vadd.f32 %v8025, %v7870
    %v8128 = vadd.f32 %v8030, %v7871
    %v8129 = vadd.f32 %v8035, %v7872
    %v8130 = vadd.f32 %v8040, %v7873
    %v8131 = vadd.f32 %v8045, %v7874
    %v8132 = vadd.f32 %v8050, %v7875
    %v8133 = vadd.f32 %v8055, %v7876
    %v8134 = vadd.f32 %v8060, %v7877
    %v8135 = vadd.f32 %v8065, %v7878
    %v8136 = vadd.f32 %v8070, %v7879
    %v8137 = vadd.f32 %v8075, %v7880
    %v8138 = vadd.f32 %v8080, %v7881
    %v8139 = vadd.f32 %v8085, %v7882
    %v8140 = vadd.f32 %v8090, %v7883
    %v8141 = vadd.f32 %v8095, %v7884
    %v8142 = vadd.f32 %v8100, %v7885
    %v8143 = vadd.f32 %v8105, %v7886
    %v8144 = vadd.f32 %v8110, %v7887
    %v8145 = vmax.f32 %v8113, 0.0
    %v8146 = vmax.f32 %v8114, 0.0
    %v8147 = vmax.f32 %v8115, 0.0
    %v8148 = vmax.f32 %v8116, 0.0
    %v8149 = vmax.f32 %v8117, 0.0
    %v8150 = vmax.f32 %v8118, 0.0
    %v8151 = vmax.f32 %v8119, 0.0
    %v8152 = vmax.f32 %v8120, 0.0
    %v8153 = vmax.f32 %v8121, 0.0
    %v8154 = vmax.f32 %v8122, 0.0
    %v8155 = vmax.f32 %v8123, 0.0
    %v8156 = vmax.f32 %v8124, 0.0
    %v8157 = vmax.f32 %v8125, 0.0
    %v8158 = vmax.f32 %v8126, 0.0
    %v8159 = vmax.f32 %v8127, 0.0
    %v8160 = vmax.f32 %v8128, 0.0
    %v8161 = vmax.f32 %v8129, 0.0
    %v8162 = vmax.f32 %v8130, 0.0
    %v8163 = vmax.f32 %v8131, 0.0
    %v8164 = vmax.f32 %v8132, 0.0
    %v8165 = vmax.f32 %v8133, 0.0
    %v8166 = vmax.f32 %v8134, 0.0
    %v8167 = vmax.f32 %v8135, 0.0
    %v8168 = vmax.f32 %v8136, 0.0
    %v8169 = vmax.f32 %v8137, 0.0
    %v8170 = vmax.f32 %v8138, 0.0
    %v8171 = vmax.f32 %v8139, 0.0
    %v8172 = vmax.f32 %v8140, 0.0
    %v8173 = vmax.f32 %v8141, 0.0
    %v8174 = vmax.f32 %v8142, 0.0
    %v8175 = vmax.f32 %v8143, 0.0
    %v8176 = vmax.f32 %v8144, 0.0
    %v8177 = vadd.f32 %v7856, %v8145
    %v8178 = vadd.f32 %v7857, %v8146
    %v8179 = vadd.f32 %v7858, %v8147
    %v8180 = vadd.f32 %v7859, %v8148
    %v8181 = vadd.f32 %v7860, %v8149
    %v8182 = vadd.f32 %v7861, %v8150
    %v8183 = vadd.f32 %v7862, %v8151
    %v8184 = vadd.f32 %v7863, %v8152
    %v8185 = vadd.f32 %v7864, %v8153
    %v8186 = vadd.f32 %v7865, %v8154
    %v8187 = vadd.f32 %v7866, %v8155
    %v8188 = vadd.f32 %v7867, %v8156
    %v8189 = vadd.f32 %v7868, %v8157
    %v8190 = vadd.f32 %v7869, %v8158
    %v8191 = vadd.f32 %v7870, %v8159
    %v8192 = vadd.f32 %v7871, %v8160
    %v8193 = vadd.f32 %v7872, %v8161
    %v8194 = vadd.f32 %v7873, %v8162
    %v8195 = vadd.f32 %v7874, %v8163
    %v8196 = vadd.f32 %v7875, %v8164
    %v8197 = vadd.f32 %v7876, %v8165
    %v8198 = vadd.f32 %v7877, %v8166
    %v8199 = vadd.f32 %v7878, %v8167
    %v8200 = vadd.f32 %v7879, %v8168
    %v8201 = vadd.f32 %v7880, %v8169
    %v8202 = vadd.f32 %v7881, %v8170
    %v8203 = vadd.f32 %v7882, %v8171
    %v8204 = vadd.f32 %v7883, %v8172
    %v8205 = vadd.f32 %v7884, %v8173
    %v8206 = vadd.f32 %v7885, %v8174
    %v8207 = vadd.f32 %v7886, %v8175
    %v8208 = vadd.f32 %v7887, %v8176
    %8209 = vmatprep.subr.mxu0 0.0
    %8210 = vmatpush1.msra.mxu0 %v7544
    %8211 = vmatprep.subr.mxu0 0.0
    %8212 = vmatpush1.msra.mxu0 %v7545
    %8213 = vmatprep.subr.mxu0 0.0
    %8214 = vmatpush1.msra.mxu0 %v7546
    %8215 = vmatprep.subr.mxu0 0.0
    %8216 = vmatpush1.msra.mxu0 %v7547
    %8217 = vmatprep.subr.mxu0 0.0
    %8218 = vmatpush1.msra.mxu0 %v7548
    %8219 = vmatprep.subr.mxu0 0.0
    %8220 = vmatpush1.msra.mxu0 %v7549
    %8221 = vmatprep.subr.mxu0 0.0
    %8222 = vmatpush1.msra.mxu0 %v7550
    %8223 = vmatprep.subr.mxu0 0.0
    %8224 = vmatpush1.msra.mxu0 %v7551
    %8225 = vmatprep.subr.mxu0 0.0
    %8226 = vmatpush1.msra.mxu0 %v7552
    %8227 = vmatprep.subr.mxu0 0.0
    %8228 = vmatpush1.msra.mxu0 %v7553
    %8229 = vmatprep.subr.mxu0 0.0
    %8230 = vmatpush1.msra.mxu0 %v7554
    %8231 = vmatprep.subr.mxu0 0.0
    %8232 = vmatpush1.msra.mxu0 %v7555
    %8233 = vmatprep.subr.mxu0 0.0
    %8234 = vmatpush1.msra.mxu0 %v7556
    %8235 = vmatprep.subr.mxu0 0.0
    %8236 = vmatpush1.msra.mxu0 %v7557
    %8237 = vmatprep.subr.mxu0 0.0
    %8238 = vmatpush1.msra.mxu0 %v7558
    %8239 = vmatprep.subr.mxu0 0.0
    %8240 = vmatpush1.msra.mxu0 %v7559
    %8241 = vmatprep.subr.mxu0 0.0
    %8242 = vmatpush1.msra.mxu0 0.0
    %8243 = vmatprep.subr.mxu0 0.0
    %8244 = vmatpush1.msra.mxu0 0.0
    %8245 = vmatprep.subr.mxu0 0.0
    %8246 = vmatpush1.msra.mxu0 0.0
    %8247 = vmatprep.subr.mxu0 0.0
    %8248 = vmatpush1.msra.mxu0 0.0
    %8249 = vmatprep.subr.mxu0 0.0
    %8250 = vmatpush1.msra.mxu0 0.0
    %8251 = vmatprep.subr.mxu0 0.0
    %8252 = vmatpush1.msra.mxu0 0.0
    %8253 = vmatprep.subr.mxu0 0.0
    %8254 = vmatpush1.msra.mxu0 0.0
    %8255 = vmatprep.subr.mxu0 0.0
    %8256 = vmatpush1.msra.mxu0 0.0
    %8257 = vmatprep.subr.mxu0 0.0
    %8258 = vmatpush1.msra.mxu0 0.0
    %8259 = vmatprep.subr.mxu0 0.0
    %8260 = vmatpush1.msra.mxu0 0.0
    %8261 = vmatprep.subr.mxu0 0.0
    %8262 = vmatpush1.msra.mxu0 0.0
    %8263 = vmatprep.subr.mxu0 0.0
    %8264 = vmatpush1.msra.mxu0 0.0
    %8265 = vmatprep.subr.mxu0 0.0
    %8266 = vmatpush1.msra.mxu0 0.0
    %8267 = vmatprep.subr.mxu0 0.0
    %8268 = vmatpush1.msra.mxu0 0.0
    %8269 = vmatprep.subr.mxu0 0.0
    %8270 = vmatpush1.msra.mxu0 0.0
    %8271 = vmatprep.subr.mxu0 0.0
    %8272 = vmatpush1.msra.mxu0 0.0
    %8273 = vmatprep.mubr.f32.mxu0 0.0
    %8274 = vmatmul.mubr.f32.gmra.mrb[0].mxu0 %v8145
    %v8275 = vpop.f32.mrb[0].mxu0
    %v8276 = vadd.f32 %v7565, %v8275
    %v8277 = vpop.f32.mrb[0].mxu0
    %8278 = vmatprep.mubr.f32.mxu0 0.0
    %8279 = vmatmul.mubr.f32.gmra.mrb[0].mxu0 %v8146
    %v8280 = vpop.f32.mrb[0].mxu0
    %v8281 = vadd.f32 %v7565, %v8280
    %v8282 = vpop.f32.mrb[0].mxu0
    %8283 = vmatprep.mubr.f32.mxu0 0.0
    %8284 = vmatmul.mubr.f32.gmra.mrb[0].mxu0 %v8147
    %v8285 = vpop.f32.mrb[0].mxu0
    %v8286 = vadd.f32 %v7565, %v8285
    %v8287 = vpop.f32.mrb[0].mxu0
    %8288 = vmatprep.mubr.f32.mxu0 0.0
    %8289 = vmatmul.mubr.f32.gmra.mrb[0].mxu0 %v8148
    %v8290 = vpop.f32.mrb[0].mxu0
    %v8291 = vadd.f32 %v7565, %v8290
    %v8292 = vpop.f32.mrb[0].mxu0
    %8293 = vmatprep.mubr.f32.mxu0 0.0
    %8294 = vmatmul.mubr.f32.gmra.mrb[0].mxu0 %v8149
    %v8295 = vpop.f32.mrb[0].mxu0
    %v8296 = vadd.f32 %v7565, %v8295
    %v8297 = vpop.f32.mrb[0].mxu0
    %8298 = vmatprep.mubr.f32.mxu0 0.0
    %8299 = vmatmul.mubr.f32.gmra.mrb[0].mxu0 %v8150
    %v8300 = vpop.f32.mrb[0].mxu0
    %v8301 = vadd.f32 %v7565, %v8300
    %v8302 = vpop.f32.mrb[0].mxu0
    %8303 = vmatprep.mubr.f32.mxu0 0.0
    %8304 = vmatmul.mubr.f32.gmra.mrb[0].mxu0 %v8151
    %v8305 = vpop.f32.mrb[0].mxu0
    %v8306 = vadd.f32 %v7565, %v8305
    %v8307 = vpop.f32.mrb[0].mxu0
    %8308 = vmatprep.mubr.f32.mxu0 0.0
    %8309 = vmatmul.mubr.f32.gmra.mrb[0].mxu0 %v8152
    %v8310 = vpop.f32.mrb[0].mxu0
    %v8311 = vadd.f32 %v7565, %v8310
    %v8312 = vpop.f32.mrb[0].mxu0
    %8313 = vmatprep.mubr.f32.mxu0 0.0
    %8314 = vmatmul.mubr.f32.gmra.mrb[0].mxu0 %v8153
    %v8315 = vpop.f32.mrb[0].mxu0
    %v8316 = vadd.f32 %v7565, %v8315
    %v8317 = vpop.f32.mrb[0].mxu0
    %8318 = vmatprep.mubr.f32.mxu0 0.0
    %8319 = vmatmul.mubr.f32.gmra.mrb[0].mxu0 %v8154
    %v8320 = vpop.f32.mrb[0].mxu0
    %v8321 = vadd.f32 %v7565, %v8320
    %v8322 = vpop.f32.mrb[0].mxu0
    %8323 = vmatprep.mubr.f32.mxu0 0.0
    %8324 = vmatmul.mubr.f32.gmra.mrb[0].mxu0 %v8155
    %v8325 = vpop.f32.mrb[0].mxu0
    %v8326 = vadd.f32 %v7565, %v8325
    %v8327 = vpop.f32.mrb[0].mxu0
    %8328 = vmatprep.mubr.f32.mxu0 0.0
    %8329 = vmatmul.mubr.f32.gmra.mrb[0].mxu0 %v8156
    %v8330 = vpop.f32.mrb[0].mxu0
    %v8331 = vadd.f32 %v7565, %v8330
    %v8332 = vpop.f32.mrb[0].mxu0
    %8333 = vmatprep.mubr.f32.mxu0 0.0
    %8334 = vmatmul.mubr.f32.gmra.mrb[0].mxu0 %v8157
    %v8335 = vpop.f32.mrb[0].mxu0
    %v8336 = vadd.f32 %v7565, %v8335
    %v8337 = vpop.f32.mrb[0].mxu0
    %8338 = vmatprep.mubr.f32.mxu0 0.0
    %8339 = vmatmul.mubr.f32.gmra.mrb[0].mxu0 %v8158
    %v8340 = vpop.f32.mrb[0].mxu0
    %v8341 = vadd.f32 %v7565, %v8340
    %v8342 = vpop.f32.mrb[0].mxu0
    %8343 = vmatprep.mubr.f32.mxu0 0.0
    %8344 = vmatmul.mubr.f32.gmra.mrb[0].mxu0 %v8159
    %v8345 = vpop.f32.mrb[0].mxu0
    %v8346 = vadd.f32 %v7565, %v8345
    %v8347 = vpop.f32.mrb[0].mxu0
    %8348 = vmatprep.mubr.f32.mxu0 0.0
    %8349 = vmatmul.mubr.f32.gmra.mrb[0].mxu0 %v8160
    %v8350 = vpop.f32.mrb[0].mxu0
    %v8351 = vadd.f32 %v7565, %v8350
    %v8352 = vpop.f32.mrb[0].mxu0
    %8353 = vmatprep.mubr.f32.mxu0 0.0
    %8354 = vmatmul.mubr.f32.gmra.mrb[0].mxu0 %v8161
    %v8355 = vpop.f32.mrb[0].mxu0
    %v8356 = vadd.f32 %v7565, %v8355
    %v8357 = vpop.f32.mrb[0].mxu0
    %8358 = vmatprep.mubr.f32.mxu0 0.0
    %8359 = vmatmul.mubr.f32.gmra.mrb[0].mxu0 %v8162
    %v8360 = vpop.f32.mrb[0].mxu0
    %v8361 = vadd.f32 %v7565, %v8360
    %v8362 = vpop.f32.mrb[0].mxu0
    %8363 = vmatprep.mubr.f32.mxu0 0.0
    %8364 = vmatmul.mubr.f32.gmra.mrb[0].mxu0 %v8163
    %v8365 = vpop.f32.mrb[0].mxu0
    %v8366 = vadd.f32 %v7565, %v8365
    %v8367 = vpop.f32.mrb[0].mxu0
    %8368 = vmatprep.mubr.f32.mxu0 0.0
    %8369 = vmatmul.mubr.f32.gmra.mrb[0].mxu0 %v8164
    %v8370 = vpop.f32.mrb[0].mxu0
    %v8371 = vadd.f32 %v7565, %v8370
    %v8372 = vpop.f32.mrb[0].mxu0
    %8373 = vmatprep.mubr.f32.mxu0 0.0
    %8374 = vmatmul.mubr.f32.gmra.mrb[0].mxu0 %v8165
    %v8375 = vpop.f32.mrb[0].mxu0
    %v8376 = vadd.f32 %v7565, %v8375
    %v8377 = vpop.f32.mrb[0].mxu0
    %8378 = vmatprep.mubr.f32.mxu0 0.0
    %8379 = vmatmul.mubr.f32.gmra.mrb[0].mxu0 %v8166
    %v8380 = vpop.f32.mrb[0].mxu0
    %v8381 = vadd.f32 %v7565, %v8380
    %v8382 = vpop.f32.mrb[0].mxu0
    %8383 = vmatprep.mubr.f32.mxu0 0.0
    %8384 = vmatmul.mubr.f32.gmra.mrb[0].mxu0 %v8167
    %v8385 = vpop.f32.mrb[0].mxu0
    %v8386 = vadd.f32 %v7565, %v8385
    %v8387 = vpop.f32.mrb[0].mxu0
    %8388 = vmatprep.mubr.f32.mxu0 0.0
    %8389 = vmatmul.mubr.f32.gmra.mrb[0].mxu0 %v8168
    %v8390 = vpop.f32.mrb[0].mxu0
    %v8391 = vadd.f32 %v7565, %v8390
    %v8392 = vpop.f32.mrb[0].mxu0
    %8393 = vmatprep.mubr.f32.mxu0 0.0
    %8394 = vmatmul.mubr.f32.gmra.mrb[0].mxu0 %v8169
    %v8395 = vpop.f32.mrb[0].mxu0
    %v8396 = vadd.f32 %v7565, %v8395
    %v8397 = vpop.f32.mrb[0].mxu0
    %8398 = vmatprep.mubr.f32.mxu0 0.0
    %8399 = vmatmul.mubr.f32.gmra.mrb[0].mxu0 %v8170
    %v8400 = vpop.f32.mrb[0].mxu0
    %v8401 = vadd.f32 %v7565, %v8400
    %v8402 = vpop.f32.mrb[0].mxu0
    %8403 = vmatprep.mubr.f32.mxu0 0.0
    %8404 = vmatmul.mubr.f32.gmra.mrb[0].mxu0 %v8171
    %v8405 = vpop.f32.mrb[0].mxu0
    %v8406 = vadd.f32 %v7565, %v8405
    %v8407 = vpop.f32.mrb[0].mxu0
    %8408 = vmatprep.mubr.f32.mxu0 0.0
    %8409 = vmatmul.mubr.f32.gmra.mrb[0].mxu0 %v8172
    %v8410 = vpop.f32.mrb[0].mxu0
    %v8411 = vadd.f32 %v7565, %v8410
    %v8412 = vpop.f32.mrb[0].mxu0
    %8413 = vmatprep.mubr.f32.mxu0 0.0
    %8414 = vmatmul.mubr.f32.gmra.mrb[0].mxu0 %v8173
    %v8415 = vpop.f32.mrb[0].mxu0
    %v8416 = vadd.f32 %v7565, %v8415
    %v8417 = vpop.f32.mrb[0].mxu0
    %8418 = vmatprep.mubr.f32.mxu0 0.0
    %8419 = vmatmul.mubr.f32.gmra.mrb[0].mxu0 %v8174
    %v8420 = vpop.f32.mrb[0].mxu0
    %v8421 = vadd.f32 %v7565, %v8420
    %v8422 = vpop.f32.mrb[0].mxu0
    %8423 = vmatprep.mubr.f32.mxu0 0.0
    %8424 = vmatmul.mubr.f32.gmra.mrb[0].mxu0 %v8175
    %v8425 = vpop.f32.mrb[0].mxu0
    %v8426 = vadd.f32 %v7565, %v8425
    %v8427 = vpop.f32.mrb[0].mxu0
    %8428 = vmatprep.mubr.f32.mxu0 0.0
    %8429 = vmatmul.mubr.f32.gmra.mrb[0].mxu0 %v8176
    %v8430 = vpop.f32.mrb[0].mxu0
    %v8431 = vadd.f32 %v7565, %v8430
    %v8432 = vpop.f32.mrb[0].mxu0
    %8433 = vdwg.mxu0
    %v8434 = vadd.f32 %v8276, %v8177
    %v8435 = vadd.f32 %v8281, %v8178
    %v8436 = vadd.f32 %v8286, %v8179
    %v8437 = vadd.f32 %v8291, %v8180
    %v8438 = vadd.f32 %v8296, %v8181
    %v8439 = vadd.f32 %v8301, %v8182
    %v8440 = vadd.f32 %v8306, %v8183
    %v8441 = vadd.f32 %v8311, %v8184
    %v8442 = vadd.f32 %v8316, %v8185
    %v8443 = vadd.f32 %v8321, %v8186
    %v8444 = vadd.f32 %v8326, %v8187
    %v8445 = vadd.f32 %v8331, %v8188
    %v8446 = vadd.f32 %v8336, %v8189
    %v8447 = vadd.f32 %v8341, %v8190
    %v8448 = vadd.f32 %v8346, %v8191
    %v8449 = vadd.f32 %v8351, %v8192
    %v8450 = vadd.f32 %v8356, %v8193
    %v8451 = vadd.f32 %v8361, %v8194
    %v8452 = vadd.f32 %v8366, %v8195
    %v8453 = vadd.f32 %v8371, %v8196
    %v8454 = vadd.f32 %v8376, %v8197
    %v8455 = vadd.f32 %v8381, %v8198
    %v8456 = vadd.f32 %v8386, %v8199
    %v8457 = vadd.f32 %v8391, %v8200
    %v8458 = vadd.f32 %v8396, %v8201
    %v8459 = vadd.f32 %v8401, %v8202
    %v8460 = vadd.f32 %v8406, %v8203
    %v8461 = vadd.f32 %v8411, %v8204
    %v8462 = vadd.f32 %v8416, %v8205
    %v8463 = vadd.f32 %v8421, %v8206
    %v8464 = vadd.f32 %v8426, %v8207
    %v8465 = vadd.f32 %v8431, %v8208
    %v8466 = vmax.f32 %v8434, 0.0
    %v8467 = vmax.f32 %v8435, 0.0
    %v8468 = vmax.f32 %v8436, 0.0
    %v8469 = vmax.f32 %v8437, 0.0
    %v8470 = vmax.f32 %v8438, 0.0
    %v8471 = vmax.f32 %v8439, 0.0
    %v8472 = vmax.f32 %v8440, 0.0
    %v8473 = vmax.f32 %v8441, 0.0
    %v8474 = vmax.f32 %v8442, 0.0
    %v8475 = vmax.f32 %v8443, 0.0
    %v8476 = vmax.f32 %v8444, 0.0
    %v8477 = vmax.f32 %v8445, 0.0
    %v8478 = vmax.f32 %v8446, 0.0
    %v8479 = vmax.f32 %v8447, 0.0
    %v8480 = vmax.f32 %v8448, 0.0
    %v8481 = vmax.f32 %v8449, 0.0
    %v8482 = vmax.f32 %v8450, 0.0
    %v8483 = vmax.f32 %v8451, 0.0
    %v8484 = vmax.f32 %v8452, 0.0
    %v8485 = vmax.f32 %v8453, 0.0
    %v8486 = vmax.f32 %v8454, 0.0
    %v8487 = vmax.f32 %v8455, 0.0
    %v8488 = vmax.f32 %v8456, 0.0
    %v8489 = vmax.f32 %v8457, 0.0
    %v8490 = vmax.f32 %v8458, 0.0
    %v8491 = vmax.f32 %v8459, 0.0
    %v8492 = vmax.f32 %v8460, 0.0
    %v8493 = vmax.f32 %v8461, 0.0
    %v8494 = vmax.f32 %v8462, 0.0
    %v8495 = vmax.f32 %v8463, 0.0
    %v8496 = vmax.f32 %v8464, 0.0
    %v8497 = vmax.f32 %v8465, 0.0
    %v8498 = vadd.f32 %v8177, %v8466
    %v8499 = vadd.f32 %v8178, %v8467
    %v8500 = vadd.f32 %v8179, %v8468
    %v8501 = vadd.f32 %v8180, %v8469
    %v8502 = vadd.f32 %v8181, %v8470
    %v8503 = vadd.f32 %v8182, %v8471
    %v8504 = vadd.f32 %v8183, %v8472
    %v8505 = vadd.f32 %v8184, %v8473
    %v8506 = vadd.f32 %v8185, %v8474
    %v8507 = vadd.f32 %v8186, %v8475
    %v8508 = vadd.f32 %v8187, %v8476
    %v8509 = vadd.f32 %v8188, %v8477
    %v8510 = vadd.f32 %v8189, %v8478
    %v8511 = vadd.f32 %v8190, %v8479
    %v8512 = vadd.f32 %v8191, %v8480
    %v8513 = vadd.f32 %v8192, %v8481
    %v8514 = vadd.f32 %v8193, %v8482
    %v8515 = vadd.f32 %v8194, %v8483
    %v8516 = vadd.f32 %v8195, %v8484
    %v8517 = vadd.f32 %v8196, %v8485
    %v8518 = vadd.f32 %v8197, %v8486
    %v8519 = vadd.f32 %v8198, %v8487
    %v8520 = vadd.f32 %v8199, %v8488
    %v8521 = vadd.f32 %v8200, %v8489
    %v8522 = vadd.f32 %v8201, %v8490
    %v8523 = vadd.f32 %v8202, %v8491
    %v8524 = vadd.f32 %v8203, %v8492
    %v8525 = vadd.f32 %v8204, %v8493
    %v8526 = vadd.f32 %v8205, %v8494
    %v8527 = vadd.f32 %v8206, %v8495
    %v8528 = vadd.f32 %v8207, %v8496
    %v8529 = vadd.f32 %v8208, %v8497
    %8530 = vmatprep.subr.mxu0 0.0
    %8531 = vmatpush1.msra.mxu0 %v7544
    %8532 = vmatprep.subr.mxu0 0.0
    %8533 = vmatpush1.msra.mxu0 %v7545
    %8534 = vmatprep.subr.mxu0 0.0
    %8535 = vmatpush1.msra.mxu0 %v7546
    %8536 = vmatprep.subr.mxu0 0.0
    %8537 = vmatpush1.msra.mxu0 %v7547
    %8538 = vmatprep.subr.mxu0 0.0
    %8539 = vmatpush1.msra.mxu0 %v7548
    %8540 = vmatprep.subr.mxu0 0.0
    %8541 = vmatpush1.msra.mxu0 %v7549
    %8542 = vmatprep.subr.mxu0 0.0
    %8543 = vmatpush1.msra.mxu0 %v7550
    %8544 = vmatprep.subr.mxu0 0.0
    %8545 = vmatpush1.msra.mxu0 %v7551
    %8546 = vmatprep.subr.mxu0 0.0
    %8547 = vmatpush1.msra.mxu0 %v7552
    %8548 = vmatprep.subr.mxu0 0.0
    %8549 = vmatpush1.msra.mxu0 %v7553
    %8550 = vmatprep.subr.mxu0 0.0
    %8551 = vmatpush1.msra.mxu0 %v7554
    %8552 = vmatprep.subr.mxu0 0.0
    %8553 = vmatpush1.msra.mxu0 %v7555
    %8554 = vmatprep.subr.mxu0 0.0
    %8555 = vmatpush1.msra.mxu0 %v7556
    %8556 = vmatprep.subr.mxu0 0.0
    %8557 = vmatpush1.msra.mxu0 %v7557
    %8558 = vmatprep.subr.mxu0 0.0
    %8559 = vmatpush1.msra.mxu0 %v7558
    %8560 = vmatprep.subr.mxu0 0.0
    %8561 = vmatpush1.msra.mxu0 %v7559
    %8562 = vmatprep.subr.mxu0 0.0
    %8563 = vmatpush1.msra.mxu0 0.0
    %8564 = vmatprep.subr.mxu0 0.0
    %8565 = vmatpush1.msra.mxu0 0.0
    %8566 = vmatprep.subr.mxu0 0.0
    %8567 = vmatpush1.msra.mxu0 0.0
    %8568 = vmatprep.subr.mxu0 0.0
    %8569 = vmatpush1.msra.mxu0 0.0
    %8570 = vmatprep.subr.mxu0 0.0
    %8571 = vmatpush1.msra.mxu0 0.0
    %8572 = vmatprep.subr.mxu0 0.0
    %8573 = vmatpush1.msra.mxu0 0.0
    %8574 = vmatprep.subr.mxu0 0.0
    %8575 = vmatpush1.msra.mxu0 0.0
    %8576 = vmatprep.subr.mxu0 0.0
    %8577 = vmatpush1.msra.mxu0 0.0
    %8578 = vmatprep.subr.mxu0 0.0
    %8579 = vmatpush1.msra.mxu0 0.0
    %8580 = vmatprep.subr.mxu0 0.0
    %8581 = vmatpush1.msra.mxu0 0.0
    %8582 = vmatprep.subr.mxu0 0.0
    %8583 = vmatpush1.msra.mxu0 0.0
    %8584 = vmatprep.subr.mxu0 0.0
    %8585 = vmatpush1.msra.mxu0 0.0
    %8586 = vmatprep.subr.mxu0 0.0
    %8587 = vmatpush1.msra.mxu0 0.0
    %8588 = vmatprep.subr.mxu0 0.0
    %8589 = vmatpush1.msra.mxu0 0.0
    %8590 = vmatprep.subr.mxu0 0.0
    %8591 = vmatpush1.msra.mxu0 0.0
    %8592 = vmatprep.subr.mxu0 0.0
    %8593 = vmatpush1.msra.mxu0 0.0
    %8594 = vmatprep.mubr.f32.mxu0 0.0
    %8595 = vmatmul.mubr.f32.gmra.mrb[0].mxu0 %v8466
    %v8596 = vpop.f32.mrb[0].mxu0
    %v8597 = vadd.f32 %v7565, %v8596
    %v8598 = vpop.f32.mrb[0].mxu0
    %8599 = vmatprep.mubr.f32.mxu0 0.0
    %8600 = vmatmul.mubr.f32.gmra.mrb[0].mxu0 %v8467
    %v8601 = vpop.f32.mrb[0].mxu0
    %v8602 = vadd.f32 %v7565, %v8601
    %v8603 = vpop.f32.mrb[0].mxu0
    %8604 = vmatprep.mubr.f32.mxu0 0.0
    %8605 = vmatmul.mubr.f32.gmra.mrb[0].mxu0 %v8468
    %v8606 = vpop.f32.mrb[0].mxu0
    %v8607 = vadd.f32 %v7565, %v8606
    %v8608 = vpop.f32.mrb[0].mxu0
    %8609 = vmatprep.mubr.f32.mxu0 0.0
    %8610 = vmatmul.mubr.f32.gmra.mrb[0].mxu0 %v8469
    %v8611 = vpop.f32.mrb[0].mxu0
    %v8612 = vadd.f32 %v7565, %v8611
    %v8613 = vpop.f32.mrb[0].mxu0
    %8614 = vmatprep.mubr.f32.mxu0 0.0
    %8615 = vmatmul.mubr.f32.gmra.mrb[0].mxu0 %v8470
    %v8616 = vpop.f32.mrb[0].mxu0
    %v8617 = vadd.f32 %v7565, %v8616
    %v8618 = vpop.f32.mrb[0].mxu0
    %8619 = vmatprep.mubr.f32.mxu0 0.0
    %8620 = vmatmul.mubr.f32.gmra.mrb[0].mxu0 %v8471
    %v8621 = vpop.f32.mrb[0].mxu0
    %v8622 = vadd.f32 %v7565, %v8621
    %v8623 = vpop.f32.mrb[0].mxu0
    %8624 = vmatprep.mubr.f32.mxu0 0.0
    %8625 = vmatmul.mubr.f32.gmra.mrb[0].mxu0 %v8472
    %v8626 = vpop.f32.mrb[0].mxu0
    %v8627 = vadd.f32 %v7565, %v8626
    %v8628 = vpop.f32.mrb[0].mxu0
    %8629 = vmatprep.mubr.f32.mxu0 0.0
    %8630 = vmatmul.mubr.f32.gmra.mrb[0].mxu0 %v8473
    %v8631 = vpop.f32.mrb[0].mxu0
    %v8632 = vadd.f32 %v7565, %v8631
    %v8633 = vpop.f32.mrb[0].mxu0
    %8634 = vmatprep.mubr.f32.mxu0 0.0
    %8635 = vmatmul.mubr.f32.gmra.mrb[0].mxu0 %v8474
    %v8636 = vpop.f32.mrb[0].mxu0
    %v8637 = vadd.f32 %v7565, %v8636
    %v8638 = vpop.f32.mrb[0].mxu0
    %8639 = vmatprep.mubr.f32.mxu0 0.0
    %8640 = vmatmul.mubr.f32.gmra.mrb[0].mxu0 %v8475
    %v8641 = vpop.f32.mrb[0].mxu0
    %v8642 = vadd.f32 %v7565, %v8641
    %v8643 = vpop.f32.mrb[0].mxu0
    %8644 = vmatprep.mubr.f32.mxu0 0.0
    %8645 = vmatmul.mubr.f32.gmra.mrb[0].mxu0 %v8476
    %v8646 = vpop.f32.mrb[0].mxu0
    %v8647 = vadd.f32 %v7565, %v8646
    %v8648 = vpop.f32.mrb[0].mxu0
    %8649 = vmatprep.mubr.f32.mxu0 0.0
    %8650 = vmatmul.mubr.f32.gmra.mrb[0].mxu0 %v8477
    %v8651 = vpop.f32.mrb[0].mxu0
    %v8652 = vadd.f32 %v7565, %v8651
    %v8653 = vpop.f32.mrb[0].mxu0
    %8654 = vmatprep.mubr.f32.mxu0 0.0
    %8655 = vmatmul.mubr.f32.gmra.mrb[0].mxu0 %v8478
    %v8656 = vpop.f32.mrb[0].mxu0
    %v8657 = vadd.f32 %v7565, %v8656
    %v8658 = vpop.f32.mrb[0].mxu0
    %8659 = vmatprep.mubr.f32.mxu0 0.0
    %8660 = vmatmul.mubr.f32.gmra.mrb[0].mxu0 %v8479
    %v8661 = vpop.f32.mrb[0].mxu0
    %v8662 = vadd.f32 %v7565, %v8661
    %v8663 = vpop.f32.mrb[0].mxu0
    %8664 = vmatprep.mubr.f32.mxu0 0.0
    %8665 = vmatmul.mubr.f32.gmra.mrb[0].mxu0 %v8480
    %v8666 = vpop.f32.mrb[0].mxu0
    %v8667 = vadd.f32 %v7565, %v8666
    %v8668 = vpop.f32.mrb[0].mxu0
    %8669 = vmatprep.mubr.f32.mxu0 0.0
    %8670 = vmatmul.mubr.f32.gmra.mrb[0].mxu0 %v8481
    %v8671 = vpop.f32.mrb[0].mxu0
    %v8672 = vadd.f32 %v7565, %v8671
    %v8673 = vpop.f32.mrb[0].mxu0
    %8674 = vmatprep.mubr.f32.mxu0 0.0
    %8675 = vmatmul.mubr.f32.gmra.mrb[0].mxu0 %v8482
    %v8676 = vpop.f32.mrb[0].mxu0
    %v8677 = vadd.f32 %v7565, %v8676
    %v8678 = vpop.f32.mrb[0].mxu0
    %8679 = vmatprep.mubr.f32.mxu0 0.0
    %8680 = vmatmul.mubr.f32.gmra.mrb[0].mxu0 %v8483
    %v8681 = vpop.f32.mrb[0].mxu0
    %v8682 = vadd.f32 %v7565, %v8681
    %v8683 = vpop.f32.mrb[0].mxu0
    %8684 = vmatprep.mubr.f32.mxu0 0.0
    %8685 = vmatmul.mubr.f32.gmra.mrb[0].mxu0 %v8484
    %v8686 = vpop.f32.mrb[0].mxu0
    %v8687 = vadd.f32 %v7565, %v8686
    %v8688 = vpop.f32.mrb[0].mxu0
    %8689 = vmatprep.mubr.f32.mxu0 0.0
    %8690 = vmatmul.mubr.f32.gmra.mrb[0].mxu0 %v8485
    %v8691 = vpop.f32.mrb[0].mxu0
    %v8692 = vadd.f32 %v7565, %v8691
    %v8693 = vpop.f32.mrb[0].mxu0
    %8694 = vmatprep.mubr.f32.mxu0 0.0
    %8695 = vmatmul.mubr.f32.gmra.mrb[0].mxu0 %v8486
    %v8696 = vpop.f32.mrb[0].mxu0
    %v8697 = vadd.f32 %v7565, %v8696
    %v8698 = vpop.f32.mrb[0].mxu0
    %8699 = vmatprep.mubr.f32.mxu0 0.0
    %8700 = vmatmul.mubr.f32.gmra.mrb[0].mxu0 %v8487
    %v8701 = vpop.f32.mrb[0].mxu0
    %v8702 = vadd.f32 %v7565, %v8701
    %v8703 = vpop.f32.mrb[0].mxu0
    %8704 = vmatprep.mubr.f32.mxu0 0.0
    %8705 = vmatmul.mubr.f32.gmra.mrb[0].mxu0 %v8488
    %v8706 = vpop.f32.mrb[0].mxu0
    %v8707 = vadd.f32 %v7565, %v8706
    %v8708 = vpop.f32.mrb[0].mxu0
    %8709 = vmatprep.mubr.f32.mxu0 0.0
    %8710 = vmatmul.mubr.f32.gmra.mrb[0].mxu0 %v8489
    %v8711 = vpop.f32.mrb[0].mxu0
    %v8712 = vadd.f32 %v7565, %v8711
    %v8713 = vpop.f32.mrb[0].mxu0
    %8714 = vmatprep.mubr.f32.mxu0 0.0
    %8715 = vmatmul.mubr.f32.gmra.mrb[0].mxu0 %v8490
    %v8716 = vpop.f32.mrb[0].mxu0
    %v8717 = vadd.f32 %v7565, %v8716
    %v8718 = vpop.f32.mrb[0].mxu0
    %8719 = vmatprep.mubr.f32.mxu0 0.0
    %8720 = vmatmul.mubr.f32.gmra.mrb[0].mxu0 %v8491
    %v8721 = vpop.f32.mrb[0].mxu0
    %v8722 = vadd.f32 %v7565, %v8721
    %v8723 = vpop.f32.mrb[0].mxu0
    %8724 = vmatprep.mubr.f32.mxu0 0.0
    %8725 = vmatmul.mubr.f32.gmra.mrb[0].mxu0 %v8492
    %v8726 = vpop.f32.mrb[0].mxu0
    %v8727 = vadd.f32 %v7565, %v8726
    %v8728 = vpop.f32.mrb[0].mxu0
    %8729 = vmatprep.mubr.f32.mxu0 0.0
    %8730 = vmatmul.mubr.f32.gmra.mrb[0].mxu0 %v8493
    %v8731 = vpop.f32.mrb[0].mxu0
    %v8732 = vadd.f32 %v7565, %v8731
    %v8733 = vpop.f32.mrb[0].mxu0
    %8734 = vmatprep.mubr.f32.mxu0 0.0
    %8735 = vmatmul.mubr.f32.gmra.mrb[0].mxu0 %v8494
    %v8736 = vpop.f32.mrb[0].mxu0
    %v8737 = vadd.f32 %v7565, %v8736
    %v8738 = vpop.f32.mrb[0].mxu0
    %8739 = vmatprep.mubr.f32.mxu0 0.0
    %8740 = vmatmul.mubr.f32.gmra.mrb[0].mxu0 %v8495
    %v8741 = vpop.f32.mrb[0].mxu0
    %v8742 = vadd.f32 %v7565, %v8741
    %v8743 = vpop.f32.mrb[0].mxu0
    %8744 = vmatprep.mubr.f32.mxu0 0.0
    %8745 = vmatmul.mubr.f32.gmra.mrb[0].mxu0 %v8496
    %v8746 = vpop.f32.mrb[0].mxu0
    %v8747 = vadd.f32 %v7565, %v8746
    %v8748 = vpop.f32.mrb[0].mxu0
    %8749 = vmatprep.mubr.f32.mxu0 0.0
    %8750 = vmatmul.mubr.f32.gmra.mrb[0].mxu0 %v8497
    %v8751 = vpop.f32.mrb[0].mxu0
    %v8752 = vadd.f32 %v7565, %v8751
    %v8753 = vpop.f32.mrb[0].mxu0
    %8754 = vdwg.mxu0
    %v8755 = vadd.f32 %v8597, %v8498
    %v8756 = vadd.f32 %v8602, %v8499
    %v8757 = vadd.f32 %v8607, %v8500
    %v8758 = vadd.f32 %v8612, %v8501
    %v8759 = vadd.f32 %v8617, %v8502
    %v8760 = vadd.f32 %v8622, %v8503
    %v8761 = vadd.f32 %v8627, %v8504
    %v8762 = vadd.f32 %v8632, %v8505
    %v8763 = vadd.f32 %v8637, %v8506
    %v8764 = vadd.f32 %v8642, %v8507
    %v8765 = vadd.f32 %v8647, %v8508
    %v8766 = vadd.f32 %v8652, %v8509
    %v8767 = vadd.f32 %v8657, %v8510
    %v8768 = vadd.f32 %v8662, %v8511
    %v8769 = vadd.f32 %v8667, %v8512
    %v8770 = vadd.f32 %v8672, %v8513
    %v8771 = vadd.f32 %v8677, %v8514
    %v8772 = vadd.f32 %v8682, %v8515
    %v8773 = vadd.f32 %v8687, %v8516
    %v8774 = vadd.f32 %v8692, %v8517
    %v8775 = vadd.f32 %v8697, %v8518
    %v8776 = vadd.f32 %v8702, %v8519
    %v8777 = vadd.f32 %v8707, %v8520
    %v8778 = vadd.f32 %v8712, %v8521
    %v8779 = vadd.f32 %v8717, %v8522
    %v8780 = vadd.f32 %v8722, %v8523
    %v8781 = vadd.f32 %v8727, %v8524
    %v8782 = vadd.f32 %v8732, %v8525
    %v8783 = vadd.f32 %v8737, %v8526
    %v8784 = vadd.f32 %v8742, %v8527
    %v8785 = vadd.f32 %v8747, %v8528
    %v8786 = vadd.f32 %v8752, %v8529
    %v8787 = vmax.f32 %v8755, 0.0
    %v8788 = vmax.f32 %v8756, 0.0
    %v8789 = vmax.f32 %v8757, 0.0
    %v8790 = vmax.f32 %v8758, 0.0
    %v8791 = vmax.f32 %v8759, 0.0
    %v8792 = vmax.f32 %v8760, 0.0
    %v8793 = vmax.f32 %v8761, 0.0
    %v8794 = vmax.f32 %v8762, 0.0
    %v8795 = vmax.f32 %v8763, 0.0
    %v8796 = vmax.f32 %v8764, 0.0
    %v8797 = vmax.f32 %v8765, 0.0
    %v8798 = vmax.f32 %v8766, 0.0
    %v8799 = vmax.f32 %v8767, 0.0
    %v8800 = vmax.f32 %v8768, 0.0
    %v8801 = vmax.f32 %v8769, 0.0
    %v8802 = vmax.f32 %v8770, 0.0
    %v8803 = vmax.f32 %v8771, 0.0
    %v8804 = vmax.f32 %v8772, 0.0
    %v8805 = vmax.f32 %v8773, 0.0
    %v8806 = vmax.f32 %v8774, 0.0
    %v8807 = vmax.f32 %v8775, 0.0
    %v8808 = vmax.f32 %v8776, 0.0
    %v8809 = vmax.f32 %v8777, 0.0
    %v8810 = vmax.f32 %v8778, 0.0
    %v8811 = vmax.f32 %v8779, 0.0
    %v8812 = vmax.f32 %v8780, 0.0
    %v8813 = vmax.f32 %v8781, 0.0
    %v8814 = vmax.f32 %v8782, 0.0
    %v8815 = vmax.f32 %v8783, 0.0
    %v8816 = vmax.f32 %v8784, 0.0
    %v8817 = vmax.f32 %v8785, 0.0
    %v8818 = vmax.f32 %v8786, 0.0
    %v8819 = vld [vmem:[%s11] sm:$0xff]
    %v8820 = vld [vmem:[%s11 + $0x8] sm:$0xff]
    %v8821 = vld [vmem:[%s11 + $0x10] sm:$0xff]
    %v8822 = vld [vmem:[%s11 + $0x18] sm:$0xff]
    %v8823 = vld [vmem:[%s11 + $0x20] sm:$0xff]
    %v8824 = vld [vmem:[%s11 + $0x28] sm:$0xff]
    %v8825 = vld [vmem:[%s11 + $0x30] sm:$0xff]
    %v8826 = vld [vmem:[%s11 + $0x38] sm:$0xff]
    %v8827 = vld [vmem:[%s11 + $0x40] sm:$0xff]
    %v8828 = vld [vmem:[%s11 + $0x48] sm:$0xff]
    %v8829 = vld [vmem:[%s11 + $0x50] sm:$0xff]
    %v8830 = vld [vmem:[%s11 + $0x58] sm:$0xff]
    %v8831 = vld [vmem:[%s11 + $0x60] sm:$0xff]
    %v8832 = vld [vmem:[%s11 + $0x68] sm:$0xff]
    %v8833 = vld [vmem:[%s11 + $0x70] sm:$0xff]
    %v8834 = vld [vmem:[%s11 + $0x78] sm:$0xff]
    %v8835 = vld [vmem:[#allocation15] sm:$0x1]
    %v8837 = vlaneseq
    %v8838 = vshrl.u32 %v8837, 7
    %v8839 = vsub.s32 0, %v8838
    %v8840 = vrot.slane %v8835, %v8839
    %8842 = vmatprep.subr.mxu0 0.0
    %8843 = vmatpush1.msra.mxu0 %v8819
    %8844 = vmatprep.subr.mxu0 0.0
    %8845 = vmatpush1.msra.mxu0 %v8820
    %8846 = vmatprep.subr.mxu0 0.0
    %8847 = vmatpush1.msra.mxu0 %v8821
    %8848 = vmatprep.subr.mxu0 0.0
    %8849 = vmatpush1.msra.mxu0 %v8822
    %8850 = vmatprep.subr.mxu0 0.0
    %8851 = vmatpush1.msra.mxu0 %v8823
    %8852 = vmatprep.subr.mxu0 0.0
    %8853 = vmatpush1.msra.mxu0 %v8824
    %8854 = vmatprep.subr.mxu0 0.0
    %8855 = vmatpush1.msra.mxu0 %v8825
    %8856 = vmatprep.subr.mxu0 0.0
    %8857 = vmatpush1.msra.mxu0 %v8826
    %8858 = vmatprep.subr.mxu0 0.0
    %8859 = vmatpush1.msra.mxu0 %v8827
    %8860 = vmatprep.subr.mxu0 0.0
    %8861 = vmatpush1.msra.mxu0 %v8828
    %8862 = vmatprep.subr.mxu0 0.0
    %8863 = vmatpush1.msra.mxu0 %v8829
    %8864 = vmatprep.subr.mxu0 0.0
    %8865 = vmatpush1.msra.mxu0 %v8830
    %8866 = vmatprep.subr.mxu0 0.0
    %8867 = vmatpush1.msra.mxu0 %v8831
    %8868 = vmatprep.subr.mxu0 0.0
    %8869 = vmatpush1.msra.mxu0 %v8832
    %8870 = vmatprep.subr.mxu0 0.0
    %8871 = vmatpush1.msra.mxu0 %v8833
    %8872 = vmatprep.subr.mxu0 0.0
    %8873 = vmatpush1.msra.mxu0 %v8834
    %8874 = vmatprep.subr.mxu0 0.0
    %8875 = vmatpush1.msra.mxu0 0.0
    %8876 = vmatprep.subr.mxu0 0.0
    %8877 = vmatpush1.msra.mxu0 0.0
    %8878 = vmatprep.subr.mxu0 0.0
    %8879 = vmatpush1.msra.mxu0 0.0
    %8880 = vmatprep.subr.mxu0 0.0
    %8881 = vmatpush1.msra.mxu0 0.0
    %8882 = vmatprep.subr.mxu0 0.0
    %8883 = vmatpush1.msra.mxu0 0.0
    %8884 = vmatprep.subr.mxu0 0.0
    %8885 = vmatpush1.msra.mxu0 0.0
    %8886 = vmatprep.subr.mxu0 0.0
    %8887 = vmatpush1.msra.mxu0 0.0
    %8888 = vmatprep.subr.mxu0 0.0
    %8889 = vmatpush1.msra.mxu0 0.0
    %8890 = vmatprep.subr.mxu0 0.0
    %8891 = vmatpush1.msra.mxu0 0.0
    %8892 = vmatprep.subr.mxu0 0.0
    %8893 = vmatpush1.msra.mxu0 0.0
    %8894 = vmatprep.subr.mxu0 0.0
    %8895 = vmatpush1.msra.mxu0 0.0
    %8896 = vmatprep.subr.mxu0 0.0
    %8897 = vmatpush1.msra.mxu0 0.0
    %8898 = vmatprep.subr.mxu0 0.0
    %8899 = vmatpush1.msra.mxu0 0.0
    %8900 = vmatprep.subr.mxu0 0.0
    %8901 = vmatpush1.msra.mxu0 0.0
    %8902 = vmatprep.subr.mxu0 0.0
    %8903 = vmatpush1.msra.mxu0 0.0
    %8904 = vmatprep.subr.mxu0 0.0
    %8905 = vmatpush1.msra.mxu0 0.0
    %8906 = vmatprep.mubr.f32.mxu0 0.0
    %8907 = vmatmul.mubr.f32.gmra.mrb[0].mxu0 %v8787
    %v8908 = vpop.f32.mrb[0].mxu0
    %v8909 = vadd.f32 %v8840, %v8908
    %v8910 = vpop.f32.mrb[0].mxu0
    %8911 = vmatprep.mubr.f32.mxu0 0.0
    %8912 = vmatmul.mubr.f32.gmra.mrb[0].mxu0 %v8788
    %v8913 = vpop.f32.mrb[0].mxu0
    %v8914 = vadd.f32 %v8840, %v8913
    %v8915 = vpop.f32.mrb[0].mxu0
    %8916 = vmatprep.mubr.f32.mxu0 0.0
    %8917 = vmatmul.mubr.f32.gmra.mrb[0].mxu0 %v8789
    %v8918 = vpop.f32.mrb[0].mxu0
    %v8919 = vadd.f32 %v8840, %v8918
    %v8920 = vpop.f32.mrb[0].mxu0
    %8921 = vmatprep.mubr.f32.mxu0 0.0
    %8922 = vmatmul.mubr.f32.gmra.mrb[0].mxu0 %v8790
    %v8923 = vpop.f32.mrb[0].mxu0
    %v8924 = vadd.f32 %v8840, %v8923
    %v8925 = vpop.f32.mrb[0].mxu0
    %8926 = vmatprep.mubr.f32.mxu0 0.0
    %8927 = vmatmul.mubr.f32.gmra.mrb[0].mxu0 %v8791
    %v8928 = vpop.f32.mrb[0].mxu0
    %v8929 = vadd.f32 %v8840, %v8928
    %v8930 = vpop.f32.mrb[0].mxu0
    %8931 = vmatprep.mubr.f32.mxu0 0.0
    %8932 = vmatmul.mubr.f32.gmra.mrb[0].mxu0 %v8792
    %v8933 = vpop.f32.mrb[0].mxu0
    %v8934 = vadd.f32 %v8840, %v8933
    %v8935 = vpop.f32.mrb[0].mxu0
    %8936 = vmatprep.mubr.f32.mxu0 0.0
    %8937 = vmatmul.mubr.f32.gmra.mrb[0].mxu0 %v8793
    %v8938 = vpop.f32.mrb[0].mxu0
    %v8939 = vadd.f32 %v8840, %v8938
    %v8940 = vpop.f32.mrb[0].mxu0
    %8941 = vmatprep.mubr.f32.mxu0 0.0
    %8942 = vmatmul.mubr.f32.gmra.mrb[0].mxu0 %v8794
    %v8943 = vpop.f32.mrb[0].mxu0
    %v8944 = vadd.f32 %v8840, %v8943
    %v8945 = vpop.f32.mrb[0].mxu0
    %8946 = vmatprep.mubr.f32.mxu0 0.0
    %8947 = vmatmul.mubr.f32.gmra.mrb[0].mxu0 %v8795
    %v8948 = vpop.f32.mrb[0].mxu0
    %v8949 = vadd.f32 %v8840, %v8948
    %v8950 = vpop.f32.mrb[0].mxu0
    %8951 = vmatprep.mubr.f32.mxu0 0.0
    %8952 = vmatmul.mubr.f32.gmra.mrb[0].mxu0 %v8796
    %v8953 = vpop.f32.mrb[0].mxu0
    %v8954 = vadd.f32 %v8840, %v8953
    %v8955 = vpop.f32.mrb[0].mxu0
    %8956 = vmatprep.mubr.f32.mxu0 0.0
    %8957 = vmatmul.mubr.f32.gmra.mrb[0].mxu0 %v8797
    %v8958 = vpop.f32.mrb[0].mxu0
    %v8959 = vadd.f32 %v8840, %v8958
    %v8960 = vpop.f32.mrb[0].mxu0
    %8961 = vmatprep.mubr.f32.mxu0 0.0
    %8962 = vmatmul.mubr.f32.gmra.mrb[0].mxu0 %v8798
    %v8963 = vpop.f32.mrb[0].mxu0
    %v8964 = vadd.f32 %v8840, %v8963
    %v8965 = vpop.f32.mrb[0].mxu0
    %8966 = vmatprep.mubr.f32.mxu0 0.0
    %8967 = vmatmul.mubr.f32.gmra.mrb[0].mxu0 %v8799
    %v8968 = vpop.f32.mrb[0].mxu0
    %v8969 = vadd.f32 %v8840, %v8968
    %v8970 = vpop.f32.mrb[0].mxu0
    %8971 = vmatprep.mubr.f32.mxu0 0.0
    %8972 = vmatmul.mubr.f32.gmra.mrb[0].mxu0 %v8800
    %v8973 = vpop.f32.mrb[0].mxu0
    %v8974 = vadd.f32 %v8840, %v8973
    %v8975 = vpop.f32.mrb[0].mxu0
    %8976 = vmatprep.mubr.f32.mxu0 0.0
    %8977 = vmatmul.mubr.f32.gmra.mrb[0].mxu0 %v8801
    %v8978 = vpop.f32.mrb[0].mxu0
    %v8979 = vadd.f32 %v8840, %v8978
    %v8980 = vpop.f32.mrb[0].mxu0
    %8981 = vmatprep.mubr.f32.mxu0 0.0
    %8982 = vmatmul.mubr.f32.gmra.mrb[0].mxu0 %v8802
    %v8983 = vpop.f32.mrb[0].mxu0
    %v8984 = vadd.f32 %v8840, %v8983
    %v8985 = vpop.f32.mrb[0].mxu0
    %8986 = vmatprep.mubr.f32.mxu0 0.0
    %8987 = vmatmul.mubr.f32.gmra.mrb[0].mxu0 %v8803
    %v8988 = vpop.f32.mrb[0].mxu0
    %v8989 = vadd.f32 %v8840, %v8988
    %v8990 = vpop.f32.mrb[0].mxu0
    %8991 = vmatprep.mubr.f32.mxu0 0.0
    %8992 = vmatmul.mubr.f32.gmra.mrb[0].mxu0 %v8804
    %v8993 = vpop.f32.mrb[0].mxu0
    %v8994 = vadd.f32 %v8840, %v8993
    %v8995 = vpop.f32.mrb[0].mxu0
    %8996 = vmatprep.mubr.f32.mxu0 0.0
    %8997 = vmatmul.mubr.f32.gmra.mrb[0].mxu0 %v8805
    %v8998 = vpop.f32.mrb[0].mxu0
    %v8999 = vadd.f32 %v8840, %v8998
    %v9000 = vpop.f32.mrb[0].mxu0
    %9001 = vmatprep.mubr.f32.mxu0 0.0
    %9002 = vmatmul.mubr.f32.gmra.mrb[0].mxu0 %v8806
    %v9003 = vpop.f32.mrb[0].mxu0
    %v9004 = vadd.f32 %v8840, %v9003
    %v9005 = vpop.f32.mrb[0].mxu0
    %9006 = vmatprep.mubr.f32.mxu0 0.0
    %9007 = vmatmul.mubr.f32.gmra.mrb[0].mxu0 %v8807
    %v9008 = vpop.f32.mrb[0].mxu0
    %v9009 = vadd.f32 %v8840, %v9008
    %v9010 = vpop.f32.mrb[0].mxu0
    %9011 = vmatprep.mubr.f32.mxu0 0.0
    %9012 = vmatmul.mubr.f32.gmra.mrb[0].mxu0 %v8808
    %v9013 = vpop.f32.mrb[0].mxu0
    %v9014 = vadd.f32 %v8840, %v9013
    %v9015 = vpop.f32.mrb[0].mxu0
    %9016 = vmatprep.mubr.f32.mxu0 0.0
    %9017 = vmatmul.mubr.f32.gmra.mrb[0].mxu0 %v8809
    %v9018 = vpop.f32.mrb[0].mxu0
    %v9019 = vadd.f32 %v8840, %v9018
    %v9020 = vpop.f32.mrb[0].mxu0
    %9021 = vmatprep.mubr.f32.mxu0 0.0
    %9022 = vmatmul.mubr.f32.gmra.mrb[0].mxu0 %v8810
    %v9023 = vpop.f32.mrb[0].mxu0
    %v9024 = vadd.f32 %v8840, %v9023
    %v9025 = vpop.f32.mrb[0].mxu0
    %9026 = vmatprep.mubr.f32.mxu0 0.0
    %9027 = vmatmul.mubr.f32.gmra.mrb[0].mxu0 %v8811
    %v9028 = vpop.f32.mrb[0].mxu0
    %v9029 = vadd.f32 %v8840, %v9028
    %v9030 = vpop.f32.mrb[0].mxu0
    %9031 = vmatprep.mubr.f32.mxu0 0.0
    %9032 = vmatmul.mubr.f32.gmra.mrb[0].mxu0 %v8812
    %v9033 = vpop.f32.mrb[0].mxu0
    %v9034 = vadd.f32 %v8840, %v9033
    %v9035 = vpop.f32.mrb[0].mxu0
    %9036 = vmatprep.mubr.f32.mxu0 0.0
    %9037 = vmatmul.mubr.f32.gmra.mrb[0].mxu0 %v8813
    %v9038 = vpop.f32.mrb[0].mxu0
    %v9039 = vadd.f32 %v8840, %v9038
    %v9040 = vpop.f32.mrb[0].mxu0
    %9041 = vmatprep.mubr.f32.mxu0 0.0
    %9042 = vmatmul.mubr.f32.gmra.mrb[0].mxu0 %v8814
    %v9043 = vpop.f32.mrb[0].mxu0
    %v9044 = vadd.f32 %v8840, %v9043
    %v9045 = vpop.f32.mrb[0].mxu0
    %9046 = vmatprep.mubr.f32.mxu0 0.0
    %9047 = vmatmul.mubr.f32.gmra.mrb[0].mxu0 %v8815
    %v9048 = vpop.f32.mrb[0].mxu0
    %v9049 = vadd.f32 %v8840, %v9048
    %v9050 = vpop.f32.mrb[0].mxu0
    %9051 = vmatprep.mubr.f32.mxu0 0.0
    %9052 = vmatmul.mubr.f32.gmra.mrb[0].mxu0 %v8816
    %v9053 = vpop.f32.mrb[0].mxu0
    %v9054 = vadd.f32 %v8840, %v9053
    %v9055 = vpop.f32.mrb[0].mxu0
    %9056 = vmatprep.mubr.f32.mxu0 0.0
    %9057 = vmatmul.mubr.f32.gmra.mrb[0].mxu0 %v8817
    %v9058 = vpop.f32.mrb[0].mxu0
    %v9059 = vadd.f32 %v8840, %v9058
    %v9060 = vpop.f32.mrb[0].mxu0
    %9061 = vmatprep.mubr.f32.mxu0 0.0
    %9062 = vmatmul.mubr.f32.gmra.mrb[0].mxu0 %v8818
    %v9063 = vpop.f32.mrb[0].mxu0
    %v9064 = vadd.f32 %v8840, %v9063
    %v9065 = vpop.f32.mrb[0].mxu0
    %9066 = vdwg.mxu0
    %v9067 = vmax.f32 %v8909, 0.0
    %v9068 = vmax.f32 %v8914, 0.0
    %v9069 = vmax.f32 %v8919, 0.0
    %v9070 = vmax.f32 %v8924, 0.0
    %v9071 = vmax.f32 %v8929, 0.0
    %v9072 = vmax.f32 %v8934, 0.0
    %v9073 = vmax.f32 %v8939, 0.0
    %v9074 = vmax.f32 %v8944, 0.0
    %v9075 = vmax.f32 %v8949, 0.0
    %v9076 = vmax.f32 %v8954, 0.0
    %v9077 = vmax.f32 %v8959, 0.0
    %v9078 = vmax.f32 %v8964, 0.0
    %v9079 = vmax.f32 %v8969, 0.0
    %v9080 = vmax.f32 %v8974, 0.0
    %v9081 = vmax.f32 %v8979, 0.0
    %v9082 = vmax.f32 %v8984, 0.0
    %v9083 = vmax.f32 %v8989, 0.0
    %v9084 = vmax.f32 %v8994, 0.0
    %v9085 = vmax.f32 %v8999, 0.0
    %v9086 = vmax.f32 %v9004, 0.0
    %v9087 = vmax.f32 %v9009, 0.0
    %v9088 = vmax.f32 %v9014, 0.0
    %v9089 = vmax.f32 %v9019, 0.0
    %v9090 = vmax.f32 %v9024, 0.0
    %v9091 = vmax.f32 %v9029, 0.0
    %v9092 = vmax.f32 %v9034, 0.0
    %v9093 = vmax.f32 %v9039, 0.0
    %v9094 = vmax.f32 %v9044, 0.0
    %v9095 = vmax.f32 %v9049, 0.0
    %v9096 = vmax.f32 %v9054, 0.0
    %v9097 = vmax.f32 %v9059, 0.0
    %v9098 = vmax.f32 %v9064, 0.0
    %v9099 = vld [vmem:[#allocation17] sm:$0xff]
    %v9100 = vld [vmem:[#allocation17 + $0x8] sm:$0xff]
    %v9101 = vld [vmem:[#allocation17 + $0x10] sm:$0xff]
    %v9102 = vld [vmem:[#allocation17 + $0x18] sm:$0xff]
    %v9103 = vld [vmem:[#allocation17 + $0x20] sm:$0xff]
    %v9104 = vld [vmem:[#allocation17 + $0x28] sm:$0xff]
    %v9105 = vld [vmem:[#allocation17 + $0x30] sm:$0xff]
    %v9106 = vld [vmem:[#allocation17 + $0x38] sm:$0xff]
    %v9107 = vld [vmem:[#allocation18] sm:$0x1]
    %v9109 = vlaneseq
    %v9110 = vshrl.u32 %v9109, 7
    %v9111 = vsub.s32 0, %v9110
    %v9112 = vrot.slane %v9107, %v9111
    %vm9114 = vcmask 523264
    %v9116 = vsel %vm9114, %v9067, 0
    %v9119 = vsel %vm9114, %v9068, 0
    %v9122 = vsel %vm9114, %v9069, 0
    %v9125 = vsel %vm9114, %v9070, 0
    %v9128 = vsel %vm9114, %v9071, 0
    %v9131 = vsel %vm9114, %v9072, 0
    %v9134 = vsel %vm9114, %v9073, 0
    %v9137 = vsel %vm9114, %v9074, 0
    %v9140 = vsel %vm9114, %v9075, 0
    %v9143 = vsel %vm9114, %v9076, 0
    %v9146 = vsel %vm9114, %v9077, 0
    %v9149 = vsel %vm9114, %v9078, 0
    %v9152 = vsel %vm9114, %v9079, 0
    %v9155 = vsel %vm9114, %v9080, 0
    %v9158 = vsel %vm9114, %v9081, 0
    %v9161 = vsel %vm9114, %v9082, 0
    %v9164 = vsel %vm9114, %v9083, 0
    %v9167 = vsel %vm9114, %v9084, 0
    %v9170 = vsel %vm9114, %v9085, 0
    %v9173 = vsel %vm9114, %v9086, 0
    %v9176 = vsel %vm9114, %v9087, 0
    %v9179 = vsel %vm9114, %v9088, 0
    %v9182 = vsel %vm9114, %v9089, 0
    %v9185 = vsel %vm9114, %v9090, 0
    %v9188 = vsel %vm9114, %v9091, 0
    %v9191 = vsel %vm9114, %v9092, 0
    %v9194 = vsel %vm9114, %v9093, 0
    %v9197 = vsel %vm9114, %v9094, 0
    %v9200 = vsel %vm9114, %v9095, 0
    %v9203 = vsel %vm9114, %v9096, 0
    %v9206 = vsel %vm9114, %v9097, 0
    %v9209 = vsel %vm9114, %v9098, 0
    %9211 = vmatprep.subr.mxu0 0.0
    %9212 = vmatpush1.msra.mxu0 %v9099
    %9213 = vmatprep.subr.mxu0 0.0
    %9214 = vmatpush1.msra.mxu0 %v9100
    %9215 = vmatprep.subr.mxu0 0.0
    %9216 = vmatpush1.msra.mxu0 %v9101
    %9217 = vmatprep.subr.mxu0 0.0
    %9218 = vmatpush1.msra.mxu0 %v9102
    %9219 = vmatprep.subr.mxu0 0.0
    %9220 = vmatpush1.msra.mxu0 %v9103
    %9221 = vmatprep.subr.mxu0 0.0
    %9222 = vmatpush1.msra.mxu0 %v9104
    %9223 = vmatprep.subr.mxu0 0.0
    %9224 = vmatpush1.msra.mxu0 %v9105
    %9225 = vmatprep.subr.mxu0 0.0
    %9226 = vmatpush1.msra.mxu0 %v9106
    %9227 = vmatprep.subr.mxu0 0.0
    %9228 = vmatpush1.msra.mxu0 0.0
    %9229 = vmatprep.subr.mxu0 0.0
    %9230 = vmatpush1.msra.mxu0 0.0
    %9231 = vmatprep.subr.mxu0 0.0
    %9232 = vmatpush1.msra.mxu0 0.0
    %9233 = vmatprep.subr.mxu0 0.0
    %9234 = vmatpush1.msra.mxu0 0.0
    %9235 = vmatprep.subr.mxu0 0.0
    %9236 = vmatpush1.msra.mxu0 0.0
    %9237 = vmatprep.subr.mxu0 0.0
    %9238 = vmatpush1.msra.mxu0 0.0
    %9239 = vmatprep.subr.mxu0 0.0
    %9240 = vmatpush1.msra.mxu0 0.0
    %9241 = vmatprep.subr.mxu0 0.0
    %9242 = vmatpush1.msra.mxu0 0.0
    %9243 = vmatprep.subr.mxu0 0.0
    %9244 = vmatpush1.msra.mxu0 0.0
    %9245 = vmatprep.subr.mxu0 0.0
    %9246 = vmatpush1.msra.mxu0 0.0
    %9247 = vmatprep.subr.mxu0 0.0
    %9248 = vmatpush1.msra.mxu0 0.0
    %9249 = vmatprep.subr.mxu0 0.0
    %9250 = vmatpush1.msra.mxu0 0.0
    %9251 = vmatprep.subr.mxu0 0.0
    %9252 = vmatpush1.msra.mxu0 0.0
    %9253 = vmatprep.subr.mxu0 0.0
    %9254 = vmatpush1.msra.mxu0 0.0
    %9255 = vmatprep.subr.mxu0 0.0
    %9256 = vmatpush1.msra.mxu0 0.0
    %9257 = vmatprep.subr.mxu0 0.0
    %9258 = vmatpush1.msra.mxu0 0.0
    %9259 = vmatprep.subr.mxu0 0.0
    %9260 = vmatpush1.msra.mxu0 0.0
    %9261 = vmatprep.subr.mxu0 0.0
    %9262 = vmatpush1.msra.mxu0 0.0
    %9263 = vmatprep.subr.mxu0 0.0
    %9264 = vmatpush1.msra.mxu0 0.0
    %9265 = vmatprep.subr.mxu0 0.0
    %9266 = vmatpush1.msra.mxu0 0.0
    %9267 = vmatprep.subr.mxu0 0.0
    %9268 = vmatpush1.msra.mxu0 0.0
    %9269 = vmatprep.subr.mxu0 0.0
    %9270 = vmatpush1.msra.mxu0 0.0
    %9271 = vmatprep.subr.mxu0 0.0
    %9272 = vmatpush1.msra.mxu0 0.0
    %9273 = vmatprep.subr.mxu0 0.0
    %9274 = vmatpush1.msra.mxu0 0.0
    %9275 = vmatprep.mubr.f32.mxu0 0.0
    %9276 = vmatmul.mubr.f32.gmra.mrb[0].mxu0 %v9116
    %v9277 = vpop.f32.mrb[0].mxu0
    %v9278 = vadd.f32 %v9112, %v9277
    %v9279 = vpop.f32.mrb[0].mxu0
    %9280 = vmatprep.mubr.f32.mxu0 0.0
    %9281 = vmatmul.mubr.f32.gmra.mrb[0].mxu0 %v9119
    %v9282 = vpop.f32.mrb[0].mxu0
    %v9283 = vadd.f32 %v9112, %v9282
    %v9284 = vpop.f32.mrb[0].mxu0
    %9285 = vmatprep.mubr.f32.mxu0 0.0
    %9286 = vmatmul.mubr.f32.gmra.mrb[0].mxu0 %v9122
    %v9287 = vpop.f32.mrb[0].mxu0
    %v9288 = vadd.f32 %v9112, %v9287
    %v9289 = vpop.f32.mrb[0].mxu0
    %9290 = vmatprep.mubr.f32.mxu0 0.0
    %9291 = vmatmul.mubr.f32.gmra.mrb[0].mxu0 %v9125
    %v9292 = vpop.f32.mrb[0].mxu0
    %v9293 = vadd.f32 %v9112, %v9292
    %v9294 = vpop.f32.mrb[0].mxu0
    %9295 = vmatprep.mubr.f32.mxu0 0.0
    %9296 = vmatmul.mubr.f32.gmra.mrb[0].mxu0 %v9128
    %v9297 = vpop.f32.mrb[0].mxu0
    %v9298 = vadd.f32 %v9112, %v9297
    %v9299 = vpop.f32.mrb[0].mxu0
    %9300 = vmatprep.mubr.f32.mxu0 0.0
    %9301 = vmatmul.mubr.f32.gmra.mrb[0].mxu0 %v9131
    %v9302 = vpop.f32.mrb[0].mxu0
    %v9303 = vadd.f32 %v9112, %v9302
    %v9304 = vpop.f32.mrb[0].mxu0
    %9305 = vmatprep.mubr.f32.mxu0 0.0
    %9306 = vmatmul.mubr.f32.gmra.mrb[0].mxu0 %v9134
    %v9307 = vpop.f32.mrb[0].mxu0
    %v9308 = vadd.f32 %v9112, %v9307
    %v9309 = vpop.f32.mrb[0].mxu0
    %9310 = vmatprep.mubr.f32.mxu0 0.0
    %9311 = vmatmul.mubr.f32.gmra.mrb[0].mxu0 %v9137
    %v9312 = vpop.f32.mrb[0].mxu0
    %v9313 = vadd.f32 %v9112, %v9312
    %v9314 = vpop.f32.mrb[0].mxu0
    %9315 = vmatprep.mubr.f32.mxu0 0.0
    %9316 = vmatmul.mubr.f32.gmra.mrb[0].mxu0 %v9140
    %v9317 = vpop.f32.mrb[0].mxu0
    %v9318 = vadd.f32 %v9112, %v9317
    %v9319 = vpop.f32.mrb[0].mxu0
    %9320 = vmatprep.mubr.f32.mxu0 0.0
    %9321 = vmatmul.mubr.f32.gmra.mrb[0].mxu0 %v9143
    %v9322 = vpop.f32.mrb[0].mxu0
    %v9323 = vadd.f32 %v9112, %v9322
    %v9324 = vpop.f32.mrb[0].mxu0
    %9325 = vmatprep.mubr.f32.mxu0 0.0
    %9326 = vmatmul.mubr.f32.gmra.mrb[0].mxu0 %v9146
    %v9327 = vpop.f32.mrb[0].mxu0
    %v9328 = vadd.f32 %v9112, %v9327
    %v9329 = vpop.f32.mrb[0].mxu0
    %9330 = vmatprep.mubr.f32.mxu0 0.0
    %9331 = vmatmul.mubr.f32.gmra.mrb[0].mxu0 %v9149
    %v9332 = vpop.f32.mrb[0].mxu0
    %v9333 = vadd.f32 %v9112, %v9332
    %v9334 = vpop.f32.mrb[0].mxu0
    %9335 = vmatprep.mubr.f32.mxu0 0.0
    %9336 = vmatmul.mubr.f32.gmra.mrb[0].mxu0 %v9152
    %v9337 = vpop.f32.mrb[0].mxu0
    %v9338 = vadd.f32 %v9112, %v9337
    %v9339 = vpop.f32.mrb[0].mxu0
    %9340 = vmatprep.mubr.f32.mxu0 0.0
    %9341 = vmatmul.mubr.f32.gmra.mrb[0].mxu0 %v9155
    %v9342 = vpop.f32.mrb[0].mxu0
    %v9343 = vadd.f32 %v9112, %v9342
    %v9344 = vpop.f32.mrb[0].mxu0
    %9345 = vmatprep.mubr.f32.mxu0 0.0
    %9346 = vmatmul.mubr.f32.gmra.mrb[0].mxu0 %v9158
    %v9347 = vpop.f32.mrb[0].mxu0
    %v9348 = vadd.f32 %v9112, %v9347
    %v9349 = vpop.f32.mrb[0].mxu0
    %9350 = vmatprep.mubr.f32.mxu0 0.0
    %9351 = vmatmul.mubr.f32.gmra.mrb[0].mxu0 %v9161
    %v9352 = vpop.f32.mrb[0].mxu0
    %v9353 = vadd.f32 %v9112, %v9352
    %v9354 = vpop.f32.mrb[0].mxu0
    %9355 = vmatprep.mubr.f32.mxu0 0.0
    %9356 = vmatmul.mubr.f32.gmra.mrb[0].mxu0 %v9164
    %v9357 = vpop.f32.mrb[0].mxu0
    %v9358 = vadd.f32 %v9112, %v9357
    %v9359 = vpop.f32.mrb[0].mxu0
    %9360 = vmatprep.mubr.f32.mxu0 0.0
    %9361 = vmatmul.mubr.f32.gmra.mrb[0].mxu0 %v9167
    %v9362 = vpop.f32.mrb[0].mxu0
    %v9363 = vadd.f32 %v9112, %v9362
    %v9364 = vpop.f32.mrb[0].mxu0
    %9365 = vmatprep.mubr.f32.mxu0 0.0
    %9366 = vmatmul.mubr.f32.gmra.mrb[0].mxu0 %v9170
    %v9367 = vpop.f32.mrb[0].mxu0
    %v9368 = vadd.f32 %v9112, %v9367
    %v9369 = vpop.f32.mrb[0].mxu0
    %9370 = vmatprep.mubr.f32.mxu0 0.0
    %9371 = vmatmul.mubr.f32.gmra.mrb[0].mxu0 %v9173
    %v9372 = vpop.f32.mrb[0].mxu0
    %v9373 = vadd.f32 %v9112, %v9372
    %v9374 = vpop.f32.mrb[0].mxu0
    %9375 = vmatprep.mubr.f32.mxu0 0.0
    %9376 = vmatmul.mubr.f32.gmra.mrb[0].mxu0 %v9176
    %v9377 = vpop.f32.mrb[0].mxu0
    %v9378 = vadd.f32 %v9112, %v9377
    %v9379 = vpop.f32.mrb[0].mxu0
    %9380 = vmatprep.mubr.f32.mxu0 0.0
    %9381 = vmatmul.mubr.f32.gmra.mrb[0].mxu0 %v9179
    %v9382 = vpop.f32.mrb[0].mxu0
    %v9383 = vadd.f32 %v9112, %v9382
    %v9384 = vpop.f32.mrb[0].mxu0
    %9385 = vmatprep.mubr.f32.mxu0 0.0
    %9386 = vmatmul.mubr.f32.gmra.mrb[0].mxu0 %v9182
    %v9387 = vpop.f32.mrb[0].mxu0
    %v9388 = vadd.f32 %v9112, %v9387
    %v9389 = vpop.f32.mrb[0].mxu0
    %9390 = vmatprep.mubr.f32.mxu0 0.0
    %9391 = vmatmul.mubr.f32.gmra.mrb[0].mxu0 %v9185
    %v9392 = vpop.f32.mrb[0].mxu0
    %v9393 = vadd.f32 %v9112, %v9392
    %v9394 = vpop.f32.mrb[0].mxu0
    %9395 = vmatprep.mubr.f32.mxu0 0.0
    %9396 = vmatmul.mubr.f32.gmra.mrb[0].mxu0 %v9188
    %v9397 = vpop.f32.mrb[0].mxu0
    %v9398 = vadd.f32 %v9112, %v9397
    %v9399 = vpop.f32.mrb[0].mxu0
    %9400 = vmatprep.mubr.f32.mxu0 0.0
    %9401 = vmatmul.mubr.f32.gmra.mrb[0].mxu0 %v9191
    %v9402 = vpop.f32.mrb[0].mxu0
    %v9403 = vadd.f32 %v9112, %v9402
    %v9404 = vpop.f32.mrb[0].mxu0
    %9405 = vmatprep.mubr.f32.mxu0 0.0
    %9406 = vmatmul.mubr.f32.gmra.mrb[0].mxu0 %v9194
    %v9407 = vpop.f32.mrb[0].mxu0
    %v9408 = vadd.f32 %v9112, %v9407
    %v9409 = vpop.f32.mrb[0].mxu0
    %9410 = vmatprep.mubr.f32.mxu0 0.0
    %9411 = vmatmul.mubr.f32.gmra.mrb[0].mxu0 %v9197
    %v9412 = vpop.f32.mrb[0].mxu0
    %v9413 = vadd.f32 %v9112, %v9412
    %v9414 = vpop.f32.mrb[0].mxu0
    %9415 = vmatprep.mubr.f32.mxu0 0.0
    %9416 = vmatmul.mubr.f32.gmra.mrb[0].mxu0 %v9200
    %v9417 = vpop.f32.mrb[0].mxu0
    %v9418 = vadd.f32 %v9112, %v9417
    %v9419 = vpop.f32.mrb[0].mxu0
    %9420 = vmatprep.mubr.f32.mxu0 0.0
    %9421 = vmatmul.mubr.f32.gmra.mrb[0].mxu0 %v9203
    %v9422 = vpop.f32.mrb[0].mxu0
    %v9423 = vadd.f32 %v9112, %v9422
    %v9424 = vpop.f32.mrb[0].mxu0
    %9425 = vmatprep.mubr.f32.mxu0 0.0
    %9426 = vmatmul.mubr.f32.gmra.mrb[0].mxu0 %v9206
    %v9427 = vpop.f32.mrb[0].mxu0
    %v9428 = vadd.f32 %v9112, %v9427
    %v9429 = vpop.f32.mrb[0].mxu0
    %9430 = vmatprep.mubr.f32.mxu0 0.0
    %9431 = vmatmul.mubr.f32.gmra.mrb[0].mxu0 %v9209
    %v9432 = vpop.f32.mrb[0].mxu0
    %v9433 = vadd.f32 %v9112, %v9432
    %v9434 = vpop.f32.mrb[0].mxu0
    %9435 = vdwg.mxu0
    %v9436 = vadd.f32 %v9278, %v9067
    %v9437 = vadd.f32 %v9283, %v9068
    %v9438 = vadd.f32 %v9288, %v9069
    %v9439 = vadd.f32 %v9293, %v9070
    %v9440 = vadd.f32 %v9298, %v9071
    %v9441 = vadd.f32 %v9303, %v9072
    %v9442 = vadd.f32 %v9308, %v9073
    %v9443 = vadd.f32 %v9313, %v9074
    %v9444 = vadd.f32 %v9318, %v9075
    %v9445 = vadd.f32 %v9323, %v9076
    %v9446 = vadd.f32 %v9328, %v9077
    %v9447 = vadd.f32 %v9333, %v9078
    %v9448 = vadd.f32 %v9338, %v9079
    %v9449 = vadd.f32 %v9343, %v9080
    %v9450 = vadd.f32 %v9348, %v9081
    %v9451 = vadd.f32 %v9353, %v9082
    %v9452 = vadd.f32 %v9358, %v9083
    %v9453 = vadd.f32 %v9363, %v9084
    %v9454 = vadd.f32 %v9368, %v9085
    %v9455 = vadd.f32 %v9373, %v9086
    %v9456 = vadd.f32 %v9378, %v9087
    %v9457 = vadd.f32 %v9383, %v9088
    %v9458 = vadd.f32 %v9388, %v9089
    %v9459 = vadd.f32 %v9393, %v9090
    %v9460 = vadd.f32 %v9398, %v9091
    %v9461 = vadd.f32 %v9403, %v9092
    %v9462 = vadd.f32 %v9408, %v9093
    %v9463 = vadd.f32 %v9413, %v9094
    %v9464 = vadd.f32 %v9418, %v9095
    %v9465 = vadd.f32 %v9423, %v9096
    %v9466 = vadd.f32 %v9428, %v9097
    %v9467 = vadd.f32 %v9433, %v9098
    %v9468 = vmax.f32 %v9436, 0.0
    %v9469 = vmax.f32 %v9437, 0.0
    %v9470 = vmax.f32 %v9438, 0.0
    %v9471 = vmax.f32 %v9439, 0.0
    %v9472 = vmax.f32 %v9440, 0.0
    %v9473 = vmax.f32 %v9441, 0.0
    %v9474 = vmax.f32 %v9442, 0.0
    %v9475 = vmax.f32 %v9443, 0.0
    %v9476 = vmax.f32 %v9444, 0.0
    %v9477 = vmax.f32 %v9445, 0.0
    %v9478 = vmax.f32 %v9446, 0.0
    %v9479 = vmax.f32 %v9447, 0.0
    %v9480 = vmax.f32 %v9448, 0.0
    %v9481 = vmax.f32 %v9449, 0.0
    %v9482 = vmax.f32 %v9450, 0.0
    %v9483 = vmax.f32 %v9451, 0.0
    %v9484 = vmax.f32 %v9452, 0.0
    %v9485 = vmax.f32 %v9453, 0.0
    %v9486 = vmax.f32 %v9454, 0.0
    %v9487 = vmax.f32 %v9455, 0.0
    %v9488 = vmax.f32 %v9456, 0.0
    %v9489 = vmax.f32 %v9457, 0.0
    %v9490 = vmax.f32 %v9458, 0.0
    %v9491 = vmax.f32 %v9459, 0.0
    %v9492 = vmax.f32 %v9460, 0.0
    %v9493 = vmax.f32 %v9461, 0.0
    %v9494 = vmax.f32 %v9462, 0.0
    %v9495 = vmax.f32 %v9463, 0.0
    %v9496 = vmax.f32 %v9464, 0.0
    %v9497 = vmax.f32 %v9465, 0.0
    %v9498 = vmax.f32 %v9466, 0.0
    %v9499 = vmax.f32 %v9467, 0.0
    %v9500 = vadd.f32 %v9067, %v9468
    %v9501 = vadd.f32 %v9068, %v9469
    %v9502 = vadd.f32 %v9069, %v9470
    %v9503 = vadd.f32 %v9070, %v9471
    %v9504 = vadd.f32 %v9071, %v9472
    %v9505 = vadd.f32 %v9072, %v9473
    %v9506 = vadd.f32 %v9073, %v9474
    %v9507 = vadd.f32 %v9074, %v9475
    %v9508 = vadd.f32 %v9075, %v9476
    %v9509 = vadd.f32 %v9076, %v9477
    %v9510 = vadd.f32 %v9077, %v9478
    %v9511 = vadd.f32 %v9078, %v9479
    %v9512 = vadd.f32 %v9079, %v9480
    %v9513 = vadd.f32 %v9080, %v9481
    %v9514 = vadd.f32 %v9081, %v9482
    %v9515 = vadd.f32 %v9082, %v9483
    %v9516 = vadd.f32 %v9083, %v9484
    %v9517 = vadd.f32 %v9084, %v9485
    %v9518 = vadd.f32 %v9085, %v9486
    %v9519 = vadd.f32 %v9086, %v9487
    %v9520 = vadd.f32 %v9087, %v9488
    %v9521 = vadd.f32 %v9088, %v9489
    %v9522 = vadd.f32 %v9089, %v9490
    %v9523 = vadd.f32 %v9090, %v9491
    %v9524 = vadd.f32 %v9091, %v9492
    %v9525 = vadd.f32 %v9092, %v9493
    %v9526 = vadd.f32 %v9093, %v9494
    %v9527 = vadd.f32 %v9094, %v9495
    %v9528 = vadd.f32 %v9095, %v9496
    %v9529 = vadd.f32 %v9096, %v9497
    %v9530 = vadd.f32 %v9097, %v9498
    %v9531 = vadd.f32 %v9098, %v9499
    %v9533 = vsel %vm9114, %v9468, 0
    %v9536 = vsel %vm9114, %v9469, 0
    %v9539 = vsel %vm9114, %v9470, 0
    %v9542 = vsel %vm9114, %v9471, 0
    %v9545 = vsel %vm9114, %v9472, 0
    %v9548 = vsel %vm9114, %v9473, 0
    %v9551 = vsel %vm9114, %v9474, 0
    %v9554 = vsel %vm9114, %v9475, 0
    %v9557 = vsel %vm9114, %v9476, 0
    %v9560 = vsel %vm9114, %v9477, 0
    %v9563 = vsel %vm9114, %v9478, 0
    %v9566 = vsel %vm9114, %v9479, 0
    %v9569 = vsel %vm9114, %v9480, 0
    %v9572 = vsel %vm9114, %v9481, 0
    %v9575 = vsel %vm9114, %v9482, 0
    %v9578 = vsel %vm9114, %v9483, 0
    %v9581 = vsel %vm9114, %v9484, 0
    %v9584 = vsel %vm9114, %v9485, 0
    %v9587 = vsel %vm9114, %v9486, 0
    %v9590 = vsel %vm9114, %v9487, 0
    %v9593 = vsel %vm9114, %v9488, 0
    %v9596 = vsel %vm9114, %v9489, 0
    %v9599 = vsel %vm9114, %v9490, 0
    %v9602 = vsel %vm9114, %v9491, 0
    %v9605 = vsel %vm9114, %v9492, 0
    %v9608 = vsel %vm9114, %v9493, 0
    %v9611 = vsel %vm9114, %v9494, 0
    %v9614 = vsel %vm9114, %v9495, 0
    %v9617 = vsel %vm9114, %v9496, 0
    %v9620 = vsel %vm9114, %v9497, 0
    %v9623 = vsel %vm9114, %v9498, 0
    %v9626 = vsel %vm9114, %v9499, 0
    %9628 = vmatprep.subr.mxu0 0.0
    %9629 = vmatpush1.msra.mxu0 %v9099
    %9630 = vmatprep.subr.mxu0 0.0
    %9631 = vmatpush1.msra.mxu0 %v9100
    %9632 = vmatprep.subr.mxu0 0.0
    %9633 = vmatpush1.msra.mxu0 %v9101
    %9634 = vmatprep.subr.mxu0 0.0
    %9635 = vmatpush1.msra.mxu0 %v9102
    %9636 = vmatprep.subr.mxu0 0.0
    %9637 = vmatpush1.msra.mxu0 %v9103
    %9638 = vmatprep.subr.mxu0 0.0
    %9639 = vmatpush1.msra.mxu0 %v9104
    %9640 = vmatprep.subr.mxu0 0.0
    %9641 = vmatpush1.msra.mxu0 %v9105
    %9642 = vmatprep.subr.mxu0 0.0
    %9643 = vmatpush1.msra.mxu0 %v9106
    %9644 = vmatprep.subr.mxu0 0.0
    %9645 = vmatpush1.msra.mxu0 0.0
    %9646 = vmatprep.subr.mxu0 0.0
    %9647 = vmatpush1.msra.mxu0 0.0
    %9648 = vmatprep.subr.mxu0 0.0
    %9649 = vmatpush1.msra.mxu0 0.0
    %9650 = vmatprep.subr.mxu0 0.0
    %9651 = vmatpush1.msra.mxu0 0.0
    %9652 = vmatprep.subr.mxu0 0.0
    %9653 = vmatpush1.msra.mxu0 0.0
    %9654 = vmatprep.subr.mxu0 0.0
    %9655 = vmatpush1.msra.mxu0 0.0
    %9656 = vmatprep.subr.mxu0 0.0
    %9657 = vmatpush1.msra.mxu0 0.0
    %9658 = vmatprep.subr.mxu0 0.0
    %9659 = vmatpush1.msra.mxu0 0.0
    %9660 = vmatprep.subr.mxu0 0.0
    %9661 = vmatpush1.msra.mxu0 0.0
    %9662 = vmatprep.subr.mxu0 0.0
    %9663 = vmatpush1.msra.mxu0 0.0
    %9664 = vmatprep.subr.mxu0 0.0
    %9665 = vmatpush1.msra.mxu0 0.0
    %9666 = vmatprep.subr.mxu0 0.0
    %9667 = vmatpush1.msra.mxu0 0.0
    %9668 = vmatprep.subr.mxu0 0.0
    %9669 = vmatpush1.msra.mxu0 0.0
    %9670 = vmatprep.subr.mxu0 0.0
    %9671 = vmatpush1.msra.mxu0 0.0
    %9672 = vmatprep.subr.mxu0 0.0
    %9673 = vmatpush1.msra.mxu0 0.0
    %9674 = vmatprep.subr.mxu0 0.0
    %9675 = vmatpush1.msra.mxu0 0.0
    %9676 = vmatprep.subr.mxu0 0.0
    %9677 = vmatpush1.msra.mxu0 0.0
    %9678 = vmatprep.subr.mxu0 0.0
    %9679 = vmatpush1.msra.mxu0 0.0
    %9680 = vmatprep.subr.mxu0 0.0
    %9681 = vmatpush1.msra.mxu0 0.0
    %9682 = vmatprep.subr.mxu0 0.0
    %9683 = vmatpush1.msra.mxu0 0.0
    %9684 = vmatprep.subr.mxu0 0.0
    %9685 = vmatpush1.msra.mxu0 0.0
    %9686 = vmatprep.subr.mxu0 0.0
    %9687 = vmatpush1.msra.mxu0 0.0
    %9688 = vmatprep.subr.mxu0 0.0
    %9689 = vmatpush1.msra.mxu0 0.0
    %9690 = vmatprep.subr.mxu0 0.0
    %9691 = vmatpush1.msra.mxu0 0.0
    %9692 = vmatprep.mubr.f32.mxu0 0.0
    %9693 = vmatmul.mubr.f32.gmra.mrb[0].mxu0 %v9533
    %v9694 = vpop.f32.mrb[0].mxu0
    %v9695 = vadd.f32 %v9112, %v9694
    %v9696 = vpop.f32.mrb[0].mxu0
    %9697 = vmatprep.mubr.f32.mxu0 0.0
    %9698 = vmatmul.mubr.f32.gmra.mrb[0].mxu0 %v9536
    %v9699 = vpop.f32.mrb[0].mxu0
    %v9700 = vadd.f32 %v9112, %v9699
    %v9701 = vpop.f32.mrb[0].mxu0
    %9702 = vmatprep.mubr.f32.mxu0 0.0
    %9703 = vmatmul.mubr.f32.gmra.mrb[0].mxu0 %v9539
    %v9704 = vpop.f32.mrb[0].mxu0
    %v9705 = vadd.f32 %v9112, %v9704
    %v9706 = vpop.f32.mrb[0].mxu0
    %9707 = vmatprep.mubr.f32.mxu0 0.0
    %9708 = vmatmul.mubr.f32.gmra.mrb[0].mxu0 %v9542
    %v9709 = vpop.f32.mrb[0].mxu0
    %v9710 = vadd.f32 %v9112, %v9709
    %v9711 = vpop.f32.mrb[0].mxu0
    %9712 = vmatprep.mubr.f32.mxu0 0.0
    %9713 = vmatmul.mubr.f32.gmra.mrb[0].mxu0 %v9545
    %v9714 = vpop.f32.mrb[0].mxu0
    %v9715 = vadd.f32 %v9112, %v9714
    %v9716 = vpop.f32.mrb[0].mxu0
    %9717 = vmatprep.mubr.f32.mxu0 0.0
    %9718 = vmatmul.mubr.f32.gmra.mrb[0].mxu0 %v9548
    %v9719 = vpop.f32.mrb[0].mxu0
    %v9720 = vadd.f32 %v9112, %v9719
    %v9721 = vpop.f32.mrb[0].mxu0
    %9722 = vmatprep.mubr.f32.mxu0 0.0
    %9723 = vmatmul.mubr.f32.gmra.mrb[0].mxu0 %v9551
    %v9724 = vpop.f32.mrb[0].mxu0
    %v9725 = vadd.f32 %v9112, %v9724
    %v9726 = vpop.f32.mrb[0].mxu0
    %9727 = vmatprep.mubr.f32.mxu0 0.0
    %9728 = vmatmul.mubr.f32.gmra.mrb[0].mxu0 %v9554
    %v9729 = vpop.f32.mrb[0].mxu0
    %v9730 = vadd.f32 %v9112, %v9729
    %v9731 = vpop.f32.mrb[0].mxu0
    %9732 = vmatprep.mubr.f32.mxu0 0.0
    %9733 = vmatmul.mubr.f32.gmra.mrb[0].mxu0 %v9557
    %v9734 = vpop.f32.mrb[0].mxu0
    %v9735 = vadd.f32 %v9112, %v9734
    %v9736 = vpop.f32.mrb[0].mxu0
    %9737 = vmatprep.mubr.f32.mxu0 0.0
    %9738 = vmatmul.mubr.f32.gmra.mrb[0].mxu0 %v9560
    %v9739 = vpop.f32.mrb[0].mxu0
    %v9740 = vadd.f32 %v9112, %v9739
    %v9741 = vpop.f32.mrb[0].mxu0
    %9742 = vmatprep.mubr.f32.mxu0 0.0
    %9743 = vmatmul.mubr.f32.gmra.mrb[0].mxu0 %v9563
    %v9744 = vpop.f32.mrb[0].mxu0
    %v9745 = vadd.f32 %v9112, %v9744
    %v9746 = vpop.f32.mrb[0].mxu0
    %9747 = vmatprep.mubr.f32.mxu0 0.0
    %9748 = vmatmul.mubr.f32.gmra.mrb[0].mxu0 %v9566
    %v9749 = vpop.f32.mrb[0].mxu0
    %v9750 = vadd.f32 %v9112, %v9749
    %v9751 = vpop.f32.mrb[0].mxu0
    %9752 = vmatprep.mubr.f32.mxu0 0.0
    %9753 = vmatmul.mubr.f32.gmra.mrb[0].mxu0 %v9569
    %v9754 = vpop.f32.mrb[0].mxu0
    %v9755 = vadd.f32 %v9112, %v9754
    %v9756 = vpop.f32.mrb[0].mxu0
    %9757 = vmatprep.mubr.f32.mxu0 0.0
    %9758 = vmatmul.mubr.f32.gmra.mrb[0].mxu0 %v9572
    %v9759 = vpop.f32.mrb[0].mxu0
    %v9760 = vadd.f32 %v9112, %v9759
    %v9761 = vpop.f32.mrb[0].mxu0
    %9762 = vmatprep.mubr.f32.mxu0 0.0
    %9763 = vmatmul.mubr.f32.gmra.mrb[0].mxu0 %v9575
    %v9764 = vpop.f32.mrb[0].mxu0
    %v9765 = vadd.f32 %v9112, %v9764
    %v9766 = vpop.f32.mrb[0].mxu0
    %9767 = vmatprep.mubr.f32.mxu0 0.0
    %9768 = vmatmul.mubr.f32.gmra.mrb[0].mxu0 %v9578
    %v9769 = vpop.f32.mrb[0].mxu0
    %v9770 = vadd.f32 %v9112, %v9769
    %v9771 = vpop.f32.mrb[0].mxu0
    %9772 = vmatprep.mubr.f32.mxu0 0.0
    %9773 = vmatmul.mubr.f32.gmra.mrb[0].mxu0 %v9581
    %v9774 = vpop.f32.mrb[0].mxu0
    %v9775 = vadd.f32 %v9112, %v9774
    %v9776 = vpop.f32.mrb[0].mxu0
    %9777 = vmatprep.mubr.f32.mxu0 0.0
    %9778 = vmatmul.mubr.f32.gmra.mrb[0].mxu0 %v9584
    %v9779 = vpop.f32.mrb[0].mxu0
    %v9780 = vadd.f32 %v9112, %v9779
    %v9781 = vpop.f32.mrb[0].mxu0
    %9782 = vmatprep.mubr.f32.mxu0 0.0
    %9783 = vmatmul.mubr.f32.gmra.mrb[0].mxu0 %v9587
    %v9784 = vpop.f32.mrb[0].mxu0
    %v9785 = vadd.f32 %v9112, %v9784
    %v9786 = vpop.f32.mrb[0].mxu0
    %9787 = vmatprep.mubr.f32.mxu0 0.0
    %9788 = vmatmul.mubr.f32.gmra.mrb[0].mxu0 %v9590
    %v9789 = vpop.f32.mrb[0].mxu0
    %v9790 = vadd.f32 %v9112, %v9789
    %v9791 = vpop.f32.mrb[0].mxu0
    %9792 = vmatprep.mubr.f32.mxu0 0.0
    %9793 = vmatmul.mubr.f32.gmra.mrb[0].mxu0 %v9593
    %v9794 = vpop.f32.mrb[0].mxu0
    %v9795 = vadd.f32 %v9112, %v9794
    %v9796 = vpop.f32.mrb[0].mxu0
    %9797 = vmatprep.mubr.f32.mxu0 0.0
    %9798 = vmatmul.mubr.f32.gmra.mrb[0].mxu0 %v9596
    %v9799 = vpop.f32.mrb[0].mxu0
    %v9800 = vadd.f32 %v9112, %v9799
    %v9801 = vpop.f32.mrb[0].mxu0
    %9802 = vmatprep.mubr.f32.mxu0 0.0
    %9803 = vmatmul.mubr.f32.gmra.mrb[0].mxu0 %v9599
    %v9804 = vpop.f32.mrb[0].mxu0
    %v9805 = vadd.f32 %v9112, %v9804
    %v9806 = vpop.f32.mrb[0].mxu0
    %9807 = vmatprep.mubr.f32.mxu0 0.0
    %9808 = vmatmul.mubr.f32.gmra.mrb[0].mxu0 %v9602
    %v9809 = vpop.f32.mrb[0].mxu0
    %v9810 = vadd.f32 %v9112, %v9809
    %v9811 = vpop.f32.mrb[0].mxu0
    %9812 = vmatprep.mubr.f32.mxu0 0.0
    %9813 = vmatmul.mubr.f32.gmra.mrb[0].mxu0 %v9605
    %v9814 = vpop.f32.mrb[0].mxu0
    %v9815 = vadd.f32 %v9112, %v9814
    %v9816 = vpop.f32.mrb[0].mxu0
    %9817 = vmatprep.mubr.f32.mxu0 0.0
    %9818 = vmatmul.mubr.f32.gmra.mrb[0].mxu0 %v9608
    %v9819 = vpop.f32.mrb[0].mxu0
    %v9820 = vadd.f32 %v9112, %v9819
    %v9821 = vpop.f32.mrb[0].mxu0
    %9822 = vmatprep.mubr.f32.mxu0 0.0
    %9823 = vmatmul.mubr.f32.gmra.mrb[0].mxu0 %v9611
    %v9824 = vpop.f32.mrb[0].mxu0
    %v9825 = vadd.f32 %v9112, %v9824
    %v9826 = vpop.f32.mrb[0].mxu0
    %9827 = vmatprep.mubr.f32.mxu0 0.0
    %9828 = vmatmul.mubr.f32.gmra.mrb[0].mxu0 %v9614
    %v9829 = vpop.f32.mrb[0].mxu0
    %v9830 = vadd.f32 %v9112, %v9829
    %v9831 = vpop.f32.mrb[0].mxu0
    %9832 = vmatprep.mubr.f32.mxu0 0.0
    %9833 = vmatmul.mubr.f32.gmra.mrb[0].mxu0 %v9617
    %v9834 = vpop.f32.mrb[0].mxu0
    %v9835 = vadd.f32 %v9112, %v9834
    %v9836 = vpop.f32.mrb[0].mxu0
    %9837 = vmatprep.mubr.f32.mxu0 0.0
    %9838 = vmatmul.mubr.f32.gmra.mrb[0].mxu0 %v9620
    %v9839 = vpop.f32.mrb[0].mxu0
    %v9840 = vadd.f32 %v9112, %v9839
    %v9841 = vpop.f32.mrb[0].mxu0
    %9842 = vmatprep.mubr.f32.mxu0 0.0
    %9843 = vmatmul.mubr.f32.gmra.mrb[0].mxu0 %v9623
    %v9844 = vpop.f32.mrb[0].mxu0
    %v9845 = vadd.f32 %v9112, %v9844
    %v9846 = vpop.f32.mrb[0].mxu0
    %9847 = vmatprep.mubr.f32.mxu0 0.0
    %9848 = vmatmul.mubr.f32.gmra.mrb[0].mxu0 %v9626
    %v9849 = vpop.f32.mrb[0].mxu0
    %v9850 = vadd.f32 %v9112, %v9849
    %v9851 = vpop.f32.mrb[0].mxu0
    %9852 = vdwg.mxu0
    %v9853 = vadd.f32 %v9695, %v9500
    %v9854 = vadd.f32 %v9700, %v9501
    %v9855 = vadd.f32 %v9705, %v9502
    %v9856 = vadd.f32 %v9710, %v9503
    %v9857 = vadd.f32 %v9715, %v9504
    %v9858 = vadd.f32 %v9720, %v9505
    %v9859 = vadd.f32 %v9725, %v9506
    %v9860 = vadd.f32 %v9730, %v9507
    %v9861 = vadd.f32 %v9735, %v9508
    %v9862 = vadd.f32 %v9740, %v9509
    %v9863 = vadd.f32 %v9745, %v9510
    %v9864 = vadd.f32 %v9750, %v9511
    %v9865 = vadd.f32 %v9755, %v9512
    %v9866 = vadd.f32 %v9760, %v9513
    %v9867 = vadd.f32 %v9765, %v9514
    %v9868 = vadd.f32 %v9770, %v9515
    %v9869 = vadd.f32 %v9775, %v9516
    %v9870 = vadd.f32 %v9780, %v9517
    %v9871 = vadd.f32 %v9785, %v9518
    %v9872 = vadd.f32 %v9790, %v9519
    %v9873 = vadd.f32 %v9795, %v9520
    %v9874 = vadd.f32 %v9800, %v9521
    %v9875 = vadd.f32 %v9805, %v9522
    %v9876 = vadd.f32 %v9810, %v9523
    %v9877 = vadd.f32 %v9815, %v9524
    %v9878 = vadd.f32 %v9820, %v9525
    %v9879 = vadd.f32 %v9825, %v9526
    %v9880 = vadd.f32 %v9830, %v9527
    %v9881 = vadd.f32 %v9835, %v9528
    %v9882 = vadd.f32 %v9840, %v9529
    %v9883 = vadd.f32 %v9845, %v9530
    %v9884 = vadd.f32 %v9850, %v9531
    %v9885 = vmax.f32 %v9853, 0.0
    %v9886 = vmax.f32 %v9854, 0.0
    %v9887 = vmax.f32 %v9855, 0.0
    %v9888 = vmax.f32 %v9856, 0.0
    %v9889 = vmax.f32 %v9857, 0.0
    %v9890 = vmax.f32 %v9858, 0.0
    %v9891 = vmax.f32 %v9859, 0.0
    %v9892 = vmax.f32 %v9860, 0.0
    %v9893 = vmax.f32 %v9861, 0.0
    %v9894 = vmax.f32 %v9862, 0.0
    %v9895 = vmax.f32 %v9863, 0.0
    %v9896 = vmax.f32 %v9864, 0.0
    %v9897 = vmax.f32 %v9865, 0.0
    %v9898 = vmax.f32 %v9866, 0.0
    %v9899 = vmax.f32 %v9867, 0.0
    %v9900 = vmax.f32 %v9868, 0.0
    %v9901 = vmax.f32 %v9869, 0.0
    %v9902 = vmax.f32 %v9870, 0.0
    %v9903 = vmax.f32 %v9871, 0.0
    %v9904 = vmax.f32 %v9872, 0.0
    %v9905 = vmax.f32 %v9873, 0.0
    %v9906 = vmax.f32 %v9874, 0.0
    %v9907 = vmax.f32 %v9875, 0.0
    %v9908 = vmax.f32 %v9876, 0.0
    %v9909 = vmax.f32 %v9877, 0.0
    %v9910 = vmax.f32 %v9878, 0.0
    %v9911 = vmax.f32 %v9879, 0.0
    %v9912 = vmax.f32 %v9880, 0.0
    %v9913 = vmax.f32 %v9881, 0.0
    %v9914 = vmax.f32 %v9882, 0.0
    %v9915 = vmax.f32 %v9883, 0.0
    %v9916 = vmax.f32 %v9884, 0.0
    %v9917 = vadd.f32 %v9500, %v9885
    %v9918 = vadd.f32 %v9501, %v9886
    %v9919 = vadd.f32 %v9502, %v9887
    %v9920 = vadd.f32 %v9503, %v9888
    %v9921 = vadd.f32 %v9504, %v9889
    %v9922 = vadd.f32 %v9505, %v9890
    %v9923 = vadd.f32 %v9506, %v9891
    %v9924 = vadd.f32 %v9507, %v9892
    %v9925 = vadd.f32 %v9508, %v9893
    %v9926 = vadd.f32 %v9509, %v9894
    %v9927 = vadd.f32 %v9510, %v9895
    %v9928 = vadd.f32 %v9511, %v9896
    %v9929 = vadd.f32 %v9512, %v9897
    %v9930 = vadd.f32 %v9513, %v9898
    %v9931 = vadd.f32 %v9514, %v9899
    %v9932 = vadd.f32 %v9515, %v9900
    %v9933 = vadd.f32 %v9516, %v9901
    %v9934 = vadd.f32 %v9517, %v9902
    %v9935 = vadd.f32 %v9518, %v9903
    %v9936 = vadd.f32 %v9519, %v9904
    %v9937 = vadd.f32 %v9520, %v9905
    %v9938 = vadd.f32 %v9521, %v9906
    %v9939 = vadd.f32 %v9522, %v9907
    %v9940 = vadd.f32 %v9523, %v9908
    %v9941 = vadd.f32 %v9524, %v9909
    %v9942 = vadd.f32 %v9525, %v9910
    %v9943 = vadd.f32 %v9526, %v9911
    %v9944 = vadd.f32 %v9527, %v9912
    %v9945 = vadd.f32 %v9528, %v9913
    %v9946 = vadd.f32 %v9529, %v9914
    %v9947 = vadd.f32 %v9530, %v9915
    %v9948 = vadd.f32 %v9531, %v9916
    %v9950 = vsel %vm9114, %v9885, 0
    %v9953 = vsel %vm9114, %v9886, 0
    %v9956 = vsel %vm9114, %v9887, 0
    %v9959 = vsel %vm9114, %v9888, 0
    %v9962 = vsel %vm9114, %v9889, 0
    %v9965 = vsel %vm9114, %v9890, 0
    %v9968 = vsel %vm9114, %v9891, 0
    %v9971 = vsel %vm9114, %v9892, 0
    %v9974 = vsel %vm9114, %v9893, 0
    %v9977 = vsel %vm9114, %v9894, 0
    %v9980 = vsel %vm9114, %v9895, 0
    %v9983 = vsel %vm9114, %v9896, 0
    %v9986 = vsel %vm9114, %v9897, 0
    %v9989 = vsel %vm9114, %v9898, 0
    %v9992 = vsel %vm9114, %v9899, 0
    %v9995 = vsel %vm9114, %v9900, 0
    %v9998 = vsel %vm9114, %v9901, 0
    %v10001 = vsel %vm9114, %v9902, 0
    %v10004 = vsel %vm9114, %v9903, 0
    %v10007 = vsel %vm9114, %v9904, 0
    %v10010 = vsel %vm9114, %v9905, 0
    %v10013 = vsel %vm9114, %v9906, 0
    %v10016 = vsel %vm9114, %v9907, 0
    %v10019 = vsel %vm9114, %v9908, 0
    %v10022 = vsel %vm9114, %v9909, 0
    %v10025 = vsel %vm9114, %v9910, 0
    %v10028 = vsel %vm9114, %v9911, 0
    %v10031 = vsel %vm9114, %v9912, 0
    %v10034 = vsel %vm9114, %v9913, 0
    %v10037 = vsel %vm9114, %v9914, 0
    %v10040 = vsel %vm9114, %v9915, 0
    %v10043 = vsel %vm9114, %v9916, 0
    %10045 = vmatprep.subr.mxu0 0.0
    %10046 = vmatpush1.msra.mxu0 %v9099
    %10047 = vmatprep.subr.mxu0 0.0
    %10048 = vmatpush1.msra.mxu0 %v9100
    %10049 = vmatprep.subr.mxu0 0.0
    %10050 = vmatpush1.msra.mxu0 %v9101
    %10051 = vmatprep.subr.mxu0 0.0
    %10052 = vmatpush1.msra.mxu0 %v9102
    %10053 = vmatprep.subr.mxu0 0.0
    %10054 = vmatpush1.msra.mxu0 %v9103
    %10055 = vmatprep.subr.mxu0 0.0
    %10056 = vmatpush1.msra.mxu0 %v9104
    %10057 = vmatprep.subr.mxu0 0.0
    %10058 = vmatpush1.msra.mxu0 %v9105
    %10059 = vmatprep.subr.mxu0 0.0
    %10060 = vmatpush1.msra.mxu0 %v9106
    %10061 = vmatprep.subr.mxu0 0.0
    %10062 = vmatpush1.msra.mxu0 0.0
    %10063 = vmatprep.subr.mxu0 0.0
    %10064 = vmatpush1.msra.mxu0 0.0
    %10065 = vmatprep.subr.mxu0 0.0
    %10066 = vmatpush1.msra.mxu0 0.0
    %10067 = vmatprep.subr.mxu0 0.0
    %10068 = vmatpush1.msra.mxu0 0.0
    %10069 = vmatprep.subr.mxu0 0.0
    %10070 = vmatpush1.msra.mxu0 0.0
    %10071 = vmatprep.subr.mxu0 0.0
    %10072 = vmatpush1.msra.mxu0 0.0
    %10073 = vmatprep.subr.mxu0 0.0
    %10074 = vmatpush1.msra.mxu0 0.0
    %10075 = vmatprep.subr.mxu0 0.0
    %10076 = vmatpush1.msra.mxu0 0.0
    %10077 = vmatprep.subr.mxu0 0.0
    %10078 = vmatpush1.msra.mxu0 0.0
    %10079 = vmatprep.subr.mxu0 0.0
    %10080 = vmatpush1.msra.mxu0 0.0
    %10081 = vmatprep.subr.mxu0 0.0
    %10082 = vmatpush1.msra.mxu0 0.0
    %10083 = vmatprep.subr.mxu0 0.0
    %10084 = vmatpush1.msra.mxu0 0.0
    %10085 = vmatprep.subr.mxu0 0.0
    %10086 = vmatpush1.msra.mxu0 0.0
    %10087 = vmatprep.subr.mxu0 0.0
    %10088 = vmatpush1.msra.mxu0 0.0
    %10089 = vmatprep.subr.mxu0 0.0
    %10090 = vmatpush1.msra.mxu0 0.0
    %10091 = vmatprep.subr.mxu0 0.0
    %10092 = vmatpush1.msra.mxu0 0.0
    %10093 = vmatprep.subr.mxu0 0.0
    %10094 = vmatpush1.msra.mxu0 0.0
    %10095 = vmatprep.subr.mxu0 0.0
    %10096 = vmatpush1.msra.mxu0 0.0
    %10097 = vmatprep.subr.mxu0 0.0
    %10098 = vmatpush1.msra.mxu0 0.0
    %10099 = vmatprep.subr.mxu0 0.0
    %10100 = vmatpush1.msra.mxu0 0.0
    %10101 = vmatprep.subr.mxu0 0.0
    %10102 = vmatpush1.msra.mxu0 0.0
    %10103 = vmatprep.subr.mxu0 0.0
    %10104 = vmatpush1.msra.mxu0 0.0
    %10105 = vmatprep.subr.mxu0 0.0
    %10106 = vmatpush1.msra.mxu0 0.0
    %10107 = vmatprep.subr.mxu0 0.0
    %10108 = vmatpush1.msra.mxu0 0.0
    %10109 = vmatprep.mubr.f32.mxu0 0.0
    %10110 = vmatmul.mubr.f32.gmra.mrb[0].mxu0 %v9950
    %v10111 = vpop.f32.mrb[0].mxu0
    %v10112 = vadd.f32 %v9112, %v10111
    %v10113 = vpop.f32.mrb[0].mxu0
    %10114 = vmatprep.mubr.f32.mxu0 0.0
    %10115 = vmatmul.mubr.f32.gmra.mrb[0].mxu0 %v9953
    %v10116 = vpop.f32.mrb[0].mxu0
    %v10117 = vadd.f32 %v9112, %v10116
    %v10118 = vpop.f32.mrb[0].mxu0
    %10119 = vmatprep.mubr.f32.mxu0 0.0
    %10120 = vmatmul.mubr.f32.gmra.mrb[0].mxu0 %v9956
    %v10121 = vpop.f32.mrb[0].mxu0
    %v10122 = vadd.f32 %v9112, %v10121
    %v10123 = vpop.f32.mrb[0].mxu0
    %10124 = vmatprep.mubr.f32.mxu0 0.0
    %10125 = vmatmul.mubr.f32.gmra.mrb[0].mxu0 %v9959
    %v10126 = vpop.f32.mrb[0].mxu0
    %v10127 = vadd.f32 %v9112, %v10126
    %v10128 = vpop.f32.mrb[0].mxu0
    %10129 = vmatprep.mubr.f32.mxu0 0.0
    %10130 = vmatmul.mubr.f32.gmra.mrb[0].mxu0 %v9962
    %v10131 = vpop.f32.mrb[0].mxu0
    %v10132 = vadd.f32 %v9112, %v10131
    %v10133 = vpop.f32.mrb[0].mxu0
    %10134 = vmatprep.mubr.f32.mxu0 0.0
    %10135 = vmatmul.mubr.f32.gmra.mrb[0].mxu0 %v9965
    %v10136 = vpop.f32.mrb[0].mxu0
    %v10137 = vadd.f32 %v9112, %v10136
    %v10138 = vpop.f32.mrb[0].mxu0
    %10139 = vmatprep.mubr.f32.mxu0 0.0
    %10140 = vmatmul.mubr.f32.gmra.mrb[0].mxu0 %v9968
    %v10141 = vpop.f32.mrb[0].mxu0
    %v10142 = vadd.f32 %v9112, %v10141
    %v10143 = vpop.f32.mrb[0].mxu0
    %10144 = vmatprep.mubr.f32.mxu0 0.0
    %10145 = vmatmul.mubr.f32.gmra.mrb[0].mxu0 %v9971
    %v10146 = vpop.f32.mrb[0].mxu0
    %v10147 = vadd.f32 %v9112, %v10146
    %v10148 = vpop.f32.mrb[0].mxu0
    %10149 = vmatprep.mubr.f32.mxu0 0.0
    %10150 = vmatmul.mubr.f32.gmra.mrb[0].mxu0 %v9974
    %v10151 = vpop.f32.mrb[0].mxu0
    %v10152 = vadd.f32 %v9112, %v10151
    %v10153 = vpop.f32.mrb[0].mxu0
    %10154 = vmatprep.mubr.f32.mxu0 0.0
    %10155 = vmatmul.mubr.f32.gmra.mrb[0].mxu0 %v9977
    %v10156 = vpop.f32.mrb[0].mxu0
    %v10157 = vadd.f32 %v9112, %v10156
    %v10158 = vpop.f32.mrb[0].mxu0
    %10159 = vmatprep.mubr.f32.mxu0 0.0
    %10160 = vmatmul.mubr.f32.gmra.mrb[0].mxu0 %v9980
    %v10161 = vpop.f32.mrb[0].mxu0
    %v10162 = vadd.f32 %v9112, %v10161
    %v10163 = vpop.f32.mrb[0].mxu0
    %10164 = vmatprep.mubr.f32.mxu0 0.0
    %10165 = vmatmul.mubr.f32.gmra.mrb[0].mxu0 %v9983
    %v10166 = vpop.f32.mrb[0].mxu0
    %v10167 = vadd.f32 %v9112, %v10166
    %v10168 = vpop.f32.mrb[0].mxu0
    %10169 = vmatprep.mubr.f32.mxu0 0.0
    %10170 = vmatmul.mubr.f32.gmra.mrb[0].mxu0 %v9986
    %v10171 = vpop.f32.mrb[0].mxu0
    %v10172 = vadd.f32 %v9112, %v10171
    %v10173 = vpop.f32.mrb[0].mxu0
    %10174 = vmatprep.mubr.f32.mxu0 0.0
    %10175 = vmatmul.mubr.f32.gmra.mrb[0].mxu0 %v9989
    %v10176 = vpop.f32.mrb[0].mxu0
    %v10177 = vadd.f32 %v9112, %v10176
    %v10178 = vpop.f32.mrb[0].mxu0
    %10179 = vmatprep.mubr.f32.mxu0 0.0
    %10180 = vmatmul.mubr.f32.gmra.mrb[0].mxu0 %v9992
    %v10181 = vpop.f32.mrb[0].mxu0
    %v10182 = vadd.f32 %v9112, %v10181
    %v10183 = vpop.f32.mrb[0].mxu0
    %10184 = vmatprep.mubr.f32.mxu0 0.0
    %10185 = vmatmul.mubr.f32.gmra.mrb[0].mxu0 %v9995
    %v10186 = vpop.f32.mrb[0].mxu0
    %v10187 = vadd.f32 %v9112, %v10186
    %v10188 = vpop.f32.mrb[0].mxu0
    %10189 = vmatprep.mubr.f32.mxu0 0.0
    %10190 = vmatmul.mubr.f32.gmra.mrb[0].mxu0 %v9998
    %v10191 = vpop.f32.mrb[0].mxu0
    %v10192 = vadd.f32 %v9112, %v10191
    %v10193 = vpop.f32.mrb[0].mxu0
    %10194 = vmatprep.mubr.f32.mxu0 0.0
    %10195 = vmatmul.mubr.f32.gmra.mrb[0].mxu0 %v10001
    %v10196 = vpop.f32.mrb[0].mxu0
    %v10197 = vadd.f32 %v9112, %v10196
    %v10198 = vpop.f32.mrb[0].mxu0
    %10199 = vmatprep.mubr.f32.mxu0 0.0
    %10200 = vmatmul.mubr.f32.gmra.mrb[0].mxu0 %v10004
    %v10201 = vpop.f32.mrb[0].mxu0
    %v10202 = vadd.f32 %v9112, %v10201
    %v10203 = vpop.f32.mrb[0].mxu0
    %10204 = vmatprep.mubr.f32.mxu0 0.0
    %10205 = vmatmul.mubr.f32.gmra.mrb[0].mxu0 %v10007
    %v10206 = vpop.f32.mrb[0].mxu0
    %v10207 = vadd.f32 %v9112, %v10206
    %v10208 = vpop.f32.mrb[0].mxu0
    %10209 = vmatprep.mubr.f32.mxu0 0.0
    %10210 = vmatmul.mubr.f32.gmra.mrb[0].mxu0 %v10010
    %v10211 = vpop.f32.mrb[0].mxu0
    %v10212 = vadd.f32 %v9112, %v10211
    %v10213 = vpop.f32.mrb[0].mxu0
    %10214 = vmatprep.mubr.f32.mxu0 0.0
    %10215 = vmatmul.mubr.f32.gmra.mrb[0].mxu0 %v10013
    %v10216 = vpop.f32.mrb[0].mxu0
    %v10217 = vadd.f32 %v9112, %v10216
    %v10218 = vpop.f32.mrb[0].mxu0
    %10219 = vmatprep.mubr.f32.mxu0 0.0
    %10220 = vmatmul.mubr.f32.gmra.mrb[0].mxu0 %v10016
    %v10221 = vpop.f32.mrb[0].mxu0
    %v10222 = vadd.f32 %v9112, %v10221
    %v10223 = vpop.f32.mrb[0].mxu0
    %10224 = vmatprep.mubr.f32.mxu0 0.0
    %10225 = vmatmul.mubr.f32.gmra.mrb[0].mxu0 %v10019
    %v10226 = vpop.f32.mrb[0].mxu0
    %v10227 = vadd.f32 %v9112, %v10226
    %v10228 = vpop.f32.mrb[0].mxu0
    %10229 = vmatprep.mubr.f32.mxu0 0.0
    %10230 = vmatmul.mubr.f32.gmra.mrb[0].mxu0 %v10022
    %v10231 = vpop.f32.mrb[0].mxu0
    %v10232 = vadd.f32 %v9112, %v10231
    %v10233 = vpop.f32.mrb[0].mxu0
    %10234 = vmatprep.mubr.f32.mxu0 0.0
    %10235 = vmatmul.mubr.f32.gmra.mrb[0].mxu0 %v10025
    %v10236 = vpop.f32.mrb[0].mxu0
    %v10237 = vadd.f32 %v9112, %v10236
    %v10238 = vpop.f32.mrb[0].mxu0
    %10239 = vmatprep.mubr.f32.mxu0 0.0
    %10240 = vmatmul.mubr.f32.gmra.mrb[0].mxu0 %v10028
    %v10241 = vpop.f32.mrb[0].mxu0
    %v10242 = vadd.f32 %v9112, %v10241
    %v10243 = vpop.f32.mrb[0].mxu0
    %10244 = vmatprep.mubr.f32.mxu0 0.0
    %10245 = vmatmul.mubr.f32.gmra.mrb[0].mxu0 %v10031
    %v10246 = vpop.f32.mrb[0].mxu0
    %v10247 = vadd.f32 %v9112, %v10246
    %v10248 = vpop.f32.mrb[0].mxu0
    %10249 = vmatprep.mubr.f32.mxu0 0.0
    %10250 = vmatmul.mubr.f32.gmra.mrb[0].mxu0 %v10034
    %v10251 = vpop.f32.mrb[0].mxu0
    %v10252 = vadd.f32 %v9112, %v10251
    %v10253 = vpop.f32.mrb[0].mxu0
    %10254 = vmatprep.mubr.f32.mxu0 0.0
    %10255 = vmatmul.mubr.f32.gmra.mrb[0].mxu0 %v10037
    %v10256 = vpop.f32.mrb[0].mxu0
    %v10257 = vadd.f32 %v9112, %v10256
    %v10258 = vpop.f32.mrb[0].mxu0
    %10259 = vmatprep.mubr.f32.mxu0 0.0
    %10260 = vmatmul.mubr.f32.gmra.mrb[0].mxu0 %v10040
    %v10261 = vpop.f32.mrb[0].mxu0
    %v10262 = vadd.f32 %v9112, %v10261
    %v10263 = vpop.f32.mrb[0].mxu0
    %10264 = vmatprep.mubr.f32.mxu0 0.0
    %10265 = vmatmul.mubr.f32.gmra.mrb[0].mxu0 %v10043
    %v10266 = vpop.f32.mrb[0].mxu0
    %v10267 = vadd.f32 %v9112, %v10266
    %v10268 = vpop.f32.mrb[0].mxu0
    %10269 = vdwg.mxu0
    %v10270 = vadd.f32 %v10112, %v9917
    %v10271 = vadd.f32 %v10117, %v9918
    %v10272 = vadd.f32 %v10122, %v9919
    %v10273 = vadd.f32 %v10127, %v9920
    %v10274 = vadd.f32 %v10132, %v9921
    %v10275 = vadd.f32 %v10137, %v9922
    %v10276 = vadd.f32 %v10142, %v9923
    %v10277 = vadd.f32 %v10147, %v9924
    %v10278 = vadd.f32 %v10152, %v9925
    %v10279 = vadd.f32 %v10157, %v9926
    %v10280 = vadd.f32 %v10162, %v9927
    %v10281 = vadd.f32 %v10167, %v9928
    %v10282 = vadd.f32 %v10172, %v9929
    %v10283 = vadd.f32 %v10177, %v9930
    %v10284 = vadd.f32 %v10182, %v9931
    %v10285 = vadd.f32 %v10187, %v9932
    %v10286 = vadd.f32 %v10192, %v9933
    %v10287 = vadd.f32 %v10197, %v9934
    %v10288 = vadd.f32 %v10202, %v9935
    %v10289 = vadd.f32 %v10207, %v9936
    %v10290 = vadd.f32 %v10212, %v9937
    %v10291 = vadd.f32 %v10217, %v9938
    %v10292 = vadd.f32 %v10222, %v9939
    %v10293 = vadd.f32 %v10227, %v9940
    %v10294 = vadd.f32 %v10232, %v9941
    %v10295 = vadd.f32 %v10237, %v9942
    %v10296 = vadd.f32 %v10242, %v9943
    %v10297 = vadd.f32 %v10247, %v9944
    %v10298 = vadd.f32 %v10252, %v9945
    %v10299 = vadd.f32 %v10257, %v9946
    %v10300 = vadd.f32 %v10262, %v9947
    %v10301 = vadd.f32 %v10267, %v9948
    %v10302 = vmax.f32 %v10270, 0.0
    %v10303 = vmax.f32 %v10271, 0.0
    %v10304 = vmax.f32 %v10272, 0.0
    %v10305 = vmax.f32 %v10273, 0.0
    %v10306 = vmax.f32 %v10274, 0.0
    %v10307 = vmax.f32 %v10275, 0.0
    %v10308 = vmax.f32 %v10276, 0.0
    %v10309 = vmax.f32 %v10277, 0.0
    %v10310 = vmax.f32 %v10278, 0.0
    %v10311 = vmax.f32 %v10279, 0.0
    %v10312 = vmax.f32 %v10280, 0.0
    %v10313 = vmax.f32 %v10281, 0.0
    %v10314 = vmax.f32 %v10282, 0.0
    %v10315 = vmax.f32 %v10283, 0.0
    %v10316 = vmax.f32 %v10284, 0.0
    %v10317 = vmax.f32 %v10285, 0.0
    %v10318 = vmax.f32 %v10286, 0.0
    %v10319 = vmax.f32 %v10287, 0.0
    %v10320 = vmax.f32 %v10288, 0.0
    %v10321 = vmax.f32 %v10289, 0.0
    %v10322 = vmax.f32 %v10290, 0.0
    %v10323 = vmax.f32 %v10291, 0.0
    %v10324 = vmax.f32 %v10292, 0.0
    %v10325 = vmax.f32 %v10293, 0.0
    %v10326 = vmax.f32 %v10294, 0.0
    %v10327 = vmax.f32 %v10295, 0.0
    %v10328 = vmax.f32 %v10296, 0.0
    %v10329 = vmax.f32 %v10297, 0.0
    %v10330 = vmax.f32 %v10298, 0.0
    %v10331 = vmax.f32 %v10299, 0.0
    %v10332 = vmax.f32 %v10300, 0.0
    %v10333 = vmax.f32 %v10301, 0.0
    %v10334 = vadd.f32 %v9917, %v10302
    %v10335 = vadd.f32 %v9918, %v10303
    %v10336 = vadd.f32 %v9919, %v10304
    %v10337 = vadd.f32 %v9920, %v10305
    %v10338 = vadd.f32 %v9921, %v10306
    %v10339 = vadd.f32 %v9922, %v10307
    %v10340 = vadd.f32 %v9923, %v10308
    %v10341 = vadd.f32 %v9924, %v10309
    %v10342 = vadd.f32 %v9925, %v10310
    %v10343 = vadd.f32 %v9926, %v10311
    %v10344 = vadd.f32 %v9927, %v10312
    %v10345 = vadd.f32 %v9928, %v10313
    %v10346 = vadd.f32 %v9929, %v10314
    %v10347 = vadd.f32 %v9930, %v10315
    %v10348 = vadd.f32 %v9931, %v10316
    %v10349 = vadd.f32 %v9932, %v10317
    %v10350 = vadd.f32 %v9933, %v10318
    %v10351 = vadd.f32 %v9934, %v10319
    %v10352 = vadd.f32 %v9935, %v10320
    %v10353 = vadd.f32 %v9936, %v10321
    %v10354 = vadd.f32 %v9937, %v10322
    %v10355 = vadd.f32 %v9938, %v10323
    %v10356 = vadd.f32 %v9939, %v10324
    %v10357 = vadd.f32 %v9940, %v10325
    %v10358 = vadd.f32 %v9941, %v10326
    %v10359 = vadd.f32 %v9942, %v10327
    %v10360 = vadd.f32 %v9943, %v10328
    %v10361 = vadd.f32 %v9944, %v10329
    %v10362 = vadd.f32 %v9945, %v10330
    %v10363 = vadd.f32 %v9946, %v10331
    %v10364 = vadd.f32 %v9947, %v10332
    %v10365 = vadd.f32 %v9948, %v10333
    %v10367 = vsel %vm9114, %v10302, 0
    %v10370 = vsel %vm9114, %v10303, 0
    %v10373 = vsel %vm9114, %v10304, 0
    %v10376 = vsel %vm9114, %v10305, 0
    %v10379 = vsel %vm9114, %v10306, 0
    %v10382 = vsel %vm9114, %v10307, 0
    %v10385 = vsel %vm9114, %v10308, 0
    %v10388 = vsel %vm9114, %v10309, 0
    %v10391 = vsel %vm9114, %v10310, 0
    %v10394 = vsel %vm9114, %v10311, 0
    %v10397 = vsel %vm9114, %v10312, 0
    %v10400 = vsel %vm9114, %v10313, 0
    %v10403 = vsel %vm9114, %v10314, 0
    %v10406 = vsel %vm9114, %v10315, 0
    %v10409 = vsel %vm9114, %v10316, 0
    %v10412 = vsel %vm9114, %v10317, 0
    %v10415 = vsel %vm9114, %v10318, 0
    %v10418 = vsel %vm9114, %v10319, 0
    %v10421 = vsel %vm9114, %v10320, 0
    %v10424 = vsel %vm9114, %v10321, 0
    %v10427 = vsel %vm9114, %v10322, 0
    %v10430 = vsel %vm9114, %v10323, 0
    %v10433 = vsel %vm9114, %v10324, 0
    %v10436 = vsel %vm9114, %v10325, 0
    %v10439 = vsel %vm9114, %v10326, 0
    %v10442 = vsel %vm9114, %v10327, 0
    %v10445 = vsel %vm9114, %v10328, 0
    %v10448 = vsel %vm9114, %v10329, 0
    %v10451 = vsel %vm9114, %v10330, 0
    %v10454 = vsel %vm9114, %v10331, 0
    %v10457 = vsel %vm9114, %v10332, 0
    %v10460 = vsel %vm9114, %v10333, 0
    %10462 = vmatprep.subr.mxu0 0.0
    %10463 = vmatpush1.msra.mxu0 %v9099
    %10464 = vmatprep.subr.mxu0 0.0
    %10465 = vmatpush1.msra.mxu0 %v9100
    %10466 = vmatprep.subr.mxu0 0.0
    %10467 = vmatpush1.msra.mxu0 %v9101
    %10468 = vmatprep.subr.mxu0 0.0
    %10469 = vmatpush1.msra.mxu0 %v9102
    %10470 = vmatprep.subr.mxu0 0.0
    %10471 = vmatpush1.msra.mxu0 %v9103
    %10472 = vmatprep.subr.mxu0 0.0
    %10473 = vmatpush1.msra.mxu0 %v9104
    %10474 = vmatprep.subr.mxu0 0.0
    %10475 = vmatpush1.msra.mxu0 %v9105
    %10476 = vmatprep.subr.mxu0 0.0
    %10477 = vmatpush1.msra.mxu0 %v9106
    %10478 = vmatprep.subr.mxu0 0.0
    %10479 = vmatpush1.msra.mxu0 0.0
    %10480 = vmatprep.subr.mxu0 0.0
    %10481 = vmatpush1.msra.mxu0 0.0
    %10482 = vmatprep.subr.mxu0 0.0
    %10483 = vmatpush1.msra.mxu0 0.0
    %10484 = vmatprep.subr.mxu0 0.0
    %10485 = vmatpush1.msra.mxu0 0.0
    %10486 = vmatprep.subr.mxu0 0.0
    %10487 = vmatpush1.msra.mxu0 0.0
    %10488 = vmatprep.subr.mxu0 0.0
    %10489 = vmatpush1.msra.mxu0 0.0
    %10490 = vmatprep.subr.mxu0 0.0
    %10491 = vmatpush1.msra.mxu0 0.0
    %10492 = vmatprep.subr.mxu0 0.0
    %10493 = vmatpush1.msra.mxu0 0.0
    %10494 = vmatprep.subr.mxu0 0.0
    %10495 = vmatpush1.msra.mxu0 0.0
    %10496 = vmatprep.subr.mxu0 0.0
    %10497 = vmatpush1.msra.mxu0 0.0
    %10498 = vmatprep.subr.mxu0 0.0
    %10499 = vmatpush1.msra.mxu0 0.0
    %10500 = vmatprep.subr.mxu0 0.0
    %10501 = vmatpush1.msra.mxu0 0.0
    %10502 = vmatprep.subr.mxu0 0.0
    %10503 = vmatpush1.msra.mxu0 0.0
    %10504 = vmatprep.subr.mxu0 0.0
    %10505 = vmatpush1.msra.mxu0 0.0
    %10506 = vmatprep.subr.mxu0 0.0
    %10507 = vmatpush1.msra.mxu0 0.0
    %10508 = vmatprep.subr.mxu0 0.0
    %10509 = vmatpush1.msra.mxu0 0.0
    %10510 = vmatprep.subr.mxu0 0.0
    %10511 = vmatpush1.msra.mxu0 0.0
    %10512 = vmatprep.subr.mxu0 0.0
    %10513 = vmatpush1.msra.mxu0 0.0
    %10514 = vmatprep.subr.mxu0 0.0
    %10515 = vmatpush1.msra.mxu0 0.0
    %10516 = vmatprep.subr.mxu0 0.0
    %10517 = vmatpush1.msra.mxu0 0.0
    %10518 = vmatprep.subr.mxu0 0.0
    %10519 = vmatpush1.msra.mxu0 0.0
    %10520 = vmatprep.subr.mxu0 0.0
    %10521 = vmatpush1.msra.mxu0 0.0
    %10522 = vmatprep.subr.mxu0 0.0
    %10523 = vmatpush1.msra.mxu0 0.0
    %10524 = vmatprep.subr.mxu0 0.0
    %10525 = vmatpush1.msra.mxu0 0.0
    %10526 = vmatprep.mubr.f32.mxu0 0.0
    %10527 = vmatmul.mubr.f32.gmra.mrb[0].mxu0 %v10367
    %v10528 = vpop.f32.mrb[0].mxu0
    %v10529 = vadd.f32 %v9112, %v10528
    %v10530 = vpop.f32.mrb[0].mxu0
    %10531 = vmatprep.mubr.f32.mxu0 0.0
    %10532 = vmatmul.mubr.f32.gmra.mrb[0].mxu0 %v10370
    %v10533 = vpop.f32.mrb[0].mxu0
    %v10534 = vadd.f32 %v9112, %v10533
    %v10535 = vpop.f32.mrb[0].mxu0
    %10536 = vmatprep.mubr.f32.mxu0 0.0
    %10537 = vmatmul.mubr.f32.gmra.mrb[0].mxu0 %v10373
    %v10538 = vpop.f32.mrb[0].mxu0
    %v10539 = vadd.f32 %v9112, %v10538
    %v10540 = vpop.f32.mrb[0].mxu0
    %10541 = vmatprep.mubr.f32.mxu0 0.0
    %10542 = vmatmul.mubr.f32.gmra.mrb[0].mxu0 %v10376
    %v10543 = vpop.f32.mrb[0].mxu0
    %v10544 = vadd.f32 %v9112, %v10543
    %v10545 = vpop.f32.mrb[0].mxu0
    %10546 = vmatprep.mubr.f32.mxu0 0.0
    %10547 = vmatmul.mubr.f32.gmra.mrb[0].mxu0 %v10379
    %v10548 = vpop.f32.mrb[0].mxu0
    %v10549 = vadd.f32 %v9112, %v10548
    %v10550 = vpop.f32.mrb[0].mxu0
    %10551 = vmatprep.mubr.f32.mxu0 0.0
    %10552 = vmatmul.mubr.f32.gmra.mrb[0].mxu0 %v10382
    %v10553 = vpop.f32.mrb[0].mxu0
    %v10554 = vadd.f32 %v9112, %v10553
    %v10555 = vpop.f32.mrb[0].mxu0
    %10556 = vmatprep.mubr.f32.mxu0 0.0
    %10557 = vmatmul.mubr.f32.gmra.mrb[0].mxu0 %v10385
    %v10558 = vpop.f32.mrb[0].mxu0
    %v10559 = vadd.f32 %v9112, %v10558
    %v10560 = vpop.f32.mrb[0].mxu0
    %10561 = vmatprep.mubr.f32.mxu0 0.0
    %10562 = vmatmul.mubr.f32.gmra.mrb[0].mxu0 %v10388
    %v10563 = vpop.f32.mrb[0].mxu0
    %v10564 = vadd.f32 %v9112, %v10563
    %v10565 = vpop.f32.mrb[0].mxu0
    %10566 = vmatprep.mubr.f32.mxu0 0.0
    %10567 = vmatmul.mubr.f32.gmra.mrb[0].mxu0 %v10391
    %v10568 = vpop.f32.mrb[0].mxu0
    %v10569 = vadd.f32 %v9112, %v10568
    %v10570 = vpop.f32.mrb[0].mxu0
    %10571 = vmatprep.mubr.f32.mxu0 0.0
    %10572 = vmatmul.mubr.f32.gmra.mrb[0].mxu0 %v10394
    %v10573 = vpop.f32.mrb[0].mxu0
    %v10574 = vadd.f32 %v9112, %v10573
    %v10575 = vpop.f32.mrb[0].mxu0
    %10576 = vmatprep.mubr.f32.mxu0 0.0
    %10577 = vmatmul.mubr.f32.gmra.mrb[0].mxu0 %v10397
    %v10578 = vpop.f32.mrb[0].mxu0
    %v10579 = vadd.f32 %v9112, %v10578
    %v10580 = vpop.f32.mrb[0].mxu0
    %10581 = vmatprep.mubr.f32.mxu0 0.0
    %10582 = vmatmul.mubr.f32.gmra.mrb[0].mxu0 %v10400
    %v10583 = vpop.f32.mrb[0].mxu0
    %v10584 = vadd.f32 %v9112, %v10583
    %v10585 = vpop.f32.mrb[0].mxu0
    %10586 = vmatprep.mubr.f32.mxu0 0.0
    %10587 = vmatmul.mubr.f32.gmra.mrb[0].mxu0 %v10403
    %v10588 = vpop.f32.mrb[0].mxu0
    %v10589 = vadd.f32 %v9112, %v10588
    %v10590 = vpop.f32.mrb[0].mxu0
    %10591 = vmatprep.mubr.f32.mxu0 0.0
    %10592 = vmatmul.mubr.f32.gmra.mrb[0].mxu0 %v10406
    %v10593 = vpop.f32.mrb[0].mxu0
    %v10594 = vadd.f32 %v9112, %v10593
    %v10595 = vpop.f32.mrb[0].mxu0
    %10596 = vmatprep.mubr.f32.mxu0 0.0
    %10597 = vmatmul.mubr.f32.gmra.mrb[0].mxu0 %v10409
    %v10598 = vpop.f32.mrb[0].mxu0
    %v10599 = vadd.f32 %v9112, %v10598
    %v10600 = vpop.f32.mrb[0].mxu0
    %10601 = vmatprep.mubr.f32.mxu0 0.0
    %10602 = vmatmul.mubr.f32.gmra.mrb[0].mxu0 %v10412
    %v10603 = vpop.f32.mrb[0].mxu0
    %v10604 = vadd.f32 %v9112, %v10603
    %v10605 = vpop.f32.mrb[0].mxu0
    %10606 = vmatprep.mubr.f32.mxu0 0.0
    %10607 = vmatmul.mubr.f32.gmra.mrb[0].mxu0 %v10415
    %v10608 = vpop.f32.mrb[0].mxu0
    %v10609 = vadd.f32 %v9112, %v10608
    %v10610 = vpop.f32.mrb[0].mxu0
    %10611 = vmatprep.mubr.f32.mxu0 0.0
    %10612 = vmatmul.mubr.f32.gmra.mrb[0].mxu0 %v10418
    %v10613 = vpop.f32.mrb[0].mxu0
    %v10614 = vadd.f32 %v9112, %v10613
    %v10615 = vpop.f32.mrb[0].mxu0
    %10616 = vmatprep.mubr.f32.mxu0 0.0
    %10617 = vmatmul.mubr.f32.gmra.mrb[0].mxu0 %v10421
    %v10618 = vpop.f32.mrb[0].mxu0
    %v10619 = vadd.f32 %v9112, %v10618
    %v10620 = vpop.f32.mrb[0].mxu0
    %10621 = vmatprep.mubr.f32.mxu0 0.0
    %10622 = vmatmul.mubr.f32.gmra.mrb[0].mxu0 %v10424
    %v10623 = vpop.f32.mrb[0].mxu0
    %v10624 = vadd.f32 %v9112, %v10623
    %v10625 = vpop.f32.mrb[0].mxu0
    %10626 = vmatprep.mubr.f32.mxu0 0.0
    %10627 = vmatmul.mubr.f32.gmra.mrb[0].mxu0 %v10427
    %v10628 = vpop.f32.mrb[0].mxu0
    %v10629 = vadd.f32 %v9112, %v10628
    %v10630 = vpop.f32.mrb[0].mxu0
    %10631 = vmatprep.mubr.f32.mxu0 0.0
    %10632 = vmatmul.mubr.f32.gmra.mrb[0].mxu0 %v10430
    %v10633 = vpop.f32.mrb[0].mxu0
    %v10634 = vadd.f32 %v9112, %v10633
    %v10635 = vpop.f32.mrb[0].mxu0
    %10636 = vmatprep.mubr.f32.mxu0 0.0
    %10637 = vmatmul.mubr.f32.gmra.mrb[0].mxu0 %v10433
    %v10638 = vpop.f32.mrb[0].mxu0
    %v10639 = vadd.f32 %v9112, %v10638
    %v10640 = vpop.f32.mrb[0].mxu0
    %10641 = vmatprep.mubr.f32.mxu0 0.0
    %10642 = vmatmul.mubr.f32.gmra.mrb[0].mxu0 %v10436
    %v10643 = vpop.f32.mrb[0].mxu0
    %v10644 = vadd.f32 %v9112, %v10643
    %v10645 = vpop.f32.mrb[0].mxu0
    %10646 = vmatprep.mubr.f32.mxu0 0.0
    %10647 = vmatmul.mubr.f32.gmra.mrb[0].mxu0 %v10439
    %v10648 = vpop.f32.mrb[0].mxu0
    %v10649 = vadd.f32 %v9112, %v10648
    %v10650 = vpop.f32.mrb[0].mxu0
    %10651 = vmatprep.mubr.f32.mxu0 0.0
    %10652 = vmatmul.mubr.f32.gmra.mrb[0].mxu0 %v10442
    %v10653 = vpop.f32.mrb[0].mxu0
    %v10654 = vadd.f32 %v9112, %v10653
    %v10655 = vpop.f32.mrb[0].mxu0
    %10656 = vmatprep.mubr.f32.mxu0 0.0
    %10657 = vmatmul.mubr.f32.gmra.mrb[0].mxu0 %v10445
    %v10658 = vpop.f32.mrb[0].mxu0
    %v10659 = vadd.f32 %v9112, %v10658
    %v10660 = vpop.f32.mrb[0].mxu0
    %10661 = vmatprep.mubr.f32.mxu0 0.0
    %10662 = vmatmul.mubr.f32.gmra.mrb[0].mxu0 %v10448
    %v10663 = vpop.f32.mrb[0].mxu0
    %v10664 = vadd.f32 %v9112, %v10663
    %v10665 = vpop.f32.mrb[0].mxu0
    %10666 = vmatprep.mubr.f32.mxu0 0.0
    %10667 = vmatmul.mubr.f32.gmra.mrb[0].mxu0 %v10451
    %v10668 = vpop.f32.mrb[0].mxu0
    %v10669 = vadd.f32 %v9112, %v10668
    %v10670 = vpop.f32.mrb[0].mxu0
    %10671 = vmatprep.mubr.f32.mxu0 0.0
    %10672 = vmatmul.mubr.f32.gmra.mrb[0].mxu0 %v10454
    %v10673 = vpop.f32.mrb[0].mxu0
    %v10674 = vadd.f32 %v9112, %v10673
    %v10675 = vpop.f32.mrb[0].mxu0
    %10676 = vmatprep.mubr.f32.mxu0 0.0
    %10677 = vmatmul.mubr.f32.gmra.mrb[0].mxu0 %v10457
    %v10678 = vpop.f32.mrb[0].mxu0
    %v10679 = vadd.f32 %v9112, %v10678
    %v10680 = vpop.f32.mrb[0].mxu0
    %10681 = vmatprep.mubr.f32.mxu0 0.0
    %10682 = vmatmul.mubr.f32.gmra.mrb[0].mxu0 %v10460
    %v10683 = vpop.f32.mrb[0].mxu0
    %v10684 = vadd.f32 %v9112, %v10683
    %v10685 = vpop.f32.mrb[0].mxu0
    %10686 = vdwg.mxu0
    %v10687 = vadd.f32 %v10529, %v10334
    %v10688 = vadd.f32 %v10534, %v10335
    %v10689 = vadd.f32 %v10539, %v10336
    %v10690 = vadd.f32 %v10544, %v10337
    %v10691 = vadd.f32 %v10549, %v10338
    %v10692 = vadd.f32 %v10554, %v10339
    %v10693 = vadd.f32 %v10559, %v10340
    %v10694 = vadd.f32 %v10564, %v10341
    %v10695 = vadd.f32 %v10569, %v10342
    %v10696 = vadd.f32 %v10574, %v10343
    %v10697 = vadd.f32 %v10579, %v10344
    %v10698 = vadd.f32 %v10584, %v10345
    %v10699 = vadd.f32 %v10589, %v10346
    %v10700 = vadd.f32 %v10594, %v10347
    %v10701 = vadd.f32 %v10599, %v10348
    %v10702 = vadd.f32 %v10604, %v10349
    %v10703 = vadd.f32 %v10609, %v10350
    %v10704 = vadd.f32 %v10614, %v10351
    %v10705 = vadd.f32 %v10619, %v10352
    %v10706 = vadd.f32 %v10624, %v10353
    %v10707 = vadd.f32 %v10629, %v10354
    %v10708 = vadd.f32 %v10634, %v10355
    %v10709 = vadd.f32 %v10639, %v10356
    %v10710 = vadd.f32 %v10644, %v10357
    %v10711 = vadd.f32 %v10649, %v10358
    %v10712 = vadd.f32 %v10654, %v10359
    %v10713 = vadd.f32 %v10659, %v10360
    %v10714 = vadd.f32 %v10664, %v10361
    %v10715 = vadd.f32 %v10669, %v10362
    %v10716 = vadd.f32 %v10674, %v10363
    %v10717 = vadd.f32 %v10679, %v10364
    %v10718 = vadd.f32 %v10684, %v10365
    %v10719 = vmax.f32 %v10687, 0.0
    %v10720 = vmax.f32 %v10688, 0.0
    %v10721 = vmax.f32 %v10689, 0.0
    %v10722 = vmax.f32 %v10690, 0.0
    %v10723 = vmax.f32 %v10691, 0.0
    %v10724 = vmax.f32 %v10692, 0.0
    %v10725 = vmax.f32 %v10693, 0.0
    %v10726 = vmax.f32 %v10694, 0.0
    %v10727 = vmax.f32 %v10695, 0.0
    %v10728 = vmax.f32 %v10696, 0.0
    %v10729 = vmax.f32 %v10697, 0.0
    %v10730 = vmax.f32 %v10698, 0.0
    %v10731 = vmax.f32 %v10699, 0.0
    %v10732 = vmax.f32 %v10700, 0.0
    %v10733 = vmax.f32 %v10701, 0.0
    %v10734 = vmax.f32 %v10702, 0.0
    %v10735 = vmax.f32 %v10703, 0.0
    %v10736 = vmax.f32 %v10704, 0.0
    %v10737 = vmax.f32 %v10705, 0.0
    %v10738 = vmax.f32 %v10706, 0.0
    %v10739 = vmax.f32 %v10707, 0.0
    %v10740 = vmax.f32 %v10708, 0.0
    %v10741 = vmax.f32 %v10709, 0.0
    %v10742 = vmax.f32 %v10710, 0.0
    %v10743 = vmax.f32 %v10711, 0.0
    %v10744 = vmax.f32 %v10712, 0.0
    %v10745 = vmax.f32 %v10713, 0.0
    %v10746 = vmax.f32 %v10714, 0.0
    %v10747 = vmax.f32 %v10715, 0.0
    %v10748 = vmax.f32 %v10716, 0.0
    %v10749 = vmax.f32 %v10717, 0.0
    %v10750 = vmax.f32 %v10718, 0.0
    %v10751 = vld [vmem:[%s15] sm:$0xff]
    %v10752 = vld [vmem:[%s15 + $0x8] sm:$0xff]
    %v10753 = vld [vmem:[%s15 + $0x10] sm:$0xff]
    %v10754 = vld [vmem:[%s15 + $0x18] sm:$0xff]
    %v10755 = vld [vmem:[%s16] sm:$0xff]
    %v10756 = vld [vmem:[%s16 + $0x8] sm:$0xff]
    %v10757 = vld [vmem:[%s16 + $0x10] sm:$0xff]
    %v10758 = vld [vmem:[%s16 + $0x18] sm:$0xff]
    %10760 = vset.pattern.permute.xlu0 0
    %10761 = vperm.xlu0 %10760, %v10755
    %v10762 = vpop.permute.xlu0 %10761
    %10765 = vset.pattern.permute.xlu0 0
    %10766 = vperm.xlu0 %10765, %v10756
    %v10767 = vpop.permute.xlu0 %10766
    %10770 = vset.pattern.permute.xlu0 0
    %10771 = vperm.xlu0 %10770, %v10757
    %v10772 = vpop.permute.xlu0 %10771
    %10775 = vset.pattern.permute.xlu0 0
    %10776 = vperm.xlu0 %10775, %v10758
    %v10777 = vpop.permute.xlu0 %10776
    %v10780 = vsel %vm9114, %v10751, 0
    %v10783 = vsel %vm9114, %v10752, 0
    %v10786 = vsel %vm9114, %v10753, 0
    %v10789 = vsel %vm9114, %v10754, 0
    %v10792 = vsel %vm9114, %v10719, 0
    %v10795 = vsel %vm9114, %v10720, 0
    %v10798 = vsel %vm9114, %v10721, 0
    %v10801 = vsel %vm9114, %v10722, 0
    %v10804 = vsel %vm9114, %v10723, 0
    %v10807 = vsel %vm9114, %v10724, 0
    %v10810 = vsel %vm9114, %v10725, 0
    %v10813 = vsel %vm9114, %v10726, 0
    %v10816 = vsel %vm9114, %v10727, 0
    %v10819 = vsel %vm9114, %v10728, 0
    %v10822 = vsel %vm9114, %v10729, 0
    %v10825 = vsel %vm9114, %v10730, 0
    %v10828 = vsel %vm9114, %v10731, 0
    %v10831 = vsel %vm9114, %v10732, 0
    %v10834 = vsel %vm9114, %v10733, 0
    %v10837 = vsel %vm9114, %v10734, 0
    %v10840 = vsel %vm9114, %v10735, 0
    %v10843 = vsel %vm9114, %v10736, 0
    %v10846 = vsel %vm9114, %v10737, 0
    %v10849 = vsel %vm9114, %v10738, 0
    %v10852 = vsel %vm9114, %v10739, 0
    %v10855 = vsel %vm9114, %v10740, 0
    %v10858 = vsel %vm9114, %v10741, 0
    %v10861 = vsel %vm9114, %v10742, 0
    %v10864 = vsel %vm9114, %v10743, 0
    %v10867 = vsel %vm9114, %v10744, 0
    %v10870 = vsel %vm9114, %v10745, 0
    %v10873 = vsel %vm9114, %v10746, 0
    %v10876 = vsel %vm9114, %v10747, 0
    %v10879 = vsel %vm9114, %v10748, 0
    %v10882 = vsel %vm9114, %v10749, 0
    %v10885 = vsel %vm9114, %v10750, 0
    %10887 = vmatprep.subr.mxu0 0.0
    %10888 = vmatpush1.xpose.msra.mxu0 %v10792
    %10889 = vmatprep.subr.mxu0 0.0
    %10890 = vmatpush1.xpose.msra.mxu0 %v10795
    %10891 = vmatprep.subr.mxu0 0.0
    %10892 = vmatpush1.xpose.msra.mxu0 %v10798
    %10893 = vmatprep.subr.mxu0 0.0
    %10894 = vmatpush1.xpose.msra.mxu0 %v10801
    %10895 = vmatprep.subr.mxu0 0.0
    %10896 = vmatpush1.xpose.msra.mxu0 %v10804
    %10897 = vmatprep.subr.mxu0 0.0
    %10898 = vmatpush1.xpose.msra.mxu0 %v10807
    %10899 = vmatprep.subr.mxu0 0.0
    %10900 = vmatpush1.xpose.msra.mxu0 %v10810
    %10901 = vmatprep.subr.mxu0 0.0
    %10902 = vmatpush1.xpose.msra.mxu0 %v10813
    %10903 = vmatprep.subr.mxu0 0.0
    %10904 = vmatpush1.xpose.msra.mxu0 %v10816
    %10905 = vmatprep.subr.mxu0 0.0
    %10906 = vmatpush1.xpose.msra.mxu0 %v10819
    %10907 = vmatprep.subr.mxu0 0.0
    %10908 = vmatpush1.xpose.msra.mxu0 %v10822
    %10909 = vmatprep.subr.mxu0 0.0
    %10910 = vmatpush1.xpose.msra.mxu0 %v10825
    %10911 = vmatprep.subr.mxu0 0.0
    %10912 = vmatpush1.xpose.msra.mxu0 %v10828
    %10913 = vmatprep.subr.mxu0 0.0
    %10914 = vmatpush1.xpose.msra.mxu0 %v10831
    %10915 = vmatprep.subr.mxu0 0.0
    %10916 = vmatpush1.xpose.msra.mxu0 %v10834
    %10917 = vmatprep.subr.mxu0 0.0
    %10918 = vmatpush1.xpose.msra.mxu0 %v10837
    %10919 = vmatprep.subr.mxu0 0.0
    %10920 = vmatpush1.xpose.msra.mxu0 %v10840
    %10921 = vmatprep.subr.mxu0 0.0
    %10922 = vmatpush1.xpose.msra.mxu0 %v10843
    %10923 = vmatprep.subr.mxu0 0.0
    %10924 = vmatpush1.xpose.msra.mxu0 %v10846
    %10925 = vmatprep.subr.mxu0 0.0
    %10926 = vmatpush1.xpose.msra.mxu0 %v10849
    %10927 = vmatprep.subr.mxu0 0.0
    %10928 = vmatpush1.xpose.msra.mxu0 %v10852
    %10929 = vmatprep.subr.mxu0 0.0
    %10930 = vmatpush1.xpose.msra.mxu0 %v10855
    %10931 = vmatprep.subr.mxu0 0.0
    %10932 = vmatpush1.xpose.msra.mxu0 %v10858
    %10933 = vmatprep.subr.mxu0 0.0
    %10934 = vmatpush1.xpose.msra.mxu0 %v10861
    %10935 = vmatprep.subr.mxu0 0.0
    %10936 = vmatpush1.xpose.msra.mxu0 %v10864
    %10937 = vmatprep.subr.mxu0 0.0
    %10938 = vmatpush1.xpose.msra.mxu0 %v10867
    %10939 = vmatprep.subr.mxu0 0.0
    %10940 = vmatpush1.xpose.msra.mxu0 %v10870
    %10941 = vmatprep.subr.mxu0 0.0
    %10942 = vmatpush1.xpose.msra.mxu0 %v10873
    %10943 = vmatprep.subr.mxu0 0.0
    %10944 = vmatpush1.xpose.msra.mxu0 %v10876
    %10945 = vmatprep.subr.mxu0 0.0
    %10946 = vmatpush1.xpose.msra.mxu0 %v10879
    %10947 = vmatprep.subr.mxu0 0.0
    %10948 = vmatpush1.xpose.msra.mxu0 %v10882
    %10949 = vmatprep.subr.mxu0 0.0
    %10950 = vmatpush1.xpose.msra.mxu0 %v10885
    %10951 = vmatprep.mubr.f32.mxu0 0.0
    %10952 = vmatmul.mubr.f32.gmra.mrb[0].mxu0 %v10780
    %v10953 = vpop.f32.mrb[0].mxu0
    %v10954 = vadd.f32 %v10762, %v10953
    %v10955 = vpop.f32.mrb[0].mxu0
    %v10956 = vadd.f32 %v10762, %v10955
    %10957 = vmatprep.mubr.f32.mxu0 0.0
    %10958 = vmatmul.mubr.f32.gmra.mrb[0].mxu0 %v10783
    %v10959 = vpop.f32.mrb[0].mxu0
    %v10960 = vadd.f32 %v10767, %v10959
    %v10961 = vpop.f32.mrb[0].mxu0
    %v10962 = vadd.f32 %v10767, %v10961
    %10963 = vmatprep.mubr.f32.mxu0 0.0
    %10964 = vmatmul.mubr.f32.gmra.mrb[0].mxu0 %v10786
    %v10965 = vpop.f32.mrb[0].mxu0
    %v10966 = vadd.f32 %v10772, %v10965
    %v10967 = vpop.f32.mrb[0].mxu0
    %v10968 = vadd.f32 %v10772, %v10967
    %10969 = vmatprep.mubr.f32.mxu0 0.0
    %10970 = vmatmul.mubr.f32.gmra.mrb[0].mxu0 %v10789
    %v10971 = vpop.f32.mrb[0].mxu0
    %v10972 = vadd.f32 %v10777, %v10971
    %v10973 = vpop.f32.mrb[0].mxu0
    %v10974 = vadd.f32 %v10777, %v10973
    %10975 = vdwg.mxu0
    %v10976 = vmax.f32 %v10954, 0.0
    %v10977 = vmax.f32 %v10956, 0.0
    %v10978 = vmax.f32 %v10960, 0.0
    %v10979 = vmax.f32 %v10962, 0.0
    %v10980 = vmax.f32 %v10966, 0.0
    %v10981 = vmax.f32 %v10968, 0.0
    %v10982 = vmax.f32 %v10972, 0.0
    %v10983 = vmax.f32 %v10974, 0.0
    %v10984 = vld [vmem:[%s17] sm:$0xff]
    %v10985 = vld [vmem:[%s18] sm:$0xff]
    %10987 = vset.pattern.permute.xlu0 0
    %10988 = vperm.xlu0 %10987, %v10985
    %v10989 = vpop.permute.xlu0 %10988
    %vm10991 = vcmask 261120
    %v10993 = vsel %vm10991, %v10984, 0
    %10995 = vmatprep.subr.mxu0 %v10977
    %10996 = vmatpush1.msra.mxu0 %v10976
    %10997 = vmatprep.subr.mxu0 %v10979
    %10998 = vmatpush1.msra.mxu0 %v10978
    %10999 = vmatprep.subr.mxu0 %v10981
    %11000 = vmatpush1.msra.mxu0 %v10980
    %11001 = vmatprep.subr.mxu0 %v10983
    %11002 = vmatpush1.msra.mxu0 %v10982
    %11003 = vmatprep.subr.mxu0 0.0
    %11004 = vmatpush1.msra.mxu0 0.0
    %11005 = vmatprep.subr.mxu0 0.0
    %11006 = vmatpush1.msra.mxu0 0.0
    %11007 = vmatprep.subr.mxu0 0.0
    %11008 = vmatpush1.msra.mxu0 0.0
    %11009 = vmatprep.subr.mxu0 0.0
    %11010 = vmatpush1.msra.mxu0 0.0
    %11011 = vmatprep.subr.mxu0 0.0
    %11012 = vmatpush1.msra.mxu0 0.0
    %11013 = vmatprep.subr.mxu0 0.0
    %11014 = vmatpush1.msra.mxu0 0.0
    %11015 = vmatprep.subr.mxu0 0.0
    %11016 = vmatpush1.msra.mxu0 0.0
    %11017 = vmatprep.subr.mxu0 0.0
    %11018 = vmatpush1.msra.mxu0 0.0
    %11019 = vmatprep.subr.mxu0 0.0
    %11020 = vmatpush1.msra.mxu0 0.0
    %11021 = vmatprep.subr.mxu0 0.0
    %11022 = vmatpush1.msra.mxu0 0.0
    %11023 = vmatprep.subr.mxu0 0.0
    %11024 = vmatpush1.msra.mxu0 0.0
    %11025 = vmatprep.subr.mxu0 0.0
    %11026 = vmatpush1.msra.mxu0 0.0
    %11027 = vmatprep.subr.mxu0 0.0
    %11028 = vmatpush1.msra.mxu0 0.0
    %11029 = vmatprep.subr.mxu0 0.0
    %11030 = vmatpush1.msra.mxu0 0.0
    %11031 = vmatprep.subr.mxu0 0.0
    %11032 = vmatpush1.msra.mxu0 0.0
    %11033 = vmatprep.subr.mxu0 0.0
    %11034 = vmatpush1.msra.mxu0 0.0
    %11035 = vmatprep.subr.mxu0 0.0
    %11036 = vmatpush1.msra.mxu0 0.0
    %11037 = vmatprep.subr.mxu0 0.0
    %11038 = vmatpush1.msra.mxu0 0.0
    %11039 = vmatprep.subr.mxu0 0.0
    %11040 = vmatpush1.msra.mxu0 0.0
    %11041 = vmatprep.subr.mxu0 0.0
    %11042 = vmatpush1.msra.mxu0 0.0
    %11043 = vmatprep.subr.mxu0 0.0
    %11044 = vmatpush1.msra.mxu0 0.0
    %11045 = vmatprep.subr.mxu0 0.0
    %11046 = vmatpush1.msra.mxu0 0.0
    %11047 = vmatprep.subr.mxu0 0.0
    %11048 = vmatpush1.msra.mxu0 0.0
    %11049 = vmatprep.subr.mxu0 0.0
    %11050 = vmatpush1.msra.mxu0 0.0
    %11051 = vmatprep.subr.mxu0 0.0
    %11052 = vmatpush1.msra.mxu0 0.0
    %11053 = vmatprep.subr.mxu0 0.0
    %11054 = vmatpush1.msra.mxu0 0.0
    %11055 = vmatprep.subr.mxu0 0.0
    %11056 = vmatpush1.msra.mxu0 0.0
    %11057 = vmatprep.subr.mxu0 0.0
    %11058 = vmatpush1.msra.mxu0 0.0
    %11059 = vmatprep.mubr.f32.mxu0 0.0
    %11060 = vmatmul.mubr.f32.gmra.mrb[0].mxu0 %v10993
    %v11061 = vpop.f32.mrb[0].mxu0
    %v11062 = vadd.f32 %v10989, %v11061
    %v11063 = vpop.f32.mrb[0].mxu0
    %v11064 = vadd.f32 %v10989, %v11063
    %11065 = vdwg.mxu0
    %v11066 = vmax.f32 %v11062, 0.0
    %v11067 = vmax.f32 %v11064, 0.0
    %v11068 = vld [vmem:[%s19] sm:$0xf]
    %v11069 = vld [vmem:[%s20] sm:$0xf]
    %11071 = vset.pattern.permute.xlu0 0
    %11072 = vperm.xlu0 %11071, %v11069
    %v11073 = vpop.permute.xlu0 %11072
    %vm11075 = vcmask 64512
    %v11077 = vsel %vm11075, %v11068, 0
    %11079 = vmatprep.subr.mxu0 %v11067
    %11080 = vmatpush1.msra.mxu0 %v11066
    %11081 = vmatprep.subr.mxu0 0.0
    %11082 = vmatpush1.msra.mxu0 0.0
    %11083 = vmatprep.subr.mxu0 0.0
    %11084 = vmatpush1.msra.mxu0 0.0
    %11085 = vmatprep.subr.mxu0 0.0
    %11086 = vmatpush1.msra.mxu0 0.0
    %11087 = vmatprep.subr.mxu0 0.0
    %11088 = vmatpush1.msra.mxu0 0.0
    %11089 = vmatprep.subr.mxu0 0.0
    %11090 = vmatpush1.msra.mxu0 0.0
    %11091 = vmatprep.subr.mxu0 0.0
    %11092 = vmatpush1.msra.mxu0 0.0
    %11093 = vmatprep.subr.mxu0 0.0
    %11094 = vmatpush1.msra.mxu0 0.0
    %11095 = vmatprep.subr.mxu0 0.0
    %11096 = vmatpush1.msra.mxu0 0.0
    %11097 = vmatprep.subr.mxu0 0.0
    %11098 = vmatpush1.msra.mxu0 0.0
    %11099 = vmatprep.subr.mxu0 0.0
    %11100 = vmatpush1.msra.mxu0 0.0
    %11101 = vmatprep.subr.mxu0 0.0
    %11102 = vmatpush1.msra.mxu0 0.0
    %11103 = vmatprep.subr.mxu0 0.0
    %11104 = vmatpush1.msra.mxu0 0.0
    %11105 = vmatprep.subr.mxu0 0.0
    %11106 = vmatpush1.msra.mxu0 0.0
    %11107 = vmatprep.subr.mxu0 0.0
    %11108 = vmatpush1.msra.mxu0 0.0
    %11109 = vmatprep.subr.mxu0 0.0
    %11110 = vmatpush1.msra.mxu0 0.0
    %11111 = vmatprep.subr.mxu0 0.0
    %11112 = vmatpush1.msra.mxu0 0.0
    %11113 = vmatprep.subr.mxu0 0.0
    %11114 = vmatpush1.msra.mxu0 0.0
    %11115 = vmatprep.subr.mxu0 0.0
    %11116 = vmatpush1.msra.mxu0 0.0
    %11117 = vmatprep.subr.mxu0 0.0
    %11118 = vmatpush1.msra.mxu0 0.0
    %11119 = vmatprep.subr.mxu0 0.0
    %11120 = vmatpush1.msra.mxu0 0.0
    %11121 = vmatprep.subr.mxu0 0.0
    %11122 = vmatpush1.msra.mxu0 0.0
    %11123 = vmatprep.subr.mxu0 0.0
    %11124 = vmatpush1.msra.mxu0 0.0
    %11125 = vmatprep.subr.mxu0 0.0
    %11126 = vmatpush1.msra.mxu0 0.0
    %11127 = vmatprep.subr.mxu0 0.0
    %11128 = vmatpush1.msra.mxu0 0.0
    %11129 = vmatprep.subr.mxu0 0.0
    %11130 = vmatpush1.msra.mxu0 0.0
    %11131 = vmatprep.subr.mxu0 0.0
    %11132 = vmatpush1.msra.mxu0 0.0
    %11133 = vmatprep.subr.mxu0 0.0
    %11134 = vmatpush1.msra.mxu0 0.0
    %11135 = vmatprep.subr.mxu0 0.0
    %11136 = vmatpush1.msra.mxu0 0.0
    %11137 = vmatprep.subr.mxu0 0.0
    %11138 = vmatpush1.msra.mxu0 0.0
    %11139 = vmatprep.subr.mxu0 0.0
    %11140 = vmatpush1.msra.mxu0 0.0
    %11141 = vmatprep.subr.mxu0 0.0
    %11142 = vmatpush1.msra.mxu0 0.0
    %11143 = vmatprep.mubr.f32.mxu0 0.0
    %11144 = vmatmul.mubr.f32.gmra.mrb[0].mxu0 %v11077
    %v11145 = vpop.f32.mrb[0].mxu0
    %v11146 = vadd.f32 %v11073, %v11145
    %v11147 = vpop.f32.mrb[0].mxu0
    %v11148 = vadd.f32 %v11073, %v11147
    %11149 = vdwg.mxu0
    %v11150 = vmax.f32 %v11146, 0.0
    %v11151 = vmax.f32 %v11148, 0.0
    %v11152 = vld [vmem:[%s21] sm:$0x3]
    %v11153 = vld [vmem:[%s22] sm:$0x3]
    %11155 = vset.pattern.permute.xlu0 0
    %11156 = vperm.xlu0 %11155, %v11153
    %v11157 = vpop.permute.xlu0 %11156
    %vm11159 = vcmask 31744
    %v11161 = vsel %vm11159, %v11152, 0
    %vm11163 = vcmask 1043456
    %v11165 = vsel %vm11163, %v11150, 0
    %v11168 = vsel %vm11163, %v11151, 0
    %11170 = vmatprep.subr.mxu0 %v11168
    %11171 = vmatpush1.msra.mxu0 %v11165
    %11172 = vmatprep.subr.mxu0 0.0
    %11173 = vmatpush1.msra.mxu0 0.0
    %11174 = vmatprep.subr.mxu0 0.0
    %11175 = vmatpush1.msra.mxu0 0.0
    %11176 = vmatprep.subr.mxu0 0.0
    %11177 = vmatpush1.msra.mxu0 0.0
    %11178 = vmatprep.subr.mxu0 0.0
    %11179 = vmatpush1.msra.mxu0 0.0
    %11180 = vmatprep.subr.mxu0 0.0
    %11181 = vmatpush1.msra.mxu0 0.0
    %11182 = vmatprep.subr.mxu0 0.0
    %11183 = vmatpush1.msra.mxu0 0.0
    %11184 = vmatprep.subr.mxu0 0.0
    %11185 = vmatpush1.msra.mxu0 0.0
    %11186 = vmatprep.subr.mxu0 0.0
    %11187 = vmatpush1.msra.mxu0 0.0
    %11188 = vmatprep.subr.mxu0 0.0
    %11189 = vmatpush1.msra.mxu0 0.0
    %11190 = vmatprep.subr.mxu0 0.0
    %11191 = vmatpush1.msra.mxu0 0.0
    %11192 = vmatprep.subr.mxu0 0.0
    %11193 = vmatpush1.msra.mxu0 0.0
    %11194 = vmatprep.subr.mxu0 0.0
    %11195 = vmatpush1.msra.mxu0 0.0
    %11196 = vmatprep.subr.mxu0 0.0
    %11197 = vmatpush1.msra.mxu0 0.0
    %11198 = vmatprep.subr.mxu0 0.0
    %11199 = vmatpush1.msra.mxu0 0.0
    %11200 = vmatprep.subr.mxu0 0.0
    %11201 = vmatpush1.msra.mxu0 0.0
    %11202 = vmatprep.subr.mxu0 0.0
    %11203 = vmatpush1.msra.mxu0 0.0
    %11204 = vmatprep.subr.mxu0 0.0
    %11205 = vmatpush1.msra.mxu0 0.0
    %11206 = vmatprep.subr.mxu0 0.0
    %11207 = vmatpush1.msra.mxu0 0.0
    %11208 = vmatprep.subr.mxu0 0.0
    %11209 = vmatpush1.msra.mxu0 0.0
    %11210 = vmatprep.subr.mxu0 0.0
    %11211 = vmatpush1.msra.mxu0 0.0
    %11212 = vmatprep.subr.mxu0 0.0
    %11213 = vmatpush1.msra.mxu0 0.0
    %11214 = vmatprep.subr.mxu0 0.0
    %11215 = vmatpush1.msra.mxu0 0.0
    %11216 = vmatprep.subr.mxu0 0.0
    %11217 = vmatpush1.msra.mxu0 0.0
    %11218 = vmatprep.subr.mxu0 0.0
    %11219 = vmatpush1.msra.mxu0 0.0
    %11220 = vmatprep.subr.mxu0 0.0
    %11221 = vmatpush1.msra.mxu0 0.0
    %11222 = vmatprep.subr.mxu0 0.0
    %11223 = vmatpush1.msra.mxu0 0.0
    %11224 = vmatprep.subr.mxu0 0.0
    %11225 = vmatpush1.msra.mxu0 0.0
    %11226 = vmatprep.subr.mxu0 0.0
    %11227 = vmatpush1.msra.mxu0 0.0
    %11228 = vmatprep.subr.mxu0 0.0
    %11229 = vmatpush1.msra.mxu0 0.0
    %11230 = vmatprep.subr.mxu0 0.0
    %11231 = vmatpush1.msra.mxu0 0.0
    %11232 = vmatprep.subr.mxu0 0.0
    %11233 = vmatpush1.msra.mxu0 0.0
    %11234 = vmatprep.mubr.f32.mxu0 0.0
    %11235 = vmatmul.mubr.f32.gmra.mrb[0].mxu0 %v11161
    %v11236 = vpop.f32.mrb[0].mxu0
    %v11237 = vadd.f32 %v11157, %v11236
    %v11238 = vpop.f32.mrb[0].mxu0
    %v11239 = vadd.f32 %v11157, %v11238
    %11240 = vdwg.mxu0
    %s11241 = sld [smem:[#allocation3]]
    %vm11242 = vcmp.ge.f32.partialorder %v11237, 0.0
    %vm11243 = vcmp.ge.f32.partialorder %v11239, 0.0
    %v11244 = vstv %s11241
    %v11245 = vmul.f32 %v11244, %v11237
    %v11246 = vmul.f32 %v11244, %v11239
    %v11247 = vsel %vm11242, %v11237, %v11245
    %v11248 = vsel %vm11243, %v11239, %v11246
    %v11249 = vld [vmem:[%s23] sm:$0x1]
    %v11250 = vld [vmem:[#allocation2] sm:$0x1]
    %11252 = vset.pattern.permute.xlu0 0
    %11253 = vperm.xlu0 %11252, %v11250
    %v11254 = vpop.permute.xlu0 %11253
    %v11256 = vlaneseq
    %v11257 = vshrl.u32 %v11256, 7
    %v11258 = vsub.s32 0, %v11257
    %v11259 = vrot.slane %v11254, %v11258
    %vm11260 = vcmask 15360
    %v11262 = vsel %vm11260, %v11249, 0
    %vm11264 = vcmask 1041408
    %v11266 = vsel %vm11264, %v11247, 0
    %v11269 = vsel %vm11264, %v11248, 0
    %11271 = vmatprep.subr.mxu0 %v11269
    %11272 = vmatpush1.msra.mxu0 %v11266
    %11273 = vmatprep.subr.mxu0 0.0
    %11274 = vmatpush1.msra.mxu0 0.0
    %11275 = vmatprep.subr.mxu0 0.0
    %11276 = vmatpush1.msra.mxu0 0.0
    %11277 = vmatprep.subr.mxu0 0.0
    %11278 = vmatpush1.msra.mxu0 0.0
    %11279 = vmatprep.subr.mxu0 0.0
    %11280 = vmatpush1.msra.mxu0 0.0
    %11281 = vmatprep.subr.mxu0 0.0
    %11282 = vmatpush1.msra.mxu0 0.0
    %11283 = vmatprep.subr.mxu0 0.0
    %11284 = vmatpush1.msra.mxu0 0.0
    %11285 = vmatprep.subr.mxu0 0.0
    %11286 = vmatpush1.msra.mxu0 0.0
    %11287 = vmatprep.subr.mxu0 0.0
    %11288 = vmatpush1.msra.mxu0 0.0
    %11289 = vmatprep.subr.mxu0 0.0
    %11290 = vmatpush1.msra.mxu0 0.0
    %11291 = vmatprep.subr.mxu0 0.0
    %11292 = vmatpush1.msra.mxu0 0.0
    %11293 = vmatprep.subr.mxu0 0.0
    %11294 = vmatpush1.msra.mxu0 0.0
    %11295 = vmatprep.subr.mxu0 0.0
    %11296 = vmatpush1.msra.mxu0 0.0
    %11297 = vmatprep.subr.mxu0 0.0
    %11298 = vmatpush1.msra.mxu0 0.0
    %11299 = vmatprep.subr.mxu0 0.0
    %11300 = vmatpush1.msra.mxu0 0.0
    %11301 = vmatprep.subr.mxu0 0.0
    %11302 = vmatpush1.msra.mxu0 0.0
    %11303 = vmatprep.subr.mxu0 0.0
    %11304 = vmatpush1.msra.mxu0 0.0
    %11305 = vmatprep.subr.mxu0 0.0
    %11306 = vmatpush1.msra.mxu0 0.0
    %11307 = vmatprep.subr.mxu0 0.0
    %11308 = vmatpush1.msra.mxu0 0.0
    %11309 = vmatprep.subr.mxu0 0.0
    %11310 = vmatpush1.msra.mxu0 0.0
    %11311 = vmatprep.subr.mxu0 0.0
    %11312 = vmatpush1.msra.mxu0 0.0
    %11313 = vmatprep.subr.mxu0 0.0
    %11314 = vmatpush1.msra.mxu0 0.0
    %11315 = vmatprep.subr.mxu0 0.0
    %11316 = vmatpush1.msra.mxu0 0.0
    %11317 = vmatprep.subr.mxu0 0.0
    %11318 = vmatpush1.msra.mxu0 0.0
    %11319 = vmatprep.subr.mxu0 0.0
    %11320 = vmatpush1.msra.mxu0 0.0
    %11321 = vmatprep.subr.mxu0 0.0
    %11322 = vmatpush1.msra.mxu0 0.0
    %11323 = vmatprep.subr.mxu0 0.0
    %11324 = vmatpush1.msra.mxu0 0.0
    %11325 = vmatprep.subr.mxu0 0.0
    %11326 = vmatpush1.msra.mxu0 0.0
    %11327 = vmatprep.subr.mxu0 0.0
    %11328 = vmatpush1.msra.mxu0 0.0
    %11329 = vmatprep.subr.mxu0 0.0
    %11330 = vmatpush1.msra.mxu0 0.0
    %11331 = vmatprep.subr.mxu0 0.0
    %11332 = vmatpush1.msra.mxu0 0.0
    %11333 = vmatprep.subr.mxu0 0.0
    %11334 = vmatpush1.msra.mxu0 0.0
    %11335 = vmatprep.mubr.f32.mxu0 0.0
    %11336 = vmatmul.mubr.f32.gmra.mrb[0].mxu0 %v11262
    %v11337 = vpop.f32.mrb[0].mxu0
    %v11338 = vadd.f32 %v11259, %v11337
    %v11339 = vpop.f32.mrb[0].mxu0
    %v11340 = vadd.f32 %v11259, %v11339
    %11341 = vdwg.mxu0
    %v11344 = vcombine.low %v11338, %v11340
    %v11346 = vunpack.c.l.s4 1966171168
    %v11347 = vunpack.c.0.s8 %v11346
    %v11348 = vlaneseq
    %v11349 = vshrl.u32 %v11348, 7
    %v11350 = vsub.s32 %v11347, %v11349
    %v11351 = vrot.slane %v11344, %v11350
    %v11353 = vunpack.c.l.s4 1966171168
    %v11354 = vunpack.c.0.s8 %v11353
    %v11355 = vlaneseq
    %v11356 = vshrl.u32 %v11355, 7
    %v11357 = vsub.s32 %v11354, %v11356
    %v11358 = vrot.slane %v11351, %v11357
    %v11360 = vlaneseq
    %vm11361 = vcmp.ge.s32.totalorder %v11360, 0
    %vm11362 = vcmp.lt.s32.totalorder %v11360, 256
    %vm11363 = vmand %vm11361, %vm11362
    %11364 = vst.msk [vmem:[%s26] sm:$0x3] %vm11363, %v11358
    // Predicated region
    $region146: #{e2f_forward.1} parent=1 // pred_check
      _
    $region147: #{e2f_forward.1} parent=1 // pred_check_branch
      %11366 = sbr.rel (0) target = $region149
    $region148: #{e2f_forward.1} parent=1 // pred_region
      _
    $region149: #{e2f_forward.1} parent=1 // pred_fallthru
      _
    // Predicated region
    $region150: #{e2f_forward.1} parent=1 // pred_check
      _
    $region151: #{e2f_forward.1} parent=1 // pred_check_branch
      %11368 = sbr.rel (0) target = $region153
    $region152: #{e2f_forward.1} parent=1 // pred_region
      _
    $region153: #{e2f_forward.1} parent=1 // pred_fallthru
      _
    %11369 = vsyncpa [#allocation5], 1
    %11370 = vsyncpa [#allocation7], 1
    %11371 = vsyncpa [#allocation10], 1
    %11372 = vsyncpa [#allocation13], 1
    %11373 = vsyncpa [#allocation16], 1
    %11374 = vsyncpa [#allocation19], 1

</llo_original>
